<compile_context>
chip_gen: v6e
topology: v6e:2x2x1
jax: 0.10.0
libtpu: 0.0.40
codegen_flags: <defaults>
</compile_context>

<pallas_src>
import jax
import jax.numpy as jnp
from jax.experimental import pallas as pl
from jax.experimental.pallas import tpu as pltpu


def _fill_im2col_same(src_ref, col_ref, C):
    """Fill a (N,H,W,9*C) im2col scratch for a 3x3 'same' conv.

    col_ref must already be zeroed (the zeros provide the 1-pixel halo).
    Tap t = dy*3 + dx occupies lane columns [t*C, (t+1)*C) and matches a
    weight matrix reshaped from HWIO (3,3,C,Cout) to (9*C, Cout).
    All slice bounds are static Python ints.
    """
    N, H, W, _ = src_ref.shape
    for dy in range(3):
        ys, ye = max(0, 1 - dy), min(H, H + 1 - dy)
        for dx in range(3):
            xs, xe = max(0, 1 - dx), min(W, W + 1 - dx)
            t = dy * 3 + dx
            col_ref[:, ys:ye, xs:xe, t * C:(t + 1) * C] = src_ref[
                :, ys + dy - 1:ye + dy - 1, xs + dx - 1:xe + dx - 1, :]


def _double_conv_kernel(x_ref, w1_ref, w2_ref, b2_ref, gamma_ref, beta_ref,
                        out_ref, col1_ref, y_ref, col2_ref):
    """Whole-array kernel (small shapes -> everything fits VMEM, no grid).

    x_ref    : (N, H, W, Cin)      f32   input (NHWC, unpadded)
    w1_ref   : (9*Cin, Cout)       bf16  conv1 weights (tap-major, HWIO-flattened)
    w2_ref   : (9*Cout, Cpad)      bf16  conv2 weights, out-channels zero-padded to Cpad
    b2_ref   : (1, Cpad)           f32   conv2 bias (zero-padded)
    gamma_ref: (1, Cout)           f32   BN scale
    beta_ref : (1, Cout)           f32   BN shift
    out_ref  : (N, H-2, W-2, Cpad) f32   lane-dense output (wrapper slices :Cout)
    col1_ref : (N, H, W, 9*Cin)    f32   scratch (im2col for conv1)
    y_ref    : (N, H, W, Cout)     f32   scratch (conv1+BN+LeakyReLU activations)
    col2_ref : (N, H, W, 9*Cout)   f32   scratch (im2col for conv2)
    """
    N, H, W, Cin = x_ref.shape
    Cout = y_ref.shape[-1]
    Cpad = out_ref.shape[-1]
    NHW = N * H * W

    # ---- conv1: 3x3 'same', no bias -> one (NHW, 9*Cin) x (9*Cin, Cout) matmul ----
    col1_ref[...] = jnp.zeros(col1_ref.shape, col1_ref.dtype)
    _fill_im2col_same(x_ref, col1_ref, Cin)
    patches1 = col1_ref[...].reshape(NHW, 9 * Cin).astype(jnp.bfloat16)
    y_pre = jnp.dot(patches1, w1_ref[...],
                    preferred_element_type=jnp.float32)          # (NHW, Cout) f32

    # ---- BatchNorm2d (training-mode batch stats, biased var), one-pass stats ----
    inv_cnt = 1.0 / float(NHW)
    mean = jnp.sum(y_pre, axis=0, keepdims=True) * inv_cnt        # (1, Cout)
    ex2 = jnp.sum(y_pre * y_pre, axis=0, keepdims=True) * inv_cnt
    var = jnp.maximum(ex2 - mean * mean, 0.0)
    scale = gamma_ref[...] * jax.lax.rsqrt(var + 1e-5)
    shift = beta_ref[...] - mean * scale
    y = y_pre * scale + shift
    # ---- LeakyReLU(0.2) ----
    y = jnp.where(y > 0, y, 0.2 * y)
    y_ref[...] = y.reshape(N, H, W, Cout)

    # ---- conv2: 3x3 VALID, with bias.  Computed as a 'same' conv on the full
    #      HxW grid (border results are garbage built from the zero halo) and
    #      the valid interior is sliced at the end; this keeps every reshape on
    #      sublane-aligned (multiple-of-8) shapes. ----
    col2_ref[...] = jnp.zeros(col2_ref.shape, col2_ref.dtype)
    _fill_im2col_same(y_ref, col2_ref, Cout)
    patches2 = col2_ref[...].reshape(NHW, 9 * Cout).astype(jnp.bfloat16)
    z = jnp.dot(patches2, w2_ref[...],
                preferred_element_type=jnp.float32) + b2_ref[...]  # (NHW, Cpad)
    # ---- final LeakyReLU(0.2) ----
    z = jnp.where(z > 0, z, 0.2 * z)
    out_ref[...] = z.reshape(N, H, W, Cpad)[:, 1:H - 1, 1:W - 1, :]


def double_conv2d_block(x_nchw, w1_oihw, w2_oihw, b2, gamma, beta):
    """Wrapper: NCHW in / NCHW out (PyTorch convention)."""
    N, Cin, H, W = x_nchw.shape
    Cout = w1_oihw.shape[0]
    Cpad = max(128, ((Cout + 127) // 128) * 128)   # lane-dense output channels
    Ho, Wo = H - 2, W - 2

    # Layout glue (NCHW -> NHWC).  The 'same' halo of conv1 is handled in-kernel,
    # so there is no wrapper-side jnp.pad / padded HBM copy of x anymore.
    x = jnp.transpose(x_nchw, (0, 2, 3, 1)).astype(jnp.float32)

    # Weights: OIHW -> HWIO -> (9*Cin, Cout) tap-major matrices, bf16 for the MXU.
    w1 = jnp.transpose(w1_oihw, (2, 3, 1, 0)).reshape(9 * Cin, Cout)
    w1 = w1.astype(jnp.bfloat16)
    w2 = jnp.transpose(w2_oihw, (2, 3, 1, 0)).reshape(9 * Cout, Cout)
    w2 = jnp.pad(w2, ((0, 0), (0, Cpad - Cout))).astype(jnp.bfloat16)
    b2p = jnp.pad(b2.astype(jnp.float32), (0, Cpad - Cout)).reshape(1, Cpad)

    flops = 2 * N * H * W * (9 * Cin) * Cout + 2 * N * H * W * (9 * Cout) * Cpad
    bytes_accessed = (N * H * W * Cin * 4 + w1.size * 2 + w2.size * 2
                      + Cpad * 4 + 2 * Cout * 4 + N * Ho * Wo * Cpad * 4)

    out_pad = pl.pallas_call(
        _double_conv_kernel,
        out_shape=jax.ShapeDtypeStruct((N, Ho, Wo, Cpad), jnp.float32),
        in_specs=[pl.BlockSpec(memory_space=pltpu.MemorySpace.VMEM)] * 6,
        out_specs=pl.BlockSpec(memory_space=pltpu.MemorySpace.VMEM),
        scratch_shapes=[
            pltpu.VMEM((N, H, W, 9 * Cin), jnp.float32),   # conv1 im2col
            pltpu.VMEM((N, H, W, Cout), jnp.float32),      # post-BN activations
            pltpu.VMEM((N, H, W, 9 * Cout), jnp.float32),  # conv2 im2col
        ],
        cost_estimate=pl.CostEstimate(
            flops=flops, transcendentals=Cout, bytes_accessed=bytes_accessed),
    )(x, w1, w2, b2p,
      gamma.reshape(1, Cout).astype(jnp.float32),
      beta.reshape(1, Cout).astype(jnp.float32))

    # Drop the lane padding, back to PyTorch NCHW.
    return jnp.transpose(out_pad[..., :Cout], (0, 3, 1, 2))


def _reference_forward(x_nchw, w1_oihw, w2_oihw, b2, gamma, beta):
    """Pure-JAX f32 reference (same NHWC math) for correctness check."""
    x = jnp.transpose(x_nchw, (0, 2, 3, 1)).astype(jnp.float32)
    w1 = jnp.transpose(w1_oihw, (2, 3, 1, 0)).astype(jnp.float32)
    w2 = jnp.transpose(w2_oihw, (2, 3, 1, 0)).astype(jnp.float32)
    dn = ("NHWC", "HWIO", "NHWC")

    y = jax.lax.conv_general_dilated(x, w1, (1, 1), ((1, 1), (1, 1)),
                                     dimension_numbers=dn)
    mean = jnp.mean(y, axis=(0, 1, 2))
    var = jnp.mean((y - mean) ** 2, axis=(0, 1, 2))
    y = (y - mean) * jax.lax.rsqrt(var + 1e-5) * gamma + beta
    y = jnp.where(y > 0, y, 0.2 * y)

    z = jax.lax.conv_general_dilated(y, w2, (1, 1), "VALID",
                                     dimension_numbers=dn) + b2
    z = jnp.where(z > 0, z, 0.2 * z)
    return jnp.transpose(z, (0, 3, 1, 2))


if __name__ == "__main__":
    key = jax.random.PRNGKey(0)
    k_x, k_w1, k_w2, k_b2, k_g, k_b = jax.random.split(key, 6)

    in_ch, out_ch = 4, 8
    N, H, W = 2, 16, 16

    x = jax.random.normal(k_x, (N, in_ch, H, W), jnp.float32)
    # Deterministic synthetic parameters (module __init__ shapes; not a checkpoint).
    w1 = 0.2 * jax.random.normal(k_w1, (out_ch, in_ch, 3, 3), jnp.float32)   # conv1 (OIHW)
    w2 = 0.1 * jax.random.normal(k_w2, (out_ch, out_ch, 3, 3), jnp.float32)  # conv2 (OIHW)
    b2 = 0.1 * jax.random.normal(k_b2, (out_ch,), jnp.float32)               # conv2 bias
    gamma = 1.0 + 0.1 * jax.random.normal(k_g, (out_ch,), jnp.float32)       # BN weight
    beta = 0.1 * jax.random.normal(k_b, (out_ch,), jnp.float32)              # BN bias

    fwd = jax.jit(double_conv2d_block)
    out = fwd(x, w1, w2, b2, gamma, beta)
    out = jax.block_until_ready(out)

    ref = _reference_forward(x, w1, w2, b2, gamma, beta)
    assert out.shape == (N, out_ch, H - 2, W - 2), out.shape
    # bf16 matmul operands (f32 accumulation) -> tolerance loosened vs f32 reference.
    assert jnp.allclose(out, ref, rtol=3e-2, atol=3e-2), \
        float(jnp.max(jnp.abs(out - ref)))

    print("KERNEL_OK")
</pallas_src>

<mosaic_0001>
module attributes {stable_mosaic.version = 11 : i64} {
  func.func @_double_conv_kernel(%arg0: memref<2x16x16x4xf32, #tpu.memory_space<vmem>>, %arg1: memref<36x8xbf16, #tpu.memory_space<vmem>>, %arg2: memref<72x128xbf16, #tpu.memory_space<vmem>>, %arg3: memref<1x128xf32, #tpu.memory_space<vmem>>, %arg4: memref<1x8xf32, #tpu.memory_space<vmem>>, %arg5: memref<1x8xf32, #tpu.memory_space<vmem>>, %arg6: memref<2x14x14x128xf32, #tpu.memory_space<vmem>>, %arg7: memref<2x16x16x36xf32, #tpu.memory_space<vmem>>, %arg8: memref<2x16x16x8xf32, #tpu.memory_space<vmem>>, %arg9: memref<2x16x16x72xf32, #tpu.memory_space<vmem>>) attributes {dimension_semantics = [], scalar_prefetch = 0 : i64, scratch_operands = 3 : i64, tpu.core_type = #tpu.core_type<tc>} {
    %cst = arith.constant 0.000000e+00 : f32
    %0 = vector.broadcast %cst : f32 to vector<2x16x16x36xf32>
    %c0 = arith.constant 0 : index
    %c0_0 = arith.constant 0 : index
    %c0_1 = arith.constant 0 : index
    %c0_2 = arith.constant 0 : index
    %1 = vector.load %arg7[%c0, %c0_0, %c0_1, %c0_2] : memref<2x16x16x36xf32, #tpu.memory_space<vmem>>, vector<2x16x16x36xf32>
    tpu.vector_store %arg7[%c0, %c0_0, %c0_1, %c0_2], %0 {strides = array<i32>} : memref<2x16x16x36xf32, #tpu.memory_space<vmem>>, vector<2x16x16x36xf32>,
    %c0_3 = arith.constant 0 : index
    %c0_4 = arith.constant 0 : index
    %c0_5 = arith.constant 0 : index
    %c0_6 = arith.constant 0 : index
    %2 = vector.load %arg0[%c0_3, %c0_4, %c0_5, %c0_6] : memref<2x16x16x4xf32, #tpu.memory_space<vmem>>, vector<2x15x15x4xf32>
    %c0_7 = arith.constant 0 : index
    %c1 = arith.constant 1 : index
    %c1_8 = arith.constant 1 : index
    %c0_9 = arith.constant 0 : index
    %3 = vector.load %arg7[%c0_7, %c1, %c1_8, %c0_9] : memref<2x16x16x36xf32, #tpu.memory_space<vmem>>, vector<2x15x15x4xf32>
    tpu.vector_store %arg7[%c0_7, %c1, %c1_8, %c0_9], %2 {strides = array<i32>} : memref<2x16x16x36xf32, #tpu.memory_space<vmem>>, vector<2x15x15x4xf32>,
    %c0_10 = arith.constant 0 : index
    %c0_11 = arith.constant 0 : index
    %c0_12 = arith.constant 0 : index
    %c0_13 = arith.constant 0 : index
    %4 = vector.load %arg0[%c0_10, %c0_11, %c0_12, %c0_13] : memref<2x16x16x4xf32, #tpu.memory_space<vmem>>, vector<2x15x16x4xf32>
    %c0_14 = arith.constant 0 : index
    %c1_15 = arith.constant 1 : index
    %c0_16 = arith.constant 0 : index
    %c4 = arith.constant 4 : index
    %5 = vector.load %arg7[%c0_14, %c1_15, %c0_16, %c4] : memref<2x16x16x36xf32, #tpu.memory_space<vmem>>, vector<2x15x16x4xf32>
    tpu.vector_store %arg7[%c0_14, %c1_15, %c0_16, %c4], %4 {strides = array<i32>} : memref<2x16x16x36xf32, #tpu.memory_space<vmem>>, vector<2x15x16x4xf32>,
    %c0_17 = arith.constant 0 : index
    %c0_18 = arith.constant 0 : index
    %c1_19 = arith.constant 1 : index
    %c0_20 = arith.constant 0 : index
    %6 = vector.load %arg0[%c0_17, %c0_18, %c1_19, %c0_20] : memref<2x16x16x4xf32, #tpu.memory_space<vmem>>, vector<2x15x15x4xf32>
    %c0_21 = arith.constant 0 : index
    %c1_22 = arith.constant 1 : index
    %c0_23 = arith.constant 0 : index
    %c8 = arith.constant 8 : index
    %7 = vector.load %arg7[%c0_21, %c1_22, %c0_23, %c8] : memref<2x16x16x36xf32, #tpu.memory_space<vmem>>, vector<2x15x15x4xf32>
    tpu.vector_store %arg7[%c0_21, %c1_22, %c0_23, %c8], %6 {strides = array<i32>} : memref<2x16x16x36xf32, #tpu.memory_space<vmem>>, vector<2x15x15x4xf32>,
    %c0_24 = arith.constant 0 : index
    %c0_25 = arith.constant 0 : index
    %c0_26 = arith.constant 0 : index
    %c0_27 = arith.constant 0 : index
    %8 = vector.load %arg0[%c0_24, %c0_25, %c0_26, %c0_27] : memref<2x16x16x4xf32, #tpu.memory_space<vmem>>, vector<2x16x15x4xf32>
    %c0_28 = arith.constant 0 : index
    %c0_29 = arith.constant 0 : index
    %c1_30 = arith.constant 1 : index
    %c12 = arith.constant 12 : index
    %9 = vector.load %arg7[%c0_28, %c0_29, %c1_30, %c12] : memref<2x16x16x36xf32, #tpu.memory_space<vmem>>, vector<2x16x15x4xf32>
    tpu.vector_store %arg7[%c0_28, %c0_29, %c1_30, %c12], %8 {strides = array<i32>} : memref<2x16x16x36xf32, #tpu.memory_space<vmem>>, vector<2x16x15x4xf32>,
    %c0_31 = arith.constant 0 : index
    %c0_32 = arith.constant 0 : index
    %c0_33 = arith.constant 0 : index
    %c0_34 = arith.constant 0 : index
    %10 = vector.load %arg0[%c0_31, %c0_32, %c0_33, %c0_34] : memref<2x16x16x4xf32, #tpu.memory_space<vmem>>, vector<2x16x16x4xf32>
    %c0_35 = arith.constant 0 : index
    %c0_36 = arith.constant 0 : index
    %c0_37 = arith.constant 0 : index
    %c16 = arith.constant 16 : index
    %11 = vector.load %arg7[%c0_35, %c0_36, %c0_37, %c16] : memref<2x16x16x36xf32, #tpu.memory_space<vmem>>, vector<2x16x16x4xf32>
    tpu.vector_store %arg7[%c0_35, %c0_36, %c0_37, %c16], %10 {strides = array<i32>} : memref<2x16x16x36xf32, #tpu.memory_space<vmem>>, vector<2x16x16x4xf32>,
    %c0_38 = arith.constant 0 : index
    %c0_39 = arith.constant 0 : index
    %c1_40 = arith.constant 1 : index
    %c0_41 = arith.constant 0 : index
    %12 = vector.load %arg0[%c0_38, %c0_39, %c1_40, %c0_41] : memref<2x16x16x4xf32, #tpu.memory_space<vmem>>, vector<2x16x15x4xf32>
    %c0_42 = arith.constant 0 : index
    %c0_43 = arith.constant 0 : index
    %c0_44 = arith.constant 0 : index
    %c20 = arith.constant 20 : index
    %13 = vector.load %arg7[%c0_42, %c0_43, %c0_44, %c20] : memref<2x16x16x36xf32, #tpu.memory_space<vmem>>, vector<2x16x15x4xf32>
    tpu.vector_store %arg7[%c0_42, %c0_43, %c0_44, %c20], %12 {strides = array<i32>} : memref<2x16x16x36xf32, #tpu.memory_space<vmem>>, vector<2x16x15x4xf32>,
    %c0_45 = arith.constant 0 : index
    %c1_46 = arith.constant 1 : index
    %c0_47 = arith.constant 0 : index
    %c0_48 = arith.constant 0 : index
    %14 = vector.load %arg0[%c0_45, %c1_46, %c0_47, %c0_48] : memref<2x16x16x4xf32, #tpu.memory_space<vmem>>, vector<2x15x15x4xf32>
    %c0_49 = arith.constant 0 : index
    %c0_50 = arith.constant 0 : index
    %c1_51 = arith.constant 1 : index
    %c24 = arith.constant 24 : index
    %15 = vector.load %arg7[%c0_49, %c0_50, %c1_51, %c24] : memref<2x16x16x36xf32, #tpu.memory_space<vmem>>, vector<2x15x15x4xf32>
    tpu.vector_store %arg7[%c0_49, %c0_50, %c1_51, %c24], %14 {strides = array<i32>} : memref<2x16x16x36xf32, #tpu.memory_space<vmem>>, vector<2x15x15x4xf32>,
    %c0_52 = arith.constant 0 : index
    %c1_53 = arith.constant 1 : index
    %c0_54 = arith.constant 0 : index
    %c0_55 = arith.constant 0 : index
    %16 = vector.load %arg0[%c0_52, %c1_53, %c0_54, %c0_55] : memref<2x16x16x4xf32, #tpu.memory_space<vmem>>, vector<2x15x16x4xf32>
    %c0_56 = arith.constant 0 : index
    %c0_57 = arith.constant 0 : index
    %c0_58 = arith.constant 0 : index
    %c28 = arith.constant 28 : index
    %17 = vector.load %arg7[%c0_56, %c0_57, %c0_58, %c28] : memref<2x16x16x36xf32, #tpu.memory_space<vmem>>, vector<2x15x16x4xf32>
    tpu.vector_store %arg7[%c0_56, %c0_57, %c0_58, %c28], %16 {strides = array<i32>} : memref<2x16x16x36xf32, #tpu.memory_space<vmem>>, vector<2x15x16x4xf32>,
    %c0_59 = arith.constant 0 : index
    %c1_60 = arith.constant 1 : index
    %c1_61 = arith.constant 1 : index
    %c0_62 = arith.constant 0 : index
    %18 = vector.load %arg0[%c0_59, %c1_60, %c1_61, %c0_62] : memref<2x16x16x4xf32, #tpu.memory_space<vmem>>, vector<2x15x15x4xf32>
    %c0_63 = arith.constant 0 : index
    %c0_64 = arith.constant 0 : index
    %c0_65 = arith.constant 0 : index
    %c32 = arith.constant 32 : index
    %19 = vector.load %arg7[%c0_63, %c0_64, %c0_65, %c32] : memref<2x16x16x36xf32, #tpu.memory_space<vmem>>, vector<2x15x15x4xf32>
    tpu.vector_store %arg7[%c0_63, %c0_64, %c0_65, %c32], %18 {strides = array<i32>} : memref<2x16x16x36xf32, #tpu.memory_space<vmem>>, vector<2x15x15x4xf32>,
    %c0_66 = arith.constant 0 : index
    %c0_67 = arith.constant 0 : index
    %c0_68 = arith.constant 0 : index
    %c0_69 = arith.constant 0 : index
    %20 = vector.load %arg7[%c0_66, %c0_67, %c0_68, %c0_69] : memref<2x16x16x36xf32, #tpu.memory_space<vmem>>, vector<2x16x16x36xf32>
    %21 = vector.shape_cast %20 : vector<2x16x16x36xf32> to vector<512x36xf32>
    %22 = arith.truncf %21 : vector<512x36xf32> to vector<512x36xbf16>
    %c0_70 = arith.constant 0 : index
    %c0_71 = arith.constant 0 : index
    %23 = vector.load %arg1[%c0_70, %c0_71] : memref<36x8xbf16, #tpu.memory_space<vmem>>, vector<36x8xbf16>
    %cst_72 = arith.constant dense<0.000000e+00> : vector<512x8xf32>
    %24 = tpu.matmul %22, %23, %cst_72 {dimension_numbers = #tpu.dot_dimension_numbers<[1], [0], [0], [1], [0, 0, 1, 1], [], []>} : vector<512x36xbf16>, vector<36x8xbf16>, vector<512x8xf32> -> vector<512x8xf32>
    %cst_73 = arith.constant dense<0.000000e+00> : vector<8xf32>
    %25 = vector.multi_reduction <add>, %24, %cst_73 [0] : vector<512x8xf32> to vector<8xf32>
    %26 = vector.shape_cast %25 : vector<8xf32> to vector<1x8xf32>
    %cst_74 = arith.constant 0.001953125 : f32
    %27 = vector.broadcast %cst_74 : f32 to vector<1x8xf32>
    %28 = arith.mulf %26, %27 : vector<1x8xf32>
    %29 = arith.mulf %24, %24 : vector<512x8xf32>
    %cst_75 = arith.constant dense<0.000000e+00> : vector<8xf32>
    %30 = vector.multi_reduction <add>, %29, %cst_75 [0] : vector<512x8xf32> to vector<8xf32>
    %31 = vector.shape_cast %30 : vector<8xf32> to vector<1x8xf32>
    %cst_76 = arith.constant 0.001953125 : f32
    %32 = vector.broadcast %cst_76 : f32 to vector<1x8xf32>
    %33 = arith.mulf %31, %32 : vector<1x8xf32>
    %34 = arith.mulf %28, %28 : vector<1x8xf32>
    %35 = arith.subf %33, %34 : vector<1x8xf32>
    %cst_77 = arith.constant 0.000000e+00 : f32
    %36 = vector.broadcast %cst_77 : f32 to vector<1x8xf32>
    %37 = arith.maximumf %35, %36 : vector<1x8xf32>
    %c0_78 = arith.constant 0 : index
    %c0_79 = arith.constant 0 : index
    %38 = vector.load %arg4[%c0_78, %c0_79] : memref<1x8xf32, #tpu.memory_space<vmem>>, vector<1x8xf32>
    %cst_80 = arith.constant 9.99999974E-6 : f32
    %39 = vector.broadcast %cst_80 : f32 to vector<1x8xf32>
    %40 = arith.addf %37, %39 : vector<1x8xf32>
    %41 = math.rsqrt %40 : vector<1x8xf32>
    %42 = arith.mulf %38, %41 : vector<1x8xf32>
    %c0_81 = arith.constant 0 : index
    %c0_82 = arith.constant 0 : index
    %43 = vector.load %arg5[%c0_81, %c0_82] : memref<1x8xf32, #tpu.memory_space<vmem>>, vector<1x8xf32>
    %44 = arith.mulf %28, %42 : vector<1x8xf32>
    %45 = arith.subf %43, %44 : vector<1x8xf32>
    %46 = vector.broadcast %42 : vector<1x8xf32> to vector<512x8xf32>
    %47 = arith.mulf %24, %46 : vector<512x8xf32>
    %48 = vector.broadcast %45 : vector<1x8xf32> to vector<512x8xf32>
    %49 = arith.addf %47, %48 : vector<512x8xf32>
    %cst_83 = arith.constant 0.000000e+00 : f32
    %50 = vector.broadcast %cst_83 : f32 to vector<512x8xf32>
    %51 = arith.cmpf ogt, %49, %50 : vector<512x8xf32>
    %cst_84 = arith.constant 2.000000e-01 : f32
    %52 = vector.broadcast %cst_84 : f32 to vector<512x8xf32>
    %53 = arith.mulf %52, %49 : vector<512x8xf32>
    %54 = arith.select %51, %49, %53 : vector<512x8xi1>, vector<512x8xf32>
    %55 = vector.shape_cast %54 : vector<512x8xf32> to vector<2x16x16x8xf32>
    %c0_85 = arith.constant 0 : index
    %c0_86 = arith.constant 0 : index
    %c0_87 = arith.constant 0 : index
    %c0_88 = arith.constant 0 : index
    %56 = vector.load %arg8[%c0_85, %c0_86, %c0_87, %c0_88] : memref<2x16x16x8xf32, #tpu.memory_space<vmem>>, vector<2x16x16x8xf32>
    tpu.vector_store %arg8[%c0_85, %c0_86, %c0_87, %c0_88], %55 {strides = array<i32>} : memref<2x16x16x8xf32, #tpu.memory_space<vmem>>, vector<2x16x16x8xf32>,
    %cst_89 = arith.constant 0.000000e+00 : f32
    %57 = vector.broadcast %cst_89 : f32 to vector<2x16x16x72xf32>
    %c0_90 = arith.constant 0 : index
    %c0_91 = arith.constant 0 : index
    %c0_92 = arith.constant 0 : index
    %c0_93 = arith.constant 0 : index
    %58 = vector.load %arg9[%c0_90, %c0_91, %c0_92, %c0_93] : memref<2x16x16x72xf32, #tpu.memory_space<vmem>>, vector<2x16x16x72xf32>
    tpu.vector_store %arg9[%c0_90, %c0_91, %c0_92, %c0_93], %57 {strides = array<i32>} : memref<2x16x16x72xf32, #tpu.memory_space<vmem>>, vector<2x16x16x72xf32>,
    %c0_94 = arith.constant 0 : index
    %c0_95 = arith.constant 0 : index
    %c0_96 = arith.constant 0 : index
    %c0_97 = arith.constant 0 : index
    %59 = vector.load %arg8[%c0_94, %c0_95, %c0_96, %c0_97] : memref<2x16x16x8xf32, #tpu.memory_space<vmem>>, vector<2x15x15x8xf32>
    %c0_98 = arith.constant 0 : index
    %c1_99 = arith.constant 1 : index
    %c1_100 = arith.constant 1 : index
    %c0_101 = arith.constant 0 : index
    %60 = vector.load %arg9[%c0_98, %c1_99, %c1_100, %c0_101] : memref<2x16x16x72xf32, #tpu.memory_space<vmem>>, vector<2x15x15x8xf32>
    tpu.vector_store %arg9[%c0_98, %c1_99, %c1_100, %c0_101], %59 {strides = array<i32>} : memref<2x16x16x72xf32, #tpu.memory_space<vmem>>, vector<2x15x15x8xf32>,
    %c0_102 = arith.constant 0 : index
    %c0_103 = arith.constant 0 : index
    %c0_104 = arith.constant 0 : index
    %c0_105 = arith.constant 0 : index
    %61 = vector.load %arg8[%c0_102, %c0_103, %c0_104, %c0_105] : memref<2x16x16x8xf32, #tpu.memory_space<vmem>>, vector<2x15x16x8xf32>
    %c0_106 = arith.constant 0 : index
    %c1_107 = arith.constant 1 : index
    %c0_108 = arith.constant 0 : index
    %c8_109 = arith.constant 8 : index
    %62 = vector.load %arg9[%c0_106, %c1_107, %c0_108, %c8_109] : memref<2x16x16x72xf32, #tpu.memory_space<vmem>>, vector<2x15x16x8xf32>
    tpu.vector_store %arg9[%c0_106, %c1_107, %c0_108, %c8_109], %61 {strides = array<i32>} : memref<2x16x16x72xf32, #tpu.memory_space<vmem>>, vector<2x15x16x8xf32>,
    %c0_110 = arith.constant 0 : index
    %c0_111 = arith.constant 0 : index
    %c1_112 = arith.constant 1 : index
    %c0_113 = arith.constant 0 : index
    %63 = vector.load %arg8[%c0_110, %c0_111, %c1_112, %c0_113] : memref<2x16x16x8xf32, #tpu.memory_space<vmem>>, vector<2x15x15x8xf32>
    %c0_114 = arith.constant 0 : index
    %c1_115 = arith.constant 1 : index
    %c0_116 = arith.constant 0 : index
    %c16_117 = arith.constant 16 : index
    %64 = vector.load %arg9[%c0_114, %c1_115, %c0_116, %c16_117] : memref<2x16x16x72xf32, #tpu.memory_space<vmem>>, vector<2x15x15x8xf32>
    tpu.vector_store %arg9[%c0_114, %c1_115, %c0_116, %c16_117], %63 {strides = array<i32>} : memref<2x16x16x72xf32, #tpu.memory_space<vmem>>, vector<2x15x15x8xf32>,
    %c0_118 = arith.constant 0 : index
    %c0_119 = arith.constant 0 : index
    %c0_120 = arith.constant 0 : index
    %c0_121 = arith.constant 0 : index
    %65 = vector.load %arg8[%c0_118, %c0_119, %c0_120, %c0_121] : memref<2x16x16x8xf32, #tpu.memory_space<vmem>>, vector<2x16x15x8xf32>
    %c0_122 = arith.constant 0 : index
    %c0_123 = arith.constant 0 : index
    %c1_124 = arith.constant 1 : index
    %c24_125 = arith.constant 24 : index
    %66 = vector.load %arg9[%c0_122, %c0_123, %c1_124, %c24_125] : memref<2x16x16x72xf32, #tpu.memory_space<vmem>>, vector<2x16x15x8xf32>
    tpu.vector_store %arg9[%c0_122, %c0_123, %c1_124, %c24_125], %65 {strides = array<i32>} : memref<2x16x16x72xf32, #tpu.memory_space<vmem>>, vector<2x16x15x8xf32>,
    %c0_126 = arith.constant 0 : index
    %c0_127 = arith.constant 0 : index
    %c0_128 = arith.constant 0 : index
    %c0_129 = arith.constant 0 : index
    %67 = vector.load %arg8[%c0_126, %c0_127, %c0_128, %c0_129] : memref<2x16x16x8xf32, #tpu.memory_space<vmem>>, vector<2x16x16x8xf32>
    %c0_130 = arith.constant 0 : index
    %c0_131 = arith.constant 0 : index
    %c0_132 = arith.constant 0 : index
    %c32_133 = arith.constant 32 : index
    %68 = vector.load %arg9[%c0_130, %c0_131, %c0_132, %c32_133] : memref<2x16x16x72xf32, #tpu.memory_space<vmem>>, vector<2x16x16x8xf32>
    tpu.vector_store %arg9[%c0_130, %c0_131, %c0_132, %c32_133], %67 {strides = array<i32>} : memref<2x16x16x72xf32, #tpu.memory_space<vmem>>, vector<2x16x16x8xf32>,
    %c0_134 = arith.constant 0 : index
    %c0_135 = arith.constant 0 : index
    %c1_136 = arith.constant 1 : index
    %c0_137 = arith.constant 0 : index
    %69 = vector.load %arg8[%c0_134, %c0_135, %c1_136, %c0_137] : memref<2x16x16x8xf32, #tpu.memory_space<vmem>>, vector<2x16x15x8xf32>
    %c0_138 = arith.constant 0 : index
    %c0_139 = arith.constant 0 : index
    %c0_140 = arith.constant 0 : index
    %c40 = arith.constant 40 : index
    %70 = vector.load %arg9[%c0_138, %c0_139, %c0_140, %c40] : memref<2x16x16x72xf32, #tpu.memory_space<vmem>>, vector<2x16x15x8xf32>
    tpu.vector_store %arg9[%c0_138, %c0_139, %c0_140, %c40], %69 {strides = array<i32>} : memref<2x16x16x72xf32, #tpu.memory_space<vmem>>, vector<2x16x15x8xf32>,
    %c0_141 = arith.constant 0 : index
    %c1_142 = arith.constant 1 : index
    %c0_143 = arith.constant 0 : index
    %c0_144 = arith.constant 0 : index
    %71 = vector.load %arg8[%c0_141, %c1_142, %c0_143, %c0_144] : memref<2x16x16x8xf32, #tpu.memory_space<vmem>>, vector<2x15x15x8xf32>
    %c0_145 = arith.constant 0 : index
    %c0_146 = arith.constant 0 : index
    %c1_147 = arith.constant 1 : index
    %c48 = arith.constant 48 : index
    %72 = vector.load %arg9[%c0_145, %c0_146, %c1_147, %c48] : memref<2x16x16x72xf32, #tpu.memory_space<vmem>>, vector<2x15x15x8xf32>
    tpu.vector_store %arg9[%c0_145, %c0_146, %c1_147, %c48], %71 {strides = array<i32>} : memref<2x16x16x72xf32, #tpu.memory_space<vmem>>, vector<2x15x15x8xf32>,
    %c0_148 = arith.constant 0 : index
    %c1_149 = arith.constant 1 : index
    %c0_150 = arith.constant 0 : index
    %c0_151 = arith.constant 0 : index
    %73 = vector.load %arg8[%c0_148, %c1_149, %c0_150, %c0_151] : memref<2x16x16x8xf32, #tpu.memory_space<vmem>>, vector<2x15x16x8xf32>
    %c0_152 = arith.constant 0 : index
    %c0_153 = arith.constant 0 : index
    %c0_154 = arith.constant 0 : index
    %c56 = arith.constant 56 : index
    %74 = vector.load %arg9[%c0_152, %c0_153, %c0_154, %c56] : memref<2x16x16x72xf32, #tpu.memory_space<vmem>>, vector<2x15x16x8xf32>
    tpu.vector_store %arg9[%c0_152, %c0_153, %c0_154, %c56], %73 {strides = array<i32>} : memref<2x16x16x72xf32, #tpu.memory_space<vmem>>, vector<2x15x16x8xf32>,
    %c0_155 = arith.constant 0 : index
    %c1_156 = arith.constant 1 : index
    %c1_157 = arith.constant 1 : index
    %c0_158 = arith.constant 0 : index
    %75 = vector.load %arg8[%c0_155, %c1_156, %c1_157, %c0_158] : memref<2x16x16x8xf32, #tpu.memory_space<vmem>>, vector<2x15x15x8xf32>
    %c0_159 = arith.constant 0 : index
    %c0_160 = arith.constant 0 : index
    %c0_161 = arith.constant 0 : index
    %c64 = arith.constant 64 : index
    %76 = vector.load %arg9[%c0_159, %c0_160, %c0_161, %c64] : memref<2x16x16x72xf32, #tpu.memory_space<vmem>>, vector<2x15x15x8xf32>
    tpu.vector_store %arg9[%c0_159, %c0_160, %c0_161, %c64], %75 {strides = array<i32>} : memref<2x16x16x72xf32, #tpu.memory_space<vmem>>, vector<2x15x15x8xf32>,
    %c0_162 = arith.constant 0 : index
    %c0_163 = arith.constant 0 : index
    %c0_164 = arith.constant 0 : index
    %c0_165 = arith.constant 0 : index
    %77 = vector.load %arg9[%c0_162, %c0_163, %c0_164, %c0_165] : memref<2x16x16x72xf32, #tpu.memory_space<vmem>>, vector<2x16x16x72xf32>
    %78 = vector.shape_cast %77 : vector<2x16x16x72xf32> to vector<512x72xf32>
    %79 = arith.truncf %78 : vector<512x72xf32> to vector<512x72xbf16>
    %c0_166 = arith.constant 0 : index
    %c0_167 = arith.constant 0 : index
    %80 = vector.load %arg2[%c0_166, %c0_167] : memref<72x128xbf16, #tpu.memory_space<vmem>>, vector<72x128xbf16>
    %cst_168 = arith.constant dense<0.000000e+00> : vector<512x128xf32>
    %81 = tpu.matmul %79, %80, %cst_168 {dimension_numbers = #tpu.dot_dimension_numbers<[1], [0], [0], [1], [0, 0, 1, 1], [], []>} : vector<512x72xbf16>, vector<72x128xbf16>, vector<512x128xf32> -> vector<512x128xf32>
    %c0_169 = arith.constant 0 : index
    %c0_170 = arith.constant 0 : index
    %82 = vector.load %arg3[%c0_169, %c0_170] : memref<1x128xf32, #tpu.memory_space<vmem>>, vector<1x128xf32>
    %83 = vector.broadcast %82 : vector<1x128xf32> to vector<512x128xf32>
    %84 = arith.addf %81, %83 : vector<512x128xf32>
    %cst_171 = arith.constant 0.000000e+00 : f32
    %85 = vector.broadcast %cst_171 : f32 to vector<512x128xf32>
    %86 = arith.cmpf ogt, %84, %85 : vector<512x128xf32>
    %cst_172 = arith.constant 2.000000e-01 : f32
    %87 = vector.broadcast %cst_172 : f32 to vector<512x128xf32>
    %88 = arith.mulf %87, %84 : vector<512x128xf32>
    %89 = arith.select %86, %84, %88 : vector<512x128xi1>, vector<512x128xf32>
    %90 = vector.shape_cast %89 : vector<512x128xf32> to vector<2x16x16x128xf32>
    %91 = vector.extract_strided_slice %90 {offsets = [0, 1, 1, 0], sizes = [2, 14, 14, 128], strides = [1, 1, 1, 1]} : vector<2x16x16x128xf32> to vector<2x14x14x128xf32>
    %c0_173 = arith.constant 0 : index
    %c0_174 = arith.constant 0 : index
    %c0_175 = arith.constant 0 : index
    %c0_176 = arith.constant 0 : index
    %92 = vector.load %arg6[%c0_173, %c0_174, %c0_175, %c0_176] : memref<2x14x14x128xf32, #tpu.memory_space<vmem>>, vector<2x14x14x128xf32>
    tpu.vector_store %arg6[%c0_173, %c0_174, %c0_175, %c0_176], %91 {strides = array<i32>} : memref<2x14x14x128xf32, #tpu.memory_space<vmem>>, vector<2x14x14x128xf32>,
    return
  }
}

</mosaic_0001>

<llo_original>
// kernel: double_conv2d_block.1
$region0: #{double_conv2d_block.1}
  #allocation0 [shape = 'u32[]', space=smem, size = 0x4, offset = 0x4, fixed_abs, tag = 'smem constant byte address 0x4 - core index']
  #allocation1 [shape = 'u32[144,128]{1,0:T(1,128)}', space=vmem, size = 0x12000, scoped, tag = 'internal scratch']
  #allocation2 [shape = 'f32[2,16,16,36]{3,2,1,0:T(8,128)}', space=vmem, size = 0x40000, scoped, tag = 'scratch operand']
  #allocation3 [shape = 'f32[2,16,16,8]{3,2,1,0:T(8,128)}', space=vmem, size = 0x40000, scoped, tag = 'scratch operand']
  #allocation4 [shape = 'f32[2,16,16,72]{3,2,1,0:T(8,128)}', space=vmem, size = 0x40000, scoped, tag = 'scratch operand']
  %s0 = inlined_call_operand.vmem [shape: f32[2,16,16,4], index: 0, kind: input, shape index: {}]
  %s1 = inlined_call_operand.vmem [shape: bf16[36,8], index: 1, kind: input, shape index: {}]
  %s2 = inlined_call_operand.vmem [shape: bf16[72,128], index: 2, kind: input, shape index: {}]
  %s3 = inlined_call_operand.vmem [shape: f32[1,128], index: 3, kind: input, shape index: {}]
  %s4 = inlined_call_operand.vmem [shape: f32[1,8], index: 4, kind: input, shape index: {}]
  %s5 = inlined_call_operand.vmem [shape: f32[1,8], index: 5, kind: input, shape index: {}]
  %s6 = inlined_call_operand.vmem [shape: f32[2,14,14,128], index: 6, kind: output, shape index: {}]
  %s7 = sld [smem:[#allocation0]]
  $region34: #{double_conv2d_block.1} parent=0
    _
  %s9 = ssub.s32 1, %s7
  %s10 = scalar_select 0, %s9, %s7
  // Predicated region
  $region2: #{double_conv2d_block.1} parent=0 // pred_check
    _
  $region3: #{double_conv2d_block.1} parent=0 // pred_check_branch
    %12 = sbr.rel (0) target = $region5
  $region4: #{double_conv2d_block.1} parent=0 // pred_region
    _
  $region5: #{double_conv2d_block.1} parent=0 // pred_fallthru
    _
  // Predicated region
  $region6: #{double_conv2d_block.1} parent=0 // pred_check
    _
  $region7: #{double_conv2d_block.1} parent=0 // pred_check_branch
    %14 = sbr.rel (0) target = $region9
  $region8: #{double_conv2d_block.1} parent=0 // pred_region
    _
  $region9: #{double_conv2d_block.1} parent=0 // pred_fallthru
    _
  // Predicated region
  $region10: #{double_conv2d_block.1} parent=0 // pred_check
    _
  $region11: #{double_conv2d_block.1} parent=0 // pred_check_branch
    %16 = sbr.rel (0) target = $region13
  $region12: #{double_conv2d_block.1} parent=0 // pred_region
    _
  $region13: #{double_conv2d_block.1} parent=0 // pred_fallthru
    _
  // Predicated region
  $region14: #{double_conv2d_block.1} parent=0 // pred_check
    _
  $region15: #{double_conv2d_block.1} parent=0 // pred_check_branch
    %18 = sbr.rel (0) target = $region17
  $region16: #{double_conv2d_block.1} parent=0 // pred_region
    _
  $region17: #{double_conv2d_block.1} parent=0 // pred_fallthru
    _
  // Predicated region
  $region18: #{double_conv2d_block.1} parent=0 // pred_check
    _
  $region19: #{double_conv2d_block.1} parent=0 // pred_check_branch
    %20 = sbr.rel (0) target = $region21
  $region20: #{double_conv2d_block.1} parent=0 // pred_region
    _
  $region21: #{double_conv2d_block.1} parent=0 // pred_fallthru
    _
  // Predicated region
  $region22: #{double_conv2d_block.1} parent=0 // pred_check
    _
  $region23: #{double_conv2d_block.1} parent=0 // pred_check_branch
    %22 = sbr.rel (0) target = $region25
  $region24: #{double_conv2d_block.1} parent=0 // pred_region
    _
  $region25: #{double_conv2d_block.1} parent=0 // pred_fallthru
    _
  %vm24 = vcmask 293888
  %25 = vst.msk [vmem:[#allocation2] sm:$0xff] %vm24, 0.0
  %26 = vst.msk [vmem:[#allocation2 + $0x8] sm:$0xff] %vm24, 0.0
  %27 = vst.msk [vmem:[#allocation2 + $0x10] sm:$0xff] %vm24, 0.0
  %28 = vst.msk [vmem:[#allocation2 + $0x18] sm:$0xff] %vm24, 0.0
  %29 = vst.msk [vmem:[#allocation2 + $0x20] sm:$0xff] %vm24, 0.0
  %30 = vst.msk [vmem:[#allocation2 + $0x28] sm:$0xff] %vm24, 0.0
  %31 = vst.msk [vmem:[#allocation2 + $0x30] sm:$0xff] %vm24, 0.0
  %32 = vst.msk [vmem:[#allocation2 + $0x38] sm:$0xff] %vm24, 0.0
  %33 = vst.msk [vmem:[#allocation2 + $0x40] sm:$0xff] %vm24, 0.0
  %34 = vst.msk [vmem:[#allocation2 + $0x48] sm:$0xff] %vm24, 0.0
  %35 = vst.msk [vmem:[#allocation2 + $0x50] sm:$0xff] %vm24, 0.0
  %36 = vst.msk [vmem:[#allocation2 + $0x58] sm:$0xff] %vm24, 0.0
  %37 = vst.msk [vmem:[#allocation2 + $0x60] sm:$0xff] %vm24, 0.0
  %38 = vst.msk [vmem:[#allocation2 + $0x68] sm:$0xff] %vm24, 0.0
  %39 = vst.msk [vmem:[#allocation2 + $0x70] sm:$0xff] %vm24, 0.0
  %40 = vst.msk [vmem:[#allocation2 + $0x78] sm:$0xff] %vm24, 0.0
  %41 = vst.msk [vmem:[#allocation2 + $0x80] sm:$0xff] %vm24, 0.0
  %42 = vst.msk [vmem:[#allocation2 + $0x88] sm:$0xff] %vm24, 0.0
  %43 = vst.msk [vmem:[#allocation2 + $0x90] sm:$0xff] %vm24, 0.0
  %44 = vst.msk [vmem:[#allocation2 + $0x98] sm:$0xff] %vm24, 0.0
  %45 = vst.msk [vmem:[#allocation2 + $0xa0] sm:$0xff] %vm24, 0.0
  %46 = vst.msk [vmem:[#allocation2 + $0xa8] sm:$0xff] %vm24, 0.0
  %47 = vst.msk [vmem:[#allocation2 + $0xb0] sm:$0xff] %vm24, 0.0
  %48 = vst.msk [vmem:[#allocation2 + $0xb8] sm:$0xff] %vm24, 0.0
  %49 = vst.msk [vmem:[#allocation2 + $0xc0] sm:$0xff] %vm24, 0.0
  %50 = vst.msk [vmem:[#allocation2 + $0xc8] sm:$0xff] %vm24, 0.0
  %51 = vst.msk [vmem:[#allocation2 + $0xd0] sm:$0xff] %vm24, 0.0
  %52 = vst.msk [vmem:[#allocation2 + $0xd8] sm:$0xff] %vm24, 0.0
  %53 = vst.msk [vmem:[#allocation2 + $0xe0] sm:$0xff] %vm24, 0.0
  %54 = vst.msk [vmem:[#allocation2 + $0xe8] sm:$0xff] %vm24, 0.0
  %55 = vst.msk [vmem:[#allocation2 + $0xf0] sm:$0xff] %vm24, 0.0
  %56 = vst.msk [vmem:[#allocation2 + $0xf8] sm:$0xff] %vm24, 0.0
  %57 = vst.msk [vmem:[#allocation2 + $0x100] sm:$0xff] %vm24, 0.0
  %58 = vst.msk [vmem:[#allocation2 + $0x108] sm:$0xff] %vm24, 0.0
  %59 = vst.msk [vmem:[#allocation2 + $0x110] sm:$0xff] %vm24, 0.0
  %60 = vst.msk [vmem:[#allocation2 + $0x118] sm:$0xff] %vm24, 0.0
  %61 = vst.msk [vmem:[#allocation2 + $0x120] sm:$0xff] %vm24, 0.0
  %62 = vst.msk [vmem:[#allocation2 + $0x128] sm:$0xff] %vm24, 0.0
  %63 = vst.msk [vmem:[#allocation2 + $0x130] sm:$0xff] %vm24, 0.0
  %64 = vst.msk [vmem:[#allocation2 + $0x138] sm:$0xff] %vm24, 0.0
  %65 = vst.msk [vmem:[#allocation2 + $0x140] sm:$0xff] %vm24, 0.0
  %66 = vst.msk [vmem:[#allocation2 + $0x148] sm:$0xff] %vm24, 0.0
  %67 = vst.msk [vmem:[#allocation2 + $0x150] sm:$0xff] %vm24, 0.0
  %68 = vst.msk [vmem:[#allocation2 + $0x158] sm:$0xff] %vm24, 0.0
  %69 = vst.msk [vmem:[#allocation2 + $0x160] sm:$0xff] %vm24, 0.0
  %70 = vst.msk [vmem:[#allocation2 + $0x168] sm:$0xff] %vm24, 0.0
  %71 = vst.msk [vmem:[#allocation2 + $0x170] sm:$0xff] %vm24, 0.0
  %72 = vst.msk [vmem:[#allocation2 + $0x178] sm:$0xff] %vm24, 0.0
  %73 = vst.msk [vmem:[#allocation2 + $0x180] sm:$0xff] %vm24, 0.0
  %74 = vst.msk [vmem:[#allocation2 + $0x188] sm:$0xff] %vm24, 0.0
  %75 = vst.msk [vmem:[#allocation2 + $0x190] sm:$0xff] %vm24, 0.0
  %76 = vst.msk [vmem:[#allocation2 + $0x198] sm:$0xff] %vm24, 0.0
  %77 = vst.msk [vmem:[#allocation2 + $0x1a0] sm:$0xff] %vm24, 0.0
  %78 = vst.msk [vmem:[#allocation2 + $0x1a8] sm:$0xff] %vm24, 0.0
  %79 = vst.msk [vmem:[#allocation2 + $0x1b0] sm:$0xff] %vm24, 0.0
  %80 = vst.msk [vmem:[#allocation2 + $0x1b8] sm:$0xff] %vm24, 0.0
  %81 = vst.msk [vmem:[#allocation2 + $0x1c0] sm:$0xff] %vm24, 0.0
  %82 = vst.msk [vmem:[#allocation2 + $0x1c8] sm:$0xff] %vm24, 0.0
  %83 = vst.msk [vmem:[#allocation2 + $0x1d0] sm:$0xff] %vm24, 0.0
  %84 = vst.msk [vmem:[#allocation2 + $0x1d8] sm:$0xff] %vm24, 0.0
  %85 = vst.msk [vmem:[#allocation2 + $0x1e0] sm:$0xff] %vm24, 0.0
  %86 = vst.msk [vmem:[#allocation2 + $0x1e8] sm:$0xff] %vm24, 0.0
  %87 = vst.msk [vmem:[#allocation2 + $0x1f0] sm:$0xff] %vm24, 0.0
  %88 = vst.msk [vmem:[#allocation2 + $0x1f8] sm:$0xff] %vm24, 0.0
  %v89 = vld [vmem:[%s0] sm:$0xff]
  %v90 = vld [vmem:[%s0 + $0x8] sm:$0x7f]
  %v91 = vld [vmem:[%s0 + $0x10] sm:$0xff]
  %v92 = vld [vmem:[%s0 + $0x18] sm:$0x7f]
  %v93 = vld [vmem:[%s0 + $0x20] sm:$0xff]
  %v94 = vld [vmem:[%s0 + $0x28] sm:$0x7f]
  %v95 = vld [vmem:[%s0 + $0x30] sm:$0xff]
  %v96 = vld [vmem:[%s0 + $0x38] sm:$0x7f]
  %v97 = vld [vmem:[%s0 + $0x40] sm:$0xff]
  %v98 = vld [vmem:[%s0 + $0x48] sm:$0x7f]
  %v99 = vld [vmem:[%s0 + $0x50] sm:$0xff]
  %v100 = vld [vmem:[%s0 + $0x58] sm:$0x7f]
  %v101 = vld [vmem:[%s0 + $0x60] sm:$0xff]
  %v102 = vld [vmem:[%s0 + $0x68] sm:$0x7f]
  %v103 = vld [vmem:[%s0 + $0x70] sm:$0xff]
  %v104 = vld [vmem:[%s0 + $0x78] sm:$0x7f]
  %v105 = vld [vmem:[%s0 + $0x80] sm:$0xff]
  %v106 = vld [vmem:[%s0 + $0x88] sm:$0x7f]
  %v107 = vld [vmem:[%s0 + $0x90] sm:$0xff]
  %v108 = vld [vmem:[%s0 + $0x98] sm:$0x7f]
  %v109 = vld [vmem:[%s0 + $0xa0] sm:$0xff]
  %v110 = vld [vmem:[%s0 + $0xa8] sm:$0x7f]
  %v111 = vld [vmem:[%s0 + $0xb0] sm:$0xff]
  %v112 = vld [vmem:[%s0 + $0xb8] sm:$0x7f]
  %v113 = vld [vmem:[%s0 + $0xc0] sm:$0xff]
  %v114 = vld [vmem:[%s0 + $0xc8] sm:$0x7f]
  %v115 = vld [vmem:[%s0 + $0xd0] sm:$0xff]
  %v116 = vld [vmem:[%s0 + $0xd8] sm:$0x7f]
  %v117 = vld [vmem:[%s0 + $0xe0] sm:$0xff]
  %v118 = vld [vmem:[%s0 + $0xe8] sm:$0x7f]
  %v119 = vld [vmem:[%s0 + $0x100] sm:$0xff]
  %v120 = vld [vmem:[%s0 + $0x108] sm:$0x7f]
  %v121 = vld [vmem:[%s0 + $0x110] sm:$0xff]
  %v122 = vld [vmem:[%s0 + $0x118] sm:$0x7f]
  %v123 = vld [vmem:[%s0 + $0x120] sm:$0xff]
  %v124 = vld [vmem:[%s0 + $0x128] sm:$0x7f]
  %v125 = vld [vmem:[%s0 + $0x130] sm:$0xff]
  %v126 = vld [vmem:[%s0 + $0x138] sm:$0x7f]
  %v127 = vld [vmem:[%s0 + $0x140] sm:$0xff]
  %v128 = vld [vmem:[%s0 + $0x148] sm:$0x7f]
  %v129 = vld [vmem:[%s0 + $0x150] sm:$0xff]
  %v130 = vld [vmem:[%s0 + $0x158] sm:$0x7f]
  %v131 = vld [vmem:[%s0 + $0x160] sm:$0xff]
  %v132 = vld [vmem:[%s0 + $0x168] sm:$0x7f]
  %v133 = vld [vmem:[%s0 + $0x170] sm:$0xff]
  %v134 = vld [vmem:[%s0 + $0x178] sm:$0x7f]
  %v135 = vld [vmem:[%s0 + $0x180] sm:$0xff]
  %v136 = vld [vmem:[%s0 + $0x188] sm:$0x7f]
  %v137 = vld [vmem:[%s0 + $0x190] sm:$0xff]
  %v138 = vld [vmem:[%s0 + $0x198] sm:$0x7f]
  %v139 = vld [vmem:[%s0 + $0x1a0] sm:$0xff]
  %v140 = vld [vmem:[%s0 + $0x1a8] sm:$0x7f]
  %v141 = vld [vmem:[%s0 + $0x1b0] sm:$0xff]
  %v142 = vld [vmem:[%s0 + $0x1b8] sm:$0x7f]
  %v143 = vld [vmem:[%s0 + $0x1c0] sm:$0xff]
  %v144 = vld [vmem:[%s0 + $0x1c8] sm:$0x7f]
  %v145 = vld [vmem:[%s0 + $0x1d0] sm:$0xff]
  %v146 = vld [vmem:[%s0 + $0x1d8] sm:$0x7f]
  %v147 = vld [vmem:[%s0 + $0x1e0] sm:$0xff]
  %v148 = vld [vmem:[%s0 + $0x1e8] sm:$0x7f]
  %s149 = scalar_lea.vmem [#allocation2], 16
  %vm150 = vcmask 31744
  %151 = vst.msk [vmem:[%s149 + $0x1] sm:$0xff] %vm150, %v89
  %vm152 = vcmask 30720
  %153 = vst.msk [vmem:[%s149 + $0x9] sm:$0x7f] %vm152, %v90
  %154 = vst.msk [vmem:[%s149 + $0x11] sm:$0xff] %vm150, %v91
  %155 = vst.msk [vmem:[%s149 + $0x19] sm:$0x7f] %vm152, %v92
  %156 = vst.msk [vmem:[%s149 + $0x21] sm:$0xff] %vm150, %v93
  %157 = vst.msk [vmem:[%s149 + $0x29] sm:$0x7f] %vm152, %v94
  %158 = vst.msk [vmem:[%s149 + $0x31] sm:$0xff] %vm150, %v95
  %159 = vst.msk [vmem:[%s149 + $0x39] sm:$0x7f] %vm152, %v96
  %160 = vst.msk [vmem:[%s149 + $0x41] sm:$0xff] %vm150, %v97
  %161 = vst.msk [vmem:[%s149 + $0x49] sm:$0x7f] %vm152, %v98
  %162 = vst.msk [vmem:[%s149 + $0x51] sm:$0xff] %vm150, %v99
  %163 = vst.msk [vmem:[%s149 + $0x59] sm:$0x7f] %vm152, %v100
  %164 = vst.msk [vmem:[%s149 + $0x61] sm:$0xff] %vm150, %v101
  %165 = vst.msk [vmem:[%s149 + $0x69] sm:$0x7f] %vm152, %v102
  %166 = vst.msk [vmem:[%s149 + $0x71] sm:$0xff] %vm150, %v103
  %167 = vst.msk [vmem:[%s149 + $0x79] sm:$0x7f] %vm152, %v104
  %168 = vst.msk [vmem:[%s149 + $0x81] sm:$0xff] %vm150, %v105
  %169 = vst.msk [vmem:[%s149 + $0x89] sm:$0x7f] %vm152, %v106
  %170 = vst.msk [vmem:[%s149 + $0x91] sm:$0xff] %vm150, %v107
  %171 = vst.msk [vmem:[%s149 + $0x99] sm:$0x7f] %vm152, %v108
  %172 = vst.msk [vmem:[%s149 + $0xa1] sm:$0xff] %vm150, %v109
  %173 = vst.msk [vmem:[%s149 + $0xa9] sm:$0x7f] %vm152, %v110
  %174 = vst.msk [vmem:[%s149 + $0xb1] sm:$0xff] %vm150, %v111
  %175 = vst.msk [vmem:[%s149 + $0xb9] sm:$0x7f] %vm152, %v112
  %176 = vst.msk [vmem:[%s149 + $0xc1] sm:$0xff] %vm150, %v113
  %177 = vst.msk [vmem:[%s149 + $0xc9] sm:$0x7f] %vm152, %v114
  %178 = vst.msk [vmem:[%s149 + $0xd1] sm:$0xff] %vm150, %v115
  %179 = vst.msk [vmem:[%s149 + $0xd9] sm:$0x7f] %vm152, %v116
  %180 = vst.msk [vmem:[%s149 + $0xe1] sm:$0xff] %vm150, %v117
  %181 = vst.msk [vmem:[%s149 + $0xe9] sm:$0x7f] %vm152, %v118
  %182 = vst.msk [vmem:[%s149 + $0x101] sm:$0xff] %vm150, %v119
  %183 = vst.msk [vmem:[%s149 + $0x109] sm:$0x7f] %vm152, %v120
  %184 = vst.msk [vmem:[%s149 + $0x111] sm:$0xff] %vm150, %v121
  %185 = vst.msk [vmem:[%s149 + $0x119] sm:$0x7f] %vm152, %v122
  %186 = vst.msk [vmem:[%s149 + $0x121] sm:$0xff] %vm150, %v123
  %187 = vst.msk [vmem:[%s149 + $0x129] sm:$0x7f] %vm152, %v124
  %188 = vst.msk [vmem:[%s149 + $0x131] sm:$0xff] %vm150, %v125
  %189 = vst.msk [vmem:[%s149 + $0x139] sm:$0x7f] %vm152, %v126
  %190 = vst.msk [vmem:[%s149 + $0x141] sm:$0xff] %vm150, %v127
  %191 = vst.msk [vmem:[%s149 + $0x149] sm:$0x7f] %vm152, %v128
  %192 = vst.msk [vmem:[%s149 + $0x151] sm:$0xff] %vm150, %v129
  %193 = vst.msk [vmem:[%s149 + $0x159] sm:$0x7f] %vm152, %v130
  %194 = vst.msk [vmem:[%s149 + $0x161] sm:$0xff] %vm150, %v131
  %195 = vst.msk [vmem:[%s149 + $0x169] sm:$0x7f] %vm152, %v132
  %196 = vst.msk [vmem:[%s149 + $0x171] sm:$0xff] %vm150, %v133
  %197 = vst.msk [vmem:[%s149 + $0x179] sm:$0x7f] %vm152, %v134
  %198 = vst.msk [vmem:[%s149 + $0x181] sm:$0xff] %vm150, %v135
  %199 = vst.msk [vmem:[%s149 + $0x189] sm:$0x7f] %vm152, %v136
  %200 = vst.msk [vmem:[%s149 + $0x191] sm:$0xff] %vm150, %v137
  %201 = vst.msk [vmem:[%s149 + $0x199] sm:$0x7f] %vm152, %v138
  %202 = vst.msk [vmem:[%s149 + $0x1a1] sm:$0xff] %vm150, %v139
  %203 = vst.msk [vmem:[%s149 + $0x1a9] sm:$0x7f] %vm152, %v140
  %204 = vst.msk [vmem:[%s149 + $0x1b1] sm:$0xff] %vm150, %v141
  %205 = vst.msk [vmem:[%s149 + $0x1b9] sm:$0x7f] %vm152, %v142
  %206 = vst.msk [vmem:[%s149 + $0x1c1] sm:$0xff] %vm150, %v143
  %207 = vst.msk [vmem:[%s149 + $0x1c9] sm:$0x7f] %vm152, %v144
  %208 = vst.msk [vmem:[%s149 + $0x1d1] sm:$0xff] %vm150, %v145
  %209 = vst.msk [vmem:[%s149 + $0x1d9] sm:$0x7f] %vm152, %v146
  %210 = vst.msk [vmem:[%s149 + $0x1e1] sm:$0xff] %vm150, %v147
  %211 = vst.msk [vmem:[%s149 + $0x1e9] sm:$0x7f] %vm152, %v148
  %v212 = vld [vmem:[%s0] sm:$0xff]
  %v213 = vld [vmem:[%s0 + $0x8] sm:$0xff]
  %v214 = vld [vmem:[%s0 + $0x10] sm:$0xff]
  %v215 = vld [vmem:[%s0 + $0x18] sm:$0xff]
  %v216 = vld [vmem:[%s0 + $0x20] sm:$0xff]
  %v217 = vld [vmem:[%s0 + $0x28] sm:$0xff]
  %v218 = vld [vmem:[%s0 + $0x30] sm:$0xff]
  %v219 = vld [vmem:[%s0 + $0x38] sm:$0xff]
  %v220 = vld [vmem:[%s0 + $0x40] sm:$0xff]
  %v221 = vld [vmem:[%s0 + $0x48] sm:$0xff]
  %v222 = vld [vmem:[%s0 + $0x50] sm:$0xff]
  %v223 = vld [vmem:[%s0 + $0x58] sm:$0xff]
  %v224 = vld [vmem:[%s0 + $0x60] sm:$0xff]
  %v225 = vld [vmem:[%s0 + $0x68] sm:$0xff]
  %v226 = vld [vmem:[%s0 + $0x70] sm:$0xff]
  %v227 = vld [vmem:[%s0 + $0x78] sm:$0xff]
  %v228 = vld [vmem:[%s0 + $0x80] sm:$0xff]
  %v229 = vld [vmem:[%s0 + $0x88] sm:$0xff]
  %v230 = vld [vmem:[%s0 + $0x90] sm:$0xff]
  %v231 = vld [vmem:[%s0 + $0x98] sm:$0xff]
  %v232 = vld [vmem:[%s0 + $0xa0] sm:$0xff]
  %v233 = vld [vmem:[%s0 + $0xa8] sm:$0xff]
  %v234 = vld [vmem:[%s0 + $0xb0] sm:$0xff]
  %v235 = vld [vmem:[%s0 + $0xb8] sm:$0xff]
  %v236 = vld [vmem:[%s0 + $0xc0] sm:$0xff]
  %v237 = vld [vmem:[%s0 + $0xc8] sm:$0xff]
  %v238 = vld [vmem:[%s0 + $0xd0] sm:$0xff]
  %v239 = vld [vmem:[%s0 + $0xd8] sm:$0xff]
  %v240 = vld [vmem:[%s0 + $0xe0] sm:$0xff]
  %v241 = vld [vmem:[%s0 + $0xe8] sm:$0xff]
  %v242 = vld [vmem:[%s0 + $0x100] sm:$0xff]
  %v243 = vld [vmem:[%s0 + $0x108] sm:$0xff]
  %v244 = vld [vmem:[%s0 + $0x110] sm:$0xff]
  %v245 = vld [vmem:[%s0 + $0x118] sm:$0xff]
  %v246 = vld [vmem:[%s0 + $0x120] sm:$0xff]
  %v247 = vld [vmem:[%s0 + $0x128] sm:$0xff]
  %v248 = vld [vmem:[%s0 + $0x130] sm:$0xff]
  %v249 = vld [vmem:[%s0 + $0x138] sm:$0xff]
  %v250 = vld [vmem:[%s0 + $0x140] sm:$0xff]
  %v251 = vld [vmem:[%s0 + $0x148] sm:$0xff]
  %v252 = vld [vmem:[%s0 + $0x150] sm:$0xff]
  %v253 = vld [vmem:[%s0 + $0x158] sm:$0xff]
  %v254 = vld [vmem:[%s0 + $0x160] sm:$0xff]
  %v255 = vld [vmem:[%s0 + $0x168] sm:$0xff]
  %v256 = vld [vmem:[%s0 + $0x170] sm:$0xff]
  %v257 = vld [vmem:[%s0 + $0x178] sm:$0xff]
  %v258 = vld [vmem:[%s0 + $0x180] sm:$0xff]
  %v259 = vld [vmem:[%s0 + $0x188] sm:$0xff]
  %v260 = vld [vmem:[%s0 + $0x190] sm:$0xff]
  %v261 = vld [vmem:[%s0 + $0x198] sm:$0xff]
  %v262 = vld [vmem:[%s0 + $0x1a0] sm:$0xff]
  %v263 = vld [vmem:[%s0 + $0x1a8] sm:$0xff]
  %v264 = vld [vmem:[%s0 + $0x1b0] sm:$0xff]
  %v265 = vld [vmem:[%s0 + $0x1b8] sm:$0xff]
  %v266 = vld [vmem:[%s0 + $0x1c0] sm:$0xff]
  %v267 = vld [vmem:[%s0 + $0x1c8] sm:$0xff]
  %v268 = vld [vmem:[%s0 + $0x1d0] sm:$0xff]
  %v269 = vld [vmem:[%s0 + $0x1d8] sm:$0xff]
  %v270 = vld [vmem:[%s0 + $0x1e0] sm:$0xff]
  %v271 = vld [vmem:[%s0 + $0x1e8] sm:$0xff]
  %332 = vrot.lane.b32.xlu0 %v212, 4
  %v333 = vpop.permute.xlu0 %332
  %334 = vrot.lane.b32.xlu0 %v213, 4
  %v335 = vpop.permute.xlu0 %334
  %336 = vrot.lane.b32.xlu0 %v214, 4
  %v337 = vpop.permute.xlu0 %336
  %338 = vrot.lane.b32.xlu0 %v215, 4
  %v339 = vpop.permute.xlu0 %338
  %340 = vrot.lane.b32.xlu0 %v216, 4
  %v341 = vpop.permute.xlu0 %340
  %342 = vrot.lane.b32.xlu0 %v217, 4
  %v343 = vpop.permute.xlu0 %342
  %344 = vrot.lane.b32.xlu0 %v218, 4
  %v345 = vpop.permute.xlu0 %344
  %346 = vrot.lane.b32.xlu0 %v219, 4
  %v347 = vpop.permute.xlu0 %346
  %348 = vrot.lane.b32.xlu0 %v220, 4
  %v349 = vpop.permute.xlu0 %348
  %350 = vrot.lane.b32.xlu0 %v221, 4
  %v351 = vpop.permute.xlu0 %350
  %352 = vrot.lane.b32.xlu0 %v222, 4
  %v353 = vpop.permute.xlu0 %352
  %354 = vrot.lane.b32.xlu0 %v223, 4
  %v355 = vpop.permute.xlu0 %354
  %356 = vrot.lane.b32.xlu0 %v224, 4
  %v357 = vpop.permute.xlu0 %356
  %358 = vrot.lane.b32.xlu0 %v225, 4
  %v359 = vpop.permute.xlu0 %358
  %360 = vrot.lane.b32.xlu0 %v226, 4
  %v361 = vpop.permute.xlu0 %360
  %362 = vrot.lane.b32.xlu0 %v227, 4
  %v363 = vpop.permute.xlu0 %362
  %364 = vrot.lane.b32.xlu0 %v228, 4
  %v365 = vpop.permute.xlu0 %364
  %366 = vrot.lane.b32.xlu0 %v229, 4
  %v367 = vpop.permute.xlu0 %366
  %368 = vrot.lane.b32.xlu0 %v230, 4
  %v369 = vpop.permute.xlu0 %368
  %370 = vrot.lane.b32.xlu0 %v231, 4
  %v371 = vpop.permute.xlu0 %370
  %372 = vrot.lane.b32.xlu0 %v232, 4
  %v373 = vpop.permute.xlu0 %372
  %374 = vrot.lane.b32.xlu0 %v233, 4
  %v375 = vpop.permute.xlu0 %374
  %376 = vrot.lane.b32.xlu0 %v234, 4
  %v377 = vpop.permute.xlu0 %376
  %378 = vrot.lane.b32.xlu0 %v235, 4
  %v379 = vpop.permute.xlu0 %378
  %380 = vrot.lane.b32.xlu0 %v236, 4
  %v381 = vpop.permute.xlu0 %380
  %382 = vrot.lane.b32.xlu0 %v237, 4
  %v383 = vpop.permute.xlu0 %382
  %384 = vrot.lane.b32.xlu0 %v238, 4
  %v385 = vpop.permute.xlu0 %384
  %386 = vrot.lane.b32.xlu0 %v239, 4
  %v387 = vpop.permute.xlu0 %386
  %388 = vrot.lane.b32.xlu0 %v240, 4
  %v389 = vpop.permute.xlu0 %388
  %390 = vrot.lane.b32.xlu0 %v241, 4
  %v391 = vpop.permute.xlu0 %390
  %392 = vrot.lane.b32.xlu0 %v242, 4
  %v393 = vpop.permute.xlu0 %392
  %394 = vrot.lane.b32.xlu0 %v243, 4
  %v395 = vpop.permute.xlu0 %394
  %396 = vrot.lane.b32.xlu0 %v244, 4
  %v397 = vpop.permute.xlu0 %396
  %398 = vrot.lane.b32.xlu0 %v245, 4
  %v399 = vpop.permute.xlu0 %398
  %400 = vrot.lane.b32.xlu0 %v246, 4
  %v401 = vpop.permute.xlu0 %400
  %402 = vrot.lane.b32.xlu0 %v247, 4
  %v403 = vpop.permute.xlu0 %402
  %404 = vrot.lane.b32.xlu0 %v248, 4
  %v405 = vpop.permute.xlu0 %404
  %406 = vrot.lane.b32.xlu0 %v249, 4
  %v407 = vpop.permute.xlu0 %406
  %408 = vrot.lane.b32.xlu0 %v250, 4
  %v409 = vpop.permute.xlu0 %408
  %410 = vrot.lane.b32.xlu0 %v251, 4
  %v411 = vpop.permute.xlu0 %410
  %412 = vrot.lane.b32.xlu0 %v252, 4
  %v413 = vpop.permute.xlu0 %412
  %414 = vrot.lane.b32.xlu0 %v253, 4
  %v415 = vpop.permute.xlu0 %414
  %416 = vrot.lane.b32.xlu0 %v254, 4
  %v417 = vpop.permute.xlu0 %416
  %418 = vrot.lane.b32.xlu0 %v255, 4
  %v419 = vpop.permute.xlu0 %418
  %420 = vrot.lane.b32.xlu0 %v256, 4
  %v421 = vpop.permute.xlu0 %420
  %422 = vrot.lane.b32.xlu0 %v257, 4
  %v423 = vpop.permute.xlu0 %422
  %424 = vrot.lane.b32.xlu0 %v258, 4
  %v425 = vpop.permute.xlu0 %424
  %426 = vrot.lane.b32.xlu0 %v259, 4
  %v427 = vpop.permute.xlu0 %426
  %428 = vrot.lane.b32.xlu0 %v260, 4
  %v429 = vpop.permute.xlu0 %428
  %430 = vrot.lane.b32.xlu0 %v261, 4
  %v431 = vpop.permute.xlu0 %430
  %432 = vrot.lane.b32.xlu0 %v262, 4
  %v433 = vpop.permute.xlu0 %432
  %434 = vrot.lane.b32.xlu0 %v263, 4
  %v435 = vpop.permute.xlu0 %434
  %436 = vrot.lane.b32.xlu0 %v264, 4
  %v437 = vpop.permute.xlu0 %436
  %438 = vrot.lane.b32.xlu0 %v265, 4
  %v439 = vpop.permute.xlu0 %438
  %440 = vrot.lane.b32.xlu0 %v266, 4
  %v441 = vpop.permute.xlu0 %440
  %442 = vrot.lane.b32.xlu0 %v267, 4
  %v443 = vpop.permute.xlu0 %442
  %444 = vrot.lane.b32.xlu0 %v268, 4
  %v445 = vpop.permute.xlu0 %444
  %446 = vrot.lane.b32.xlu0 %v269, 4
  %v447 = vpop.permute.xlu0 %446
  %448 = vrot.lane.b32.xlu0 %v270, 4
  %v449 = vpop.permute.xlu0 %448
  %450 = vrot.lane.b32.xlu0 %v271, 4
  %v451 = vpop.permute.xlu0 %450
  %vm512 = vcmask 64544
  %513 = vst.msk [vmem:[%s149] sm:$0xff] %vm512, %v333
  %514 = vst.msk [vmem:[%s149 + $0x8] sm:$0xff] %vm512, %v335
  %515 = vst.msk [vmem:[%s149 + $0x10] sm:$0xff] %vm512, %v337
  %516 = vst.msk [vmem:[%s149 + $0x18] sm:$0xff] %vm512, %v339
  %517 = vst.msk [vmem:[%s149 + $0x20] sm:$0xff] %vm512, %v341
  %518 = vst.msk [vmem:[%s149 + $0x28] sm:$0xff] %vm512, %v343
  %519 = vst.msk [vmem:[%s149 + $0x30] sm:$0xff] %vm512, %v345
  %520 = vst.msk [vmem:[%s149 + $0x38] sm:$0xff] %vm512, %v347
  %521 = vst.msk [vmem:[%s149 + $0x40] sm:$0xff] %vm512, %v349
  %522 = vst.msk [vmem:[%s149 + $0x48] sm:$0xff] %vm512, %v351
  %523 = vst.msk [vmem:[%s149 + $0x50] sm:$0xff] %vm512, %v353
  %524 = vst.msk [vmem:[%s149 + $0x58] sm:$0xff] %vm512, %v355
  %525 = vst.msk [vmem:[%s149 + $0x60] sm:$0xff] %vm512, %v357
  %526 = vst.msk [vmem:[%s149 + $0x68] sm:$0xff] %vm512, %v359
  %527 = vst.msk [vmem:[%s149 + $0x70] sm:$0xff] %vm512, %v361
  %528 = vst.msk [vmem:[%s149 + $0x78] sm:$0xff] %vm512, %v363
  %529 = vst.msk [vmem:[%s149 + $0x80] sm:$0xff] %vm512, %v365
  %530 = vst.msk [vmem:[%s149 + $0x88] sm:$0xff] %vm512, %v367
  %531 = vst.msk [vmem:[%s149 + $0x90] sm:$0xff] %vm512, %v369
  %532 = vst.msk [vmem:[%s149 + $0x98] sm:$0xff] %vm512, %v371
  %533 = vst.msk [vmem:[%s149 + $0xa0] sm:$0xff] %vm512, %v373
  %534 = vst.msk [vmem:[%s149 + $0xa8] sm:$0xff] %vm512, %v375
  %535 = vst.msk [vmem:[%s149 + $0xb0] sm:$0xff] %vm512, %v377
  %536 = vst.msk [vmem:[%s149 + $0xb8] sm:$0xff] %vm512, %v379
  %537 = vst.msk [vmem:[%s149 + $0xc0] sm:$0xff] %vm512, %v381
  %538 = vst.msk [vmem:[%s149 + $0xc8] sm:$0xff] %vm512, %v383
  %539 = vst.msk [vmem:[%s149 + $0xd0] sm:$0xff] %vm512, %v385
  %540 = vst.msk [vmem:[%s149 + $0xd8] sm:$0xff] %vm512, %v387
  %541 = vst.msk [vmem:[%s149 + $0xe0] sm:$0xff] %vm512, %v389
  %542 = vst.msk [vmem:[%s149 + $0xe8] sm:$0xff] %vm512, %v391
  %543 = vst.msk [vmem:[%s149 + $0x100] sm:$0xff] %vm512, %v393
  %544 = vst.msk [vmem:[%s149 + $0x108] sm:$0xff] %vm512, %v395
  %545 = vst.msk [vmem:[%s149 + $0x110] sm:$0xff] %vm512, %v397
  %546 = vst.msk [vmem:[%s149 + $0x118] sm:$0xff] %vm512, %v399
  %547 = vst.msk [vmem:[%s149 + $0x120] sm:$0xff] %vm512, %v401
  %548 = vst.msk [vmem:[%s149 + $0x128] sm:$0xff] %vm512, %v403
  %549 = vst.msk [vmem:[%s149 + $0x130] sm:$0xff] %vm512, %v405
  %550 = vst.msk [vmem:[%s149 + $0x138] sm:$0xff] %vm512, %v407
  %551 = vst.msk [vmem:[%s149 + $0x140] sm:$0xff] %vm512, %v409
  %552 = vst.msk [vmem:[%s149 + $0x148] sm:$0xff] %vm512, %v411
  %553 = vst.msk [vmem:[%s149 + $0x150] sm:$0xff] %vm512, %v413
  %554 = vst.msk [vmem:[%s149 + $0x158] sm:$0xff] %vm512, %v415
  %555 = vst.msk [vmem:[%s149 + $0x160] sm:$0xff] %vm512, %v417
  %556 = vst.msk [vmem:[%s149 + $0x168] sm:$0xff] %vm512, %v419
  %557 = vst.msk [vmem:[%s149 + $0x170] sm:$0xff] %vm512, %v421
  %558 = vst.msk [vmem:[%s149 + $0x178] sm:$0xff] %vm512, %v423
  %559 = vst.msk [vmem:[%s149 + $0x180] sm:$0xff] %vm512, %v425
  %560 = vst.msk [vmem:[%s149 + $0x188] sm:$0xff] %vm512, %v427
  %561 = vst.msk [vmem:[%s149 + $0x190] sm:$0xff] %vm512, %v429
  %562 = vst.msk [vmem:[%s149 + $0x198] sm:$0xff] %vm512, %v431
  %563 = vst.msk [vmem:[%s149 + $0x1a0] sm:$0xff] %vm512, %v433
  %564 = vst.msk [vmem:[%s149 + $0x1a8] sm:$0xff] %vm512, %v435
  %565 = vst.msk [vmem:[%s149 + $0x1b0] sm:$0xff] %vm512, %v437
  %566 = vst.msk [vmem:[%s149 + $0x1b8] sm:$0xff] %vm512, %v439
  %567 = vst.msk [vmem:[%s149 + $0x1c0] sm:$0xff] %vm512, %v441
  %568 = vst.msk [vmem:[%s149 + $0x1c8] sm:$0xff] %vm512, %v443
  %569 = vst.msk [vmem:[%s149 + $0x1d0] sm:$0xff] %vm512, %v445
  %570 = vst.msk [vmem:[%s149 + $0x1d8] sm:$0xff] %vm512, %v447
  %571 = vst.msk [vmem:[%s149 + $0x1e0] sm:$0xff] %vm512, %v449
  %572 = vst.msk [vmem:[%s149 + $0x1e8] sm:$0xff] %vm512, %v451
  %v573 = vld [vmem:[%s0 + $0x1] sm:$0xff]
  %v574 = vld [vmem:[%s0 + $0x9] sm:$0x7f]
  %v575 = vld [vmem:[%s0 + $0x11] sm:$0xff]
  %v576 = vld [vmem:[%s0 + $0x19] sm:$0x7f]
  %v577 = vld [vmem:[%s0 + $0x21] sm:$0xff]
  %v578 = vld [vmem:[%s0 + $0x29] sm:$0x7f]
  %v579 = vld [vmem:[%s0 + $0x31] sm:$0xff]
  %v580 = vld [vmem:[%s0 + $0x39] sm:$0x7f]
  %v581 = vld [vmem:[%s0 + $0x41] sm:$0xff]
  %v582 = vld [vmem:[%s0 + $0x49] sm:$0x7f]
  %v583 = vld [vmem:[%s0 + $0x51] sm:$0xff]
  %v584 = vld [vmem:[%s0 + $0x59] sm:$0x7f]
  %v585 = vld [vmem:[%s0 + $0x61] sm:$0xff]
  %v586 = vld [vmem:[%s0 + $0x69] sm:$0x7f]
  %v587 = vld [vmem:[%s0 + $0x71] sm:$0xff]
  %v588 = vld [vmem:[%s0 + $0x79] sm:$0x7f]
  %v589 = vld [vmem:[%s0 + $0x81] sm:$0xff]
  %v590 = vld [vmem:[%s0 + $0x89] sm:$0x7f]
  %v591 = vld [vmem:[%s0 + $0x91] sm:$0xff]
  %v592 = vld [vmem:[%s0 + $0x99] sm:$0x7f]
  %v593 = vld [vmem:[%s0 + $0xa1] sm:$0xff]
  %v594 = vld [vmem:[%s0 + $0xa9] sm:$0x7f]
  %v595 = vld [vmem:[%s0 + $0xb1] sm:$0xff]
  %v596 = vld [vmem:[%s0 + $0xb9] sm:$0x7f]
  %v597 = vld [vmem:[%s0 + $0xc1] sm:$0xff]
  %v598 = vld [vmem:[%s0 + $0xc9] sm:$0x7f]
  %v599 = vld [vmem:[%s0 + $0xd1] sm:$0xff]
  %v600 = vld [vmem:[%s0 + $0xd9] sm:$0x7f]
  %v601 = vld [vmem:[%s0 + $0xe1] sm:$0xff]
  %v602 = vld [vmem:[%s0 + $0xe9] sm:$0x7f]
  %v603 = vld [vmem:[%s0 + $0x101] sm:$0xff]
  %v604 = vld [vmem:[%s0 + $0x109] sm:$0x7f]
  %v605 = vld [vmem:[%s0 + $0x111] sm:$0xff]
  %v606 = vld [vmem:[%s0 + $0x119] sm:$0x7f]
  %v607 = vld [vmem:[%s0 + $0x121] sm:$0xff]
  %v608 = vld [vmem:[%s0 + $0x129] sm:$0x7f]
  %v609 = vld [vmem:[%s0 + $0x131] sm:$0xff]
  %v610 = vld [vmem:[%s0 + $0x139] sm:$0x7f]
  %v611 = vld [vmem:[%s0 + $0x141] sm:$0xff]
  %v612 = vld [vmem:[%s0 + $0x149] sm:$0x7f]
  %v613 = vld [vmem:[%s0 + $0x151] sm:$0xff]
  %v614 = vld [vmem:[%s0 + $0x159] sm:$0x7f]
  %v615 = vld [vmem:[%s0 + $0x161] sm:$0xff]
  %v616 = vld [vmem:[%s0 + $0x169] sm:$0x7f]
  %v617 = vld [vmem:[%s0 + $0x171] sm:$0xff]
  %v618 = vld [vmem:[%s0 + $0x179] sm:$0x7f]
  %v619 = vld [vmem:[%s0 + $0x181] sm:$0xff]
  %v620 = vld [vmem:[%s0 + $0x189] sm:$0x7f]
  %v621 = vld [vmem:[%s0 + $0x191] sm:$0xff]
  %v622 = vld [vmem:[%s0 + $0x199] sm:$0x7f]
  %v623 = vld [vmem:[%s0 + $0x1a1] sm:$0xff]
  %v624 = vld [vmem:[%s0 + $0x1a9] sm:$0x7f]
  %v625 = vld [vmem:[%s0 + $0x1b1] sm:$0xff]
  %v626 = vld [vmem:[%s0 + $0x1b9] sm:$0x7f]
  %v627 = vld [vmem:[%s0 + $0x1c1] sm:$0xff]
  %v628 = vld [vmem:[%s0 + $0x1c9] sm:$0x7f]
  %v629 = vld [vmem:[%s0 + $0x1d1] sm:$0xff]
  %v630 = vld [vmem:[%s0 + $0x1d9] sm:$0x7f]
  %v631 = vld [vmem:[%s0 + $0x1e1] sm:$0xff]
  %v632 = vld [vmem:[%s0 + $0x1e9] sm:$0x7f]
  %693 = vrot.lane.b32.xlu0 %v573, 8
  %v694 = vpop.permute.xlu0 %693
  %695 = vrot.lane.b32.xlu0 %v574, 8
  %v696 = vpop.permute.xlu0 %695
  %697 = vrot.lane.b32.xlu0 %v575, 8
  %v698 = vpop.permute.xlu0 %697
  %699 = vrot.lane.b32.xlu0 %v576, 8
  %v700 = vpop.permute.xlu0 %699
  %701 = vrot.lane.b32.xlu0 %v577, 8
  %v702 = vpop.permute.xlu0 %701
  %703 = vrot.lane.b32.xlu0 %v578, 8
  %v704 = vpop.permute.xlu0 %703
  %705 = vrot.lane.b32.xlu0 %v579, 8
  %v706 = vpop.permute.xlu0 %705
  %707 = vrot.lane.b32.xlu0 %v580, 8
  %v708 = vpop.permute.xlu0 %707
  %709 = vrot.lane.b32.xlu0 %v581, 8
  %v710 = vpop.permute.xlu0 %709
  %711 = vrot.lane.b32.xlu0 %v582, 8
  %v712 = vpop.permute.xlu0 %711
  %713 = vrot.lane.b32.xlu0 %v583, 8
  %v714 = vpop.permute.xlu0 %713
  %715 = vrot.lane.b32.xlu0 %v584, 8
  %v716 = vpop.permute.xlu0 %715
  %717 = vrot.lane.b32.xlu0 %v585, 8
  %v718 = vpop.permute.xlu0 %717
  %719 = vrot.lane.b32.xlu0 %v586, 8
  %v720 = vpop.permute.xlu0 %719
  %721 = vrot.lane.b32.xlu0 %v587, 8
  %v722 = vpop.permute.xlu0 %721
  %723 = vrot.lane.b32.xlu0 %v588, 8
  %v724 = vpop.permute.xlu0 %723
  %725 = vrot.lane.b32.xlu0 %v589, 8
  %v726 = vpop.permute.xlu0 %725
  %727 = vrot.lane.b32.xlu0 %v590, 8
  %v728 = vpop.permute.xlu0 %727
  %729 = vrot.lane.b32.xlu0 %v591, 8
  %v730 = vpop.permute.xlu0 %729
  %731 = vrot.lane.b32.xlu0 %v592, 8
  %v732 = vpop.permute.xlu0 %731
  %733 = vrot.lane.b32.xlu0 %v593, 8
  %v734 = vpop.permute.xlu0 %733
  %735 = vrot.lane.b32.xlu0 %v594, 8
  %v736 = vpop.permute.xlu0 %735
  %737 = vrot.lane.b32.xlu0 %v595, 8
  %v738 = vpop.permute.xlu0 %737
  %739 = vrot.lane.b32.xlu0 %v596, 8
  %v740 = vpop.permute.xlu0 %739
  %741 = vrot.lane.b32.xlu0 %v597, 8
  %v742 = vpop.permute.xlu0 %741
  %743 = vrot.lane.b32.xlu0 %v598, 8
  %v744 = vpop.permute.xlu0 %743
  %745 = vrot.lane.b32.xlu0 %v599, 8
  %v746 = vpop.permute.xlu0 %745
  %747 = vrot.lane.b32.xlu0 %v600, 8
  %v748 = vpop.permute.xlu0 %747
  %749 = vrot.lane.b32.xlu0 %v601, 8
  %v750 = vpop.permute.xlu0 %749
  %751 = vrot.lane.b32.xlu0 %v602, 8
  %v752 = vpop.permute.xlu0 %751
  %753 = vrot.lane.b32.xlu0 %v603, 8
  %v754 = vpop.permute.xlu0 %753
  %755 = vrot.lane.b32.xlu0 %v604, 8
  %v756 = vpop.permute.xlu0 %755
  %757 = vrot.lane.b32.xlu0 %v605, 8
  %v758 = vpop.permute.xlu0 %757
  %759 = vrot.lane.b32.xlu0 %v606, 8
  %v760 = vpop.permute.xlu0 %759
  %761 = vrot.lane.b32.xlu0 %v607, 8
  %v762 = vpop.permute.xlu0 %761
  %763 = vrot.lane.b32.xlu0 %v608, 8
  %v764 = vpop.permute.xlu0 %763
  %765 = vrot.lane.b32.xlu0 %v609, 8
  %v766 = vpop.permute.xlu0 %765
  %767 = vrot.lane.b32.xlu0 %v610, 8
  %v768 = vpop.permute.xlu0 %767
  %769 = vrot.lane.b32.xlu0 %v611, 8
  %v770 = vpop.permute.xlu0 %769
  %771 = vrot.lane.b32.xlu0 %v612, 8
  %v772 = vpop.permute.xlu0 %771
  %773 = vrot.lane.b32.xlu0 %v613, 8
  %v774 = vpop.permute.xlu0 %773
  %775 = vrot.lane.b32.xlu0 %v614, 8
  %v776 = vpop.permute.xlu0 %775
  %777 = vrot.lane.b32.xlu0 %v615, 8
  %v778 = vpop.permute.xlu0 %777
  %779 = vrot.lane.b32.xlu0 %v616, 8
  %v780 = vpop.permute.xlu0 %779
  %781 = vrot.lane.b32.xlu0 %v617, 8
  %v782 = vpop.permute.xlu0 %781
  %783 = vrot.lane.b32.xlu0 %v618, 8
  %v784 = vpop.permute.xlu0 %783
  %785 = vrot.lane.b32.xlu0 %v619, 8
  %v786 = vpop.permute.xlu0 %785
  %787 = vrot.lane.b32.xlu0 %v620, 8
  %v788 = vpop.permute.xlu0 %787
  %789 = vrot.lane.b32.xlu0 %v621, 8
  %v790 = vpop.permute.xlu0 %789
  %791 = vrot.lane.b32.xlu0 %v622, 8
  %v792 = vpop.permute.xlu0 %791
  %793 = vrot.lane.b32.xlu0 %v623, 8
  %v794 = vpop.permute.xlu0 %793
  %795 = vrot.lane.b32.xlu0 %v624, 8
  %v796 = vpop.permute.xlu0 %795
  %797 = vrot.lane.b32.xlu0 %v625, 8
  %v798 = vpop.permute.xlu0 %797
  %799 = vrot.lane.b32.xlu0 %v626, 8
  %v800 = vpop.permute.xlu0 %799
  %801 = vrot.lane.b32.xlu0 %v627, 8
  %v802 = vpop.permute.xlu0 %801
  %803 = vrot.lane.b32.xlu0 %v628, 8
  %v804 = vpop.permute.xlu0 %803
  %805 = vrot.lane.b32.xlu0 %v629, 8
  %v806 = vpop.permute.xlu0 %805
  %807 = vrot.lane.b32.xlu0 %v630, 8
  %v808 = vpop.permute.xlu0 %807
  %809 = vrot.lane.b32.xlu0 %v631, 8
  %v810 = vpop.permute.xlu0 %809
  %811 = vrot.lane.b32.xlu0 %v632, 8
  %v812 = vpop.permute.xlu0 %811
  %vm873 = vcmask 97344
  %874 = vst.msk [vmem:[%s149] sm:$0xff] %vm873, %v694
  %vm875 = vcmask 96320
  %876 = vst.msk [vmem:[%s149 + $0x8] sm:$0x7f] %vm875, %v696
  %877 = vst.msk [vmem:[%s149 + $0x10] sm:$0xff] %vm873, %v698
  %878 = vst.msk [vmem:[%s149 + $0x18] sm:$0x7f] %vm875, %v700
  %879 = vst.msk [vmem:[%s149 + $0x20] sm:$0xff] %vm873, %v702
  %880 = vst.msk [vmem:[%s149 + $0x28] sm:$0x7f] %vm875, %v704
  %881 = vst.msk [vmem:[%s149 + $0x30] sm:$0xff] %vm873, %v706
  %882 = vst.msk [vmem:[%s149 + $0x38] sm:$0x7f] %vm875, %v708
  %883 = vst.msk [vmem:[%s149 + $0x40] sm:$0xff] %vm873, %v710
  %884 = vst.msk [vmem:[%s149 + $0x48] sm:$0x7f] %vm875, %v712
  %885 = vst.msk [vmem:[%s149 + $0x50] sm:$0xff] %vm873, %v714
  %886 = vst.msk [vmem:[%s149 + $0x58] sm:$0x7f] %vm875, %v716
  %887 = vst.msk [vmem:[%s149 + $0x60] sm:$0xff] %vm873, %v718
  %888 = vst.msk [vmem:[%s149 + $0x68] sm:$0x7f] %vm875, %v720
  %889 = vst.msk [vmem:[%s149 + $0x70] sm:$0xff] %vm873, %v722
  %890 = vst.msk [vmem:[%s149 + $0x78] sm:$0x7f] %vm875, %v724
  %891 = vst.msk [vmem:[%s149 + $0x80] sm:$0xff] %vm873, %v726
  %892 = vst.msk [vmem:[%s149 + $0x88] sm:$0x7f] %vm875, %v728
  %893 = vst.msk [vmem:[%s149 + $0x90] sm:$0xff] %vm873, %v730
  %894 = vst.msk [vmem:[%s149 + $0x98] sm:$0x7f] %vm875, %v732
  %895 = vst.msk [vmem:[%s149 + $0xa0] sm:$0xff] %vm873, %v734
  %896 = vst.msk [vmem:[%s149 + $0xa8] sm:$0x7f] %vm875, %v736
  %897 = vst.msk [vmem:[%s149 + $0xb0] sm:$0xff] %vm873, %v738
  %898 = vst.msk [vmem:[%s149 + $0xb8] sm:$0x7f] %vm875, %v740
  %899 = vst.msk [vmem:[%s149 + $0xc0] sm:$0xff] %vm873, %v742
  %900 = vst.msk [vmem:[%s149 + $0xc8] sm:$0x7f] %vm875, %v744
  %901 = vst.msk [vmem:[%s149 + $0xd0] sm:$0xff] %vm873, %v746
  %902 = vst.msk [vmem:[%s149 + $0xd8] sm:$0x7f] %vm875, %v748
  %903 = vst.msk [vmem:[%s149 + $0xe0] sm:$0xff] %vm873, %v750
  %904 = vst.msk [vmem:[%s149 + $0xe8] sm:$0x7f] %vm875, %v752
  %905 = vst.msk [vmem:[%s149 + $0x100] sm:$0xff] %vm873, %v754
  %906 = vst.msk [vmem:[%s149 + $0x108] sm:$0x7f] %vm875, %v756
  %907 = vst.msk [vmem:[%s149 + $0x110] sm:$0xff] %vm873, %v758
  %908 = vst.msk [vmem:[%s149 + $0x118] sm:$0x7f] %vm875, %v760
  %909 = vst.msk [vmem:[%s149 + $0x120] sm:$0xff] %vm873, %v762
  %910 = vst.msk [vmem:[%s149 + $0x128] sm:$0x7f] %vm875, %v764
  %911 = vst.msk [vmem:[%s149 + $0x130] sm:$0xff] %vm873, %v766
  %912 = vst.msk [vmem:[%s149 + $0x138] sm:$0x7f] %vm875, %v768
  %913 = vst.msk [vmem:[%s149 + $0x140] sm:$0xff] %vm873, %v770
  %914 = vst.msk [vmem:[%s149 + $0x148] sm:$0x7f] %vm875, %v772
  %915 = vst.msk [vmem:[%s149 + $0x150] sm:$0xff] %vm873, %v774
  %916 = vst.msk [vmem:[%s149 + $0x158] sm:$0x7f] %vm875, %v776
  %917 = vst.msk [vmem:[%s149 + $0x160] sm:$0xff] %vm873, %v778
  %918 = vst.msk [vmem:[%s149 + $0x168] sm:$0x7f] %vm875, %v780
  %919 = vst.msk [vmem:[%s149 + $0x170] sm:$0xff] %vm873, %v782
  %920 = vst.msk [vmem:[%s149 + $0x178] sm:$0x7f] %vm875, %v784
  %921 = vst.msk [vmem:[%s149 + $0x180] sm:$0xff] %vm873, %v786
  %922 = vst.msk [vmem:[%s149 + $0x188] sm:$0x7f] %vm875, %v788
  %923 = vst.msk [vmem:[%s149 + $0x190] sm:$0xff] %vm873, %v790
  %924 = vst.msk [vmem:[%s149 + $0x198] sm:$0x7f] %vm875, %v792
  %925 = vst.msk [vmem:[%s149 + $0x1a0] sm:$0xff] %vm873, %v794
  %926 = vst.msk [vmem:[%s149 + $0x1a8] sm:$0x7f] %vm875, %v796
  %927 = vst.msk [vmem:[%s149 + $0x1b0] sm:$0xff] %vm873, %v798
  %928 = vst.msk [vmem:[%s149 + $0x1b8] sm:$0x7f] %vm875, %v800
  %929 = vst.msk [vmem:[%s149 + $0x1c0] sm:$0xff] %vm873, %v802
  %930 = vst.msk [vmem:[%s149 + $0x1c8] sm:$0x7f] %vm875, %v804
  %931 = vst.msk [vmem:[%s149 + $0x1d0] sm:$0xff] %vm873, %v806
  %932 = vst.msk [vmem:[%s149 + $0x1d8] sm:$0x7f] %vm875, %v808
  %933 = vst.msk [vmem:[%s149 + $0x1e0] sm:$0xff] %vm873, %v810
  %934 = vst.msk [vmem:[%s149 + $0x1e8] sm:$0x7f] %vm875, %v812
  %v935 = vld [vmem:[%s0] sm:$0xff]
  %v936 = vld [vmem:[%s0 + $0x8] sm:$0x7f]
  %v937 = vld [vmem:[%s0 + $0x10] sm:$0xff]
  %v938 = vld [vmem:[%s0 + $0x18] sm:$0x7f]
  %v939 = vld [vmem:[%s0 + $0x20] sm:$0xff]
  %v940 = vld [vmem:[%s0 + $0x28] sm:$0x7f]
  %v941 = vld [vmem:[%s0 + $0x30] sm:$0xff]
  %v942 = vld [vmem:[%s0 + $0x38] sm:$0x7f]
  %v943 = vld [vmem:[%s0 + $0x40] sm:$0xff]
  %v944 = vld [vmem:[%s0 + $0x48] sm:$0x7f]
  %v945 = vld [vmem:[%s0 + $0x50] sm:$0xff]
  %v946 = vld [vmem:[%s0 + $0x58] sm:$0x7f]
  %v947 = vld [vmem:[%s0 + $0x60] sm:$0xff]
  %v948 = vld [vmem:[%s0 + $0x68] sm:$0x7f]
  %v949 = vld [vmem:[%s0 + $0x70] sm:$0xff]
  %v950 = vld [vmem:[%s0 + $0x78] sm:$0x7f]
  %v951 = vld [vmem:[%s0 + $0x80] sm:$0xff]
  %v952 = vld [vmem:[%s0 + $0x88] sm:$0x7f]
  %v953 = vld [vmem:[%s0 + $0x90] sm:$0xff]
  %v954 = vld [vmem:[%s0 + $0x98] sm:$0x7f]
  %v955 = vld [vmem:[%s0 + $0xa0] sm:$0xff]
  %v956 = vld [vmem:[%s0 + $0xa8] sm:$0x7f]
  %v957 = vld [vmem:[%s0 + $0xb0] sm:$0xff]
  %v958 = vld [vmem:[%s0 + $0xb8] sm:$0x7f]
  %v959 = vld [vmem:[%s0 + $0xc0] sm:$0xff]
  %v960 = vld [vmem:[%s0 + $0xc8] sm:$0x7f]
  %v961 = vld [vmem:[%s0 + $0xd0] sm:$0xff]
  %v962 = vld [vmem:[%s0 + $0xd8] sm:$0x7f]
  %v963 = vld [vmem:[%s0 + $0xe0] sm:$0xff]
  %v964 = vld [vmem:[%s0 + $0xe8] sm:$0x7f]
  %v965 = vld [vmem:[%s0 + $0xf0] sm:$0xff]
  %v966 = vld [vmem:[%s0 + $0xf8] sm:$0x7f]
  %v967 = vld [vmem:[%s0 + $0x100] sm:$0xff]
  %v968 = vld [vmem:[%s0 + $0x108] sm:$0x7f]
  %v969 = vld [vmem:[%s0 + $0x110] sm:$0xff]
  %v970 = vld [vmem:[%s0 + $0x118] sm:$0x7f]
  %v971 = vld [vmem:[%s0 + $0x120] sm:$0xff]
  %v972 = vld [vmem:[%s0 + $0x128] sm:$0x7f]
  %v973 = vld [vmem:[%s0 + $0x130] sm:$0xff]
  %v974 = vld [vmem:[%s0 + $0x138] sm:$0x7f]
  %v975 = vld [vmem:[%s0 + $0x140] sm:$0xff]
  %v976 = vld [vmem:[%s0 + $0x148] sm:$0x7f]
  %v977 = vld [vmem:[%s0 + $0x150] sm:$0xff]
  %v978 = vld [vmem:[%s0 + $0x158] sm:$0x7f]
  %v979 = vld [vmem:[%s0 + $0x160] sm:$0xff]
  %v980 = vld [vmem:[%s0 + $0x168] sm:$0x7f]
  %v981 = vld [vmem:[%s0 + $0x170] sm:$0xff]
  %v982 = vld [vmem:[%s0 + $0x178] sm:$0x7f]
  %v983 = vld [vmem:[%s0 + $0x180] sm:$0xff]
  %v984 = vld [vmem:[%s0 + $0x188] sm:$0x7f]
  %v985 = vld [vmem:[%s0 + $0x190] sm:$0xff]
  %v986 = vld [vmem:[%s0 + $0x198] sm:$0x7f]
  %v987 = vld [vmem:[%s0 + $0x1a0] sm:$0xff]
  %v988 = vld [vmem:[%s0 + $0x1a8] sm:$0x7f]
  %v989 = vld [vmem:[%s0 + $0x1b0] sm:$0xff]
  %v990 = vld [vmem:[%s0 + $0x1b8] sm:$0x7f]
  %v991 = vld [vmem:[%s0 + $0x1c0] sm:$0xff]
  %v992 = vld [vmem:[%s0 + $0x1c8] sm:$0x7f]
  %v993 = vld [vmem:[%s0 + $0x1d0] sm:$0xff]
  %v994 = vld [vmem:[%s0 + $0x1d8] sm:$0x7f]
  %v995 = vld [vmem:[%s0 + $0x1e0] sm:$0xff]
  %v996 = vld [vmem:[%s0 + $0x1e8] sm:$0x7f]
  %v997 = vld [vmem:[%s0 + $0x1f0] sm:$0xff]
  %v998 = vld [vmem:[%s0 + $0x1f8] sm:$0x7f]
  %1063 = vrot.lane.b32.xlu0 %v935, 12
  %v1064 = vpop.permute.xlu0 %1063
  %1065 = vrot.lane.b32.xlu0 %v936, 12
  %v1066 = vpop.permute.xlu0 %1065
  %1067 = vrot.lane.b32.xlu0 %v937, 12
  %v1068 = vpop.permute.xlu0 %1067
  %1069 = vrot.lane.b32.xlu0 %v938, 12
  %v1070 = vpop.permute.xlu0 %1069
  %1071 = vrot.lane.b32.xlu0 %v939, 12
  %v1072 = vpop.permute.xlu0 %1071
  %1073 = vrot.lane.b32.xlu0 %v940, 12
  %v1074 = vpop.permute.xlu0 %1073
  %1075 = vrot.lane.b32.xlu0 %v941, 12
  %v1076 = vpop.permute.xlu0 %1075
  %1077 = vrot.lane.b32.xlu0 %v942, 12
  %v1078 = vpop.permute.xlu0 %1077
  %1079 = vrot.lane.b32.xlu0 %v943, 12
  %v1080 = vpop.permute.xlu0 %1079
  %1081 = vrot.lane.b32.xlu0 %v944, 12
  %v1082 = vpop.permute.xlu0 %1081
  %1083 = vrot.lane.b32.xlu0 %v945, 12
  %v1084 = vpop.permute.xlu0 %1083
  %1085 = vrot.lane.b32.xlu0 %v946, 12
  %v1086 = vpop.permute.xlu0 %1085
  %1087 = vrot.lane.b32.xlu0 %v947, 12
  %v1088 = vpop.permute.xlu0 %1087
  %1089 = vrot.lane.b32.xlu0 %v948, 12
  %v1090 = vpop.permute.xlu0 %1089
  %1091 = vrot.lane.b32.xlu0 %v949, 12
  %v1092 = vpop.permute.xlu0 %1091
  %1093 = vrot.lane.b32.xlu0 %v950, 12
  %v1094 = vpop.permute.xlu0 %1093
  %1095 = vrot.lane.b32.xlu0 %v951, 12
  %v1096 = vpop.permute.xlu0 %1095
  %1097 = vrot.lane.b32.xlu0 %v952, 12
  %v1098 = vpop.permute.xlu0 %1097
  %1099 = vrot.lane.b32.xlu0 %v953, 12
  %v1100 = vpop.permute.xlu0 %1099
  %1101 = vrot.lane.b32.xlu0 %v954, 12
  %v1102 = vpop.permute.xlu0 %1101
  %1103 = vrot.lane.b32.xlu0 %v955, 12
  %v1104 = vpop.permute.xlu0 %1103
  %1105 = vrot.lane.b32.xlu0 %v956, 12
  %v1106 = vpop.permute.xlu0 %1105
  %1107 = vrot.lane.b32.xlu0 %v957, 12
  %v1108 = vpop.permute.xlu0 %1107
  %1109 = vrot.lane.b32.xlu0 %v958, 12
  %v1110 = vpop.permute.xlu0 %1109
  %1111 = vrot.lane.b32.xlu0 %v959, 12
  %v1112 = vpop.permute.xlu0 %1111
  %1113 = vrot.lane.b32.xlu0 %v960, 12
  %v1114 = vpop.permute.xlu0 %1113
  %1115 = vrot.lane.b32.xlu0 %v961, 12
  %v1116 = vpop.permute.xlu0 %1115
  %1117 = vrot.lane.b32.xlu0 %v962, 12
  %v1118 = vpop.permute.xlu0 %1117
  %1119 = vrot.lane.b32.xlu0 %v963, 12
  %v1120 = vpop.permute.xlu0 %1119
  %1121 = vrot.lane.b32.xlu0 %v964, 12
  %v1122 = vpop.permute.xlu0 %1121
  %1123 = vrot.lane.b32.xlu0 %v965, 12
  %v1124 = vpop.permute.xlu0 %1123
  %1125 = vrot.lane.b32.xlu0 %v966, 12
  %v1126 = vpop.permute.xlu0 %1125
  %1127 = vrot.lane.b32.xlu0 %v967, 12
  %v1128 = vpop.permute.xlu0 %1127
  %1129 = vrot.lane.b32.xlu0 %v968, 12
  %v1130 = vpop.permute.xlu0 %1129
  %1131 = vrot.lane.b32.xlu0 %v969, 12
  %v1132 = vpop.permute.xlu0 %1131
  %1133 = vrot.lane.b32.xlu0 %v970, 12
  %v1134 = vpop.permute.xlu0 %1133
  %1135 = vrot.lane.b32.xlu0 %v971, 12
  %v1136 = vpop.permute.xlu0 %1135
  %1137 = vrot.lane.b32.xlu0 %v972, 12
  %v1138 = vpop.permute.xlu0 %1137
  %1139 = vrot.lane.b32.xlu0 %v973, 12
  %v1140 = vpop.permute.xlu0 %1139
  %1141 = vrot.lane.b32.xlu0 %v974, 12
  %v1142 = vpop.permute.xlu0 %1141
  %1143 = vrot.lane.b32.xlu0 %v975, 12
  %v1144 = vpop.permute.xlu0 %1143
  %1145 = vrot.lane.b32.xlu0 %v976, 12
  %v1146 = vpop.permute.xlu0 %1145
  %1147 = vrot.lane.b32.xlu0 %v977, 12
  %v1148 = vpop.permute.xlu0 %1147
  %1149 = vrot.lane.b32.xlu0 %v978, 12
  %v1150 = vpop.permute.xlu0 %1149
  %1151 = vrot.lane.b32.xlu0 %v979, 12
  %v1152 = vpop.permute.xlu0 %1151
  %1153 = vrot.lane.b32.xlu0 %v980, 12
  %v1154 = vpop.permute.xlu0 %1153
  %1155 = vrot.lane.b32.xlu0 %v981, 12
  %v1156 = vpop.permute.xlu0 %1155
  %1157 = vrot.lane.b32.xlu0 %v982, 12
  %v1158 = vpop.permute.xlu0 %1157
  %1159 = vrot.lane.b32.xlu0 %v983, 12
  %v1160 = vpop.permute.xlu0 %1159
  %1161 = vrot.lane.b32.xlu0 %v984, 12
  %v1162 = vpop.permute.xlu0 %1161
  %1163 = vrot.lane.b32.xlu0 %v985, 12
  %v1164 = vpop.permute.xlu0 %1163
  %1165 = vrot.lane.b32.xlu0 %v986, 12
  %v1166 = vpop.permute.xlu0 %1165
  %1167 = vrot.lane.b32.xlu0 %v987, 12
  %v1168 = vpop.permute.xlu0 %1167
  %1169 = vrot.lane.b32.xlu0 %v988, 12
  %v1170 = vpop.permute.xlu0 %1169
  %1171 = vrot.lane.b32.xlu0 %v989, 12
  %v1172 = vpop.permute.xlu0 %1171
  %1173 = vrot.lane.b32.xlu0 %v990, 12
  %v1174 = vpop.permute.xlu0 %1173
  %1175 = vrot.lane.b32.xlu0 %v991, 12
  %v1176 = vpop.permute.xlu0 %1175
  %1177 = vrot.lane.b32.xlu0 %v992, 12
  %v1178 = vpop.permute.xlu0 %1177
  %1179 = vrot.lane.b32.xlu0 %v993, 12
  %v1180 = vpop.permute.xlu0 %1179
  %1181 = vrot.lane.b32.xlu0 %v994, 12
  %v1182 = vpop.permute.xlu0 %1181
  %1183 = vrot.lane.b32.xlu0 %v995, 12
  %v1184 = vpop.permute.xlu0 %1183
  %1185 = vrot.lane.b32.xlu0 %v996, 12
  %v1186 = vpop.permute.xlu0 %1185
  %1187 = vrot.lane.b32.xlu0 %v997, 12
  %v1188 = vpop.permute.xlu0 %1187
  %1189 = vrot.lane.b32.xlu0 %v998, 12
  %v1190 = vpop.permute.xlu0 %1189
  %vm1255 = vcmask 130144
  %1256 = vst.msk [vmem:[#allocation2 + $0x1] sm:$0xff] %vm1255, %v1064
  %vm1257 = vcmask 129120
  %1258 = vst.msk [vmem:[#allocation2 + $0x9] sm:$0x7f] %vm1257, %v1066
  %1259 = vst.msk [vmem:[#allocation2 + $0x11] sm:$0xff] %vm1255, %v1068
  %1260 = vst.msk [vmem:[#allocation2 + $0x19] sm:$0x7f] %vm1257, %v1070
  %1261 = vst.msk [vmem:[#allocation2 + $0x21] sm:$0xff] %vm1255, %v1072
  %1262 = vst.msk [vmem:[#allocation2 + $0x29] sm:$0x7f] %vm1257, %v1074
  %1263 = vst.msk [vmem:[#allocation2 + $0x31] sm:$0xff] %vm1255, %v1076
  %1264 = vst.msk [vmem:[#allocation2 + $0x39] sm:$0x7f] %vm1257, %v1078
  %1265 = vst.msk [vmem:[#allocation2 + $0x41] sm:$0xff] %vm1255, %v1080
  %1266 = vst.msk [vmem:[#allocation2 + $0x49] sm:$0x7f] %vm1257, %v1082
  %1267 = vst.msk [vmem:[#allocation2 + $0x51] sm:$0xff] %vm1255, %v1084
  %1268 = vst.msk [vmem:[#allocation2 + $0x59] sm:$0x7f] %vm1257, %v1086
  %1269 = vst.msk [vmem:[#allocation2 + $0x61] sm:$0xff] %vm1255, %v1088
  %1270 = vst.msk [vmem:[#allocation2 + $0x69] sm:$0x7f] %vm1257, %v1090
  %1271 = vst.msk [vmem:[#allocation2 + $0x71] sm:$0xff] %vm1255, %v1092
  %1272 = vst.msk [vmem:[#allocation2 + $0x79] sm:$0x7f] %vm1257, %v1094
  %1273 = vst.msk [vmem:[#allocation2 + $0x81] sm:$0xff] %vm1255, %v1096
  %1274 = vst.msk [vmem:[#allocation2 + $0x89] sm:$0x7f] %vm1257, %v1098
  %1275 = vst.msk [vmem:[#allocation2 + $0x91] sm:$0xff] %vm1255, %v1100
  %1276 = vst.msk [vmem:[#allocation2 + $0x99] sm:$0x7f] %vm1257, %v1102
  %1277 = vst.msk [vmem:[#allocation2 + $0xa1] sm:$0xff] %vm1255, %v1104
  %1278 = vst.msk [vmem:[#allocation2 + $0xa9] sm:$0x7f] %vm1257, %v1106
  %1279 = vst.msk [vmem:[#allocation2 + $0xb1] sm:$0xff] %vm1255, %v1108
  %1280 = vst.msk [vmem:[#allocation2 + $0xb9] sm:$0x7f] %vm1257, %v1110
  %1281 = vst.msk [vmem:[#allocation2 + $0xc1] sm:$0xff] %vm1255, %v1112
  %1282 = vst.msk [vmem:[#allocation2 + $0xc9] sm:$0x7f] %vm1257, %v1114
  %1283 = vst.msk [vmem:[#allocation2 + $0xd1] sm:$0xff] %vm1255, %v1116
  %1284 = vst.msk [vmem:[#allocation2 + $0xd9] sm:$0x7f] %vm1257, %v1118
  %1285 = vst.msk [vmem:[#allocation2 + $0xe1] sm:$0xff] %vm1255, %v1120
  %1286 = vst.msk [vmem:[#allocation2 + $0xe9] sm:$0x7f] %vm1257, %v1122
  %1287 = vst.msk [vmem:[#allocation2 + $0xf1] sm:$0xff] %vm1255, %v1124
  %1288 = vst.msk [vmem:[#allocation2 + $0xf9] sm:$0x7f] %vm1257, %v1126
  %1289 = vst.msk [vmem:[#allocation2 + $0x101] sm:$0xff] %vm1255, %v1128
  %1290 = vst.msk [vmem:[#allocation2 + $0x109] sm:$0x7f] %vm1257, %v1130
  %1291 = vst.msk [vmem:[#allocation2 + $0x111] sm:$0xff] %vm1255, %v1132
  %1292 = vst.msk [vmem:[#allocation2 + $0x119] sm:$0x7f] %vm1257, %v1134
  %1293 = vst.msk [vmem:[#allocation2 + $0x121] sm:$0xff] %vm1255, %v1136
  %1294 = vst.msk [vmem:[#allocation2 + $0x129] sm:$0x7f] %vm1257, %v1138
  %1295 = vst.msk [vmem:[#allocation2 + $0x131] sm:$0xff] %vm1255, %v1140
  %1296 = vst.msk [vmem:[#allocation2 + $0x139] sm:$0x7f] %vm1257, %v1142
  %1297 = vst.msk [vmem:[#allocation2 + $0x141] sm:$0xff] %vm1255, %v1144
  %1298 = vst.msk [vmem:[#allocation2 + $0x149] sm:$0x7f] %vm1257, %v1146
  %1299 = vst.msk [vmem:[#allocation2 + $0x151] sm:$0xff] %vm1255, %v1148
  %1300 = vst.msk [vmem:[#allocation2 + $0x159] sm:$0x7f] %vm1257, %v1150
  %1301 = vst.msk [vmem:[#allocation2 + $0x161] sm:$0xff] %vm1255, %v1152
  %1302 = vst.msk [vmem:[#allocation2 + $0x169] sm:$0x7f] %vm1257, %v1154
  %1303 = vst.msk [vmem:[#allocation2 + $0x171] sm:$0xff] %vm1255, %v1156
  %1304 = vst.msk [vmem:[#allocation2 + $0x179] sm:$0x7f] %vm1257, %v1158
  %1305 = vst.msk [vmem:[#allocation2 + $0x181] sm:$0xff] %vm1255, %v1160
  %1306 = vst.msk [vmem:[#allocation2 + $0x189] sm:$0x7f] %vm1257, %v1162
  %1307 = vst.msk [vmem:[#allocation2 + $0x191] sm:$0xff] %vm1255, %v1164
  %1308 = vst.msk [vmem:[#allocation2 + $0x199] sm:$0x7f] %vm1257, %v1166
  %1309 = vst.msk [vmem:[#allocation2 + $0x1a1] sm:$0xff] %vm1255, %v1168
  %1310 = vst.msk [vmem:[#allocation2 + $0x1a9] sm:$0x7f] %vm1257, %v1170
  %1311 = vst.msk [vmem:[#allocation2 + $0x1b1] sm:$0xff] %vm1255, %v1172
  %1312 = vst.msk [vmem:[#allocation2 + $0x1b9] sm:$0x7f] %vm1257, %v1174
  %1313 = vst.msk [vmem:[#allocation2 + $0x1c1] sm:$0xff] %vm1255, %v1176
  %1314 = vst.msk [vmem:[#allocation2 + $0x1c9] sm:$0x7f] %vm1257, %v1178
  %1315 = vst.msk [vmem:[#allocation2 + $0x1d1] sm:$0xff] %vm1255, %v1180
  %1316 = vst.msk [vmem:[#allocation2 + $0x1d9] sm:$0x7f] %vm1257, %v1182
  %1317 = vst.msk [vmem:[#allocation2 + $0x1e1] sm:$0xff] %vm1255, %v1184
  %1318 = vst.msk [vmem:[#allocation2 + $0x1e9] sm:$0x7f] %vm1257, %v1186
  %1319 = vst.msk [vmem:[#allocation2 + $0x1f1] sm:$0xff] %vm1255, %v1188
  %1320 = vst.msk [vmem:[#allocation2 + $0x1f9] sm:$0x7f] %vm1257, %v1190
  %v1321 = vld [vmem:[%s0] sm:$0xff]
  %v1322 = vld [vmem:[%s0 + $0x8] sm:$0xff]
  %v1323 = vld [vmem:[%s0 + $0x10] sm:$0xff]
  %v1324 = vld [vmem:[%s0 + $0x18] sm:$0xff]
  %v1325 = vld [vmem:[%s0 + $0x20] sm:$0xff]
  %v1326 = vld [vmem:[%s0 + $0x28] sm:$0xff]
  %v1327 = vld [vmem:[%s0 + $0x30] sm:$0xff]
  %v1328 = vld [vmem:[%s0 + $0x38] sm:$0xff]
  %v1329 = vld [vmem:[%s0 + $0x40] sm:$0xff]
  %v1330 = vld [vmem:[%s0 + $0x48] sm:$0xff]
  %v1331 = vld [vmem:[%s0 + $0x50] sm:$0xff]
  %v1332 = vld [vmem:[%s0 + $0x58] sm:$0xff]
  %v1333 = vld [vmem:[%s0 + $0x60] sm:$0xff]
  %v1334 = vld [vmem:[%s0 + $0x68] sm:$0xff]
  %v1335 = vld [vmem:[%s0 + $0x70] sm:$0xff]
  %v1336 = vld [vmem:[%s0 + $0x78] sm:$0xff]
  %v1337 = vld [vmem:[%s0 + $0x80] sm:$0xff]
  %v1338 = vld [vmem:[%s0 + $0x88] sm:$0xff]
  %v1339 = vld [vmem:[%s0 + $0x90] sm:$0xff]
  %v1340 = vld [vmem:[%s0 + $0x98] sm:$0xff]
  %v1341 = vld [vmem:[%s0 + $0xa0] sm:$0xff]
  %v1342 = vld [vmem:[%s0 + $0xa8] sm:$0xff]
  %v1343 = vld [vmem:[%s0 + $0xb0] sm:$0xff]
  %v1344 = vld [vmem:[%s0 + $0xb8] sm:$0xff]
  %v1345 = vld [vmem:[%s0 + $0xc0] sm:$0xff]
  %v1346 = vld [vmem:[%s0 + $0xc8] sm:$0xff]
  %v1347 = vld [vmem:[%s0 + $0xd0] sm:$0xff]
  %v1348 = vld [vmem:[%s0 + $0xd8] sm:$0xff]
  %v1349 = vld [vmem:[%s0 + $0xe0] sm:$0xff]
  %v1350 = vld [vmem:[%s0 + $0xe8] sm:$0xff]
  %v1351 = vld [vmem:[%s0 + $0xf0] sm:$0xff]
  %v1352 = vld [vmem:[%s0 + $0xf8] sm:$0xff]
  %v1353 = vld [vmem:[%s0 + $0x100] sm:$0xff]
  %v1354 = vld [vmem:[%s0 + $0x108] sm:$0xff]
  %v1355 = vld [vmem:[%s0 + $0x110] sm:$0xff]
  %v1356 = vld [vmem:[%s0 + $0x118] sm:$0xff]
  %v1357 = vld [vmem:[%s0 + $0x120] sm:$0xff]
  %v1358 = vld [vmem:[%s0 + $0x128] sm:$0xff]
  %v1359 = vld [vmem:[%s0 + $0x130] sm:$0xff]
  %v1360 = vld [vmem:[%s0 + $0x138] sm:$0xff]
  %v1361 = vld [vmem:[%s0 + $0x140] sm:$0xff]
  %v1362 = vld [vmem:[%s0 + $0x148] sm:$0xff]
  %v1363 = vld [vmem:[%s0 + $0x150] sm:$0xff]
  %v1364 = vld [vmem:[%s0 + $0x158] sm:$0xff]
  %v1365 = vld [vmem:[%s0 + $0x160] sm:$0xff]
  %v1366 = vld [vmem:[%s0 + $0x168] sm:$0xff]
  %v1367 = vld [vmem:[%s0 + $0x170] sm:$0xff]
  %v1368 = vld [vmem:[%s0 + $0x178] sm:$0xff]
  %v1369 = vld [vmem:[%s0 + $0x180] sm:$0xff]
  %v1370 = vld [vmem:[%s0 + $0x188] sm:$0xff]
  %v1371 = vld [vmem:[%s0 + $0x190] sm:$0xff]
  %v1372 = vld [vmem:[%s0 + $0x198] sm:$0xff]
  %v1373 = vld [vmem:[%s0 + $0x1a0] sm:$0xff]
  %v1374 = vld [vmem:[%s0 + $0x1a8] sm:$0xff]
  %v1375 = vld [vmem:[%s0 + $0x1b0] sm:$0xff]
  %v1376 = vld [vmem:[%s0 + $0x1b8] sm:$0xff]
  %v1377 = vld [vmem:[%s0 + $0x1c0] sm:$0xff]
  %v1378 = vld [vmem:[%s0 + $0x1c8] sm:$0xff]
  %v1379 = vld [vmem:[%s0 + $0x1d0] sm:$0xff]
  %v1380 = vld [vmem:[%s0 + $0x1d8] sm:$0xff]
  %v1381 = vld [vmem:[%s0 + $0x1e0] sm:$0xff]
  %v1382 = vld [vmem:[%s0 + $0x1e8] sm:$0xff]
  %v1383 = vld [vmem:[%s0 + $0x1f0] sm:$0xff]
  %v1384 = vld [vmem:[%s0 + $0x1f8] sm:$0xff]
  %1449 = vrot.lane.b32.xlu0 %v1321, 16
  %v1450 = vpop.permute.xlu0 %1449
  %1451 = vrot.lane.b32.xlu0 %v1322, 16
  %v1452 = vpop.permute.xlu0 %1451
  %1453 = vrot.lane.b32.xlu0 %v1323, 16
  %v1454 = vpop.permute.xlu0 %1453
  %1455 = vrot.lane.b32.xlu0 %v1324, 16
  %v1456 = vpop.permute.xlu0 %1455
  %1457 = vrot.lane.b32.xlu0 %v1325, 16
  %v1458 = vpop.permute.xlu0 %1457
  %1459 = vrot.lane.b32.xlu0 %v1326, 16
  %v1460 = vpop.permute.xlu0 %1459
  %1461 = vrot.lane.b32.xlu0 %v1327, 16
  %v1462 = vpop.permute.xlu0 %1461
  %1463 = vrot.lane.b32.xlu0 %v1328, 16
  %v1464 = vpop.permute.xlu0 %1463
  %1465 = vrot.lane.b32.xlu0 %v1329, 16
  %v1466 = vpop.permute.xlu0 %1465
  %1467 = vrot.lane.b32.xlu0 %v1330, 16
  %v1468 = vpop.permute.xlu0 %1467
  %1469 = vrot.lane.b32.xlu0 %v1331, 16
  %v1470 = vpop.permute.xlu0 %1469
  %1471 = vrot.lane.b32.xlu0 %v1332, 16
  %v1472 = vpop.permute.xlu0 %1471
  %1473 = vrot.lane.b32.xlu0 %v1333, 16
  %v1474 = vpop.permute.xlu0 %1473
  %1475 = vrot.lane.b32.xlu0 %v1334, 16
  %v1476 = vpop.permute.xlu0 %1475
  %1477 = vrot.lane.b32.xlu0 %v1335, 16
  %v1478 = vpop.permute.xlu0 %1477
  %1479 = vrot.lane.b32.xlu0 %v1336, 16
  %v1480 = vpop.permute.xlu0 %1479
  %1481 = vrot.lane.b32.xlu0 %v1337, 16
  %v1482 = vpop.permute.xlu0 %1481
  %1483 = vrot.lane.b32.xlu0 %v1338, 16
  %v1484 = vpop.permute.xlu0 %1483
  %1485 = vrot.lane.b32.xlu0 %v1339, 16
  %v1486 = vpop.permute.xlu0 %1485
  %1487 = vrot.lane.b32.xlu0 %v1340, 16
  %v1488 = vpop.permute.xlu0 %1487
  %1489 = vrot.lane.b32.xlu0 %v1341, 16
  %v1490 = vpop.permute.xlu0 %1489
  %1491 = vrot.lane.b32.xlu0 %v1342, 16
  %v1492 = vpop.permute.xlu0 %1491
  %1493 = vrot.lane.b32.xlu0 %v1343, 16
  %v1494 = vpop.permute.xlu0 %1493
  %1495 = vrot.lane.b32.xlu0 %v1344, 16
  %v1496 = vpop.permute.xlu0 %1495
  %1497 = vrot.lane.b32.xlu0 %v1345, 16
  %v1498 = vpop.permute.xlu0 %1497
  %1499 = vrot.lane.b32.xlu0 %v1346, 16
  %v1500 = vpop.permute.xlu0 %1499
  %1501 = vrot.lane.b32.xlu0 %v1347, 16
  %v1502 = vpop.permute.xlu0 %1501
  %1503 = vrot.lane.b32.xlu0 %v1348, 16
  %v1504 = vpop.permute.xlu0 %1503
  %1505 = vrot.lane.b32.xlu0 %v1349, 16
  %v1506 = vpop.permute.xlu0 %1505
  %1507 = vrot.lane.b32.xlu0 %v1350, 16
  %v1508 = vpop.permute.xlu0 %1507
  %1509 = vrot.lane.b32.xlu0 %v1351, 16
  %v1510 = vpop.permute.xlu0 %1509
  %1511 = vrot.lane.b32.xlu0 %v1352, 16
  %v1512 = vpop.permute.xlu0 %1511
  %1513 = vrot.lane.b32.xlu0 %v1353, 16
  %v1514 = vpop.permute.xlu0 %1513
  %1515 = vrot.lane.b32.xlu0 %v1354, 16
  %v1516 = vpop.permute.xlu0 %1515
  %1517 = vrot.lane.b32.xlu0 %v1355, 16
  %v1518 = vpop.permute.xlu0 %1517
  %1519 = vrot.lane.b32.xlu0 %v1356, 16
  %v1520 = vpop.permute.xlu0 %1519
  %1521 = vrot.lane.b32.xlu0 %v1357, 16
  %v1522 = vpop.permute.xlu0 %1521
  %1523 = vrot.lane.b32.xlu0 %v1358, 16
  %v1524 = vpop.permute.xlu0 %1523
  %1525 = vrot.lane.b32.xlu0 %v1359, 16
  %v1526 = vpop.permute.xlu0 %1525
  %1527 = vrot.lane.b32.xlu0 %v1360, 16
  %v1528 = vpop.permute.xlu0 %1527
  %1529 = vrot.lane.b32.xlu0 %v1361, 16
  %v1530 = vpop.permute.xlu0 %1529
  %1531 = vrot.lane.b32.xlu0 %v1362, 16
  %v1532 = vpop.permute.xlu0 %1531
  %1533 = vrot.lane.b32.xlu0 %v1363, 16
  %v1534 = vpop.permute.xlu0 %1533
  %1535 = vrot.lane.b32.xlu0 %v1364, 16
  %v1536 = vpop.permute.xlu0 %1535
  %1537 = vrot.lane.b32.xlu0 %v1365, 16
  %v1538 = vpop.permute.xlu0 %1537
  %1539 = vrot.lane.b32.xlu0 %v1366, 16
  %v1540 = vpop.permute.xlu0 %1539
  %1541 = vrot.lane.b32.xlu0 %v1367, 16
  %v1542 = vpop.permute.xlu0 %1541
  %1543 = vrot.lane.b32.xlu0 %v1368, 16
  %v1544 = vpop.permute.xlu0 %1543
  %1545 = vrot.lane.b32.xlu0 %v1369, 16
  %v1546 = vpop.permute.xlu0 %1545
  %1547 = vrot.lane.b32.xlu0 %v1370, 16
  %v1548 = vpop.permute.xlu0 %1547
  %1549 = vrot.lane.b32.xlu0 %v1371, 16
  %v1550 = vpop.permute.xlu0 %1549
  %1551 = vrot.lane.b32.xlu0 %v1372, 16
  %v1552 = vpop.permute.xlu0 %1551
  %1553 = vrot.lane.b32.xlu0 %v1373, 16
  %v1554 = vpop.permute.xlu0 %1553
  %1555 = vrot.lane.b32.xlu0 %v1374, 16
  %v1556 = vpop.permute.xlu0 %1555
  %1557 = vrot.lane.b32.xlu0 %v1375, 16
  %v1558 = vpop.permute.xlu0 %1557
  %1559 = vrot.lane.b32.xlu0 %v1376, 16
  %v1560 = vpop.permute.xlu0 %1559
  %1561 = vrot.lane.b32.xlu0 %v1377, 16
  %v1562 = vpop.permute.xlu0 %1561
  %1563 = vrot.lane.b32.xlu0 %v1378, 16
  %v1564 = vpop.permute.xlu0 %1563
  %1565 = vrot.lane.b32.xlu0 %v1379, 16
  %v1566 = vpop.permute.xlu0 %1565
  %1567 = vrot.lane.b32.xlu0 %v1380, 16
  %v1568 = vpop.permute.xlu0 %1567
  %1569 = vrot.lane.b32.xlu0 %v1381, 16
  %v1570 = vpop.permute.xlu0 %1569
  %1571 = vrot.lane.b32.xlu0 %v1382, 16
  %v1572 = vpop.permute.xlu0 %1571
  %1573 = vrot.lane.b32.xlu0 %v1383, 16
  %v1574 = vpop.permute.xlu0 %1573
  %1575 = vrot.lane.b32.xlu0 %v1384, 16
  %v1576 = vpop.permute.xlu0 %1575
  %vm1641 = vcmask 162944
  %1642 = vst.msk [vmem:[#allocation2] sm:$0xff] %vm1641, %v1450
  %1643 = vst.msk [vmem:[#allocation2 + $0x8] sm:$0xff] %vm1641, %v1452
  %1644 = vst.msk [vmem:[#allocation2 + $0x10] sm:$0xff] %vm1641, %v1454
  %1645 = vst.msk [vmem:[#allocation2 + $0x18] sm:$0xff] %vm1641, %v1456
  %1646 = vst.msk [vmem:[#allocation2 + $0x20] sm:$0xff] %vm1641, %v1458
  %1647 = vst.msk [vmem:[#allocation2 + $0x28] sm:$0xff] %vm1641, %v1460
  %1648 = vst.msk [vmem:[#allocation2 + $0x30] sm:$0xff] %vm1641, %v1462
  %1649 = vst.msk [vmem:[#allocation2 + $0x38] sm:$0xff] %vm1641, %v1464
  %1650 = vst.msk [vmem:[#allocation2 + $0x40] sm:$0xff] %vm1641, %v1466
  %1651 = vst.msk [vmem:[#allocation2 + $0x48] sm:$0xff] %vm1641, %v1468
  %1652 = vst.msk [vmem:[#allocation2 + $0x50] sm:$0xff] %vm1641, %v1470
  %1653 = vst.msk [vmem:[#allocation2 + $0x58] sm:$0xff] %vm1641, %v1472
  %1654 = vst.msk [vmem:[#allocation2 + $0x60] sm:$0xff] %vm1641, %v1474
  %1655 = vst.msk [vmem:[#allocation2 + $0x68] sm:$0xff] %vm1641, %v1476
  %1656 = vst.msk [vmem:[#allocation2 + $0x70] sm:$0xff] %vm1641, %v1478
  %1657 = vst.msk [vmem:[#allocation2 + $0x78] sm:$0xff] %vm1641, %v1480
  %1658 = vst.msk [vmem:[#allocation2 + $0x80] sm:$0xff] %vm1641, %v1482
  %1659 = vst.msk [vmem:[#allocation2 + $0x88] sm:$0xff] %vm1641, %v1484
  %1660 = vst.msk [vmem:[#allocation2 + $0x90] sm:$0xff] %vm1641, %v1486
  %1661 = vst.msk [vmem:[#allocation2 + $0x98] sm:$0xff] %vm1641, %v1488
  %1662 = vst.msk [vmem:[#allocation2 + $0xa0] sm:$0xff] %vm1641, %v1490
  %1663 = vst.msk [vmem:[#allocation2 + $0xa8] sm:$0xff] %vm1641, %v1492
  %1664 = vst.msk [vmem:[#allocation2 + $0xb0] sm:$0xff] %vm1641, %v1494
  %1665 = vst.msk [vmem:[#allocation2 + $0xb8] sm:$0xff] %vm1641, %v1496
  %1666 = vst.msk [vmem:[#allocation2 + $0xc0] sm:$0xff] %vm1641, %v1498
  %1667 = vst.msk [vmem:[#allocation2 + $0xc8] sm:$0xff] %vm1641, %v1500
  %1668 = vst.msk [vmem:[#allocation2 + $0xd0] sm:$0xff] %vm1641, %v1502
  %1669 = vst.msk [vmem:[#allocation2 + $0xd8] sm:$0xff] %vm1641, %v1504
  %1670 = vst.msk [vmem:[#allocation2 + $0xe0] sm:$0xff] %vm1641, %v1506
  %1671 = vst.msk [vmem:[#allocation2 + $0xe8] sm:$0xff] %vm1641, %v1508
  %1672 = vst.msk [vmem:[#allocation2 + $0xf0] sm:$0xff] %vm1641, %v1510
  %1673 = vst.msk [vmem:[#allocation2 + $0xf8] sm:$0xff] %vm1641, %v1512
  %1674 = vst.msk [vmem:[#allocation2 + $0x100] sm:$0xff] %vm1641, %v1514
  %1675 = vst.msk [vmem:[#allocation2 + $0x108] sm:$0xff] %vm1641, %v1516
  %1676 = vst.msk [vmem:[#allocation2 + $0x110] sm:$0xff] %vm1641, %v1518
  %1677 = vst.msk [vmem:[#allocation2 + $0x118] sm:$0xff] %vm1641, %v1520
  %1678 = vst.msk [vmem:[#allocation2 + $0x120] sm:$0xff] %vm1641, %v1522
  %1679 = vst.msk [vmem:[#allocation2 + $0x128] sm:$0xff] %vm1641, %v1524
  %1680 = vst.msk [vmem:[#allocation2 + $0x130] sm:$0xff] %vm1641, %v1526
  %1681 = vst.msk [vmem:[#allocation2 + $0x138] sm:$0xff] %vm1641, %v1528
  %1682 = vst.msk [vmem:[#allocation2 + $0x140] sm:$0xff] %vm1641, %v1530
  %1683 = vst.msk [vmem:[#allocation2 + $0x148] sm:$0xff] %vm1641, %v1532
  %1684 = vst.msk [vmem:[#allocation2 + $0x150] sm:$0xff] %vm1641, %v1534
  %1685 = vst.msk [vmem:[#allocation2 + $0x158] sm:$0xff] %vm1641, %v1536
  %1686 = vst.msk [vmem:[#allocation2 + $0x160] sm:$0xff] %vm1641, %v1538
  %1687 = vst.msk [vmem:[#allocation2 + $0x168] sm:$0xff] %vm1641, %v1540
  %1688 = vst.msk [vmem:[#allocation2 + $0x170] sm:$0xff] %vm1641, %v1542
  %1689 = vst.msk [vmem:[#allocation2 + $0x178] sm:$0xff] %vm1641, %v1544
  %1690 = vst.msk [vmem:[#allocation2 + $0x180] sm:$0xff] %vm1641, %v1546
  %1691 = vst.msk [vmem:[#allocation2 + $0x188] sm:$0xff] %vm1641, %v1548
  %1692 = vst.msk [vmem:[#allocation2 + $0x190] sm:$0xff] %vm1641, %v1550
  %1693 = vst.msk [vmem:[#allocation2 + $0x198] sm:$0xff] %vm1641, %v1552
  %1694 = vst.msk [vmem:[#allocation2 + $0x1a0] sm:$0xff] %vm1641, %v1554
  %1695 = vst.msk [vmem:[#allocation2 + $0x1a8] sm:$0xff] %vm1641, %v1556
  %1696 = vst.msk [vmem:[#allocation2 + $0x1b0] sm:$0xff] %vm1641, %v1558
  %1697 = vst.msk [vmem:[#allocation2 + $0x1b8] sm:$0xff] %vm1641, %v1560
  %1698 = vst.msk [vmem:[#allocation2 + $0x1c0] sm:$0xff] %vm1641, %v1562
  %1699 = vst.msk [vmem:[#allocation2 + $0x1c8] sm:$0xff] %vm1641, %v1564
  %1700 = vst.msk [vmem:[#allocation2 + $0x1d0] sm:$0xff] %vm1641, %v1566
  %1701 = vst.msk [vmem:[#allocation2 + $0x1d8] sm:$0xff] %vm1641, %v1568
  %1702 = vst.msk [vmem:[#allocation2 + $0x1e0] sm:$0xff] %vm1641, %v1570
  %1703 = vst.msk [vmem:[#allocation2 + $0x1e8] sm:$0xff] %vm1641, %v1572
  %1704 = vst.msk [vmem:[#allocation2 + $0x1f0] sm:$0xff] %vm1641, %v1574
  %1705 = vst.msk [vmem:[#allocation2 + $0x1f8] sm:$0xff] %vm1641, %v1576
  %v1706 = vld [vmem:[%s0 + $0x1] sm:$0xff]
  %v1707 = vld [vmem:[%s0 + $0x9] sm:$0x7f]
  %v1708 = vld [vmem:[%s0 + $0x11] sm:$0xff]
  %v1709 = vld [vmem:[%s0 + $0x19] sm:$0x7f]
  %v1710 = vld [vmem:[%s0 + $0x21] sm:$0xff]
  %v1711 = vld [vmem:[%s0 + $0x29] sm:$0x7f]
  %v1712 = vld [vmem:[%s0 + $0x31] sm:$0xff]
  %v1713 = vld [vmem:[%s0 + $0x39] sm:$0x7f]
  %v1714 = vld [vmem:[%s0 + $0x41] sm:$0xff]
  %v1715 = vld [vmem:[%s0 + $0x49] sm:$0x7f]
  %v1716 = vld [vmem:[%s0 + $0x51] sm:$0xff]
  %v1717 = vld [vmem:[%s0 + $0x59] sm:$0x7f]
  %v1718 = vld [vmem:[%s0 + $0x61] sm:$0xff]
  %v1719 = vld [vmem:[%s0 + $0x69] sm:$0x7f]
  %v1720 = vld [vmem:[%s0 + $0x71] sm:$0xff]
  %v1721 = vld [vmem:[%s0 + $0x79] sm:$0x7f]
  %v1722 = vld [vmem:[%s0 + $0x81] sm:$0xff]
  %v1723 = vld [vmem:[%s0 + $0x89] sm:$0x7f]
  %v1724 = vld [vmem:[%s0 + $0x91] sm:$0xff]
  %v1725 = vld [vmem:[%s0 + $0x99] sm:$0x7f]
  %v1726 = vld [vmem:[%s0 + $0xa1] sm:$0xff]
  %v1727 = vld [vmem:[%s0 + $0xa9] sm:$0x7f]
  %v1728 = vld [vmem:[%s0 + $0xb1] sm:$0xff]
  %v1729 = vld [vmem:[%s0 + $0xb9] sm:$0x7f]
  %v1730 = vld [vmem:[%s0 + $0xc1] sm:$0xff]
  %v1731 = vld [vmem:[%s0 + $0xc9] sm:$0x7f]
  %v1732 = vld [vmem:[%s0 + $0xd1] sm:$0xff]
  %v1733 = vld [vmem:[%s0 + $0xd9] sm:$0x7f]
  %v1734 = vld [vmem:[%s0 + $0xe1] sm:$0xff]
  %v1735 = vld [vmem:[%s0 + $0xe9] sm:$0x7f]
  %v1736 = vld [vmem:[%s0 + $0xf1] sm:$0xff]
  %v1737 = vld [vmem:[%s0 + $0xf9] sm:$0x7f]
  %v1738 = vld [vmem:[%s0 + $0x101] sm:$0xff]
  %v1739 = vld [vmem:[%s0 + $0x109] sm:$0x7f]
  %v1740 = vld [vmem:[%s0 + $0x111] sm:$0xff]
  %v1741 = vld [vmem:[%s0 + $0x119] sm:$0x7f]
  %v1742 = vld [vmem:[%s0 + $0x121] sm:$0xff]
  %v1743 = vld [vmem:[%s0 + $0x129] sm:$0x7f]
  %v1744 = vld [vmem:[%s0 + $0x131] sm:$0xff]
  %v1745 = vld [vmem:[%s0 + $0x139] sm:$0x7f]
  %v1746 = vld [vmem:[%s0 + $0x141] sm:$0xff]
  %v1747 = vld [vmem:[%s0 + $0x149] sm:$0x7f]
  %v1748 = vld [vmem:[%s0 + $0x151] sm:$0xff]
  %v1749 = vld [vmem:[%s0 + $0x159] sm:$0x7f]
  %v1750 = vld [vmem:[%s0 + $0x161] sm:$0xff]
  %v1751 = vld [vmem:[%s0 + $0x169] sm:$0x7f]
  %v1752 = vld [vmem:[%s0 + $0x171] sm:$0xff]
  %v1753 = vld [vmem:[%s0 + $0x179] sm:$0x7f]
  %v1754 = vld [vmem:[%s0 + $0x181] sm:$0xff]
  %v1755 = vld [vmem:[%s0 + $0x189] sm:$0x7f]
  %v1756 = vld [vmem:[%s0 + $0x191] sm:$0xff]
  %v1757 = vld [vmem:[%s0 + $0x199] sm:$0x7f]
  %v1758 = vld [vmem:[%s0 + $0x1a1] sm:$0xff]
  %v1759 = vld [vmem:[%s0 + $0x1a9] sm:$0x7f]
  %v1760 = vld [vmem:[%s0 + $0x1b1] sm:$0xff]
  %v1761 = vld [vmem:[%s0 + $0x1b9] sm:$0x7f]
  %v1762 = vld [vmem:[%s0 + $0x1c1] sm:$0xff]
  %v1763 = vld [vmem:[%s0 + $0x1c9] sm:$0x7f]
  %v1764 = vld [vmem:[%s0 + $0x1d1] sm:$0xff]
  %v1765 = vld [vmem:[%s0 + $0x1d9] sm:$0x7f]
  %v1766 = vld [vmem:[%s0 + $0x1e1] sm:$0xff]
  %v1767 = vld [vmem:[%s0 + $0x1e9] sm:$0x7f]
  %v1768 = vld [vmem:[%s0 + $0x1f1] sm:$0xff]
  %v1769 = vld [vmem:[%s0 + $0x1f9] sm:$0x7f]
  %1834 = vrot.lane.b32.xlu0 %v1706, 20
  %v1835 = vpop.permute.xlu0 %1834
  %1836 = vrot.lane.b32.xlu0 %v1707, 20
  %v1837 = vpop.permute.xlu0 %1836
  %1838 = vrot.lane.b32.xlu0 %v1708, 20
  %v1839 = vpop.permute.xlu0 %1838
  %1840 = vrot.lane.b32.xlu0 %v1709, 20
  %v1841 = vpop.permute.xlu0 %1840
  %1842 = vrot.lane.b32.xlu0 %v1710, 20
  %v1843 = vpop.permute.xlu0 %1842
  %1844 = vrot.lane.b32.xlu0 %v1711, 20
  %v1845 = vpop.permute.xlu0 %1844
  %1846 = vrot.lane.b32.xlu0 %v1712, 20
  %v1847 = vpop.permute.xlu0 %1846
  %1848 = vrot.lane.b32.xlu0 %v1713, 20
  %v1849 = vpop.permute.xlu0 %1848
  %1850 = vrot.lane.b32.xlu0 %v1714, 20
  %v1851 = vpop.permute.xlu0 %1850
  %1852 = vrot.lane.b32.xlu0 %v1715, 20
  %v1853 = vpop.permute.xlu0 %1852
  %1854 = vrot.lane.b32.xlu0 %v1716, 20
  %v1855 = vpop.permute.xlu0 %1854
  %1856 = vrot.lane.b32.xlu0 %v1717, 20
  %v1857 = vpop.permute.xlu0 %1856
  %1858 = vrot.lane.b32.xlu0 %v1718, 20
  %v1859 = vpop.permute.xlu0 %1858
  %1860 = vrot.lane.b32.xlu0 %v1719, 20
  %v1861 = vpop.permute.xlu0 %1860
  %1862 = vrot.lane.b32.xlu0 %v1720, 20
  %v1863 = vpop.permute.xlu0 %1862
  %1864 = vrot.lane.b32.xlu0 %v1721, 20
  %v1865 = vpop.permute.xlu0 %1864
  %1866 = vrot.lane.b32.xlu0 %v1722, 20
  %v1867 = vpop.permute.xlu0 %1866
  %1868 = vrot.lane.b32.xlu0 %v1723, 20
  %v1869 = vpop.permute.xlu0 %1868
  %1870 = vrot.lane.b32.xlu0 %v1724, 20
  %v1871 = vpop.permute.xlu0 %1870
  %1872 = vrot.lane.b32.xlu0 %v1725, 20
  %v1873 = vpop.permute.xlu0 %1872
  %1874 = vrot.lane.b32.xlu0 %v1726, 20
  %v1875 = vpop.permute.xlu0 %1874
  %1876 = vrot.lane.b32.xlu0 %v1727, 20
  %v1877 = vpop.permute.xlu0 %1876
  %1878 = vrot.lane.b32.xlu0 %v1728, 20
  %v1879 = vpop.permute.xlu0 %1878
  %1880 = vrot.lane.b32.xlu0 %v1729, 20
  %v1881 = vpop.permute.xlu0 %1880
  %1882 = vrot.lane.b32.xlu0 %v1730, 20
  %v1883 = vpop.permute.xlu0 %1882
  %1884 = vrot.lane.b32.xlu0 %v1731, 20
  %v1885 = vpop.permute.xlu0 %1884
  %1886 = vrot.lane.b32.xlu0 %v1732, 20
  %v1887 = vpop.permute.xlu0 %1886
  %1888 = vrot.lane.b32.xlu0 %v1733, 20
  %v1889 = vpop.permute.xlu0 %1888
  %1890 = vrot.lane.b32.xlu0 %v1734, 20
  %v1891 = vpop.permute.xlu0 %1890
  %1892 = vrot.lane.b32.xlu0 %v1735, 20
  %v1893 = vpop.permute.xlu0 %1892
  %1894 = vrot.lane.b32.xlu0 %v1736, 20
  %v1895 = vpop.permute.xlu0 %1894
  %1896 = vrot.lane.b32.xlu0 %v1737, 20
  %v1897 = vpop.permute.xlu0 %1896
  %1898 = vrot.lane.b32.xlu0 %v1738, 20
  %v1899 = vpop.permute.xlu0 %1898
  %1900 = vrot.lane.b32.xlu0 %v1739, 20
  %v1901 = vpop.permute.xlu0 %1900
  %1902 = vrot.lane.b32.xlu0 %v1740, 20
  %v1903 = vpop.permute.xlu0 %1902
  %1904 = vrot.lane.b32.xlu0 %v1741, 20
  %v1905 = vpop.permute.xlu0 %1904
  %1906 = vrot.lane.b32.xlu0 %v1742, 20
  %v1907 = vpop.permute.xlu0 %1906
  %1908 = vrot.lane.b32.xlu0 %v1743, 20
  %v1909 = vpop.permute.xlu0 %1908
  %1910 = vrot.lane.b32.xlu0 %v1744, 20
  %v1911 = vpop.permute.xlu0 %1910
  %1912 = vrot.lane.b32.xlu0 %v1745, 20
  %v1913 = vpop.permute.xlu0 %1912
  %1914 = vrot.lane.b32.xlu0 %v1746, 20
  %v1915 = vpop.permute.xlu0 %1914
  %1916 = vrot.lane.b32.xlu0 %v1747, 20
  %v1917 = vpop.permute.xlu0 %1916
  %1918 = vrot.lane.b32.xlu0 %v1748, 20
  %v1919 = vpop.permute.xlu0 %1918
  %1920 = vrot.lane.b32.xlu0 %v1749, 20
  %v1921 = vpop.permute.xlu0 %1920
  %1922 = vrot.lane.b32.xlu0 %v1750, 20
  %v1923 = vpop.permute.xlu0 %1922
  %1924 = vrot.lane.b32.xlu0 %v1751, 20
  %v1925 = vpop.permute.xlu0 %1924
  %1926 = vrot.lane.b32.xlu0 %v1752, 20
  %v1927 = vpop.permute.xlu0 %1926
  %1928 = vrot.lane.b32.xlu0 %v1753, 20
  %v1929 = vpop.permute.xlu0 %1928
  %1930 = vrot.lane.b32.xlu0 %v1754, 20
  %v1931 = vpop.permute.xlu0 %1930
  %1932 = vrot.lane.b32.xlu0 %v1755, 20
  %v1933 = vpop.permute.xlu0 %1932
  %1934 = vrot.lane.b32.xlu0 %v1756, 20
  %v1935 = vpop.permute.xlu0 %1934
  %1936 = vrot.lane.b32.xlu0 %v1757, 20
  %v1937 = vpop.permute.xlu0 %1936
  %1938 = vrot.lane.b32.xlu0 %v1758, 20
  %v1939 = vpop.permute.xlu0 %1938
  %1940 = vrot.lane.b32.xlu0 %v1759, 20
  %v1941 = vpop.permute.xlu0 %1940
  %1942 = vrot.lane.b32.xlu0 %v1760, 20
  %v1943 = vpop.permute.xlu0 %1942
  %1944 = vrot.lane.b32.xlu0 %v1761, 20
  %v1945 = vpop.permute.xlu0 %1944
  %1946 = vrot.lane.b32.xlu0 %v1762, 20
  %v1947 = vpop.permute.xlu0 %1946
  %1948 = vrot.lane.b32.xlu0 %v1763, 20
  %v1949 = vpop.permute.xlu0 %1948
  %1950 = vrot.lane.b32.xlu0 %v1764, 20
  %v1951 = vpop.permute.xlu0 %1950
  %1952 = vrot.lane.b32.xlu0 %v1765, 20
  %v1953 = vpop.permute.xlu0 %1952
  %1954 = vrot.lane.b32.xlu0 %v1766, 20
  %v1955 = vpop.permute.xlu0 %1954
  %1956 = vrot.lane.b32.xlu0 %v1767, 20
  %v1957 = vpop.permute.xlu0 %1956
  %1958 = vrot.lane.b32.xlu0 %v1768, 20
  %v1959 = vpop.permute.xlu0 %1958
  %1960 = vrot.lane.b32.xlu0 %v1769, 20
  %v1961 = vpop.permute.xlu0 %1960
  %vm2026 = vcmask 195744
  %2027 = vst.msk [vmem:[#allocation2] sm:$0xff] %vm2026, %v1835
  %vm2028 = vcmask 194720
  %2029 = vst.msk [vmem:[#allocation2 + $0x8] sm:$0x7f] %vm2028, %v1837
  %2030 = vst.msk [vmem:[#allocation2 + $0x10] sm:$0xff] %vm2026, %v1839
  %2031 = vst.msk [vmem:[#allocation2 + $0x18] sm:$0x7f] %vm2028, %v1841
  %2032 = vst.msk [vmem:[#allocation2 + $0x20] sm:$0xff] %vm2026, %v1843
  %2033 = vst.msk [vmem:[#allocation2 + $0x28] sm:$0x7f] %vm2028, %v1845
  %2034 = vst.msk [vmem:[#allocation2 + $0x30] sm:$0xff] %vm2026, %v1847
  %2035 = vst.msk [vmem:[#allocation2 + $0x38] sm:$0x7f] %vm2028, %v1849
  %2036 = vst.msk [vmem:[#allocation2 + $0x40] sm:$0xff] %vm2026, %v1851
  %2037 = vst.msk [vmem:[#allocation2 + $0x48] sm:$0x7f] %vm2028, %v1853
  %2038 = vst.msk [vmem:[#allocation2 + $0x50] sm:$0xff] %vm2026, %v1855
  %2039 = vst.msk [vmem:[#allocation2 + $0x58] sm:$0x7f] %vm2028, %v1857
  %2040 = vst.msk [vmem:[#allocation2 + $0x60] sm:$0xff] %vm2026, %v1859
  %2041 = vst.msk [vmem:[#allocation2 + $0x68] sm:$0x7f] %vm2028, %v1861
  %2042 = vst.msk [vmem:[#allocation2 + $0x70] sm:$0xff] %vm2026, %v1863
  %2043 = vst.msk [vmem:[#allocation2 + $0x78] sm:$0x7f] %vm2028, %v1865
  %2044 = vst.msk [vmem:[#allocation2 + $0x80] sm:$0xff] %vm2026, %v1867
  %2045 = vst.msk [vmem:[#allocation2 + $0x88] sm:$0x7f] %vm2028, %v1869
  %2046 = vst.msk [vmem:[#allocation2 + $0x90] sm:$0xff] %vm2026, %v1871
  %2047 = vst.msk [vmem:[#allocation2 + $0x98] sm:$0x7f] %vm2028, %v1873
  %2048 = vst.msk [vmem:[#allocation2 + $0xa0] sm:$0xff] %vm2026, %v1875
  %2049 = vst.msk [vmem:[#allocation2 + $0xa8] sm:$0x7f] %vm2028, %v1877
  %2050 = vst.msk [vmem:[#allocation2 + $0xb0] sm:$0xff] %vm2026, %v1879
  %2051 = vst.msk [vmem:[#allocation2 + $0xb8] sm:$0x7f] %vm2028, %v1881
  %2052 = vst.msk [vmem:[#allocation2 + $0xc0] sm:$0xff] %vm2026, %v1883
  %2053 = vst.msk [vmem:[#allocation2 + $0xc8] sm:$0x7f] %vm2028, %v1885
  %2054 = vst.msk [vmem:[#allocation2 + $0xd0] sm:$0xff] %vm2026, %v1887
  %2055 = vst.msk [vmem:[#allocation2 + $0xd8] sm:$0x7f] %vm2028, %v1889
  %2056 = vst.msk [vmem:[#allocation2 + $0xe0] sm:$0xff] %vm2026, %v1891
  %2057 = vst.msk [vmem:[#allocation2 + $0xe8] sm:$0x7f] %vm2028, %v1893
  %2058 = vst.msk [vmem:[#allocation2 + $0xf0] sm:$0xff] %vm2026, %v1895
  %2059 = vst.msk [vmem:[#allocation2 + $0xf8] sm:$0x7f] %vm2028, %v1897
  %2060 = vst.msk [vmem:[#allocation2 + $0x100] sm:$0xff] %vm2026, %v1899
  %2061 = vst.msk [vmem:[#allocation2 + $0x108] sm:$0x7f] %vm2028, %v1901
  %2062 = vst.msk [vmem:[#allocation2 + $0x110] sm:$0xff] %vm2026, %v1903
  %2063 = vst.msk [vmem:[#allocation2 + $0x118] sm:$0x7f] %vm2028, %v1905
  %2064 = vst.msk [vmem:[#allocation2 + $0x120] sm:$0xff] %vm2026, %v1907
  %2065 = vst.msk [vmem:[#allocation2 + $0x128] sm:$0x7f] %vm2028, %v1909
  %2066 = vst.msk [vmem:[#allocation2 + $0x130] sm:$0xff] %vm2026, %v1911
  %2067 = vst.msk [vmem:[#allocation2 + $0x138] sm:$0x7f] %vm2028, %v1913
  %2068 = vst.msk [vmem:[#allocation2 + $0x140] sm:$0xff] %vm2026, %v1915
  %2069 = vst.msk [vmem:[#allocation2 + $0x148] sm:$0x7f] %vm2028, %v1917
  %2070 = vst.msk [vmem:[#allocation2 + $0x150] sm:$0xff] %vm2026, %v1919
  %2071 = vst.msk [vmem:[#allocation2 + $0x158] sm:$0x7f] %vm2028, %v1921
  %2072 = vst.msk [vmem:[#allocation2 + $0x160] sm:$0xff] %vm2026, %v1923
  %2073 = vst.msk [vmem:[#allocation2 + $0x168] sm:$0x7f] %vm2028, %v1925
  %2074 = vst.msk [vmem:[#allocation2 + $0x170] sm:$0xff] %vm2026, %v1927
  %2075 = vst.msk [vmem:[#allocation2 + $0x178] sm:$0x7f] %vm2028, %v1929
  %2076 = vst.msk [vmem:[#allocation2 + $0x180] sm:$0xff] %vm2026, %v1931
  %2077 = vst.msk [vmem:[#allocation2 + $0x188] sm:$0x7f] %vm2028, %v1933
  %2078 = vst.msk [vmem:[#allocation2 + $0x190] sm:$0xff] %vm2026, %v1935
  %2079 = vst.msk [vmem:[#allocation2 + $0x198] sm:$0x7f] %vm2028, %v1937
  %2080 = vst.msk [vmem:[#allocation2 + $0x1a0] sm:$0xff] %vm2026, %v1939
  %2081 = vst.msk [vmem:[#allocation2 + $0x1a8] sm:$0x7f] %vm2028, %v1941
  %2082 = vst.msk [vmem:[#allocation2 + $0x1b0] sm:$0xff] %vm2026, %v1943
  %2083 = vst.msk [vmem:[#allocation2 + $0x1b8] sm:$0x7f] %vm2028, %v1945
  %2084 = vst.msk [vmem:[#allocation2 + $0x1c0] sm:$0xff] %vm2026, %v1947
  %2085 = vst.msk [vmem:[#allocation2 + $0x1c8] sm:$0x7f] %vm2028, %v1949
  %2086 = vst.msk [vmem:[#allocation2 + $0x1d0] sm:$0xff] %vm2026, %v1951
  %2087 = vst.msk [vmem:[#allocation2 + $0x1d8] sm:$0x7f] %vm2028, %v1953
  %2088 = vst.msk [vmem:[#allocation2 + $0x1e0] sm:$0xff] %vm2026, %v1955
  %2089 = vst.msk [vmem:[#allocation2 + $0x1e8] sm:$0x7f] %vm2028, %v1957
  %2090 = vst.msk [vmem:[#allocation2 + $0x1f0] sm:$0xff] %vm2026, %v1959
  %2091 = vst.msk [vmem:[#allocation2 + $0x1f8] sm:$0x7f] %vm2028, %v1961
  %s2092 = scalar_lea.vmem %s0, 16
  %v2093 = vld [vmem:[%s2092] sm:$0xff]
  %v2094 = vld [vmem:[%s2092 + $0x8] sm:$0x7f]
  %v2095 = vld [vmem:[%s2092 + $0x10] sm:$0xff]
  %v2096 = vld [vmem:[%s2092 + $0x18] sm:$0x7f]
  %v2097 = vld [vmem:[%s2092 + $0x20] sm:$0xff]
  %v2098 = vld [vmem:[%s2092 + $0x28] sm:$0x7f]
  %v2099 = vld [vmem:[%s2092 + $0x30] sm:$0xff]
  %v2100 = vld [vmem:[%s2092 + $0x38] sm:$0x7f]
  %v2101 = vld [vmem:[%s2092 + $0x40] sm:$0xff]
  %v2102 = vld [vmem:[%s2092 + $0x48] sm:$0x7f]
  %v2103 = vld [vmem:[%s2092 + $0x50] sm:$0xff]
  %v2104 = vld [vmem:[%s2092 + $0x58] sm:$0x7f]
  %v2105 = vld [vmem:[%s2092 + $0x60] sm:$0xff]
  %v2106 = vld [vmem:[%s2092 + $0x68] sm:$0x7f]
  %v2107 = vld [vmem:[%s2092 + $0x70] sm:$0xff]
  %v2108 = vld [vmem:[%s2092 + $0x78] sm:$0x7f]
  %v2109 = vld [vmem:[%s2092 + $0x80] sm:$0xff]
  %v2110 = vld [vmem:[%s2092 + $0x88] sm:$0x7f]
  %v2111 = vld [vmem:[%s2092 + $0x90] sm:$0xff]
  %v2112 = vld [vmem:[%s2092 + $0x98] sm:$0x7f]
  %v2113 = vld [vmem:[%s2092 + $0xa0] sm:$0xff]
  %v2114 = vld [vmem:[%s2092 + $0xa8] sm:$0x7f]
  %v2115 = vld [vmem:[%s2092 + $0xb0] sm:$0xff]
  %v2116 = vld [vmem:[%s2092 + $0xb8] sm:$0x7f]
  %v2117 = vld [vmem:[%s2092 + $0xc0] sm:$0xff]
  %v2118 = vld [vmem:[%s2092 + $0xc8] sm:$0x7f]
  %v2119 = vld [vmem:[%s2092 + $0xd0] sm:$0xff]
  %v2120 = vld [vmem:[%s2092 + $0xd8] sm:$0x7f]
  %v2121 = vld [vmem:[%s2092 + $0xe0] sm:$0xff]
  %v2122 = vld [vmem:[%s2092 + $0xe8] sm:$0x7f]
  %v2123 = vld [vmem:[%s2092 + $0x100] sm:$0xff]
  %v2124 = vld [vmem:[%s2092 + $0x108] sm:$0x7f]
  %v2125 = vld [vmem:[%s2092 + $0x110] sm:$0xff]
  %v2126 = vld [vmem:[%s2092 + $0x118] sm:$0x7f]
  %v2127 = vld [vmem:[%s2092 + $0x120] sm:$0xff]
  %v2128 = vld [vmem:[%s2092 + $0x128] sm:$0x7f]
  %v2129 = vld [vmem:[%s2092 + $0x130] sm:$0xff]
  %v2130 = vld [vmem:[%s2092 + $0x138] sm:$0x7f]
  %v2131 = vld [vmem:[%s2092 + $0x140] sm:$0xff]
  %v2132 = vld [vmem:[%s2092 + $0x148] sm:$0x7f]
  %v2133 = vld [vmem:[%s2092 + $0x150] sm:$0xff]
  %v2134 = vld [vmem:[%s2092 + $0x158] sm:$0x7f]
  %v2135 = vld [vmem:[%s2092 + $0x160] sm:$0xff]
  %v2136 = vld [vmem:[%s2092 + $0x168] sm:$0x7f]
  %v2137 = vld [vmem:[%s2092 + $0x170] sm:$0xff]
  %v2138 = vld [vmem:[%s2092 + $0x178] sm:$0x7f]
  %v2139 = vld [vmem:[%s2092 + $0x180] sm:$0xff]
  %v2140 = vld [vmem:[%s2092 + $0x188] sm:$0x7f]
  %v2141 = vld [vmem:[%s2092 + $0x190] sm:$0xff]
  %v2142 = vld [vmem:[%s2092 + $0x198] sm:$0x7f]
  %v2143 = vld [vmem:[%s2092 + $0x1a0] sm:$0xff]
  %v2144 = vld [vmem:[%s2092 + $0x1a8] sm:$0x7f]
  %v2145 = vld [vmem:[%s2092 + $0x1b0] sm:$0xff]
  %v2146 = vld [vmem:[%s2092 + $0x1b8] sm:$0x7f]
  %v2147 = vld [vmem:[%s2092 + $0x1c0] sm:$0xff]
  %v2148 = vld [vmem:[%s2092 + $0x1c8] sm:$0x7f]
  %v2149 = vld [vmem:[%s2092 + $0x1d0] sm:$0xff]
  %v2150 = vld [vmem:[%s2092 + $0x1d8] sm:$0x7f]
  %v2151 = vld [vmem:[%s2092 + $0x1e0] sm:$0xff]
  %v2152 = vld [vmem:[%s2092 + $0x1e8] sm:$0x7f]
  %2213 = vrot.lane.b32.xlu0 %v2093, 24
  %v2214 = vpop.permute.xlu0 %2213
  %2215 = vrot.lane.b32.xlu0 %v2094, 24
  %v2216 = vpop.permute.xlu0 %2215
  %2217 = vrot.lane.b32.xlu0 %v2095, 24
  %v2218 = vpop.permute.xlu0 %2217
  %2219 = vrot.lane.b32.xlu0 %v2096, 24
  %v2220 = vpop.permute.xlu0 %2219
  %2221 = vrot.lane.b32.xlu0 %v2097, 24
  %v2222 = vpop.permute.xlu0 %2221
  %2223 = vrot.lane.b32.xlu0 %v2098, 24
  %v2224 = vpop.permute.xlu0 %2223
  %2225 = vrot.lane.b32.xlu0 %v2099, 24
  %v2226 = vpop.permute.xlu0 %2225
  %2227 = vrot.lane.b32.xlu0 %v2100, 24
  %v2228 = vpop.permute.xlu0 %2227
  %2229 = vrot.lane.b32.xlu0 %v2101, 24
  %v2230 = vpop.permute.xlu0 %2229
  %2231 = vrot.lane.b32.xlu0 %v2102, 24
  %v2232 = vpop.permute.xlu0 %2231
  %2233 = vrot.lane.b32.xlu0 %v2103, 24
  %v2234 = vpop.permute.xlu0 %2233
  %2235 = vrot.lane.b32.xlu0 %v2104, 24
  %v2236 = vpop.permute.xlu0 %2235
  %2237 = vrot.lane.b32.xlu0 %v2105, 24
  %v2238 = vpop.permute.xlu0 %2237
  %2239 = vrot.lane.b32.xlu0 %v2106, 24
  %v2240 = vpop.permute.xlu0 %2239
  %2241 = vrot.lane.b32.xlu0 %v2107, 24
  %v2242 = vpop.permute.xlu0 %2241
  %2243 = vrot.lane.b32.xlu0 %v2108, 24
  %v2244 = vpop.permute.xlu0 %2243
  %2245 = vrot.lane.b32.xlu0 %v2109, 24
  %v2246 = vpop.permute.xlu0 %2245
  %2247 = vrot.lane.b32.xlu0 %v2110, 24
  %v2248 = vpop.permute.xlu0 %2247
  %2249 = vrot.lane.b32.xlu0 %v2111, 24
  %v2250 = vpop.permute.xlu0 %2249
  %2251 = vrot.lane.b32.xlu0 %v2112, 24
  %v2252 = vpop.permute.xlu0 %2251
  %2253 = vrot.lane.b32.xlu0 %v2113, 24
  %v2254 = vpop.permute.xlu0 %2253
  %2255 = vrot.lane.b32.xlu0 %v2114, 24
  %v2256 = vpop.permute.xlu0 %2255
  %2257 = vrot.lane.b32.xlu0 %v2115, 24
  %v2258 = vpop.permute.xlu0 %2257
  %2259 = vrot.lane.b32.xlu0 %v2116, 24
  %v2260 = vpop.permute.xlu0 %2259
  %2261 = vrot.lane.b32.xlu0 %v2117, 24
  %v2262 = vpop.permute.xlu0 %2261
  %2263 = vrot.lane.b32.xlu0 %v2118, 24
  %v2264 = vpop.permute.xlu0 %2263
  %2265 = vrot.lane.b32.xlu0 %v2119, 24
  %v2266 = vpop.permute.xlu0 %2265
  %2267 = vrot.lane.b32.xlu0 %v2120, 24
  %v2268 = vpop.permute.xlu0 %2267
  %2269 = vrot.lane.b32.xlu0 %v2121, 24
  %v2270 = vpop.permute.xlu0 %2269
  %2271 = vrot.lane.b32.xlu0 %v2122, 24
  %v2272 = vpop.permute.xlu0 %2271
  %2273 = vrot.lane.b32.xlu0 %v2123, 24
  %v2274 = vpop.permute.xlu0 %2273
  %2275 = vrot.lane.b32.xlu0 %v2124, 24
  %v2276 = vpop.permute.xlu0 %2275
  %2277 = vrot.lane.b32.xlu0 %v2125, 24
  %v2278 = vpop.permute.xlu0 %2277
  %2279 = vrot.lane.b32.xlu0 %v2126, 24
  %v2280 = vpop.permute.xlu0 %2279
  %2281 = vrot.lane.b32.xlu0 %v2127, 24
  %v2282 = vpop.permute.xlu0 %2281
  %2283 = vrot.lane.b32.xlu0 %v2128, 24
  %v2284 = vpop.permute.xlu0 %2283
  %2285 = vrot.lane.b32.xlu0 %v2129, 24
  %v2286 = vpop.permute.xlu0 %2285
  %2287 = vrot.lane.b32.xlu0 %v2130, 24
  %v2288 = vpop.permute.xlu0 %2287
  %2289 = vrot.lane.b32.xlu0 %v2131, 24
  %v2290 = vpop.permute.xlu0 %2289
  %2291 = vrot.lane.b32.xlu0 %v2132, 24
  %v2292 = vpop.permute.xlu0 %2291
  %2293 = vrot.lane.b32.xlu0 %v2133, 24
  %v2294 = vpop.permute.xlu0 %2293
  %2295 = vrot.lane.b32.xlu0 %v2134, 24
  %v2296 = vpop.permute.xlu0 %2295
  %2297 = vrot.lane.b32.xlu0 %v2135, 24
  %v2298 = vpop.permute.xlu0 %2297
  %2299 = vrot.lane.b32.xlu0 %v2136, 24
  %v2300 = vpop.permute.xlu0 %2299
  %2301 = vrot.lane.b32.xlu0 %v2137, 24
  %v2302 = vpop.permute.xlu0 %2301
  %2303 = vrot.lane.b32.xlu0 %v2138, 24
  %v2304 = vpop.permute.xlu0 %2303
  %2305 = vrot.lane.b32.xlu0 %v2139, 24
  %v2306 = vpop.permute.xlu0 %2305
  %2307 = vrot.lane.b32.xlu0 %v2140, 24
  %v2308 = vpop.permute.xlu0 %2307
  %2309 = vrot.lane.b32.xlu0 %v2141, 24
  %v2310 = vpop.permute.xlu0 %2309
  %2311 = vrot.lane.b32.xlu0 %v2142, 24
  %v2312 = vpop.permute.xlu0 %2311
  %2313 = vrot.lane.b32.xlu0 %v2143, 24
  %v2314 = vpop.permute.xlu0 %2313
  %2315 = vrot.lane.b32.xlu0 %v2144, 24
  %v2316 = vpop.permute.xlu0 %2315
  %2317 = vrot.lane.b32.xlu0 %v2145, 24
  %v2318 = vpop.permute.xlu0 %2317
  %2319 = vrot.lane.b32.xlu0 %v2146, 24
  %v2320 = vpop.permute.xlu0 %2319
  %2321 = vrot.lane.b32.xlu0 %v2147, 24
  %v2322 = vpop.permute.xlu0 %2321
  %2323 = vrot.lane.b32.xlu0 %v2148, 24
  %v2324 = vpop.permute.xlu0 %2323
  %2325 = vrot.lane.b32.xlu0 %v2149, 24
  %v2326 = vpop.permute.xlu0 %2325
  %2327 = vrot.lane.b32.xlu0 %v2150, 24
  %v2328 = vpop.permute.xlu0 %2327
  %2329 = vrot.lane.b32.xlu0 %v2151, 24
  %v2330 = vpop.permute.xlu0 %2329
  %2331 = vrot.lane.b32.xlu0 %v2152, 24
  %v2332 = vpop.permute.xlu0 %2331
  %vm2393 = vcmask 228544
  %2394 = vst.msk [vmem:[#allocation2 + $0x1] sm:$0xff] %vm2393, %v2214
  %vm2395 = vcmask 227520
  %2396 = vst.msk [vmem:[#allocation2 + $0x9] sm:$0x7f] %vm2395, %v2216
  %2397 = vst.msk [vmem:[#allocation2 + $0x11] sm:$0xff] %vm2393, %v2218
  %2398 = vst.msk [vmem:[#allocation2 + $0x19] sm:$0x7f] %vm2395, %v2220
  %2399 = vst.msk [vmem:[#allocation2 + $0x21] sm:$0xff] %vm2393, %v2222
  %2400 = vst.msk [vmem:[#allocation2 + $0x29] sm:$0x7f] %vm2395, %v2224
  %2401 = vst.msk [vmem:[#allocation2 + $0x31] sm:$0xff] %vm2393, %v2226
  %2402 = vst.msk [vmem:[#allocation2 + $0x39] sm:$0x7f] %vm2395, %v2228
  %2403 = vst.msk [vmem:[#allocation2 + $0x41] sm:$0xff] %vm2393, %v2230
  %2404 = vst.msk [vmem:[#allocation2 + $0x49] sm:$0x7f] %vm2395, %v2232
  %2405 = vst.msk [vmem:[#allocation2 + $0x51] sm:$0xff] %vm2393, %v2234
  %2406 = vst.msk [vmem:[#allocation2 + $0x59] sm:$0x7f] %vm2395, %v2236
  %2407 = vst.msk [vmem:[#allocation2 + $0x61] sm:$0xff] %vm2393, %v2238
  %2408 = vst.msk [vmem:[#allocation2 + $0x69] sm:$0x7f] %vm2395, %v2240
  %2409 = vst.msk [vmem:[#allocation2 + $0x71] sm:$0xff] %vm2393, %v2242
  %2410 = vst.msk [vmem:[#allocation2 + $0x79] sm:$0x7f] %vm2395, %v2244
  %2411 = vst.msk [vmem:[#allocation2 + $0x81] sm:$0xff] %vm2393, %v2246
  %2412 = vst.msk [vmem:[#allocation2 + $0x89] sm:$0x7f] %vm2395, %v2248
  %2413 = vst.msk [vmem:[#allocation2 + $0x91] sm:$0xff] %vm2393, %v2250
  %2414 = vst.msk [vmem:[#allocation2 + $0x99] sm:$0x7f] %vm2395, %v2252
  %2415 = vst.msk [vmem:[#allocation2 + $0xa1] sm:$0xff] %vm2393, %v2254
  %2416 = vst.msk [vmem:[#allocation2 + $0xa9] sm:$0x7f] %vm2395, %v2256
  %2417 = vst.msk [vmem:[#allocation2 + $0xb1] sm:$0xff] %vm2393, %v2258
  %2418 = vst.msk [vmem:[#allocation2 + $0xb9] sm:$0x7f] %vm2395, %v2260
  %2419 = vst.msk [vmem:[#allocation2 + $0xc1] sm:$0xff] %vm2393, %v2262
  %2420 = vst.msk [vmem:[#allocation2 + $0xc9] sm:$0x7f] %vm2395, %v2264
  %2421 = vst.msk [vmem:[#allocation2 + $0xd1] sm:$0xff] %vm2393, %v2266
  %2422 = vst.msk [vmem:[#allocation2 + $0xd9] sm:$0x7f] %vm2395, %v2268
  %2423 = vst.msk [vmem:[#allocation2 + $0xe1] sm:$0xff] %vm2393, %v2270
  %2424 = vst.msk [vmem:[#allocation2 + $0xe9] sm:$0x7f] %vm2395, %v2272
  %2425 = vst.msk [vmem:[#allocation2 + $0x101] sm:$0xff] %vm2393, %v2274
  %2426 = vst.msk [vmem:[#allocation2 + $0x109] sm:$0x7f] %vm2395, %v2276
  %2427 = vst.msk [vmem:[#allocation2 + $0x111] sm:$0xff] %vm2393, %v2278
  %2428 = vst.msk [vmem:[#allocation2 + $0x119] sm:$0x7f] %vm2395, %v2280
  %2429 = vst.msk [vmem:[#allocation2 + $0x121] sm:$0xff] %vm2393, %v2282
  %2430 = vst.msk [vmem:[#allocation2 + $0x129] sm:$0x7f] %vm2395, %v2284
  %2431 = vst.msk [vmem:[#allocation2 + $0x131] sm:$0xff] %vm2393, %v2286
  %2432 = vst.msk [vmem:[#allocation2 + $0x139] sm:$0x7f] %vm2395, %v2288
  %2433 = vst.msk [vmem:[#allocation2 + $0x141] sm:$0xff] %vm2393, %v2290
  %2434 = vst.msk [vmem:[#allocation2 + $0x149] sm:$0x7f] %vm2395, %v2292
  %2435 = vst.msk [vmem:[#allocation2 + $0x151] sm:$0xff] %vm2393, %v2294
  %2436 = vst.msk [vmem:[#allocation2 + $0x159] sm:$0x7f] %vm2395, %v2296
  %2437 = vst.msk [vmem:[#allocation2 + $0x161] sm:$0xff] %vm2393, %v2298
  %2438 = vst.msk [vmem:[#allocation2 + $0x169] sm:$0x7f] %vm2395, %v2300
  %2439 = vst.msk [vmem:[#allocation2 + $0x171] sm:$0xff] %vm2393, %v2302
  %2440 = vst.msk [vmem:[#allocation2 + $0x179] sm:$0x7f] %vm2395, %v2304
  %2441 = vst.msk [vmem:[#allocation2 + $0x181] sm:$0xff] %vm2393, %v2306
  %2442 = vst.msk [vmem:[#allocation2 + $0x189] sm:$0x7f] %vm2395, %v2308
  %2443 = vst.msk [vmem:[#allocation2 + $0x191] sm:$0xff] %vm2393, %v2310
  %2444 = vst.msk [vmem:[#allocation2 + $0x199] sm:$0x7f] %vm2395, %v2312
  %2445 = vst.msk [vmem:[#allocation2 + $0x1a1] sm:$0xff] %vm2393, %v2314
  %2446 = vst.msk [vmem:[#allocation2 + $0x1a9] sm:$0x7f] %vm2395, %v2316
  %2447 = vst.msk [vmem:[#allocation2 + $0x1b1] sm:$0xff] %vm2393, %v2318
  %2448 = vst.msk [vmem:[#allocation2 + $0x1b9] sm:$0x7f] %vm2395, %v2320
  %2449 = vst.msk [vmem:[#allocation2 + $0x1c1] sm:$0xff] %vm2393, %v2322
  %2450 = vst.msk [vmem:[#allocation2 + $0x1c9] sm:$0x7f] %vm2395, %v2324
  %2451 = vst.msk [vmem:[#allocation2 + $0x1d1] sm:$0xff] %vm2393, %v2326
  %2452 = vst.msk [vmem:[#allocation2 + $0x1d9] sm:$0x7f] %vm2395, %v2328
  %2453 = vst.msk [vmem:[#allocation2 + $0x1e1] sm:$0xff] %vm2393, %v2330
  %2454 = vst.msk [vmem:[#allocation2 + $0x1e9] sm:$0x7f] %vm2395, %v2332
  %v2455 = vld [vmem:[%s2092] sm:$0xff]
  %v2456 = vld [vmem:[%s2092 + $0x8] sm:$0xff]
  %v2457 = vld [vmem:[%s2092 + $0x10] sm:$0xff]
  %v2458 = vld [vmem:[%s2092 + $0x18] sm:$0xff]
  %v2459 = vld [vmem:[%s2092 + $0x20] sm:$0xff]
  %v2460 = vld [vmem:[%s2092 + $0x28] sm:$0xff]
  %v2461 = vld [vmem:[%s2092 + $0x30] sm:$0xff]
  %v2462 = vld [vmem:[%s2092 + $0x38] sm:$0xff]
  %v2463 = vld [vmem:[%s2092 + $0x40] sm:$0xff]
  %v2464 = vld [vmem:[%s2092 + $0x48] sm:$0xff]
  %v2465 = vld [vmem:[%s2092 + $0x50] sm:$0xff]
  %v2466 = vld [vmem:[%s2092 + $0x58] sm:$0xff]
  %v2467 = vld [vmem:[%s2092 + $0x60] sm:$0xff]
  %v2468 = vld [vmem:[%s2092 + $0x68] sm:$0xff]
  %v2469 = vld [vmem:[%s2092 + $0x70] sm:$0xff]
  %v2470 = vld [vmem:[%s2092 + $0x78] sm:$0xff]
  %v2471 = vld [vmem:[%s2092 + $0x80] sm:$0xff]
  %v2472 = vld [vmem:[%s2092 + $0x88] sm:$0xff]
  %v2473 = vld [vmem:[%s2092 + $0x90] sm:$0xff]
  %v2474 = vld [vmem:[%s2092 + $0x98] sm:$0xff]
  %v2475 = vld [vmem:[%s2092 + $0xa0] sm:$0xff]
  %v2476 = vld [vmem:[%s2092 + $0xa8] sm:$0xff]
  %v2477 = vld [vmem:[%s2092 + $0xb0] sm:$0xff]
  %v2478 = vld [vmem:[%s2092 + $0xb8] sm:$0xff]
  %v2479 = vld [vmem:[%s2092 + $0xc0] sm:$0xff]
  %v2480 = vld [vmem:[%s2092 + $0xc8] sm:$0xff]
  %v2481 = vld [vmem:[%s2092 + $0xd0] sm:$0xff]
  %v2482 = vld [vmem:[%s2092 + $0xd8] sm:$0xff]
  %v2483 = vld [vmem:[%s2092 + $0xe0] sm:$0xff]
  %v2484 = vld [vmem:[%s2092 + $0xe8] sm:$0xff]
  %v2485 = vld [vmem:[%s2092 + $0x100] sm:$0xff]
  %v2486 = vld [vmem:[%s2092 + $0x108] sm:$0xff]
  %v2487 = vld [vmem:[%s2092 + $0x110] sm:$0xff]
  %v2488 = vld [vmem:[%s2092 + $0x118] sm:$0xff]
  %v2489 = vld [vmem:[%s2092 + $0x120] sm:$0xff]
  %v2490 = vld [vmem:[%s2092 + $0x128] sm:$0xff]
  %v2491 = vld [vmem:[%s2092 + $0x130] sm:$0xff]
  %v2492 = vld [vmem:[%s2092 + $0x138] sm:$0xff]
  %v2493 = vld [vmem:[%s2092 + $0x140] sm:$0xff]
  %v2494 = vld [vmem:[%s2092 + $0x148] sm:$0xff]
  %v2495 = vld [vmem:[%s2092 + $0x150] sm:$0xff]
  %v2496 = vld [vmem:[%s2092 + $0x158] sm:$0xff]
  %v2497 = vld [vmem:[%s2092 + $0x160] sm:$0xff]
  %v2498 = vld [vmem:[%s2092 + $0x168] sm:$0xff]
  %v2499 = vld [vmem:[%s2092 + $0x170] sm:$0xff]
  %v2500 = vld [vmem:[%s2092 + $0x178] sm:$0xff]
  %v2501 = vld [vmem:[%s2092 + $0x180] sm:$0xff]
  %v2502 = vld [vmem:[%s2092 + $0x188] sm:$0xff]
  %v2503 = vld [vmem:[%s2092 + $0x190] sm:$0xff]
  %v2504 = vld [vmem:[%s2092 + $0x198] sm:$0xff]
  %v2505 = vld [vmem:[%s2092 + $0x1a0] sm:$0xff]
  %v2506 = vld [vmem:[%s2092 + $0x1a8] sm:$0xff]
  %v2507 = vld [vmem:[%s2092 + $0x1b0] sm:$0xff]
  %v2508 = vld [vmem:[%s2092 + $0x1b8] sm:$0xff]
  %v2509 = vld [vmem:[%s2092 + $0x1c0] sm:$0xff]
  %v2510 = vld [vmem:[%s2092 + $0x1c8] sm:$0xff]
  %v2511 = vld [vmem:[%s2092 + $0x1d0] sm:$0xff]
  %v2512 = vld [vmem:[%s2092 + $0x1d8] sm:$0xff]
  %v2513 = vld [vmem:[%s2092 + $0x1e0] sm:$0xff]
  %v2514 = vld [vmem:[%s2092 + $0x1e8] sm:$0xff]
  %2575 = vrot.lane.b32.xlu0 %v2455, 28
  %v2576 = vpop.permute.xlu0 %2575
  %2577 = vrot.lane.b32.xlu0 %v2456, 28
  %v2578 = vpop.permute.xlu0 %2577
  %2579 = vrot.lane.b32.xlu0 %v2457, 28
  %v2580 = vpop.permute.xlu0 %2579
  %2581 = vrot.lane.b32.xlu0 %v2458, 28
  %v2582 = vpop.permute.xlu0 %2581
  %2583 = vrot.lane.b32.xlu0 %v2459, 28
  %v2584 = vpop.permute.xlu0 %2583
  %2585 = vrot.lane.b32.xlu0 %v2460, 28
  %v2586 = vpop.permute.xlu0 %2585
  %2587 = vrot.lane.b32.xlu0 %v2461, 28
  %v2588 = vpop.permute.xlu0 %2587
  %2589 = vrot.lane.b32.xlu0 %v2462, 28
  %v2590 = vpop.permute.xlu0 %2589
  %2591 = vrot.lane.b32.xlu0 %v2463, 28
  %v2592 = vpop.permute.xlu0 %2591
  %2593 = vrot.lane.b32.xlu0 %v2464, 28
  %v2594 = vpop.permute.xlu0 %2593
  %2595 = vrot.lane.b32.xlu0 %v2465, 28
  %v2596 = vpop.permute.xlu0 %2595
  %2597 = vrot.lane.b32.xlu0 %v2466, 28
  %v2598 = vpop.permute.xlu0 %2597
  %2599 = vrot.lane.b32.xlu0 %v2467, 28
  %v2600 = vpop.permute.xlu0 %2599
  %2601 = vrot.lane.b32.xlu0 %v2468, 28
  %v2602 = vpop.permute.xlu0 %2601
  %2603 = vrot.lane.b32.xlu0 %v2469, 28
  %v2604 = vpop.permute.xlu0 %2603
  %2605 = vrot.lane.b32.xlu0 %v2470, 28
  %v2606 = vpop.permute.xlu0 %2605
  %2607 = vrot.lane.b32.xlu0 %v2471, 28
  %v2608 = vpop.permute.xlu0 %2607
  %2609 = vrot.lane.b32.xlu0 %v2472, 28
  %v2610 = vpop.permute.xlu0 %2609
  %2611 = vrot.lane.b32.xlu0 %v2473, 28
  %v2612 = vpop.permute.xlu0 %2611
  %2613 = vrot.lane.b32.xlu0 %v2474, 28
  %v2614 = vpop.permute.xlu0 %2613
  %2615 = vrot.lane.b32.xlu0 %v2475, 28
  %v2616 = vpop.permute.xlu0 %2615
  %2617 = vrot.lane.b32.xlu0 %v2476, 28
  %v2618 = vpop.permute.xlu0 %2617
  %2619 = vrot.lane.b32.xlu0 %v2477, 28
  %v2620 = vpop.permute.xlu0 %2619
  %2621 = vrot.lane.b32.xlu0 %v2478, 28
  %v2622 = vpop.permute.xlu0 %2621
  %2623 = vrot.lane.b32.xlu0 %v2479, 28
  %v2624 = vpop.permute.xlu0 %2623
  %2625 = vrot.lane.b32.xlu0 %v2480, 28
  %v2626 = vpop.permute.xlu0 %2625
  %2627 = vrot.lane.b32.xlu0 %v2481, 28
  %v2628 = vpop.permute.xlu0 %2627
  %2629 = vrot.lane.b32.xlu0 %v2482, 28
  %v2630 = vpop.permute.xlu0 %2629
  %2631 = vrot.lane.b32.xlu0 %v2483, 28
  %v2632 = vpop.permute.xlu0 %2631
  %2633 = vrot.lane.b32.xlu0 %v2484, 28
  %v2634 = vpop.permute.xlu0 %2633
  %2635 = vrot.lane.b32.xlu0 %v2485, 28
  %v2636 = vpop.permute.xlu0 %2635
  %2637 = vrot.lane.b32.xlu0 %v2486, 28
  %v2638 = vpop.permute.xlu0 %2637
  %2639 = vrot.lane.b32.xlu0 %v2487, 28
  %v2640 = vpop.permute.xlu0 %2639
  %2641 = vrot.lane.b32.xlu0 %v2488, 28
  %v2642 = vpop.permute.xlu0 %2641
  %2643 = vrot.lane.b32.xlu0 %v2489, 28
  %v2644 = vpop.permute.xlu0 %2643
  %2645 = vrot.lane.b32.xlu0 %v2490, 28
  %v2646 = vpop.permute.xlu0 %2645
  %2647 = vrot.lane.b32.xlu0 %v2491, 28
  %v2648 = vpop.permute.xlu0 %2647
  %2649 = vrot.lane.b32.xlu0 %v2492, 28
  %v2650 = vpop.permute.xlu0 %2649
  %2651 = vrot.lane.b32.xlu0 %v2493, 28
  %v2652 = vpop.permute.xlu0 %2651
  %2653 = vrot.lane.b32.xlu0 %v2494, 28
  %v2654 = vpop.permute.xlu0 %2653
  %2655 = vrot.lane.b32.xlu0 %v2495, 28
  %v2656 = vpop.permute.xlu0 %2655
  %2657 = vrot.lane.b32.xlu0 %v2496, 28
  %v2658 = vpop.permute.xlu0 %2657
  %2659 = vrot.lane.b32.xlu0 %v2497, 28
  %v2660 = vpop.permute.xlu0 %2659
  %2661 = vrot.lane.b32.xlu0 %v2498, 28
  %v2662 = vpop.permute.xlu0 %2661
  %2663 = vrot.lane.b32.xlu0 %v2499, 28
  %v2664 = vpop.permute.xlu0 %2663
  %2665 = vrot.lane.b32.xlu0 %v2500, 28
  %v2666 = vpop.permute.xlu0 %2665
  %2667 = vrot.lane.b32.xlu0 %v2501, 28
  %v2668 = vpop.permute.xlu0 %2667
  %2669 = vrot.lane.b32.xlu0 %v2502, 28
  %v2670 = vpop.permute.xlu0 %2669
  %2671 = vrot.lane.b32.xlu0 %v2503, 28
  %v2672 = vpop.permute.xlu0 %2671
  %2673 = vrot.lane.b32.xlu0 %v2504, 28
  %v2674 = vpop.permute.xlu0 %2673
  %2675 = vrot.lane.b32.xlu0 %v2505, 28
  %v2676 = vpop.permute.xlu0 %2675
  %2677 = vrot.lane.b32.xlu0 %v2506, 28
  %v2678 = vpop.permute.xlu0 %2677
  %2679 = vrot.lane.b32.xlu0 %v2507, 28
  %v2680 = vpop.permute.xlu0 %2679
  %2681 = vrot.lane.b32.xlu0 %v2508, 28
  %v2682 = vpop.permute.xlu0 %2681
  %2683 = vrot.lane.b32.xlu0 %v2509, 28
  %v2684 = vpop.permute.xlu0 %2683
  %2685 = vrot.lane.b32.xlu0 %v2510, 28
  %v2686 = vpop.permute.xlu0 %2685
  %2687 = vrot.lane.b32.xlu0 %v2511, 28
  %v2688 = vpop.permute.xlu0 %2687
  %2689 = vrot.lane.b32.xlu0 %v2512, 28
  %v2690 = vpop.permute.xlu0 %2689
  %2691 = vrot.lane.b32.xlu0 %v2513, 28
  %v2692 = vpop.permute.xlu0 %2691
  %2693 = vrot.lane.b32.xlu0 %v2514, 28
  %v2694 = vpop.permute.xlu0 %2693
  %vm2755 = vcmask 261344
  %2756 = vst.msk [vmem:[#allocation2] sm:$0xff] %vm2755, %v2576
  %2757 = vst.msk [vmem:[#allocation2 + $0x8] sm:$0xff] %vm2755, %v2578
  %2758 = vst.msk [vmem:[#allocation2 + $0x10] sm:$0xff] %vm2755, %v2580
  %2759 = vst.msk [vmem:[#allocation2 + $0x18] sm:$0xff] %vm2755, %v2582
  %2760 = vst.msk [vmem:[#allocation2 + $0x20] sm:$0xff] %vm2755, %v2584
  %2761 = vst.msk [vmem:[#allocation2 + $0x28] sm:$0xff] %vm2755, %v2586
  %2762 = vst.msk [vmem:[#allocation2 + $0x30] sm:$0xff] %vm2755, %v2588
  %2763 = vst.msk [vmem:[#allocation2 + $0x38] sm:$0xff] %vm2755, %v2590
  %2764 = vst.msk [vmem:[#allocation2 + $0x40] sm:$0xff] %vm2755, %v2592
  %2765 = vst.msk [vmem:[#allocation2 + $0x48] sm:$0xff] %vm2755, %v2594
  %2766 = vst.msk [vmem:[#allocation2 + $0x50] sm:$0xff] %vm2755, %v2596
  %2767 = vst.msk [vmem:[#allocation2 + $0x58] sm:$0xff] %vm2755, %v2598
  %2768 = vst.msk [vmem:[#allocation2 + $0x60] sm:$0xff] %vm2755, %v2600
  %2769 = vst.msk [vmem:[#allocation2 + $0x68] sm:$0xff] %vm2755, %v2602
  %2770 = vst.msk [vmem:[#allocation2 + $0x70] sm:$0xff] %vm2755, %v2604
  %2771 = vst.msk [vmem:[#allocation2 + $0x78] sm:$0xff] %vm2755, %v2606
  %2772 = vst.msk [vmem:[#allocation2 + $0x80] sm:$0xff] %vm2755, %v2608
  %2773 = vst.msk [vmem:[#allocation2 + $0x88] sm:$0xff] %vm2755, %v2610
  %2774 = vst.msk [vmem:[#allocation2 + $0x90] sm:$0xff] %vm2755, %v2612
  %2775 = vst.msk [vmem:[#allocation2 + $0x98] sm:$0xff] %vm2755, %v2614
  %2776 = vst.msk [vmem:[#allocation2 + $0xa0] sm:$0xff] %vm2755, %v2616
  %2777 = vst.msk [vmem:[#allocation2 + $0xa8] sm:$0xff] %vm2755, %v2618
  %2778 = vst.msk [vmem:[#allocation2 + $0xb0] sm:$0xff] %vm2755, %v2620
  %2779 = vst.msk [vmem:[#allocation2 + $0xb8] sm:$0xff] %vm2755, %v2622
  %2780 = vst.msk [vmem:[#allocation2 + $0xc0] sm:$0xff] %vm2755, %v2624
  %2781 = vst.msk [vmem:[#allocation2 + $0xc8] sm:$0xff] %vm2755, %v2626
  %2782 = vst.msk [vmem:[#allocation2 + $0xd0] sm:$0xff] %vm2755, %v2628
  %2783 = vst.msk [vmem:[#allocation2 + $0xd8] sm:$0xff] %vm2755, %v2630
  %2784 = vst.msk [vmem:[#allocation2 + $0xe0] sm:$0xff] %vm2755, %v2632
  %2785 = vst.msk [vmem:[#allocation2 + $0xe8] sm:$0xff] %vm2755, %v2634
  %2786 = vst.msk [vmem:[#allocation2 + $0x100] sm:$0xff] %vm2755, %v2636
  %2787 = vst.msk [vmem:[#allocation2 + $0x108] sm:$0xff] %vm2755, %v2638
  %2788 = vst.msk [vmem:[#allocation2 + $0x110] sm:$0xff] %vm2755, %v2640
  %2789 = vst.msk [vmem:[#allocation2 + $0x118] sm:$0xff] %vm2755, %v2642
  %2790 = vst.msk [vmem:[#allocation2 + $0x120] sm:$0xff] %vm2755, %v2644
  %2791 = vst.msk [vmem:[#allocation2 + $0x128] sm:$0xff] %vm2755, %v2646
  %2792 = vst.msk [vmem:[#allocation2 + $0x130] sm:$0xff] %vm2755, %v2648
  %2793 = vst.msk [vmem:[#allocation2 + $0x138] sm:$0xff] %vm2755, %v2650
  %2794 = vst.msk [vmem:[#allocation2 + $0x140] sm:$0xff] %vm2755, %v2652
  %2795 = vst.msk [vmem:[#allocation2 + $0x148] sm:$0xff] %vm2755, %v2654
  %2796 = vst.msk [vmem:[#allocation2 + $0x150] sm:$0xff] %vm2755, %v2656
  %2797 = vst.msk [vmem:[#allocation2 + $0x158] sm:$0xff] %vm2755, %v2658
  %2798 = vst.msk [vmem:[#allocation2 + $0x160] sm:$0xff] %vm2755, %v2660
  %2799 = vst.msk [vmem:[#allocation2 + $0x168] sm:$0xff] %vm2755, %v2662
  %2800 = vst.msk [vmem:[#allocation2 + $0x170] sm:$0xff] %vm2755, %v2664
  %2801 = vst.msk [vmem:[#allocation2 + $0x178] sm:$0xff] %vm2755, %v2666
  %2802 = vst.msk [vmem:[#allocation2 + $0x180] sm:$0xff] %vm2755, %v2668
  %2803 = vst.msk [vmem:[#allocation2 + $0x188] sm:$0xff] %vm2755, %v2670
  %2804 = vst.msk [vmem:[#allocation2 + $0x190] sm:$0xff] %vm2755, %v2672
  %2805 = vst.msk [vmem:[#allocation2 + $0x198] sm:$0xff] %vm2755, %v2674
  %2806 = vst.msk [vmem:[#allocation2 + $0x1a0] sm:$0xff] %vm2755, %v2676
  %2807 = vst.msk [vmem:[#allocation2 + $0x1a8] sm:$0xff] %vm2755, %v2678
  %2808 = vst.msk [vmem:[#allocation2 + $0x1b0] sm:$0xff] %vm2755, %v2680
  %2809 = vst.msk [vmem:[#allocation2 + $0x1b8] sm:$0xff] %vm2755, %v2682
  %2810 = vst.msk [vmem:[#allocation2 + $0x1c0] sm:$0xff] %vm2755, %v2684
  %2811 = vst.msk [vmem:[#allocation2 + $0x1c8] sm:$0xff] %vm2755, %v2686
  %2812 = vst.msk [vmem:[#allocation2 + $0x1d0] sm:$0xff] %vm2755, %v2688
  %2813 = vst.msk [vmem:[#allocation2 + $0x1d8] sm:$0xff] %vm2755, %v2690
  %2814 = vst.msk [vmem:[#allocation2 + $0x1e0] sm:$0xff] %vm2755, %v2692
  %2815 = vst.msk [vmem:[#allocation2 + $0x1e8] sm:$0xff] %vm2755, %v2694
  %v2816 = vld [vmem:[%s2092 + $0x1] sm:$0xff]
  %v2817 = vld [vmem:[%s2092 + $0x9] sm:$0x7f]
  %v2818 = vld [vmem:[%s2092 + $0x11] sm:$0xff]
  %v2819 = vld [vmem:[%s2092 + $0x19] sm:$0x7f]
  %v2820 = vld [vmem:[%s2092 + $0x21] sm:$0xff]
  %v2821 = vld [vmem:[%s2092 + $0x29] sm:$0x7f]
  %v2822 = vld [vmem:[%s2092 + $0x31] sm:$0xff]
  %v2823 = vld [vmem:[%s2092 + $0x39] sm:$0x7f]
  %v2824 = vld [vmem:[%s2092 + $0x41] sm:$0xff]
  %v2825 = vld [vmem:[%s2092 + $0x49] sm:$0x7f]
  %v2826 = vld [vmem:[%s2092 + $0x51] sm:$0xff]
  %v2827 = vld [vmem:[%s2092 + $0x59] sm:$0x7f]
  %v2828 = vld [vmem:[%s2092 + $0x61] sm:$0xff]
  %v2829 = vld [vmem:[%s2092 + $0x69] sm:$0x7f]
  %v2830 = vld [vmem:[%s2092 + $0x71] sm:$0xff]
  %v2831 = vld [vmem:[%s2092 + $0x79] sm:$0x7f]
  %v2832 = vld [vmem:[%s2092 + $0x81] sm:$0xff]
  %v2833 = vld [vmem:[%s2092 + $0x89] sm:$0x7f]
  %v2834 = vld [vmem:[%s2092 + $0x91] sm:$0xff]
  %v2835 = vld [vmem:[%s2092 + $0x99] sm:$0x7f]
  %v2836 = vld [vmem:[%s2092 + $0xa1] sm:$0xff]
  %v2837 = vld [vmem:[%s2092 + $0xa9] sm:$0x7f]
  %v2838 = vld [vmem:[%s2092 + $0xb1] sm:$0xff]
  %v2839 = vld [vmem:[%s2092 + $0xb9] sm:$0x7f]
  %v2840 = vld [vmem:[%s2092 + $0xc1] sm:$0xff]
  %v2841 = vld [vmem:[%s2092 + $0xc9] sm:$0x7f]
  %v2842 = vld [vmem:[%s2092 + $0xd1] sm:$0xff]
  %v2843 = vld [vmem:[%s2092 + $0xd9] sm:$0x7f]
  %v2844 = vld [vmem:[%s2092 + $0xe1] sm:$0xff]
  %v2845 = vld [vmem:[%s2092 + $0xe9] sm:$0x7f]
  %v2846 = vld [vmem:[%s2092 + $0x101] sm:$0xff]
  %v2847 = vld [vmem:[%s2092 + $0x109] sm:$0x7f]
  %v2848 = vld [vmem:[%s2092 + $0x111] sm:$0xff]
  %v2849 = vld [vmem:[%s2092 + $0x119] sm:$0x7f]
  %v2850 = vld [vmem:[%s2092 + $0x121] sm:$0xff]
  %v2851 = vld [vmem:[%s2092 + $0x129] sm:$0x7f]
  %v2852 = vld [vmem:[%s2092 + $0x131] sm:$0xff]
  %v2853 = vld [vmem:[%s2092 + $0x139] sm:$0x7f]
  %v2854 = vld [vmem:[%s2092 + $0x141] sm:$0xff]
  %v2855 = vld [vmem:[%s2092 + $0x149] sm:$0x7f]
  %v2856 = vld [vmem:[%s2092 + $0x151] sm:$0xff]
  %v2857 = vld [vmem:[%s2092 + $0x159] sm:$0x7f]
  %v2858 = vld [vmem:[%s2092 + $0x161] sm:$0xff]
  %v2859 = vld [vmem:[%s2092 + $0x169] sm:$0x7f]
  %v2860 = vld [vmem:[%s2092 + $0x171] sm:$0xff]
  %v2861 = vld [vmem:[%s2092 + $0x179] sm:$0x7f]
  %v2862 = vld [vmem:[%s2092 + $0x181] sm:$0xff]
  %v2863 = vld [vmem:[%s2092 + $0x189] sm:$0x7f]
  %v2864 = vld [vmem:[%s2092 + $0x191] sm:$0xff]
  %v2865 = vld [vmem:[%s2092 + $0x199] sm:$0x7f]
  %v2866 = vld [vmem:[%s2092 + $0x1a1] sm:$0xff]
  %v2867 = vld [vmem:[%s2092 + $0x1a9] sm:$0x7f]
  %v2868 = vld [vmem:[%s2092 + $0x1b1] sm:$0xff]
  %v2869 = vld [vmem:[%s2092 + $0x1b9] sm:$0x7f]
  %v2870 = vld [vmem:[%s2092 + $0x1c1] sm:$0xff]
  %v2871 = vld [vmem:[%s2092 + $0x1c9] sm:$0x7f]
  %v2872 = vld [vmem:[%s2092 + $0x1d1] sm:$0xff]
  %v2873 = vld [vmem:[%s2092 + $0x1d9] sm:$0x7f]
  %v2874 = vld [vmem:[%s2092 + $0x1e1] sm:$0xff]
  %v2875 = vld [vmem:[%s2092 + $0x1e9] sm:$0x7f]
  %2936 = vrot.lane.b32.xlu0 %v2816, 32
  %v2937 = vpop.permute.xlu0 %2936
  %2938 = vrot.lane.b32.xlu0 %v2817, 32
  %v2939 = vpop.permute.xlu0 %2938
  %2940 = vrot.lane.b32.xlu0 %v2818, 32
  %v2941 = vpop.permute.xlu0 %2940
  %2942 = vrot.lane.b32.xlu0 %v2819, 32
  %v2943 = vpop.permute.xlu0 %2942
  %2944 = vrot.lane.b32.xlu0 %v2820, 32
  %v2945 = vpop.permute.xlu0 %2944
  %2946 = vrot.lane.b32.xlu0 %v2821, 32
  %v2947 = vpop.permute.xlu0 %2946
  %2948 = vrot.lane.b32.xlu0 %v2822, 32
  %v2949 = vpop.permute.xlu0 %2948
  %2950 = vrot.lane.b32.xlu0 %v2823, 32
  %v2951 = vpop.permute.xlu0 %2950
  %2952 = vrot.lane.b32.xlu0 %v2824, 32
  %v2953 = vpop.permute.xlu0 %2952
  %2954 = vrot.lane.b32.xlu0 %v2825, 32
  %v2955 = vpop.permute.xlu0 %2954
  %2956 = vrot.lane.b32.xlu0 %v2826, 32
  %v2957 = vpop.permute.xlu0 %2956
  %2958 = vrot.lane.b32.xlu0 %v2827, 32
  %v2959 = vpop.permute.xlu0 %2958
  %2960 = vrot.lane.b32.xlu0 %v2828, 32
  %v2961 = vpop.permute.xlu0 %2960
  %2962 = vrot.lane.b32.xlu0 %v2829, 32
  %v2963 = vpop.permute.xlu0 %2962
  %2964 = vrot.lane.b32.xlu0 %v2830, 32
  %v2965 = vpop.permute.xlu0 %2964
  %2966 = vrot.lane.b32.xlu0 %v2831, 32
  %v2967 = vpop.permute.xlu0 %2966
  %2968 = vrot.lane.b32.xlu0 %v2832, 32
  %v2969 = vpop.permute.xlu0 %2968
  %2970 = vrot.lane.b32.xlu0 %v2833, 32
  %v2971 = vpop.permute.xlu0 %2970
  %2972 = vrot.lane.b32.xlu0 %v2834, 32
  %v2973 = vpop.permute.xlu0 %2972
  %2974 = vrot.lane.b32.xlu0 %v2835, 32
  %v2975 = vpop.permute.xlu0 %2974
  %2976 = vrot.lane.b32.xlu0 %v2836, 32
  %v2977 = vpop.permute.xlu0 %2976
  %2978 = vrot.lane.b32.xlu0 %v2837, 32
  %v2979 = vpop.permute.xlu0 %2978
  %2980 = vrot.lane.b32.xlu0 %v2838, 32
  %v2981 = vpop.permute.xlu0 %2980
  %2982 = vrot.lane.b32.xlu0 %v2839, 32
  %v2983 = vpop.permute.xlu0 %2982
  %2984 = vrot.lane.b32.xlu0 %v2840, 32
  %v2985 = vpop.permute.xlu0 %2984
  %2986 = vrot.lane.b32.xlu0 %v2841, 32
  %v2987 = vpop.permute.xlu0 %2986
  %2988 = vrot.lane.b32.xlu0 %v2842, 32
  %v2989 = vpop.permute.xlu0 %2988
  %2990 = vrot.lane.b32.xlu0 %v2843, 32
  %v2991 = vpop.permute.xlu0 %2990
  %2992 = vrot.lane.b32.xlu0 %v2844, 32
  %v2993 = vpop.permute.xlu0 %2992
  %2994 = vrot.lane.b32.xlu0 %v2845, 32
  %v2995 = vpop.permute.xlu0 %2994
  %2996 = vrot.lane.b32.xlu0 %v2846, 32
  %v2997 = vpop.permute.xlu0 %2996
  %2998 = vrot.lane.b32.xlu0 %v2847, 32
  %v2999 = vpop.permute.xlu0 %2998
  %3000 = vrot.lane.b32.xlu0 %v2848, 32
  %v3001 = vpop.permute.xlu0 %3000
  %3002 = vrot.lane.b32.xlu0 %v2849, 32
  %v3003 = vpop.permute.xlu0 %3002
  %3004 = vrot.lane.b32.xlu0 %v2850, 32
  %v3005 = vpop.permute.xlu0 %3004
  %3006 = vrot.lane.b32.xlu0 %v2851, 32
  %v3007 = vpop.permute.xlu0 %3006
  %3008 = vrot.lane.b32.xlu0 %v2852, 32
  %v3009 = vpop.permute.xlu0 %3008
  %3010 = vrot.lane.b32.xlu0 %v2853, 32
  %v3011 = vpop.permute.xlu0 %3010
  %3012 = vrot.lane.b32.xlu0 %v2854, 32
  %v3013 = vpop.permute.xlu0 %3012
  %3014 = vrot.lane.b32.xlu0 %v2855, 32
  %v3015 = vpop.permute.xlu0 %3014
  %3016 = vrot.lane.b32.xlu0 %v2856, 32
  %v3017 = vpop.permute.xlu0 %3016
  %3018 = vrot.lane.b32.xlu0 %v2857, 32
  %v3019 = vpop.permute.xlu0 %3018
  %3020 = vrot.lane.b32.xlu0 %v2858, 32
  %v3021 = vpop.permute.xlu0 %3020
  %3022 = vrot.lane.b32.xlu0 %v2859, 32
  %v3023 = vpop.permute.xlu0 %3022
  %3024 = vrot.lane.b32.xlu0 %v2860, 32
  %v3025 = vpop.permute.xlu0 %3024
  %3026 = vrot.lane.b32.xlu0 %v2861, 32
  %v3027 = vpop.permute.xlu0 %3026
  %3028 = vrot.lane.b32.xlu0 %v2862, 32
  %v3029 = vpop.permute.xlu0 %3028
  %3030 = vrot.lane.b32.xlu0 %v2863, 32
  %v3031 = vpop.permute.xlu0 %3030
  %3032 = vrot.lane.b32.xlu0 %v2864, 32
  %v3033 = vpop.permute.xlu0 %3032
  %3034 = vrot.lane.b32.xlu0 %v2865, 32
  %v3035 = vpop.permute.xlu0 %3034
  %3036 = vrot.lane.b32.xlu0 %v2866, 32
  %v3037 = vpop.permute.xlu0 %3036
  %3038 = vrot.lane.b32.xlu0 %v2867, 32
  %v3039 = vpop.permute.xlu0 %3038
  %3040 = vrot.lane.b32.xlu0 %v2868, 32
  %v3041 = vpop.permute.xlu0 %3040
  %3042 = vrot.lane.b32.xlu0 %v2869, 32
  %v3043 = vpop.permute.xlu0 %3042
  %3044 = vrot.lane.b32.xlu0 %v2870, 32
  %v3045 = vpop.permute.xlu0 %3044
  %3046 = vrot.lane.b32.xlu0 %v2871, 32
  %v3047 = vpop.permute.xlu0 %3046
  %3048 = vrot.lane.b32.xlu0 %v2872, 32
  %v3049 = vpop.permute.xlu0 %3048
  %3050 = vrot.lane.b32.xlu0 %v2873, 32
  %v3051 = vpop.permute.xlu0 %3050
  %3052 = vrot.lane.b32.xlu0 %v2874, 32
  %v3053 = vpop.permute.xlu0 %3052
  %3054 = vrot.lane.b32.xlu0 %v2875, 32
  %v3055 = vpop.permute.xlu0 %3054
  %vm3116 = vcmask 294144
  %3117 = vst.msk [vmem:[#allocation2] sm:$0xff] %vm3116, %v2937
  %vm3118 = vcmask 293120
  %3119 = vst.msk [vmem:[#allocation2 + $0x8] sm:$0x7f] %vm3118, %v2939
  %3120 = vst.msk [vmem:[#allocation2 + $0x10] sm:$0xff] %vm3116, %v2941
  %3121 = vst.msk [vmem:[#allocation2 + $0x18] sm:$0x7f] %vm3118, %v2943
  %3122 = vst.msk [vmem:[#allocation2 + $0x20] sm:$0xff] %vm3116, %v2945
  %3123 = vst.msk [vmem:[#allocation2 + $0x28] sm:$0x7f] %vm3118, %v2947
  %3124 = vst.msk [vmem:[#allocation2 + $0x30] sm:$0xff] %vm3116, %v2949
  %3125 = vst.msk [vmem:[#allocation2 + $0x38] sm:$0x7f] %vm3118, %v2951
  %3126 = vst.msk [vmem:[#allocation2 + $0x40] sm:$0xff] %vm3116, %v2953
  %3127 = vst.msk [vmem:[#allocation2 + $0x48] sm:$0x7f] %vm3118, %v2955
  %3128 = vst.msk [vmem:[#allocation2 + $0x50] sm:$0xff] %vm3116, %v2957
  %3129 = vst.msk [vmem:[#allocation2 + $0x58] sm:$0x7f] %vm3118, %v2959
  %3130 = vst.msk [vmem:[#allocation2 + $0x60] sm:$0xff] %vm3116, %v2961
  %3131 = vst.msk [vmem:[#allocation2 + $0x68] sm:$0x7f] %vm3118, %v2963
  %3132 = vst.msk [vmem:[#allocation2 + $0x70] sm:$0xff] %vm3116, %v2965
  %3133 = vst.msk [vmem:[#allocation2 + $0x78] sm:$0x7f] %vm3118, %v2967
  %3134 = vst.msk [vmem:[#allocation2 + $0x80] sm:$0xff] %vm3116, %v2969
  %3135 = vst.msk [vmem:[#allocation2 + $0x88] sm:$0x7f] %vm3118, %v2971
  %3136 = vst.msk [vmem:[#allocation2 + $0x90] sm:$0xff] %vm3116, %v2973
  %3137 = vst.msk [vmem:[#allocation2 + $0x98] sm:$0x7f] %vm3118, %v2975
  %3138 = vst.msk [vmem:[#allocation2 + $0xa0] sm:$0xff] %vm3116, %v2977
  %3139 = vst.msk [vmem:[#allocation2 + $0xa8] sm:$0x7f] %vm3118, %v2979
  %3140 = vst.msk [vmem:[#allocation2 + $0xb0] sm:$0xff] %vm3116, %v2981
  %3141 = vst.msk [vmem:[#allocation2 + $0xb8] sm:$0x7f] %vm3118, %v2983
  %3142 = vst.msk [vmem:[#allocation2 + $0xc0] sm:$0xff] %vm3116, %v2985
  %3143 = vst.msk [vmem:[#allocation2 + $0xc8] sm:$0x7f] %vm3118, %v2987
  %3144 = vst.msk [vmem:[#allocation2 + $0xd0] sm:$0xff] %vm3116, %v2989
  %3145 = vst.msk [vmem:[#allocation2 + $0xd8] sm:$0x7f] %vm3118, %v2991
  %3146 = vst.msk [vmem:[#allocation2 + $0xe0] sm:$0xff] %vm3116, %v2993
  %3147 = vst.msk [vmem:[#allocation2 + $0xe8] sm:$0x7f] %vm3118, %v2995
  %3148 = vst.msk [vmem:[#allocation2 + $0x100] sm:$0xff] %vm3116, %v2997
  %3149 = vst.msk [vmem:[#allocation2 + $0x108] sm:$0x7f] %vm3118, %v2999
  %3150 = vst.msk [vmem:[#allocation2 + $0x110] sm:$0xff] %vm3116, %v3001
  %3151 = vst.msk [vmem:[#allocation2 + $0x118] sm:$0x7f] %vm3118, %v3003
  %3152 = vst.msk [vmem:[#allocation2 + $0x120] sm:$0xff] %vm3116, %v3005
  %3153 = vst.msk [vmem:[#allocation2 + $0x128] sm:$0x7f] %vm3118, %v3007
  %3154 = vst.msk [vmem:[#allocation2 + $0x130] sm:$0xff] %vm3116, %v3009
  %3155 = vst.msk [vmem:[#allocation2 + $0x138] sm:$0x7f] %vm3118, %v3011
  %3156 = vst.msk [vmem:[#allocation2 + $0x140] sm:$0xff] %vm3116, %v3013
  %3157 = vst.msk [vmem:[#allocation2 + $0x148] sm:$0x7f] %vm3118, %v3015
  %3158 = vst.msk [vmem:[#allocation2 + $0x150] sm:$0xff] %vm3116, %v3017
  %3159 = vst.msk [vmem:[#allocation2 + $0x158] sm:$0x7f] %vm3118, %v3019
  %3160 = vst.msk [vmem:[#allocation2 + $0x160] sm:$0xff] %vm3116, %v3021
  %3161 = vst.msk [vmem:[#allocation2 + $0x168] sm:$0x7f] %vm3118, %v3023
  %3162 = vst.msk [vmem:[#allocation2 + $0x170] sm:$0xff] %vm3116, %v3025
  %3163 = vst.msk [vmem:[#allocation2 + $0x178] sm:$0x7f] %vm3118, %v3027
  %3164 = vst.msk [vmem:[#allocation2 + $0x180] sm:$0xff] %vm3116, %v3029
  %3165 = vst.msk [vmem:[#allocation2 + $0x188] sm:$0x7f] %vm3118, %v3031
  %3166 = vst.msk [vmem:[#allocation2 + $0x190] sm:$0xff] %vm3116, %v3033
  %3167 = vst.msk [vmem:[#allocation2 + $0x198] sm:$0x7f] %vm3118, %v3035
  %3168 = vst.msk [vmem:[#allocation2 + $0x1a0] sm:$0xff] %vm3116, %v3037
  %3169 = vst.msk [vmem:[#allocation2 + $0x1a8] sm:$0x7f] %vm3118, %v3039
  %3170 = vst.msk [vmem:[#allocation2 + $0x1b0] sm:$0xff] %vm3116, %v3041
  %3171 = vst.msk [vmem:[#allocation2 + $0x1b8] sm:$0x7f] %vm3118, %v3043
  %3172 = vst.msk [vmem:[#allocation2 + $0x1c0] sm:$0xff] %vm3116, %v3045
  %3173 = vst.msk [vmem:[#allocation2 + $0x1c8] sm:$0x7f] %vm3118, %v3047
  %3174 = vst.msk [vmem:[#allocation2 + $0x1d0] sm:$0xff] %vm3116, %v3049
  %3175 = vst.msk [vmem:[#allocation2 + $0x1d8] sm:$0x7f] %vm3118, %v3051
  %3176 = vst.msk [vmem:[#allocation2 + $0x1e0] sm:$0xff] %vm3116, %v3053
  %3177 = vst.msk [vmem:[#allocation2 + $0x1e8] sm:$0x7f] %vm3118, %v3055
  %v3178 = vld [vmem:[#allocation2] sm:$0xff]
  %v3179 = vld [vmem:[#allocation2 + $0x8] sm:$0xff]
  %v3180 = vld [vmem:[#allocation2 + $0x10] sm:$0xff]
  %v3181 = vld [vmem:[#allocation2 + $0x18] sm:$0xff]
  %v3182 = vld [vmem:[#allocation2 + $0x20] sm:$0xff]
  %v3183 = vld [vmem:[#allocation2 + $0x28] sm:$0xff]
  %v3184 = vld [vmem:[#allocation2 + $0x30] sm:$0xff]
  %v3185 = vld [vmem:[#allocation2 + $0x38] sm:$0xff]
  %v3186 = vld [vmem:[#allocation2 + $0x40] sm:$0xff]
  %v3187 = vld [vmem:[#allocation2 + $0x48] sm:$0xff]
  %v3188 = vld [vmem:[#allocation2 + $0x50] sm:$0xff]
  %v3189 = vld [vmem:[#allocation2 + $0x58] sm:$0xff]
  %v3190 = vld [vmem:[#allocation2 + $0x60] sm:$0xff]
  %v3191 = vld [vmem:[#allocation2 + $0x68] sm:$0xff]
  %v3192 = vld [vmem:[#allocation2 + $0x70] sm:$0xff]
  %v3193 = vld [vmem:[#allocation2 + $0x78] sm:$0xff]
  %v3194 = vld [vmem:[#allocation2 + $0x80] sm:$0xff]
  %v3195 = vld [vmem:[#allocation2 + $0x88] sm:$0xff]
  %v3196 = vld [vmem:[#allocation2 + $0x90] sm:$0xff]
  %v3197 = vld [vmem:[#allocation2 + $0x98] sm:$0xff]
  %v3198 = vld [vmem:[#allocation2 + $0xa0] sm:$0xff]
  %v3199 = vld [vmem:[#allocation2 + $0xa8] sm:$0xff]
  %v3200 = vld [vmem:[#allocation2 + $0xb0] sm:$0xff]
  %v3201 = vld [vmem:[#allocation2 + $0xb8] sm:$0xff]
  %v3202 = vld [vmem:[#allocation2 + $0xc0] sm:$0xff]
  %v3203 = vld [vmem:[#allocation2 + $0xc8] sm:$0xff]
  %v3204 = vld [vmem:[#allocation2 + $0xd0] sm:$0xff]
  %v3205 = vld [vmem:[#allocation2 + $0xd8] sm:$0xff]
  %v3206 = vld [vmem:[#allocation2 + $0xe0] sm:$0xff]
  %v3207 = vld [vmem:[#allocation2 + $0xe8] sm:$0xff]
  %v3208 = vld [vmem:[#allocation2 + $0xf0] sm:$0xff]
  %v3209 = vld [vmem:[#allocation2 + $0xf8] sm:$0xff]
  %v3210 = vld [vmem:[#allocation2 + $0x100] sm:$0xff]
  %v3211 = vld [vmem:[#allocation2 + $0x108] sm:$0xff]
  %v3212 = vld [vmem:[#allocation2 + $0x110] sm:$0xff]
  %v3213 = vld [vmem:[#allocation2 + $0x118] sm:$0xff]
  %v3214 = vld [vmem:[#allocation2 + $0x120] sm:$0xff]
  %v3215 = vld [vmem:[#allocation2 + $0x128] sm:$0xff]
  %v3216 = vld [vmem:[#allocation2 + $0x130] sm:$0xff]
  %v3217 = vld [vmem:[#allocation2 + $0x138] sm:$0xff]
  %v3218 = vld [vmem:[#allocation2 + $0x140] sm:$0xff]
  %v3219 = vld [vmem:[#allocation2 + $0x148] sm:$0xff]
  %v3220 = vld [vmem:[#allocation2 + $0x150] sm:$0xff]
  %v3221 = vld [vmem:[#allocation2 + $0x158] sm:$0xff]
  %v3222 = vld [vmem:[#allocation2 + $0x160] sm:$0xff]
  %v3223 = vld [vmem:[#allocation2 + $0x168] sm:$0xff]
  %v3224 = vld [vmem:[#allocation2 + $0x170] sm:$0xff]
  %v3225 = vld [vmem:[#allocation2 + $0x178] sm:$0xff]
  %v3226 = vld [vmem:[#allocation2 + $0x180] sm:$0xff]
  %v3227 = vld [vmem:[#allocation2 + $0x188] sm:$0xff]
  %v3228 = vld [vmem:[#allocation2 + $0x190] sm:$0xff]
  %v3229 = vld [vmem:[#allocation2 + $0x198] sm:$0xff]
  %v3230 = vld [vmem:[#allocation2 + $0x1a0] sm:$0xff]
  %v3231 = vld [vmem:[#allocation2 + $0x1a8] sm:$0xff]
  %v3232 = vld [vmem:[#allocation2 + $0x1b0] sm:$0xff]
  %v3233 = vld [vmem:[#allocation2 + $0x1b8] sm:$0xff]
  %v3234 = vld [vmem:[#allocation2 + $0x1c0] sm:$0xff]
  %v3235 = vld [vmem:[#allocation2 + $0x1c8] sm:$0xff]
  %v3236 = vld [vmem:[#allocation2 + $0x1d0] sm:$0xff]
  %v3237 = vld [vmem:[#allocation2 + $0x1d8] sm:$0xff]
  %v3238 = vld [vmem:[#allocation2 + $0x1e0] sm:$0xff]
  %v3239 = vld [vmem:[#allocation2 + $0x1e8] sm:$0xff]
  %v3240 = vld [vmem:[#allocation2 + $0x1f0] sm:$0xff]
  %v3241 = vld [vmem:[#allocation2 + $0x1f8] sm:$0xff]
  %v3242 = vpack.c.bf16 %v3179, %v3178
  %v3243 = vpack.c.bf16 %v3181, %v3180
  %v3244 = vpack.c.bf16 %v3183, %v3182
  %v3245 = vpack.c.bf16 %v3185, %v3184
  %v3246 = vpack.c.bf16 %v3187, %v3186
  %v3247 = vpack.c.bf16 %v3189, %v3188
  %v3248 = vpack.c.bf16 %v3191, %v3190
  %v3249 = vpack.c.bf16 %v3193, %v3192
  %v3250 = vpack.c.bf16 %v3195, %v3194
  %v3251 = vpack.c.bf16 %v3197, %v3196
  %v3252 = vpack.c.bf16 %v3199, %v3198
  %v3253 = vpack.c.bf16 %v3201, %v3200
  %v3254 = vpack.c.bf16 %v3203, %v3202
  %v3255 = vpack.c.bf16 %v3205, %v3204
  %v3256 = vpack.c.bf16 %v3207, %v3206
  %v3257 = vpack.c.bf16 %v3209, %v3208
  %v3258 = vpack.c.bf16 %v3211, %v3210
  %v3259 = vpack.c.bf16 %v3213, %v3212
  %v3260 = vpack.c.bf16 %v3215, %v3214
  %v3261 = vpack.c.bf16 %v3217, %v3216
  %v3262 = vpack.c.bf16 %v3219, %v3218
  %v3263 = vpack.c.bf16 %v3221, %v3220
  %v3264 = vpack.c.bf16 %v3223, %v3222
  %v3265 = vpack.c.bf16 %v3225, %v3224
  %v3266 = vpack.c.bf16 %v3227, %v3226
  %v3267 = vpack.c.bf16 %v3229, %v3228
  %v3268 = vpack.c.bf16 %v3231, %v3230
  %v3269 = vpack.c.bf16 %v3233, %v3232
  %v3270 = vpack.c.bf16 %v3235, %v3234
  %v3271 = vpack.c.bf16 %v3237, %v3236
  %v3272 = vpack.c.bf16 %v3239, %v3238
  %v3273 = vpack.c.bf16 %v3241, %v3240
  %v3274 = vld [vmem:[%s1] sm:$0xf]
  %v3275 = vld [vmem:[%s1 + $0x4] sm:$0xf]
  %v3276 = vld [vmem:[%s1 + $0x8] sm:$0xf]
  %v3277 = vld [vmem:[%s1 + $0xc] sm:$0xf]
  %v3278 = vld [vmem:[%s1 + $0x10] sm:$0x3]
  %v3284 = vunpack.c.l.b16 %v3274
  %v3285 = vunpack.c.l.b16 %v3275
  %v3286 = vunpack.c.l.b16 %v3276
  %v3287 = vunpack.c.l.b16 %v3277
  %v3288 = vunpack.c.l.b16 %v3278
  %v3289 = vpack.c.b16 %v3285, %v3284
  %v3290 = vpack.c.b16 %v3287, %v3286
  %v3291 = vpack.c.b16 %v3288, %v3288
  %v3295 = vsel %vm24, %v3242, 0
  %v3298 = vsel %vm24, %v3243, 0
  %v3301 = vsel %vm24, %v3244, 0
  %v3304 = vsel %vm24, %v3245, 0
  %v3307 = vsel %vm24, %v3246, 0
  %v3310 = vsel %vm24, %v3247, 0
  %v3313 = vsel %vm24, %v3248, 0
  %v3316 = vsel %vm24, %v3249, 0
  %v3319 = vsel %vm24, %v3250, 0
  %v3322 = vsel %vm24, %v3251, 0
  %v3325 = vsel %vm24, %v3252, 0
  %v3328 = vsel %vm24, %v3253, 0
  %v3331 = vsel %vm24, %v3254, 0
  %v3334 = vsel %vm24, %v3255, 0
  %v3337 = vsel %vm24, %v3256, 0
  %v3340 = vsel %vm24, %v3257, 0
  %v3343 = vsel %vm24, %v3258, 0
  %v3346 = vsel %vm24, %v3259, 0
  %v3349 = vsel %vm24, %v3260, 0
  %v3352 = vsel %vm24, %v3261, 0
  %v3355 = vsel %vm24, %v3262, 0
  %v3358 = vsel %vm24, %v3263, 0
  %v3361 = vsel %vm24, %v3264, 0
  %v3364 = vsel %vm24, %v3265, 0
  %v3367 = vsel %vm24, %v3266, 0
  %v3370 = vsel %vm24, %v3267, 0
  %v3373 = vsel %vm24, %v3268, 0
  %v3376 = vsel %vm24, %v3269, 0
  %v3379 = vsel %vm24, %v3270, 0
  %v3382 = vsel %vm24, %v3271, 0
  %v3385 = vsel %vm24, %v3272, 0
  %v3388 = vsel %vm24, %v3273, 0
  %vm3390 = vcmask 1041408
  %v3392 = vsel %vm3390, %v3291, 0
  %3394 = vmatprep.subr.bf16.mxu0 0
  %3395 = vmatpush1.bf16.msra.mxu0 0
  %3396 = vmatprep.subr.bf16.mxu0 0
  %3397 = vmatpush1.bf16.msra.mxu0 0
  %3398 = vmatprep.subr.bf16.mxu0 0
  %3399 = vmatpush1.bf16.msra.mxu0 0
  %3400 = vmatprep.subr.bf16.mxu0 0
  %3401 = vmatpush1.bf16.msra.mxu0 0
  %3402 = vmatprep.subr.bf16.mxu0 0
  %3403 = vmatpush1.bf16.msra.mxu0 0
  %3404 = vmatprep.subr.bf16.mxu0 0
  %3405 = vmatpush1.bf16.msra.mxu0 %v3392
  %3406 = vmatprep.subr.bf16.mxu0 0
  %3407 = vmatpush1.bf16.msra.mxu0 %v3290
  %3408 = vmatprep.subr.bf16.mxu0 0
  %3409 = vmatpush1.bf16.msra.mxu0 %v3289
  %3410 = vmatprep.subr.bf16.mxu0 0
  %3411 = vmatpush2.bf16.msra.mxu0 0
  %3412 = vmatprep.subr.bf16.mxu0 0
  %3413 = vmatpush2.bf16.msra.mxu0 0
  %3414 = vmatprep.subr.bf16.mxu0 0
  %3415 = vmatpush2.bf16.msra.mxu0 0
  %3416 = vmatprep.subr.bf16.mxu0 0
  %3417 = vmatpush2.bf16.msra.mxu0 0
  %3418 = vmatprep.subr.bf16.mxu0 0
  %3419 = vmatpush2.bf16.msra.mxu0 0
  %3420 = vmatprep.subr.bf16.mxu0 0
  %3421 = vmatpush2.bf16.msra.mxu0 0
  %3422 = vmatprep.subr.bf16.mxu0 0
  %3423 = vmatpush2.bf16.msra.mxu0 0
  %3424 = vmatprep.subr.bf16.mxu0 0
  %3425 = vmatpush2.bf16.msra.mxu0 0
  %3426 = vmatprep.mubr.bf16.mxu0 0
  %3427 = vmatmul.mubr.bf16.gmra.mxu0 %v3295
  %v3428 = vpop.f32.mrf.mxu0
  %v3429 = vadd.f32 0.0, %v3428
  %v3430 = vpop.f32.mrf.mxu0
  %v3431 = vpop.f32.mrf.mxu0
  %v3432 = vadd.f32 0.0, %v3431
  %v3433 = vpop.f32.mrf.mxu0
  %3434 = vmatprep.mubr.bf16.mxu0 0
  %3435 = vmatmul.mubr.bf16.gmra.mxu0 %v3298
  %v3436 = vpop.f32.mrf.mxu0
  %v3437 = vadd.f32 0.0, %v3436
  %v3438 = vpop.f32.mrf.mxu0
  %v3439 = vpop.f32.mrf.mxu0
  %v3440 = vadd.f32 0.0, %v3439
  %v3441 = vpop.f32.mrf.mxu0
  %3442 = vmatprep.mubr.bf16.mxu0 0
  %3443 = vmatmul.mubr.bf16.gmra.mxu0 %v3301
  %v3444 = vpop.f32.mrf.mxu0
  %v3445 = vadd.f32 0.0, %v3444
  %v3446 = vpop.f32.mrf.mxu0
  %v3447 = vpop.f32.mrf.mxu0
  %v3448 = vadd.f32 0.0, %v3447
  %v3449 = vpop.f32.mrf.mxu0
  %3450 = vmatprep.mubr.bf16.mxu0 0
  %3451 = vmatmul.mubr.bf16.gmra.mxu0 %v3304
  %v3452 = vpop.f32.mrf.mxu0
  %v3453 = vadd.f32 0.0, %v3452
  %v3454 = vpop.f32.mrf.mxu0
  %v3455 = vpop.f32.mrf.mxu0
  %v3456 = vadd.f32 0.0, %v3455
  %v3457 = vpop.f32.mrf.mxu0
  %3458 = vmatprep.mubr.bf16.mxu0 0
  %3459 = vmatmul.mubr.bf16.gmra.mxu0 %v3307
  %v3460 = vpop.f32.mrf.mxu0
  %v3461 = vadd.f32 0.0, %v3460
  %v3462 = vpop.f32.mrf.mxu0
  %v3463 = vpop.f32.mrf.mxu0
  %v3464 = vadd.f32 0.0, %v3463
  %v3465 = vpop.f32.mrf.mxu0
  %3466 = vmatprep.mubr.bf16.mxu0 0
  %3467 = vmatmul.mubr.bf16.gmra.mxu0 %v3310
  %v3468 = vpop.f32.mrf.mxu0
  %v3469 = vadd.f32 0.0, %v3468
  %v3470 = vpop.f32.mrf.mxu0
  %v3471 = vpop.f32.mrf.mxu0
  %v3472 = vadd.f32 0.0, %v3471
  %v3473 = vpop.f32.mrf.mxu0
  %3474 = vmatprep.mubr.bf16.mxu0 0
  %3475 = vmatmul.mubr.bf16.gmra.mxu0 %v3313
  %v3476 = vpop.f32.mrf.mxu0
  %v3477 = vadd.f32 0.0, %v3476
  %v3478 = vpop.f32.mrf.mxu0
  %v3479 = vpop.f32.mrf.mxu0
  %v3480 = vadd.f32 0.0, %v3479
  %v3481 = vpop.f32.mrf.mxu0
  %3482 = vmatprep.mubr.bf16.mxu0 0
  %3483 = vmatmul.mubr.bf16.gmra.mxu0 %v3316
  %v3484 = vpop.f32.mrf.mxu0
  %v3485 = vadd.f32 0.0, %v3484
  %v3486 = vpop.f32.mrf.mxu0
  %v3487 = vpop.f32.mrf.mxu0
  %v3488 = vadd.f32 0.0, %v3487
  %v3489 = vpop.f32.mrf.mxu0
  %3490 = vmatprep.mubr.bf16.mxu0 0
  %3491 = vmatmul.mubr.bf16.gmra.mxu0 %v3319
  %v3492 = vpop.f32.mrf.mxu0
  %v3493 = vadd.f32 0.0, %v3492
  %v3494 = vpop.f32.mrf.mxu0
  %v3495 = vpop.f32.mrf.mxu0
  %v3496 = vadd.f32 0.0, %v3495
  %v3497 = vpop.f32.mrf.mxu0
  %3498 = vmatprep.mubr.bf16.mxu0 0
  %3499 = vmatmul.mubr.bf16.gmra.mxu0 %v3322
  %v3500 = vpop.f32.mrf.mxu0
  %v3501 = vadd.f32 0.0, %v3500
  %v3502 = vpop.f32.mrf.mxu0
  %v3503 = vpop.f32.mrf.mxu0
  %v3504 = vadd.f32 0.0, %v3503
  %v3505 = vpop.f32.mrf.mxu0
  %3506 = vmatprep.mubr.bf16.mxu0 0
  %3507 = vmatmul.mubr.bf16.gmra.mxu0 %v3325
  %v3508 = vpop.f32.mrf.mxu0
  %v3509 = vadd.f32 0.0, %v3508
  %v3510 = vpop.f32.mrf.mxu0
  %v3511 = vpop.f32.mrf.mxu0
  %v3512 = vadd.f32 0.0, %v3511
  %v3513 = vpop.f32.mrf.mxu0
  %3514 = vmatprep.mubr.bf16.mxu0 0
  %3515 = vmatmul.mubr.bf16.gmra.mxu0 %v3328
  %v3516 = vpop.f32.mrf.mxu0
  %v3517 = vadd.f32 0.0, %v3516
  %v3518 = vpop.f32.mrf.mxu0
  %v3519 = vpop.f32.mrf.mxu0
  %v3520 = vadd.f32 0.0, %v3519
  %v3521 = vpop.f32.mrf.mxu0
  %3522 = vmatprep.mubr.bf16.mxu0 0
  %3523 = vmatmul.mubr.bf16.gmra.mxu0 %v3331
  %v3524 = vpop.f32.mrf.mxu0
  %v3525 = vadd.f32 0.0, %v3524
  %v3526 = vpop.f32.mrf.mxu0
  %v3527 = vpop.f32.mrf.mxu0
  %v3528 = vadd.f32 0.0, %v3527
  %v3529 = vpop.f32.mrf.mxu0
  %3530 = vmatprep.mubr.bf16.mxu0 0
  %3531 = vmatmul.mubr.bf16.gmra.mxu0 %v3334
  %v3532 = vpop.f32.mrf.mxu0
  %v3533 = vadd.f32 0.0, %v3532
  %v3534 = vpop.f32.mrf.mxu0
  %v3535 = vpop.f32.mrf.mxu0
  %v3536 = vadd.f32 0.0, %v3535
  %v3537 = vpop.f32.mrf.mxu0
  %3538 = vmatprep.mubr.bf16.mxu0 0
  %3539 = vmatmul.mubr.bf16.gmra.mxu0 %v3337
  %v3540 = vpop.f32.mrf.mxu0
  %v3541 = vadd.f32 0.0, %v3540
  %v3542 = vpop.f32.mrf.mxu0
  %v3543 = vpop.f32.mrf.mxu0
  %v3544 = vadd.f32 0.0, %v3543
  %v3545 = vpop.f32.mrf.mxu0
  %3546 = vmatprep.mubr.bf16.mxu0 0
  %3547 = vmatmul.mubr.bf16.gmra.mxu0 %v3340
  %v3548 = vpop.f32.mrf.mxu0
  %v3549 = vadd.f32 0.0, %v3548
  %v3550 = vpop.f32.mrf.mxu0
  %v3551 = vpop.f32.mrf.mxu0
  %v3552 = vadd.f32 0.0, %v3551
  %v3553 = vpop.f32.mrf.mxu0
  %3554 = vmatprep.mubr.bf16.mxu0 0
  %3555 = vmatmul.mubr.bf16.gmra.mxu0 %v3343
  %v3556 = vpop.f32.mrf.mxu0
  %v3557 = vadd.f32 0.0, %v3556
  %v3558 = vpop.f32.mrf.mxu0
  %v3559 = vpop.f32.mrf.mxu0
  %v3560 = vadd.f32 0.0, %v3559
  %v3561 = vpop.f32.mrf.mxu0
  %3562 = vmatprep.mubr.bf16.mxu0 0
  %3563 = vmatmul.mubr.bf16.gmra.mxu0 %v3346
  %v3564 = vpop.f32.mrf.mxu0
  %v3565 = vadd.f32 0.0, %v3564
  %v3566 = vpop.f32.mrf.mxu0
  %v3567 = vpop.f32.mrf.mxu0
  %v3568 = vadd.f32 0.0, %v3567
  %v3569 = vpop.f32.mrf.mxu0
  %3570 = vmatprep.mubr.bf16.mxu0 0
  %3571 = vmatmul.mubr.bf16.gmra.mxu0 %v3349
  %v3572 = vpop.f32.mrf.mxu0
  %v3573 = vadd.f32 0.0, %v3572
  %v3574 = vpop.f32.mrf.mxu0
  %v3575 = vpop.f32.mrf.mxu0
  %v3576 = vadd.f32 0.0, %v3575
  %v3577 = vpop.f32.mrf.mxu0
  %3578 = vmatprep.mubr.bf16.mxu0 0
  %3579 = vmatmul.mubr.bf16.gmra.mxu0 %v3352
  %v3580 = vpop.f32.mrf.mxu0
  %v3581 = vadd.f32 0.0, %v3580
  %v3582 = vpop.f32.mrf.mxu0
  %v3583 = vpop.f32.mrf.mxu0
  %v3584 = vadd.f32 0.0, %v3583
  %v3585 = vpop.f32.mrf.mxu0
  %3586 = vmatprep.mubr.bf16.mxu0 0
  %3587 = vmatmul.mubr.bf16.gmra.mxu0 %v3355
  %v3588 = vpop.f32.mrf.mxu0
  %v3589 = vadd.f32 0.0, %v3588
  %v3590 = vpop.f32.mrf.mxu0
  %v3591 = vpop.f32.mrf.mxu0
  %v3592 = vadd.f32 0.0, %v3591
  %v3593 = vpop.f32.mrf.mxu0
  %3594 = vmatprep.mubr.bf16.mxu0 0
  %3595 = vmatmul.mubr.bf16.gmra.mxu0 %v3358
  %v3596 = vpop.f32.mrf.mxu0
  %v3597 = vadd.f32 0.0, %v3596
  %v3598 = vpop.f32.mrf.mxu0
  %v3599 = vpop.f32.mrf.mxu0
  %v3600 = vadd.f32 0.0, %v3599
  %v3601 = vpop.f32.mrf.mxu0
  %3602 = vmatprep.mubr.bf16.mxu0 0
  %3603 = vmatmul.mubr.bf16.gmra.mxu0 %v3361
  %v3604 = vpop.f32.mrf.mxu0
  %v3605 = vadd.f32 0.0, %v3604
  %v3606 = vpop.f32.mrf.mxu0
  %v3607 = vpop.f32.mrf.mxu0
  %v3608 = vadd.f32 0.0, %v3607
  %v3609 = vpop.f32.mrf.mxu0
  %3610 = vmatprep.mubr.bf16.mxu0 0
  %3611 = vmatmul.mubr.bf16.gmra.mxu0 %v3364
  %v3612 = vpop.f32.mrf.mxu0
  %v3613 = vadd.f32 0.0, %v3612
  %v3614 = vpop.f32.mrf.mxu0
  %v3615 = vpop.f32.mrf.mxu0
  %v3616 = vadd.f32 0.0, %v3615
  %v3617 = vpop.f32.mrf.mxu0
  %3618 = vmatprep.mubr.bf16.mxu0 0
  %3619 = vmatmul.mubr.bf16.gmra.mxu0 %v3367
  %v3620 = vpop.f32.mrf.mxu0
  %v3621 = vadd.f32 0.0, %v3620
  %v3622 = vpop.f32.mrf.mxu0
  %v3623 = vpop.f32.mrf.mxu0
  %v3624 = vadd.f32 0.0, %v3623
  %v3625 = vpop.f32.mrf.mxu0
  %3626 = vmatprep.mubr.bf16.mxu0 0
  %3627 = vmatmul.mubr.bf16.gmra.mxu0 %v3370
  %v3628 = vpop.f32.mrf.mxu0
  %v3629 = vadd.f32 0.0, %v3628
  %v3630 = vpop.f32.mrf.mxu0
  %v3631 = vpop.f32.mrf.mxu0
  %v3632 = vadd.f32 0.0, %v3631
  %v3633 = vpop.f32.mrf.mxu0
  %3634 = vmatprep.mubr.bf16.mxu0 0
  %3635 = vmatmul.mubr.bf16.gmra.mxu0 %v3373
  %v3636 = vpop.f32.mrf.mxu0
  %v3637 = vadd.f32 0.0, %v3636
  %v3638 = vpop.f32.mrf.mxu0
  %v3639 = vpop.f32.mrf.mxu0
  %v3640 = vadd.f32 0.0, %v3639
  %v3641 = vpop.f32.mrf.mxu0
  %3642 = vmatprep.mubr.bf16.mxu0 0
  %3643 = vmatmul.mubr.bf16.gmra.mxu0 %v3376
  %v3644 = vpop.f32.mrf.mxu0
  %v3645 = vadd.f32 0.0, %v3644
  %v3646 = vpop.f32.mrf.mxu0
  %v3647 = vpop.f32.mrf.mxu0
  %v3648 = vadd.f32 0.0, %v3647
  %v3649 = vpop.f32.mrf.mxu0
  %3650 = vmatprep.mubr.bf16.mxu0 0
  %3651 = vmatmul.mubr.bf16.gmra.mxu0 %v3379
  %v3652 = vpop.f32.mrf.mxu0
  %v3653 = vadd.f32 0.0, %v3652
  %v3654 = vpop.f32.mrf.mxu0
  %v3655 = vpop.f32.mrf.mxu0
  %v3656 = vadd.f32 0.0, %v3655
  %v3657 = vpop.f32.mrf.mxu0
  %3658 = vmatprep.mubr.bf16.mxu0 0
  %3659 = vmatmul.mubr.bf16.gmra.mxu0 %v3382
  %v3660 = vpop.f32.mrf.mxu0
  %v3661 = vadd.f32 0.0, %v3660
  %v3662 = vpop.f32.mrf.mxu0
  %v3663 = vpop.f32.mrf.mxu0
  %v3664 = vadd.f32 0.0, %v3663
  %v3665 = vpop.f32.mrf.mxu0
  %3666 = vmatprep.mubr.bf16.mxu0 0
  %3667 = vmatmul.mubr.bf16.gmra.mxu0 %v3385
  %v3668 = vpop.f32.mrf.mxu0
  %v3669 = vadd.f32 0.0, %v3668
  %v3670 = vpop.f32.mrf.mxu0
  %v3671 = vpop.f32.mrf.mxu0
  %v3672 = vadd.f32 0.0, %v3671
  %v3673 = vpop.f32.mrf.mxu0
  %3674 = vmatprep.mubr.bf16.mxu0 0
  %3675 = vmatmul.mubr.bf16.gmra.mxu0 %v3388
  %v3676 = vpop.f32.mrf.mxu0
  %v3677 = vadd.f32 0.0, %v3676
  %v3678 = vpop.f32.mrf.mxu0
  %v3679 = vpop.f32.mrf.mxu0
  %v3680 = vadd.f32 0.0, %v3679
  %v3681 = vpop.f32.mrf.mxu0
  %3682 = vdwg.mxu0
  %vm3683 = vcmask 64512
  %v3684 = vsel %vm3683, %v3429, 0.0
  %v3685 = vsel %vm3683, %v3432, 0.0
  %v3686 = vadd.f32 %v3684, %v3685
  %v3687 = vsel %vm3683, %v3437, 0.0
  %v3688 = vadd.f32 %v3686, %v3687
  %v3689 = vsel %vm3683, %v3440, 0.0
  %v3690 = vadd.f32 %v3688, %v3689
  %v3691 = vsel %vm3683, %v3445, 0.0
  %v3692 = vadd.f32 %v3690, %v3691
  %v3693 = vsel %vm3683, %v3448, 0.0
  %v3694 = vadd.f32 %v3692, %v3693
  %v3695 = vsel %vm3683, %v3453, 0.0
  %v3696 = vadd.f32 %v3694, %v3695
  %v3697 = vsel %vm3683, %v3456, 0.0
  %v3698 = vadd.f32 %v3696, %v3697
  %v3699 = vsel %vm3683, %v3461, 0.0
  %v3700 = vadd.f32 %v3698, %v3699
  %v3701 = vsel %vm3683, %v3464, 0.0
  %v3702 = vadd.f32 %v3700, %v3701
  %v3703 = vsel %vm3683, %v3469, 0.0
  %v3704 = vadd.f32 %v3702, %v3703
  %v3705 = vsel %vm3683, %v3472, 0.0
  %v3706 = vadd.f32 %v3704, %v3705
  %v3707 = vsel %vm3683, %v3477, 0.0
  %v3708 = vadd.f32 %v3706, %v3707
  %v3709 = vsel %vm3683, %v3480, 0.0
  %v3710 = vadd.f32 %v3708, %v3709
  %v3711 = vsel %vm3683, %v3485, 0.0
  %v3712 = vadd.f32 %v3710, %v3711
  %v3713 = vsel %vm3683, %v3488, 0.0
  %v3714 = vadd.f32 %v3712, %v3713
  %v3715 = vsel %vm3683, %v3493, 0.0
  %v3716 = vadd.f32 %v3714, %v3715
  %v3717 = vsel %vm3683, %v3496, 0.0
  %v3718 = vadd.f32 %v3716, %v3717
  %v3719 = vsel %vm3683, %v3501, 0.0
  %v3720 = vadd.f32 %v3718, %v3719
  %v3721 = vsel %vm3683, %v3504, 0.0
  %v3722 = vadd.f32 %v3720, %v3721
  %v3723 = vsel %vm3683, %v3509, 0.0
  %v3724 = vadd.f32 %v3722, %v3723
  %v3725 = vsel %vm3683, %v3512, 0.0
  %v3726 = vadd.f32 %v3724, %v3725
  %v3727 = vsel %vm3683, %v3517, 0.0
  %v3728 = vadd.f32 %v3726, %v3727
  %v3729 = vsel %vm3683, %v3520, 0.0
  %v3730 = vadd.f32 %v3728, %v3729
  %v3731 = vsel %vm3683, %v3525, 0.0
  %v3732 = vadd.f32 %v3730, %v3731
  %v3733 = vsel %vm3683, %v3528, 0.0
  %v3734 = vadd.f32 %v3732, %v3733
  %v3735 = vsel %vm3683, %v3533, 0.0
  %v3736 = vadd.f32 %v3734, %v3735
  %v3737 = vsel %vm3683, %v3536, 0.0
  %v3738 = vadd.f32 %v3736, %v3737
  %v3739 = vsel %vm3683, %v3541, 0.0
  %v3740 = vadd.f32 %v3738, %v3739
  %v3741 = vsel %vm3683, %v3544, 0.0
  %v3742 = vadd.f32 %v3740, %v3741
  %v3743 = vsel %vm3683, %v3549, 0.0
  %v3744 = vadd.f32 %v3742, %v3743
  %v3745 = vsel %vm3683, %v3552, 0.0
  %v3746 = vadd.f32 %v3744, %v3745
  %v3747 = vsel %vm3683, %v3557, 0.0
  %v3748 = vadd.f32 %v3746, %v3747
  %v3749 = vsel %vm3683, %v3560, 0.0
  %v3750 = vadd.f32 %v3748, %v3749
  %v3751 = vsel %vm3683, %v3565, 0.0
  %v3752 = vadd.f32 %v3750, %v3751
  %v3753 = vsel %vm3683, %v3568, 0.0
  %v3754 = vadd.f32 %v3752, %v3753
  %v3755 = vsel %vm3683, %v3573, 0.0
  %v3756 = vadd.f32 %v3754, %v3755
  %v3757 = vsel %vm3683, %v3576, 0.0
  %v3758 = vadd.f32 %v3756, %v3757
  %v3759 = vsel %vm3683, %v3581, 0.0
  %v3760 = vadd.f32 %v3758, %v3759
  %v3761 = vsel %vm3683, %v3584, 0.0
  %v3762 = vadd.f32 %v3760, %v3761
  %v3763 = vsel %vm3683, %v3589, 0.0
  %v3764 = vadd.f32 %v3762, %v3763
  %v3765 = vsel %vm3683, %v3592, 0.0
  %v3766 = vadd.f32 %v3764, %v3765
  %v3767 = vsel %vm3683, %v3597, 0.0
  %v3768 = vadd.f32 %v3766, %v3767
  %v3769 = vsel %vm3683, %v3600, 0.0
  %v3770 = vadd.f32 %v3768, %v3769
  %v3771 = vsel %vm3683, %v3605, 0.0
  %v3772 = vadd.f32 %v3770, %v3771
  %v3773 = vsel %vm3683, %v3608, 0.0
  %v3774 = vadd.f32 %v3772, %v3773
  %v3775 = vsel %vm3683, %v3613, 0.0
  %v3776 = vadd.f32 %v3774, %v3775
  %v3777 = vsel %vm3683, %v3616, 0.0
  %v3778 = vadd.f32 %v3776, %v3777
  %v3779 = vsel %vm3683, %v3621, 0.0
  %v3780 = vadd.f32 %v3778, %v3779
  %v3781 = vsel %vm3683, %v3624, 0.0
  %v3782 = vadd.f32 %v3780, %v3781
  %v3783 = vsel %vm3683, %v3629, 0.0
  %v3784 = vadd.f32 %v3782, %v3783
  %v3785 = vsel %vm3683, %v3632, 0.0
  %v3786 = vadd.f32 %v3784, %v3785
  %v3787 = vsel %vm3683, %v3637, 0.0
  %v3788 = vadd.f32 %v3786, %v3787
  %v3789 = vsel %vm3683, %v3640, 0.0
  %v3790 = vadd.f32 %v3788, %v3789
  %v3791 = vsel %vm3683, %v3645, 0.0
  %v3792 = vadd.f32 %v3790, %v3791
  %v3793 = vsel %vm3683, %v3648, 0.0
  %v3794 = vadd.f32 %v3792, %v3793
  %v3795 = vsel %vm3683, %v3653, 0.0
  %v3796 = vadd.f32 %v3794, %v3795
  %v3797 = vsel %vm3683, %v3656, 0.0
  %v3798 = vadd.f32 %v3796, %v3797
  %v3799 = vsel %vm3683, %v3661, 0.0
  %v3800 = vadd.f32 %v3798, %v3799
  %v3801 = vsel %vm3683, %v3664, 0.0
  %v3802 = vadd.f32 %v3800, %v3801
  %v3803 = vsel %vm3683, %v3669, 0.0
  %v3804 = vadd.f32 %v3802, %v3803
  %v3805 = vsel %vm3683, %v3672, 0.0
  %v3806 = vadd.f32 %v3804, %v3805
  %v3807 = vsel %vm3683, %v3677, 0.0
  %v3808 = vadd.f32 %v3806, %v3807
  %v3809 = vsel %vm3683, %v3680, 0.0
  %v3810 = vadd.f32 %v3808, %v3809
  %v3811 = vrot.slane %v3810, 4
  %v3812 = vadd.f32 %v3810, %v3811
  %v3813 = vrot.slane %v3812, 2
  %v3814 = vadd.f32 %v3812, %v3813
  %v3815 = vrot.slane %v3814, 1
  %v3816 = vadd.f32 %v3814, %v3815
  %v3817 = vmul.f32 %v3816, 0.001953125
  %v3818 = vmul.f32 %v3429, %v3429
  %v3819 = vmul.f32 %v3432, %v3432
  %v3820 = vmul.f32 %v3437, %v3437
  %v3821 = vmul.f32 %v3440, %v3440
  %v3822 = vmul.f32 %v3445, %v3445
  %v3823 = vmul.f32 %v3448, %v3448
  %v3824 = vmul.f32 %v3453, %v3453
  %v3825 = vmul.f32 %v3456, %v3456
  %v3826 = vmul.f32 %v3461, %v3461
  %v3827 = vmul.f32 %v3464, %v3464
  %v3828 = vmul.f32 %v3469, %v3469
  %v3829 = vmul.f32 %v3472, %v3472
  %v3830 = vmul.f32 %v3477, %v3477
  %v3831 = vmul.f32 %v3480, %v3480
  %v3832 = vmul.f32 %v3485, %v3485
  %v3833 = vmul.f32 %v3488, %v3488
  %v3834 = vmul.f32 %v3493, %v3493
  %v3835 = vmul.f32 %v3496, %v3496
  %v3836 = vmul.f32 %v3501, %v3501
  %v3837 = vmul.f32 %v3504, %v3504
  %v3838 = vmul.f32 %v3509, %v3509
  %v3839 = vmul.f32 %v3512, %v3512
  %v3840 = vmul.f32 %v3517, %v3517
  %v3841 = vmul.f32 %v3520, %v3520
  %v3842 = vmul.f32 %v3525, %v3525
  %v3843 = vmul.f32 %v3528, %v3528
  %v3844 = vmul.f32 %v3533, %v3533
  %v3845 = vmul.f32 %v3536, %v3536
  %v3846 = vmul.f32 %v3541, %v3541
  %v3847 = vmul.f32 %v3544, %v3544
  %v3848 = vmul.f32 %v3549, %v3549
  %v3849 = vmul.f32 %v3552, %v3552
  %v3850 = vmul.f32 %v3557, %v3557
  %v3851 = vmul.f32 %v3560, %v3560
  %v3852 = vmul.f32 %v3565, %v3565
  %v3853 = vmul.f32 %v3568, %v3568
  %v3854 = vmul.f32 %v3573, %v3573
  %v3855 = vmul.f32 %v3576, %v3576
  %v3856 = vmul.f32 %v3581, %v3581
  %v3857 = vmul.f32 %v3584, %v3584
  %v3858 = vmul.f32 %v3589, %v3589
  %v3859 = vmul.f32 %v3592, %v3592
  %v3860 = vmul.f32 %v3597, %v3597
  %v3861 = vmul.f32 %v3600, %v3600
  %v3862 = vmul.f32 %v3605, %v3605
  %v3863 = vmul.f32 %v3608, %v3608
  %v3864 = vmul.f32 %v3613, %v3613
  %v3865 = vmul.f32 %v3616, %v3616
  %v3866 = vmul.f32 %v3621, %v3621
  %v3867 = vmul.f32 %v3624, %v3624
  %v3868 = vmul.f32 %v3629, %v3629
  %v3869 = vmul.f32 %v3632, %v3632
  %v3870 = vmul.f32 %v3637, %v3637
  %v3871 = vmul.f32 %v3640, %v3640
  %v3872 = vmul.f32 %v3645, %v3645
  %v3873 = vmul.f32 %v3648, %v3648
  %v3874 = vmul.f32 %v3653, %v3653
  %v3875 = vmul.f32 %v3656, %v3656
  %v3876 = vmul.f32 %v3661, %v3661
  %v3877 = vmul.f32 %v3664, %v3664
  %v3878 = vmul.f32 %v3669, %v3669
  %v3879 = vmul.f32 %v3672, %v3672
  %v3880 = vmul.f32 %v3677, %v3677
  %v3881 = vmul.f32 %v3680, %v3680
  %v3882 = vsel %vm3683, %v3818, 0.0
  %v3883 = vsel %vm3683, %v3819, 0.0
  %v3884 = vadd.f32 %v3882, %v3883
  %v3885 = vsel %vm3683, %v3820, 0.0
  %v3886 = vadd.f32 %v3884, %v3885
  %v3887 = vsel %vm3683, %v3821, 0.0
  %v3888 = vadd.f32 %v3886, %v3887
  %v3889 = vsel %vm3683, %v3822, 0.0
  %v3890 = vadd.f32 %v3888, %v3889
  %v3891 = vsel %vm3683, %v3823, 0.0
  %v3892 = vadd.f32 %v3890, %v3891
  %v3893 = vsel %vm3683, %v3824, 0.0
  %v3894 = vadd.f32 %v3892, %v3893
  %v3895 = vsel %vm3683, %v3825, 0.0
  %v3896 = vadd.f32 %v3894, %v3895
  %v3897 = vsel %vm3683, %v3826, 0.0
  %v3898 = vadd.f32 %v3896, %v3897
  %v3899 = vsel %vm3683, %v3827, 0.0
  %v3900 = vadd.f32 %v3898, %v3899
  %v3901 = vsel %vm3683, %v3828, 0.0
  %v3902 = vadd.f32 %v3900, %v3901
  %v3903 = vsel %vm3683, %v3829, 0.0
  %v3904 = vadd.f32 %v3902, %v3903
  %v3905 = vsel %vm3683, %v3830, 0.0
  %v3906 = vadd.f32 %v3904, %v3905
  %v3907 = vsel %vm3683, %v3831, 0.0
  %v3908 = vadd.f32 %v3906, %v3907
  %v3909 = vsel %vm3683, %v3832, 0.0
  %v3910 = vadd.f32 %v3908, %v3909
  %v3911 = vsel %vm3683, %v3833, 0.0
  %v3912 = vadd.f32 %v3910, %v3911
  %v3913 = vsel %vm3683, %v3834, 0.0
  %v3914 = vadd.f32 %v3912, %v3913
  %v3915 = vsel %vm3683, %v3835, 0.0
  %v3916 = vadd.f32 %v3914, %v3915
  %v3917 = vsel %vm3683, %v3836, 0.0
  %v3918 = vadd.f32 %v3916, %v3917
  %v3919 = vsel %vm3683, %v3837, 0.0
  %v3920 = vadd.f32 %v3918, %v3919
  %v3921 = vsel %vm3683, %v3838, 0.0
  %v3922 = vadd.f32 %v3920, %v3921
  %v3923 = vsel %vm3683, %v3839, 0.0
  %v3924 = vadd.f32 %v3922, %v3923
  %v3925 = vsel %vm3683, %v3840, 0.0
  %v3926 = vadd.f32 %v3924, %v3925
  %v3927 = vsel %vm3683, %v3841, 0.0
  %v3928 = vadd.f32 %v3926, %v3927
  %v3929 = vsel %vm3683, %v3842, 0.0
  %v3930 = vadd.f32 %v3928, %v3929
  %v3931 = vsel %vm3683, %v3843, 0.0
  %v3932 = vadd.f32 %v3930, %v3931
  %v3933 = vsel %vm3683, %v3844, 0.0
  %v3934 = vadd.f32 %v3932, %v3933
  %v3935 = vsel %vm3683, %v3845, 0.0
  %v3936 = vadd.f32 %v3934, %v3935
  %v3937 = vsel %vm3683, %v3846, 0.0
  %v3938 = vadd.f32 %v3936, %v3937
  %v3939 = vsel %vm3683, %v3847, 0.0
  %v3940 = vadd.f32 %v3938, %v3939
  %v3941 = vsel %vm3683, %v3848, 0.0
  %v3942 = vadd.f32 %v3940, %v3941
  %v3943 = vsel %vm3683, %v3849, 0.0
  %v3944 = vadd.f32 %v3942, %v3943
  %v3945 = vsel %vm3683, %v3850, 0.0
  %v3946 = vadd.f32 %v3944, %v3945
  %v3947 = vsel %vm3683, %v3851, 0.0
  %v3948 = vadd.f32 %v3946, %v3947
  %v3949 = vsel %vm3683, %v3852, 0.0
  %v3950 = vadd.f32 %v3948, %v3949
  %v3951 = vsel %vm3683, %v3853, 0.0
  %v3952 = vadd.f32 %v3950, %v3951
  %v3953 = vsel %vm3683, %v3854, 0.0
  %v3954 = vadd.f32 %v3952, %v3953
  %v3955 = vsel %vm3683, %v3855, 0.0
  %v3956 = vadd.f32 %v3954, %v3955
  %v3957 = vsel %vm3683, %v3856, 0.0
  %v3958 = vadd.f32 %v3956, %v3957
  %v3959 = vsel %vm3683, %v3857, 0.0
  %v3960 = vadd.f32 %v3958, %v3959
  %v3961 = vsel %vm3683, %v3858, 0.0
  %v3962 = vadd.f32 %v3960, %v3961
  %v3963 = vsel %vm3683, %v3859, 0.0
  %v3964 = vadd.f32 %v3962, %v3963
  %v3965 = vsel %vm3683, %v3860, 0.0
  %v3966 = vadd.f32 %v3964, %v3965
  %v3967 = vsel %vm3683, %v3861, 0.0
  %v3968 = vadd.f32 %v3966, %v3967
  %v3969 = vsel %vm3683, %v3862, 0.0
  %v3970 = vadd.f32 %v3968, %v3969
  %v3971 = vsel %vm3683, %v3863, 0.0
  %v3972 = vadd.f32 %v3970, %v3971
  %v3973 = vsel %vm3683, %v3864, 0.0
  %v3974 = vadd.f32 %v3972, %v3973
  %v3975 = vsel %vm3683, %v3865, 0.0
  %v3976 = vadd.f32 %v3974, %v3975
  %v3977 = vsel %vm3683, %v3866, 0.0
  %v3978 = vadd.f32 %v3976, %v3977
  %v3979 = vsel %vm3683, %v3867, 0.0
  %v3980 = vadd.f32 %v3978, %v3979
  %v3981 = vsel %vm3683, %v3868, 0.0
  %v3982 = vadd.f32 %v3980, %v3981
  %v3983 = vsel %vm3683, %v3869, 0.0
  %v3984 = vadd.f32 %v3982, %v3983
  %v3985 = vsel %vm3683, %v3870, 0.0
  %v3986 = vadd.f32 %v3984, %v3985
  %v3987 = vsel %vm3683, %v3871, 0.0
  %v3988 = vadd.f32 %v3986, %v3987
  %v3989 = vsel %vm3683, %v3872, 0.0
  %v3990 = vadd.f32 %v3988, %v3989
  %v3991 = vsel %vm3683, %v3873, 0.0
  %v3992 = vadd.f32 %v3990, %v3991
  %v3993 = vsel %vm3683, %v3874, 0.0
  %v3994 = vadd.f32 %v3992, %v3993
  %v3995 = vsel %vm3683, %v3875, 0.0
  %v3996 = vadd.f32 %v3994, %v3995
  %v3997 = vsel %vm3683, %v3876, 0.0
  %v3998 = vadd.f32 %v3996, %v3997
  %v3999 = vsel %vm3683, %v3877, 0.0
  %v4000 = vadd.f32 %v3998, %v3999
  %v4001 = vsel %vm3683, %v3878, 0.0
  %v4002 = vadd.f32 %v4000, %v4001
  %v4003 = vsel %vm3683, %v3879, 0.0
  %v4004 = vadd.f32 %v4002, %v4003
  %v4005 = vsel %vm3683, %v3880, 0.0
  %v4006 = vadd.f32 %v4004, %v4005
  %v4007 = vsel %vm3683, %v3881, 0.0
  %v4008 = vadd.f32 %v4006, %v4007
  %v4009 = vrot.slane %v4008, 4
  %v4010 = vadd.f32 %v4008, %v4009
  %v4011 = vrot.slane %v4010, 2
  %v4012 = vadd.f32 %v4010, %v4011
  %v4013 = vrot.slane %v4012, 1
  %v4014 = vadd.f32 %v4012, %v4013
  %v4015 = vmul.f32 %v4014, 0.001953125
  %v4016 = vmul.f32 %v3817, %v3817
  %v4017 = vsub.f32 %v4015, %v4016
  %v4018 = vmax.f32 %v4017, 0.0
  %v4019 = vld [vmem:[%s4] sm:$0x1]
  %v4020 = vadd.f32 %v4018, 1e-05
  %v4021 = vrsqrt.pop %v4020
  %v4022 = vmul.f32 %v4019, %v4021
  %v4023 = vld [vmem:[%s5] sm:$0x1]
  %v4024 = vmul.f32 %v3817, %v4022
  %v4025 = vsub.f32 %v4023, %v4024
  %v4027 = vlaneseq
  %v4028 = vshrl.u32 %v4027, 7
  %v4029 = vsub.s32 0, %v4028
  %v4030 = vrot.slane %v4022, %v4029
  %v4032 = vmul.f32 %v3429, %v4030
  %v4033 = vmul.f32 %v3432, %v4030
  %v4034 = vmul.f32 %v3437, %v4030
  %v4035 = vmul.f32 %v3440, %v4030
  %v4036 = vmul.f32 %v3445, %v4030
  %v4037 = vmul.f32 %v3448, %v4030
  %v4038 = vmul.f32 %v3453, %v4030
  %v4039 = vmul.f32 %v3456, %v4030
  %v4040 = vmul.f32 %v3461, %v4030
  %v4041 = vmul.f32 %v3464, %v4030
  %v4042 = vmul.f32 %v3469, %v4030
  %v4043 = vmul.f32 %v3472, %v4030
  %v4044 = vmul.f32 %v3477, %v4030
  %v4045 = vmul.f32 %v3480, %v4030
  %v4046 = vmul.f32 %v3485, %v4030
  %v4047 = vmul.f32 %v3488, %v4030
  %v4048 = vmul.f32 %v3493, %v4030
  %v4049 = vmul.f32 %v3496, %v4030
  %v4050 = vmul.f32 %v3501, %v4030
  %v4051 = vmul.f32 %v3504, %v4030
  %v4052 = vmul.f32 %v3509, %v4030
  %v4053 = vmul.f32 %v3512, %v4030
  %v4054 = vmul.f32 %v3517, %v4030
  %v4055 = vmul.f32 %v3520, %v4030
  %v4056 = vmul.f32 %v3525, %v4030
  %v4057 = vmul.f32 %v3528, %v4030
  %v4058 = vmul.f32 %v3533, %v4030
  %v4059 = vmul.f32 %v3536, %v4030
  %v4060 = vmul.f32 %v3541, %v4030
  %v4061 = vmul.f32 %v3544, %v4030
  %v4062 = vmul.f32 %v3549, %v4030
  %v4063 = vmul.f32 %v3552, %v4030
  %v4064 = vmul.f32 %v3557, %v4030
  %v4065 = vmul.f32 %v3560, %v4030
  %v4066 = vmul.f32 %v3565, %v4030
  %v4067 = vmul.f32 %v3568, %v4030
  %v4068 = vmul.f32 %v3573, %v4030
  %v4069 = vmul.f32 %v3576, %v4030
  %v4070 = vmul.f32 %v3581, %v4030
  %v4071 = vmul.f32 %v3584, %v4030
  %v4072 = vmul.f32 %v3589, %v4030
  %v4073 = vmul.f32 %v3592, %v4030
  %v4074 = vmul.f32 %v3597, %v4030
  %v4075 = vmul.f32 %v3600, %v4030
  %v4076 = vmul.f32 %v3605, %v4030
  %v4077 = vmul.f32 %v3608, %v4030
  %v4078 = vmul.f32 %v3613, %v4030
  %v4079 = vmul.f32 %v3616, %v4030
  %v4080 = vmul.f32 %v3621, %v4030
  %v4081 = vmul.f32 %v3624, %v4030
  %v4082 = vmul.f32 %v3629, %v4030
  %v4083 = vmul.f32 %v3632, %v4030
  %v4084 = vmul.f32 %v3637, %v4030
  %v4085 = vmul.f32 %v3640, %v4030
  %v4086 = vmul.f32 %v3645, %v4030
  %v4087 = vmul.f32 %v3648, %v4030
  %v4088 = vmul.f32 %v3653, %v4030
  %v4089 = vmul.f32 %v3656, %v4030
  %v4090 = vmul.f32 %v3661, %v4030
  %v4091 = vmul.f32 %v3664, %v4030
  %v4092 = vmul.f32 %v3669, %v4030
  %v4093 = vmul.f32 %v3672, %v4030
  %v4094 = vmul.f32 %v3677, %v4030
  %v4095 = vmul.f32 %v3680, %v4030
  %v4097 = vlaneseq
  %v4098 = vshrl.u32 %v4097, 7
  %v4099 = vsub.s32 0, %v4098
  %v4100 = vrot.slane %v4025, %v4099
  %v4102 = vadd.f32 %v4032, %v4100
  %v4103 = vadd.f32 %v4033, %v4100
  %v4104 = vadd.f32 %v4034, %v4100
  %v4105 = vadd.f32 %v4035, %v4100
  %v4106 = vadd.f32 %v4036, %v4100
  %v4107 = vadd.f32 %v4037, %v4100
  %v4108 = vadd.f32 %v4038, %v4100
  %v4109 = vadd.f32 %v4039, %v4100
  %v4110 = vadd.f32 %v4040, %v4100
  %v4111 = vadd.f32 %v4041, %v4100
  %v4112 = vadd.f32 %v4042, %v4100
  %v4113 = vadd.f32 %v4043, %v4100
  %v4114 = vadd.f32 %v4044, %v4100
  %v4115 = vadd.f32 %v4045, %v4100
  %v4116 = vadd.f32 %v4046, %v4100
  %v4117 = vadd.f32 %v4047, %v4100
  %v4118 = vadd.f32 %v4048, %v4100
  %v4119 = vadd.f32 %v4049, %v4100
  %v4120 = vadd.f32 %v4050, %v4100
  %v4121 = vadd.f32 %v4051, %v4100
  %v4122 = vadd.f32 %v4052, %v4100
  %v4123 = vadd.f32 %v4053, %v4100
  %v4124 = vadd.f32 %v4054, %v4100
  %v4125 = vadd.f32 %v4055, %v4100
  %v4126 = vadd.f32 %v4056, %v4100
  %v4127 = vadd.f32 %v4057, %v4100
  %v4128 = vadd.f32 %v4058, %v4100
  %v4129 = vadd.f32 %v4059, %v4100
  %v4130 = vadd.f32 %v4060, %v4100
  %v4131 = vadd.f32 %v4061, %v4100
  %v4132 = vadd.f32 %v4062, %v4100
  %v4133 = vadd.f32 %v4063, %v4100
  %v4134 = vadd.f32 %v4064, %v4100
  %v4135 = vadd.f32 %v4065, %v4100
  %v4136 = vadd.f32 %v4066, %v4100
  %v4137 = vadd.f32 %v4067, %v4100
  %v4138 = vadd.f32 %v4068, %v4100
  %v4139 = vadd.f32 %v4069, %v4100
  %v4140 = vadd.f32 %v4070, %v4100
  %v4141 = vadd.f32 %v4071, %v4100
  %v4142 = vadd.f32 %v4072, %v4100
  %v4143 = vadd.f32 %v4073, %v4100
  %v4144 = vadd.f32 %v4074, %v4100
  %v4145 = vadd.f32 %v4075, %v4100
  %v4146 = vadd.f32 %v4076, %v4100
  %v4147 = vadd.f32 %v4077, %v4100
  %v4148 = vadd.f32 %v4078, %v4100
  %v4149 = vadd.f32 %v4079, %v4100
  %v4150 = vadd.f32 %v4080, %v4100
  %v4151 = vadd.f32 %v4081, %v4100
  %v4152 = vadd.f32 %v4082, %v4100
  %v4153 = vadd.f32 %v4083, %v4100
  %v4154 = vadd.f32 %v4084, %v4100
  %v4155 = vadd.f32 %v4085, %v4100
  %v4156 = vadd.f32 %v4086, %v4100
  %v4157 = vadd.f32 %v4087, %v4100
  %v4158 = vadd.f32 %v4088, %v4100
  %v4159 = vadd.f32 %v4089, %v4100
  %v4160 = vadd.f32 %v4090, %v4100
  %v4161 = vadd.f32 %v4091, %v4100
  %v4162 = vadd.f32 %v4092, %v4100
  %v4163 = vadd.f32 %v4093, %v4100
  %v4164 = vadd.f32 %v4094, %v4100
  %v4165 = vadd.f32 %v4095, %v4100
  %vm4166 = vcmp.gt.f32.partialorder %v4102, 0.0
  %vm4167 = vcmp.gt.f32.partialorder %v4103, 0.0
  %vm4168 = vcmp.gt.f32.partialorder %v4104, 0.0
  %vm4169 = vcmp.gt.f32.partialorder %v4105, 0.0
  %vm4170 = vcmp.gt.f32.partialorder %v4106, 0.0
  %vm4171 = vcmp.gt.f32.partialorder %v4107, 0.0
  %vm4172 = vcmp.gt.f32.partialorder %v4108, 0.0
  %vm4173 = vcmp.gt.f32.partialorder %v4109, 0.0
  %vm4174 = vcmp.gt.f32.partialorder %v4110, 0.0
  %vm4175 = vcmp.gt.f32.partialorder %v4111, 0.0
  %vm4176 = vcmp.gt.f32.partialorder %v4112, 0.0
  %vm4177 = vcmp.gt.f32.partialorder %v4113, 0.0
  %vm4178 = vcmp.gt.f32.partialorder %v4114, 0.0
  %vm4179 = vcmp.gt.f32.partialorder %v4115, 0.0
  %vm4180 = vcmp.gt.f32.partialorder %v4116, 0.0
  %vm4181 = vcmp.gt.f32.partialorder %v4117, 0.0
  %vm4182 = vcmp.gt.f32.partialorder %v4118, 0.0
  %vm4183 = vcmp.gt.f32.partialorder %v4119, 0.0
  %vm4184 = vcmp.gt.f32.partialorder %v4120, 0.0
  %vm4185 = vcmp.gt.f32.partialorder %v4121, 0.0
  %vm4186 = vcmp.gt.f32.partialorder %v4122, 0.0
  %vm4187 = vcmp.gt.f32.partialorder %v4123, 0.0
  %vm4188 = vcmp.gt.f32.partialorder %v4124, 0.0
  %vm4189 = vcmp.gt.f32.partialorder %v4125, 0.0
  %vm4190 = vcmp.gt.f32.partialorder %v4126, 0.0
  %vm4191 = vcmp.gt.f32.partialorder %v4127, 0.0
  %vm4192 = vcmp.gt.f32.partialorder %v4128, 0.0
  %vm4193 = vcmp.gt.f32.partialorder %v4129, 0.0
  %vm4194 = vcmp.gt.f32.partialorder %v4130, 0.0
  %vm4195 = vcmp.gt.f32.partialorder %v4131, 0.0
  %vm4196 = vcmp.gt.f32.partialorder %v4132, 0.0
  %vm4197 = vcmp.gt.f32.partialorder %v4133, 0.0
  %vm4198 = vcmp.gt.f32.partialorder %v4134, 0.0
  %vm4199 = vcmp.gt.f32.partialorder %v4135, 0.0
  %vm4200 = vcmp.gt.f32.partialorder %v4136, 0.0
  %vm4201 = vcmp.gt.f32.partialorder %v4137, 0.0
  %vm4202 = vcmp.gt.f32.partialorder %v4138, 0.0
  %vm4203 = vcmp.gt.f32.partialorder %v4139, 0.0
  %vm4204 = vcmp.gt.f32.partialorder %v4140, 0.0
  %vm4205 = vcmp.gt.f32.partialorder %v4141, 0.0
  %vm4206 = vcmp.gt.f32.partialorder %v4142, 0.0
  %vm4207 = vcmp.gt.f32.partialorder %v4143, 0.0
  %vm4208 = vcmp.gt.f32.partialorder %v4144, 0.0
  %vm4209 = vcmp.gt.f32.partialorder %v4145, 0.0
  %vm4210 = vcmp.gt.f32.partialorder %v4146, 0.0
  %vm4211 = vcmp.gt.f32.partialorder %v4147, 0.0
  %vm4212 = vcmp.gt.f32.partialorder %v4148, 0.0
  %vm4213 = vcmp.gt.f32.partialorder %v4149, 0.0
  %vm4214 = vcmp.gt.f32.partialorder %v4150, 0.0
  %vm4215 = vcmp.gt.f32.partialorder %v4151, 0.0
  %vm4216 = vcmp.gt.f32.partialorder %v4152, 0.0
  %vm4217 = vcmp.gt.f32.partialorder %v4153, 0.0
  %vm4218 = vcmp.gt.f32.partialorder %v4154, 0.0
  %vm4219 = vcmp.gt.f32.partialorder %v4155, 0.0
  %vm4220 = vcmp.gt.f32.partialorder %v4156, 0.0
  %vm4221 = vcmp.gt.f32.partialorder %v4157, 0.0
  %vm4222 = vcmp.gt.f32.partialorder %v4158, 0.0
  %vm4223 = vcmp.gt.f32.partialorder %v4159, 0.0
  %vm4224 = vcmp.gt.f32.partialorder %v4160, 0.0
  %vm4225 = vcmp.gt.f32.partialorder %v4161, 0.0
  %vm4226 = vcmp.gt.f32.partialorder %v4162, 0.0
  %vm4227 = vcmp.gt.f32.partialorder %v4163, 0.0
  %vm4228 = vcmp.gt.f32.partialorder %v4164, 0.0
  %vm4229 = vcmp.gt.f32.partialorder %v4165, 0.0
  %v4230 = vmul.f32 %v4102, 0.2
  %v4231 = vmul.f32 %v4103, 0.2
  %v4232 = vmul.f32 %v4104, 0.2
  %v4233 = vmul.f32 %v4105, 0.2
  %v4234 = vmul.f32 %v4106, 0.2
  %v4235 = vmul.f32 %v4107, 0.2
  %v4236 = vmul.f32 %v4108, 0.2
  %v4237 = vmul.f32 %v4109, 0.2
  %v4238 = vmul.f32 %v4110, 0.2
  %v4239 = vmul.f32 %v4111, 0.2
  %v4240 = vmul.f32 %v4112, 0.2
  %v4241 = vmul.f32 %v4113, 0.2
  %v4242 = vmul.f32 %v4114, 0.2
  %v4243 = vmul.f32 %v4115, 0.2
  %v4244 = vmul.f32 %v4116, 0.2
  %v4245 = vmul.f32 %v4117, 0.2
  %v4246 = vmul.f32 %v4118, 0.2
  %v4247 = vmul.f32 %v4119, 0.2
  %v4248 = vmul.f32 %v4120, 0.2
  %v4249 = vmul.f32 %v4121, 0.2
  %v4250 = vmul.f32 %v4122, 0.2
  %v4251 = vmul.f32 %v4123, 0.2
  %v4252 = vmul.f32 %v4124, 0.2
  %v4253 = vmul.f32 %v4125, 0.2
  %v4254 = vmul.f32 %v4126, 0.2
  %v4255 = vmul.f32 %v4127, 0.2
  %v4256 = vmul.f32 %v4128, 0.2
  %v4257 = vmul.f32 %v4129, 0.2
  %v4258 = vmul.f32 %v4130, 0.2
  %v4259 = vmul.f32 %v4131, 0.2
  %v4260 = vmul.f32 %v4132, 0.2
  %v4261 = vmul.f32 %v4133, 0.2
  %v4262 = vmul.f32 %v4134, 0.2
  %v4263 = vmul.f32 %v4135, 0.2
  %v4264 = vmul.f32 %v4136, 0.2
  %v4265 = vmul.f32 %v4137, 0.2
  %v4266 = vmul.f32 %v4138, 0.2
  %v4267 = vmul.f32 %v4139, 0.2
  %v4268 = vmul.f32 %v4140, 0.2
  %v4269 = vmul.f32 %v4141, 0.2
  %v4270 = vmul.f32 %v4142, 0.2
  %v4271 = vmul.f32 %v4143, 0.2
  %v4272 = vmul.f32 %v4144, 0.2
  %v4273 = vmul.f32 %v4145, 0.2
  %v4274 = vmul.f32 %v4146, 0.2
  %v4275 = vmul.f32 %v4147, 0.2
  %v4276 = vmul.f32 %v4148, 0.2
  %v4277 = vmul.f32 %v4149, 0.2
  %v4278 = vmul.f32 %v4150, 0.2
  %v4279 = vmul.f32 %v4151, 0.2
  %v4280 = vmul.f32 %v4152, 0.2
  %v4281 = vmul.f32 %v4153, 0.2
  %v4282 = vmul.f32 %v4154, 0.2
  %v4283 = vmul.f32 %v4155, 0.2
  %v4284 = vmul.f32 %v4156, 0.2
  %v4285 = vmul.f32 %v4157, 0.2
  %v4286 = vmul.f32 %v4158, 0.2
  %v4287 = vmul.f32 %v4159, 0.2
  %v4288 = vmul.f32 %v4160, 0.2
  %v4289 = vmul.f32 %v4161, 0.2
  %v4290 = vmul.f32 %v4162, 0.2
  %v4291 = vmul.f32 %v4163, 0.2
  %v4292 = vmul.f32 %v4164, 0.2
  %v4293 = vmul.f32 %v4165, 0.2
  %v4294 = vsel %vm4166, %v4102, %v4230
  %v4295 = vsel %vm4167, %v4103, %v4231
  %v4296 = vsel %vm4168, %v4104, %v4232
  %v4297 = vsel %vm4169, %v4105, %v4233
  %v4298 = vsel %vm4170, %v4106, %v4234
  %v4299 = vsel %vm4171, %v4107, %v4235
  %v4300 = vsel %vm4172, %v4108, %v4236
  %v4301 = vsel %vm4173, %v4109, %v4237
  %v4302 = vsel %vm4174, %v4110, %v4238
  %v4303 = vsel %vm4175, %v4111, %v4239
  %v4304 = vsel %vm4176, %v4112, %v4240
  %v4305 = vsel %vm4177, %v4113, %v4241
  %v4306 = vsel %vm4178, %v4114, %v4242
  %v4307 = vsel %vm4179, %v4115, %v4243
  %v4308 = vsel %vm4180, %v4116, %v4244
  %v4309 = vsel %vm4181, %v4117, %v4245
  %v4310 = vsel %vm4182, %v4118, %v4246
  %v4311 = vsel %vm4183, %v4119, %v4247
  %v4312 = vsel %vm4184, %v4120, %v4248
  %v4313 = vsel %vm4185, %v4121, %v4249
  %v4314 = vsel %vm4186, %v4122, %v4250
  %v4315 = vsel %vm4187, %v4123, %v4251
  %v4316 = vsel %vm4188, %v4124, %v4252
  %v4317 = vsel %vm4189, %v4125, %v4253
  %v4318 = vsel %vm4190, %v4126, %v4254
  %v4319 = vsel %vm4191, %v4127, %v4255
  %v4320 = vsel %vm4192, %v4128, %v4256
  %v4321 = vsel %vm4193, %v4129, %v4257
  %v4322 = vsel %vm4194, %v4130, %v4258
  %v4323 = vsel %vm4195, %v4131, %v4259
  %v4324 = vsel %vm4196, %v4132, %v4260
  %v4325 = vsel %vm4197, %v4133, %v4261
  %v4326 = vsel %vm4198, %v4134, %v4262
  %v4327 = vsel %vm4199, %v4135, %v4263
  %v4328 = vsel %vm4200, %v4136, %v4264
  %v4329 = vsel %vm4201, %v4137, %v4265
  %v4330 = vsel %vm4202, %v4138, %v4266
  %v4331 = vsel %vm4203, %v4139, %v4267
  %v4332 = vsel %vm4204, %v4140, %v4268
  %v4333 = vsel %vm4205, %v4141, %v4269
  %v4334 = vsel %vm4206, %v4142, %v4270
  %v4335 = vsel %vm4207, %v4143, %v4271
  %v4336 = vsel %vm4208, %v4144, %v4272
  %v4337 = vsel %vm4209, %v4145, %v4273
  %v4338 = vsel %vm4210, %v4146, %v4274
  %v4339 = vsel %vm4211, %v4147, %v4275
  %v4340 = vsel %vm4212, %v4148, %v4276
  %v4341 = vsel %vm4213, %v4149, %v4277
  %v4342 = vsel %vm4214, %v4150, %v4278
  %v4343 = vsel %vm4215, %v4151, %v4279
  %v4344 = vsel %vm4216, %v4152, %v4280
  %v4345 = vsel %vm4217, %v4153, %v4281
  %v4346 = vsel %vm4218, %v4154, %v4282
  %v4347 = vsel %vm4219, %v4155, %v4283
  %v4348 = vsel %vm4220, %v4156, %v4284
  %v4349 = vsel %vm4221, %v4157, %v4285
  %v4350 = vsel %vm4222, %v4158, %v4286
  %v4351 = vsel %vm4223, %v4159, %v4287
  %v4352 = vsel %vm4224, %v4160, %v4288
  %v4353 = vsel %vm4225, %v4161, %v4289
  %v4354 = vsel %vm4226, %v4162, %v4290
  %v4355 = vsel %vm4227, %v4163, %v4291
  %v4356 = vsel %vm4228, %v4164, %v4292
  %v4357 = vsel %vm4229, %v4165, %v4293
  %4358 = vst.msk [vmem:[#allocation3] sm:$0xff] %vm3683, %v4294
  %4359 = vst.msk [vmem:[#allocation3 + $0x8] sm:$0xff] %vm3683, %v4295
  %4360 = vst.msk [vmem:[#allocation3 + $0x10] sm:$0xff] %vm3683, %v4296
  %4361 = vst.msk [vmem:[#allocation3 + $0x18] sm:$0xff] %vm3683, %v4297
  %4362 = vst.msk [vmem:[#allocation3 + $0x20] sm:$0xff] %vm3683, %v4298
  %4363 = vst.msk [vmem:[#allocation3 + $0x28] sm:$0xff] %vm3683, %v4299
  %4364 = vst.msk [vmem:[#allocation3 + $0x30] sm:$0xff] %vm3683, %v4300
  %4365 = vst.msk [vmem:[#allocation3 + $0x38] sm:$0xff] %vm3683, %v4301
  %4366 = vst.msk [vmem:[#allocation3 + $0x40] sm:$0xff] %vm3683, %v4302
  %4367 = vst.msk [vmem:[#allocation3 + $0x48] sm:$0xff] %vm3683, %v4303
  %4368 = vst.msk [vmem:[#allocation3 + $0x50] sm:$0xff] %vm3683, %v4304
  %4369 = vst.msk [vmem:[#allocation3 + $0x58] sm:$0xff] %vm3683, %v4305
  %4370 = vst.msk [vmem:[#allocation3 + $0x60] sm:$0xff] %vm3683, %v4306
  %4371 = vst.msk [vmem:[#allocation3 + $0x68] sm:$0xff] %vm3683, %v4307
  %4372 = vst.msk [vmem:[#allocation3 + $0x70] sm:$0xff] %vm3683, %v4308
  %4373 = vst.msk [vmem:[#allocation3 + $0x78] sm:$0xff] %vm3683, %v4309
  %4374 = vst.msk [vmem:[#allocation3 + $0x80] sm:$0xff] %vm3683, %v4310
  %4375 = vst.msk [vmem:[#allocation3 + $0x88] sm:$0xff] %vm3683, %v4311
  %4376 = vst.msk [vmem:[#allocation3 + $0x90] sm:$0xff] %vm3683, %v4312
  %4377 = vst.msk [vmem:[#allocation3 + $0x98] sm:$0xff] %vm3683, %v4313
  %4378 = vst.msk [vmem:[#allocation3 + $0xa0] sm:$0xff] %vm3683, %v4314
  %4379 = vst.msk [vmem:[#allocation3 + $0xa8] sm:$0xff] %vm3683, %v4315
  %4380 = vst.msk [vmem:[#allocation3 + $0xb0] sm:$0xff] %vm3683, %v4316
  %4381 = vst.msk [vmem:[#allocation3 + $0xb8] sm:$0xff] %vm3683, %v4317
  %4382 = vst.msk [vmem:[#allocation3 + $0xc0] sm:$0xff] %vm3683, %v4318
  %4383 = vst.msk [vmem:[#allocation3 + $0xc8] sm:$0xff] %vm3683, %v4319
  %4384 = vst.msk [vmem:[#allocation3 + $0xd0] sm:$0xff] %vm3683, %v4320
  %4385 = vst.msk [vmem:[#allocation3 + $0xd8] sm:$0xff] %vm3683, %v4321
  %4386 = vst.msk [vmem:[#allocation3 + $0xe0] sm:$0xff] %vm3683, %v4322
  %4387 = vst.msk [vmem:[#allocation3 + $0xe8] sm:$0xff] %vm3683, %v4323
  %4388 = vst.msk [vmem:[#allocation3 + $0xf0] sm:$0xff] %vm3683, %v4324
  %4389 = vst.msk [vmem:[#allocation3 + $0xf8] sm:$0xff] %vm3683, %v4325
  %4390 = vst.msk [vmem:[#allocation3 + $0x100] sm:$0xff] %vm3683, %v4326
  %4391 = vst.msk [vmem:[#allocation3 + $0x108] sm:$0xff] %vm3683, %v4327
  %4392 = vst.msk [vmem:[#allocation3 + $0x110] sm:$0xff] %vm3683, %v4328
  %4393 = vst.msk [vmem:[#allocation3 + $0x118] sm:$0xff] %vm3683, %v4329
  %4394 = vst.msk [vmem:[#allocation3 + $0x120] sm:$0xff] %vm3683, %v4330
  %4395 = vst.msk [vmem:[#allocation3 + $0x128] sm:$0xff] %vm3683, %v4331
  %4396 = vst.msk [vmem:[#allocation3 + $0x130] sm:$0xff] %vm3683, %v4332
  %4397 = vst.msk [vmem:[#allocation3 + $0x138] sm:$0xff] %vm3683, %v4333
  %4398 = vst.msk [vmem:[#allocation3 + $0x140] sm:$0xff] %vm3683, %v4334
  %4399 = vst.msk [vmem:[#allocation3 + $0x148] sm:$0xff] %vm3683, %v4335
  %4400 = vst.msk [vmem:[#allocation3 + $0x150] sm:$0xff] %vm3683, %v4336
  %4401 = vst.msk [vmem:[#allocation3 + $0x158] sm:$0xff] %vm3683, %v4337
  %4402 = vst.msk [vmem:[#allocation3 + $0x160] sm:$0xff] %vm3683, %v4338
  %4403 = vst.msk [vmem:[#allocation3 + $0x168] sm:$0xff] %vm3683, %v4339
  %4404 = vst.msk [vmem:[#allocation3 + $0x170] sm:$0xff] %vm3683, %v4340
  %4405 = vst.msk [vmem:[#allocation3 + $0x178] sm:$0xff] %vm3683, %v4341
  %4406 = vst.msk [vmem:[#allocation3 + $0x180] sm:$0xff] %vm3683, %v4342
  %4407 = vst.msk [vmem:[#allocation3 + $0x188] sm:$0xff] %vm3683, %v4343
  %4408 = vst.msk [vmem:[#allocation3 + $0x190] sm:$0xff] %vm3683, %v4344
  %4409 = vst.msk [vmem:[#allocation3 + $0x198] sm:$0xff] %vm3683, %v4345
  %4410 = vst.msk [vmem:[#allocation3 + $0x1a0] sm:$0xff] %vm3683, %v4346
  %4411 = vst.msk [vmem:[#allocation3 + $0x1a8] sm:$0xff] %vm3683, %v4347
  %4412 = vst.msk [vmem:[#allocation3 + $0x1b0] sm:$0xff] %vm3683, %v4348
  %4413 = vst.msk [vmem:[#allocation3 + $0x1b8] sm:$0xff] %vm3683, %v4349
  %4414 = vst.msk [vmem:[#allocation3 + $0x1c0] sm:$0xff] %vm3683, %v4350
  %4415 = vst.msk [vmem:[#allocation3 + $0x1c8] sm:$0xff] %vm3683, %v4351
  %4416 = vst.msk [vmem:[#allocation3 + $0x1d0] sm:$0xff] %vm3683, %v4352
  %4417 = vst.msk [vmem:[#allocation3 + $0x1d8] sm:$0xff] %vm3683, %v4353
  %4418 = vst.msk [vmem:[#allocation3 + $0x1e0] sm:$0xff] %vm3683, %v4354
  %4419 = vst.msk [vmem:[#allocation3 + $0x1e8] sm:$0xff] %vm3683, %v4355
  %4420 = vst.msk [vmem:[#allocation3 + $0x1f0] sm:$0xff] %vm3683, %v4356
  %4421 = vst.msk [vmem:[#allocation3 + $0x1f8] sm:$0xff] %vm3683, %v4357
  %vm4422 = vcmask 588800
  %4423 = vst.msk [vmem:[#allocation4] sm:$0xff] %vm4422, 0.0
  %4424 = vst.msk [vmem:[#allocation4 + $0x8] sm:$0xff] %vm4422, 0.0
  %4425 = vst.msk [vmem:[#allocation4 + $0x10] sm:$0xff] %vm4422, 0.0
  %4426 = vst.msk [vmem:[#allocation4 + $0x18] sm:$0xff] %vm4422, 0.0
  %4427 = vst.msk [vmem:[#allocation4 + $0x20] sm:$0xff] %vm4422, 0.0
  %4428 = vst.msk [vmem:[#allocation4 + $0x28] sm:$0xff] %vm4422, 0.0
  %4429 = vst.msk [vmem:[#allocation4 + $0x30] sm:$0xff] %vm4422, 0.0
  %4430 = vst.msk [vmem:[#allocation4 + $0x38] sm:$0xff] %vm4422, 0.0
  %4431 = vst.msk [vmem:[#allocation4 + $0x40] sm:$0xff] %vm4422, 0.0
  %4432 = vst.msk [vmem:[#allocation4 + $0x48] sm:$0xff] %vm4422, 0.0
  %4433 = vst.msk [vmem:[#allocation4 + $0x50] sm:$0xff] %vm4422, 0.0
  %4434 = vst.msk [vmem:[#allocation4 + $0x58] sm:$0xff] %vm4422, 0.0
  %4435 = vst.msk [vmem:[#allocation4 + $0x60] sm:$0xff] %vm4422, 0.0
  %4436 = vst.msk [vmem:[#allocation4 + $0x68] sm:$0xff] %vm4422, 0.0
  %4437 = vst.msk [vmem:[#allocation4 + $0x70] sm:$0xff] %vm4422, 0.0
  %4438 = vst.msk [vmem:[#allocation4 + $0x78] sm:$0xff] %vm4422, 0.0
  %4439 = vst.msk [vmem:[#allocation4 + $0x80] sm:$0xff] %vm4422, 0.0
  %4440 = vst.msk [vmem:[#allocation4 + $0x88] sm:$0xff] %vm4422, 0.0
  %4441 = vst.msk [vmem:[#allocation4 + $0x90] sm:$0xff] %vm4422, 0.0
  %4442 = vst.msk [vmem:[#allocation4 + $0x98] sm:$0xff] %vm4422, 0.0
  %4443 = vst.msk [vmem:[#allocation4 + $0xa0] sm:$0xff] %vm4422, 0.0
  %4444 = vst.msk [vmem:[#allocation4 + $0xa8] sm:$0xff] %vm4422, 0.0
  %4445 = vst.msk [vmem:[#allocation4 + $0xb0] sm:$0xff] %vm4422, 0.0
  %4446 = vst.msk [vmem:[#allocation4 + $0xb8] sm:$0xff] %vm4422, 0.0
  %4447 = vst.msk [vmem:[#allocation4 + $0xc0] sm:$0xff] %vm4422, 0.0
  %4448 = vst.msk [vmem:[#allocation4 + $0xc8] sm:$0xff] %vm4422, 0.0
  %4449 = vst.msk [vmem:[#allocation4 + $0xd0] sm:$0xff] %vm4422, 0.0
  %4450 = vst.msk [vmem:[#allocation4 + $0xd8] sm:$0xff] %vm4422, 0.0
  %4451 = vst.msk [vmem:[#allocation4 + $0xe0] sm:$0xff] %vm4422, 0.0
  %4452 = vst.msk [vmem:[#allocation4 + $0xe8] sm:$0xff] %vm4422, 0.0
  %4453 = vst.msk [vmem:[#allocation4 + $0xf0] sm:$0xff] %vm4422, 0.0
  %4454 = vst.msk [vmem:[#allocation4 + $0xf8] sm:$0xff] %vm4422, 0.0
  %4455 = vst.msk [vmem:[#allocation4 + $0x100] sm:$0xff] %vm4422, 0.0
  %4456 = vst.msk [vmem:[#allocation4 + $0x108] sm:$0xff] %vm4422, 0.0
  %4457 = vst.msk [vmem:[#allocation4 + $0x110] sm:$0xff] %vm4422, 0.0
  %4458 = vst.msk [vmem:[#allocation4 + $0x118] sm:$0xff] %vm4422, 0.0
  %4459 = vst.msk [vmem:[#allocation4 + $0x120] sm:$0xff] %vm4422, 0.0
  %4460 = vst.msk [vmem:[#allocation4 + $0x128] sm:$0xff] %vm4422, 0.0
  %4461 = vst.msk [vmem:[#allocation4 + $0x130] sm:$0xff] %vm4422, 0.0
  %4462 = vst.msk [vmem:[#allocation4 + $0x138] sm:$0xff] %vm4422, 0.0
  %4463 = vst.msk [vmem:[#allocation4 + $0x140] sm:$0xff] %vm4422, 0.0
  %4464 = vst.msk [vmem:[#allocation4 + $0x148] sm:$0xff] %vm4422, 0.0
  %4465 = vst.msk [vmem:[#allocation4 + $0x150] sm:$0xff] %vm4422, 0.0
  %4466 = vst.msk [vmem:[#allocation4 + $0x158] sm:$0xff] %vm4422, 0.0
  %4467 = vst.msk [vmem:[#allocation4 + $0x160] sm:$0xff] %vm4422, 0.0
  %4468 = vst.msk [vmem:[#allocation4 + $0x168] sm:$0xff] %vm4422, 0.0
  %4469 = vst.msk [vmem:[#allocation4 + $0x170] sm:$0xff] %vm4422, 0.0
  %4470 = vst.msk [vmem:[#allocation4 + $0x178] sm:$0xff] %vm4422, 0.0
  %4471 = vst.msk [vmem:[#allocation4 + $0x180] sm:$0xff] %vm4422, 0.0
  %4472 = vst.msk [vmem:[#allocation4 + $0x188] sm:$0xff] %vm4422, 0.0
  %4473 = vst.msk [vmem:[#allocation4 + $0x190] sm:$0xff] %vm4422, 0.0
  %4474 = vst.msk [vmem:[#allocation4 + $0x198] sm:$0xff] %vm4422, 0.0
  %4475 = vst.msk [vmem:[#allocation4 + $0x1a0] sm:$0xff] %vm4422, 0.0
  %4476 = vst.msk [vmem:[#allocation4 + $0x1a8] sm:$0xff] %vm4422, 0.0
  %4477 = vst.msk [vmem:[#allocation4 + $0x1b0] sm:$0xff] %vm4422, 0.0
  %4478 = vst.msk [vmem:[#allocation4 + $0x1b8] sm:$0xff] %vm4422, 0.0
  %4479 = vst.msk [vmem:[#allocation4 + $0x1c0] sm:$0xff] %vm4422, 0.0
  %4480 = vst.msk [vmem:[#allocation4 + $0x1c8] sm:$0xff] %vm4422, 0.0
  %4481 = vst.msk [vmem:[#allocation4 + $0x1d0] sm:$0xff] %vm4422, 0.0
  %4482 = vst.msk [vmem:[#allocation4 + $0x1d8] sm:$0xff] %vm4422, 0.0
  %4483 = vst.msk [vmem:[#allocation4 + $0x1e0] sm:$0xff] %vm4422, 0.0
  %4484 = vst.msk [vmem:[#allocation4 + $0x1e8] sm:$0xff] %vm4422, 0.0
  %4485 = vst.msk [vmem:[#allocation4 + $0x1f0] sm:$0xff] %vm4422, 0.0
  %4486 = vst.msk [vmem:[#allocation4 + $0x1f8] sm:$0xff] %vm4422, 0.0
  %v4487 = vld [vmem:[#allocation3] sm:$0xff]
  %v4488 = vld [vmem:[#allocation3 + $0x8] sm:$0x7f]
  %v4489 = vld [vmem:[#allocation3 + $0x10] sm:$0xff]
  %v4490 = vld [vmem:[#allocation3 + $0x18] sm:$0x7f]
  %v4491 = vld [vmem:[#allocation3 + $0x20] sm:$0xff]
  %v4492 = vld [vmem:[#allocation3 + $0x28] sm:$0x7f]
  %v4493 = vld [vmem:[#allocation3 + $0x30] sm:$0xff]
  %v4494 = vld [vmem:[#allocation3 + $0x38] sm:$0x7f]
  %v4495 = vld [vmem:[#allocation3 + $0x40] sm:$0xff]
  %v4496 = vld [vmem:[#allocation3 + $0x48] sm:$0x7f]
  %v4497 = vld [vmem:[#allocation3 + $0x50] sm:$0xff]
  %v4498 = vld [vmem:[#allocation3 + $0x58] sm:$0x7f]
  %v4499 = vld [vmem:[#allocation3 + $0x60] sm:$0xff]
  %v4500 = vld [vmem:[#allocation3 + $0x68] sm:$0x7f]
  %v4501 = vld [vmem:[#allocation3 + $0x70] sm:$0xff]
  %v4502 = vld [vmem:[#allocation3 + $0x78] sm:$0x7f]
  %v4503 = vld [vmem:[#allocation3 + $0x80] sm:$0xff]
  %v4504 = vld [vmem:[#allocation3 + $0x88] sm:$0x7f]
  %v4505 = vld [vmem:[#allocation3 + $0x90] sm:$0xff]
  %v4506 = vld [vmem:[#allocation3 + $0x98] sm:$0x7f]
  %v4507 = vld [vmem:[#allocation3 + $0xa0] sm:$0xff]
  %v4508 = vld [vmem:[#allocation3 + $0xa8] sm:$0x7f]
  %v4509 = vld [vmem:[#allocation3 + $0xb0] sm:$0xff]
  %v4510 = vld [vmem:[#allocation3 + $0xb8] sm:$0x7f]
  %v4511 = vld [vmem:[#allocation3 + $0xc0] sm:$0xff]
  %v4512 = vld [vmem:[#allocation3 + $0xc8] sm:$0x7f]
  %v4513 = vld [vmem:[#allocation3 + $0xd0] sm:$0xff]
  %v4514 = vld [vmem:[#allocation3 + $0xd8] sm:$0x7f]
  %v4515 = vld [vmem:[#allocation3 + $0xe0] sm:$0xff]
  %v4516 = vld [vmem:[#allocation3 + $0xe8] sm:$0x7f]
  %v4517 = vld [vmem:[#allocation3 + $0x100] sm:$0xff]
  %v4518 = vld [vmem:[#allocation3 + $0x108] sm:$0x7f]
  %v4519 = vld [vmem:[#allocation3 + $0x110] sm:$0xff]
  %v4520 = vld [vmem:[#allocation3 + $0x118] sm:$0x7f]
  %v4521 = vld [vmem:[#allocation3 + $0x120] sm:$0xff]
  %v4522 = vld [vmem:[#allocation3 + $0x128] sm:$0x7f]
  %v4523 = vld [vmem:[#allocation3 + $0x130] sm:$0xff]
  %v4524 = vld [vmem:[#allocation3 + $0x138] sm:$0x7f]
  %v4525 = vld [vmem:[#allocation3 + $0x140] sm:$0xff]
  %v4526 = vld [vmem:[#allocation3 + $0x148] sm:$0x7f]
  %v4527 = vld [vmem:[#allocation3 + $0x150] sm:$0xff]
  %v4528 = vld [vmem:[#allocation3 + $0x158] sm:$0x7f]
  %v4529 = vld [vmem:[#allocation3 + $0x160] sm:$0xff]
  %v4530 = vld [vmem:[#allocation3 + $0x168] sm:$0x7f]
  %v4531 = vld [vmem:[#allocation3 + $0x170] sm:$0xff]
  %v4532 = vld [vmem:[#allocation3 + $0x178] sm:$0x7f]
  %v4533 = vld [vmem:[#allocation3 + $0x180] sm:$0xff]
  %v4534 = vld [vmem:[#allocation3 + $0x188] sm:$0x7f]
  %v4535 = vld [vmem:[#allocation3 + $0x190] sm:$0xff]
  %v4536 = vld [vmem:[#allocation3 + $0x198] sm:$0x7f]
  %v4537 = vld [vmem:[#allocation3 + $0x1a0] sm:$0xff]
  %v4538 = vld [vmem:[#allocation3 + $0x1a8] sm:$0x7f]
  %v4539 = vld [vmem:[#allocation3 + $0x1b0] sm:$0xff]
  %v4540 = vld [vmem:[#allocation3 + $0x1b8] sm:$0x7f]
  %v4541 = vld [vmem:[#allocation3 + $0x1c0] sm:$0xff]
  %v4542 = vld [vmem:[#allocation3 + $0x1c8] sm:$0x7f]
  %v4543 = vld [vmem:[#allocation3 + $0x1d0] sm:$0xff]
  %v4544 = vld [vmem:[#allocation3 + $0x1d8] sm:$0x7f]
  %v4545 = vld [vmem:[#allocation3 + $0x1e0] sm:$0xff]
  %v4546 = vld [vmem:[#allocation3 + $0x1e8] sm:$0x7f]
  %s4547 = scalar_lea.vmem [#allocation4], 16
  %4548 = vst.msk [vmem:[%s4547 + $0x1] sm:$0xff] %vm3683, %v4487
  %vm4549 = vcmask 63488
  %4550 = vst.msk [vmem:[%s4547 + $0x9] sm:$0x7f] %vm4549, %v4488
  %4551 = vst.msk [vmem:[%s4547 + $0x11] sm:$0xff] %vm3683, %v4489
  %4552 = vst.msk [vmem:[%s4547 + $0x19] sm:$0x7f] %vm4549, %v4490
  %4553 = vst.msk [vmem:[%s4547 + $0x21] sm:$0xff] %vm3683, %v4491
  %4554 = vst.msk [vmem:[%s4547 + $0x29] sm:$0x7f] %vm4549, %v4492
  %4555 = vst.msk [vmem:[%s4547 + $0x31] sm:$0xff] %vm3683, %v4493
  %4556 = vst.msk [vmem:[%s4547 + $0x39] sm:$0x7f] %vm4549, %v4494
  %4557 = vst.msk [vmem:[%s4547 + $0x41] sm:$0xff] %vm3683, %v4495
  %4558 = vst.msk [vmem:[%s4547 + $0x49] sm:$0x7f] %vm4549, %v4496
  %4559 = vst.msk [vmem:[%s4547 + $0x51] sm:$0xff] %vm3683, %v4497
  %4560 = vst.msk [vmem:[%s4547 + $0x59] sm:$0x7f] %vm4549, %v4498
  %4561 = vst.msk [vmem:[%s4547 + $0x61] sm:$0xff] %vm3683, %v4499
  %4562 = vst.msk [vmem:[%s4547 + $0x69] sm:$0x7f] %vm4549, %v4500
  %4563 = vst.msk [vmem:[%s4547 + $0x71] sm:$0xff] %vm3683, %v4501
  %4564 = vst.msk [vmem:[%s4547 + $0x79] sm:$0x7f] %vm4549, %v4502
  %4565 = vst.msk [vmem:[%s4547 + $0x81] sm:$0xff] %vm3683, %v4503
  %4566 = vst.msk [vmem:[%s4547 + $0x89] sm:$0x7f] %vm4549, %v4504
  %4567 = vst.msk [vmem:[%s4547 + $0x91] sm:$0xff] %vm3683, %v4505
  %4568 = vst.msk [vmem:[%s4547 + $0x99] sm:$0x7f] %vm4549, %v4506
  %4569 = vst.msk [vmem:[%s4547 + $0xa1] sm:$0xff] %vm3683, %v4507
  %4570 = vst.msk [vmem:[%s4547 + $0xa9] sm:$0x7f] %vm4549, %v4508
  %4571 = vst.msk [vmem:[%s4547 + $0xb1] sm:$0xff] %vm3683, %v4509
  %4572 = vst.msk [vmem:[%s4547 + $0xb9] sm:$0x7f] %vm4549, %v4510
  %4573 = vst.msk [vmem:[%s4547 + $0xc1] sm:$0xff] %vm3683, %v4511
  %4574 = vst.msk [vmem:[%s4547 + $0xc9] sm:$0x7f] %vm4549, %v4512
  %4575 = vst.msk [vmem:[%s4547 + $0xd1] sm:$0xff] %vm3683, %v4513
  %4576 = vst.msk [vmem:[%s4547 + $0xd9] sm:$0x7f] %vm4549, %v4514
  %4577 = vst.msk [vmem:[%s4547 + $0xe1] sm:$0xff] %vm3683, %v4515
  %4578 = vst.msk [vmem:[%s4547 + $0xe9] sm:$0x7f] %vm4549, %v4516
  %4579 = vst.msk [vmem:[%s4547 + $0x101] sm:$0xff] %vm3683, %v4517
  %4580 = vst.msk [vmem:[%s4547 + $0x109] sm:$0x7f] %vm4549, %v4518
  %4581 = vst.msk [vmem:[%s4547 + $0x111] sm:$0xff] %vm3683, %v4519
  %4582 = vst.msk [vmem:[%s4547 + $0x119] sm:$0x7f] %vm4549, %v4520
  %4583 = vst.msk [vmem:[%s4547 + $0x121] sm:$0xff] %vm3683, %v4521
  %4584 = vst.msk [vmem:[%s4547 + $0x129] sm:$0x7f] %vm4549, %v4522
  %4585 = vst.msk [vmem:[%s4547 + $0x131] sm:$0xff] %vm3683, %v4523
  %4586 = vst.msk [vmem:[%s4547 + $0x139] sm:$0x7f] %vm4549, %v4524
  %4587 = vst.msk [vmem:[%s4547 + $0x141] sm:$0xff] %vm3683, %v4525
  %4588 = vst.msk [vmem:[%s4547 + $0x149] sm:$0x7f] %vm4549, %v4526
  %4589 = vst.msk [vmem:[%s4547 + $0x151] sm:$0xff] %vm3683, %v4527
  %4590 = vst.msk [vmem:[%s4547 + $0x159] sm:$0x7f] %vm4549, %v4528
  %4591 = vst.msk [vmem:[%s4547 + $0x161] sm:$0xff] %vm3683, %v4529
  %4592 = vst.msk [vmem:[%s4547 + $0x169] sm:$0x7f] %vm4549, %v4530
  %4593 = vst.msk [vmem:[%s4547 + $0x171] sm:$0xff] %vm3683, %v4531
  %4594 = vst.msk [vmem:[%s4547 + $0x179] sm:$0x7f] %vm4549, %v4532
  %4595 = vst.msk [vmem:[%s4547 + $0x181] sm:$0xff] %vm3683, %v4533
  %4596 = vst.msk [vmem:[%s4547 + $0x189] sm:$0x7f] %vm4549, %v4534
  %4597 = vst.msk [vmem:[%s4547 + $0x191] sm:$0xff] %vm3683, %v4535
  %4598 = vst.msk [vmem:[%s4547 + $0x199] sm:$0x7f] %vm4549, %v4536
  %4599 = vst.msk [vmem:[%s4547 + $0x1a1] sm:$0xff] %vm3683, %v4537
  %4600 = vst.msk [vmem:[%s4547 + $0x1a9] sm:$0x7f] %vm4549, %v4538
  %4601 = vst.msk [vmem:[%s4547 + $0x1b1] sm:$0xff] %vm3683, %v4539
  %4602 = vst.msk [vmem:[%s4547 + $0x1b9] sm:$0x7f] %vm4549, %v4540
  %4603 = vst.msk [vmem:[%s4547 + $0x1c1] sm:$0xff] %vm3683, %v4541
  %4604 = vst.msk [vmem:[%s4547 + $0x1c9] sm:$0x7f] %vm4549, %v4542
  %4605 = vst.msk [vmem:[%s4547 + $0x1d1] sm:$0xff] %vm3683, %v4543
  %4606 = vst.msk [vmem:[%s4547 + $0x1d9] sm:$0x7f] %vm4549, %v4544
  %4607 = vst.msk [vmem:[%s4547 + $0x1e1] sm:$0xff] %vm3683, %v4545
  %4608 = vst.msk [vmem:[%s4547 + $0x1e9] sm:$0x7f] %vm4549, %v4546
  %v4609 = vld [vmem:[#allocation3] sm:$0xff]
  %v4610 = vld [vmem:[#allocation3 + $0x8] sm:$0xff]
  %v4611 = vld [vmem:[#allocation3 + $0x10] sm:$0xff]
  %v4612 = vld [vmem:[#allocation3 + $0x18] sm:$0xff]
  %v4613 = vld [vmem:[#allocation3 + $0x20] sm:$0xff]
  %v4614 = vld [vmem:[#allocation3 + $0x28] sm:$0xff]
  %v4615 = vld [vmem:[#allocation3 + $0x30] sm:$0xff]
  %v4616 = vld [vmem:[#allocation3 + $0x38] sm:$0xff]
  %v4617 = vld [vmem:[#allocation3 + $0x40] sm:$0xff]
  %v4618 = vld [vmem:[#allocation3 + $0x48] sm:$0xff]
  %v4619 = vld [vmem:[#allocation3 + $0x50] sm:$0xff]
  %v4620 = vld [vmem:[#allocation3 + $0x58] sm:$0xff]
  %v4621 = vld [vmem:[#allocation3 + $0x60] sm:$0xff]
  %v4622 = vld [vmem:[#allocation3 + $0x68] sm:$0xff]
  %v4623 = vld [vmem:[#allocation3 + $0x70] sm:$0xff]
  %v4624 = vld [vmem:[#allocation3 + $0x78] sm:$0xff]
  %v4625 = vld [vmem:[#allocation3 + $0x80] sm:$0xff]
  %v4626 = vld [vmem:[#allocation3 + $0x88] sm:$0xff]
  %v4627 = vld [vmem:[#allocation3 + $0x90] sm:$0xff]
  %v4628 = vld [vmem:[#allocation3 + $0x98] sm:$0xff]
  %v4629 = vld [vmem:[#allocation3 + $0xa0] sm:$0xff]
  %v4630 = vld [vmem:[#allocation3 + $0xa8] sm:$0xff]
  %v4631 = vld [vmem:[#allocation3 + $0xb0] sm:$0xff]
  %v4632 = vld [vmem:[#allocation3 + $0xb8] sm:$0xff]
  %v4633 = vld [vmem:[#allocation3 + $0xc0] sm:$0xff]
  %v4634 = vld [vmem:[#allocation3 + $0xc8] sm:$0xff]
  %v4635 = vld [vmem:[#allocation3 + $0xd0] sm:$0xff]
  %v4636 = vld [vmem:[#allocation3 + $0xd8] sm:$0xff]
  %v4637 = vld [vmem:[#allocation3 + $0xe0] sm:$0xff]
  %v4638 = vld [vmem:[#allocation3 + $0xe8] sm:$0xff]
  %v4639 = vld [vmem:[#allocation3 + $0x100] sm:$0xff]
  %v4640 = vld [vmem:[#allocation3 + $0x108] sm:$0xff]
  %v4641 = vld [vmem:[#allocation3 + $0x110] sm:$0xff]
  %v4642 = vld [vmem:[#allocation3 + $0x118] sm:$0xff]
  %v4643 = vld [vmem:[#allocation3 + $0x120] sm:$0xff]
  %v4644 = vld [vmem:[#allocation3 + $0x128] sm:$0xff]
  %v4645 = vld [vmem:[#allocation3 + $0x130] sm:$0xff]
  %v4646 = vld [vmem:[#allocation3 + $0x138] sm:$0xff]
  %v4647 = vld [vmem:[#allocation3 + $0x140] sm:$0xff]
  %v4648 = vld [vmem:[#allocation3 + $0x148] sm:$0xff]
  %v4649 = vld [vmem:[#allocation3 + $0x150] sm:$0xff]
  %v4650 = vld [vmem:[#allocation3 + $0x158] sm:$0xff]
  %v4651 = vld [vmem:[#allocation3 + $0x160] sm:$0xff]
  %v4652 = vld [vmem:[#allocation3 + $0x168] sm:$0xff]
  %v4653 = vld [vmem:[#allocation3 + $0x170] sm:$0xff]
  %v4654 = vld [vmem:[#allocation3 + $0x178] sm:$0xff]
  %v4655 = vld [vmem:[#allocation3 + $0x180] sm:$0xff]
  %v4656 = vld [vmem:[#allocation3 + $0x188] sm:$0xff]
  %v4657 = vld [vmem:[#allocation3 + $0x190] sm:$0xff]
  %v4658 = vld [vmem:[#allocation3 + $0x198] sm:$0xff]
  %v4659 = vld [vmem:[#allocation3 + $0x1a0] sm:$0xff]
  %v4660 = vld [vmem:[#allocation3 + $0x1a8] sm:$0xff]
  %v4661 = vld [vmem:[#allocation3 + $0x1b0] sm:$0xff]
  %v4662 = vld [vmem:[#allocation3 + $0x1b8] sm:$0xff]
  %v4663 = vld [vmem:[#allocation3 + $0x1c0] sm:$0xff]
  %v4664 = vld [vmem:[#allocation3 + $0x1c8] sm:$0xff]
  %v4665 = vld [vmem:[#allocation3 + $0x1d0] sm:$0xff]
  %v4666 = vld [vmem:[#allocation3 + $0x1d8] sm:$0xff]
  %v4667 = vld [vmem:[#allocation3 + $0x1e0] sm:$0xff]
  %v4668 = vld [vmem:[#allocation3 + $0x1e8] sm:$0xff]
  %4729 = vrot.lane.b32.xlu0 %v4609, 8
  %v4730 = vpop.permute.xlu0 %4729
  %4731 = vrot.lane.b32.xlu0 %v4610, 8
  %v4732 = vpop.permute.xlu0 %4731
  %4733 = vrot.lane.b32.xlu0 %v4611, 8
  %v4734 = vpop.permute.xlu0 %4733
  %4735 = vrot.lane.b32.xlu0 %v4612, 8
  %v4736 = vpop.permute.xlu0 %4735
  %4737 = vrot.lane.b32.xlu0 %v4613, 8
  %v4738 = vpop.permute.xlu0 %4737
  %4739 = vrot.lane.b32.xlu0 %v4614, 8
  %v4740 = vpop.permute.xlu0 %4739
  %4741 = vrot.lane.b32.xlu0 %v4615, 8
  %v4742 = vpop.permute.xlu0 %4741
  %4743 = vrot.lane.b32.xlu0 %v4616, 8
  %v4744 = vpop.permute.xlu0 %4743
  %4745 = vrot.lane.b32.xlu0 %v4617, 8
  %v4746 = vpop.permute.xlu0 %4745
  %4747 = vrot.lane.b32.xlu0 %v4618, 8
  %v4748 = vpop.permute.xlu0 %4747
  %4749 = vrot.lane.b32.xlu0 %v4619, 8
  %v4750 = vpop.permute.xlu0 %4749
  %4751 = vrot.lane.b32.xlu0 %v4620, 8
  %v4752 = vpop.permute.xlu0 %4751
  %4753 = vrot.lane.b32.xlu0 %v4621, 8
  %v4754 = vpop.permute.xlu0 %4753
  %4755 = vrot.lane.b32.xlu0 %v4622, 8
  %v4756 = vpop.permute.xlu0 %4755
  %4757 = vrot.lane.b32.xlu0 %v4623, 8
  %v4758 = vpop.permute.xlu0 %4757
  %4759 = vrot.lane.b32.xlu0 %v4624, 8
  %v4760 = vpop.permute.xlu0 %4759
  %4761 = vrot.lane.b32.xlu0 %v4625, 8
  %v4762 = vpop.permute.xlu0 %4761
  %4763 = vrot.lane.b32.xlu0 %v4626, 8
  %v4764 = vpop.permute.xlu0 %4763
  %4765 = vrot.lane.b32.xlu0 %v4627, 8
  %v4766 = vpop.permute.xlu0 %4765
  %4767 = vrot.lane.b32.xlu0 %v4628, 8
  %v4768 = vpop.permute.xlu0 %4767
  %4769 = vrot.lane.b32.xlu0 %v4629, 8
  %v4770 = vpop.permute.xlu0 %4769
  %4771 = vrot.lane.b32.xlu0 %v4630, 8
  %v4772 = vpop.permute.xlu0 %4771
  %4773 = vrot.lane.b32.xlu0 %v4631, 8
  %v4774 = vpop.permute.xlu0 %4773
  %4775 = vrot.lane.b32.xlu0 %v4632, 8
  %v4776 = vpop.permute.xlu0 %4775
  %4777 = vrot.lane.b32.xlu0 %v4633, 8
  %v4778 = vpop.permute.xlu0 %4777
  %4779 = vrot.lane.b32.xlu0 %v4634, 8
  %v4780 = vpop.permute.xlu0 %4779
  %4781 = vrot.lane.b32.xlu0 %v4635, 8
  %v4782 = vpop.permute.xlu0 %4781
  %4783 = vrot.lane.b32.xlu0 %v4636, 8
  %v4784 = vpop.permute.xlu0 %4783
  %4785 = vrot.lane.b32.xlu0 %v4637, 8
  %v4786 = vpop.permute.xlu0 %4785
  %4787 = vrot.lane.b32.xlu0 %v4638, 8
  %v4788 = vpop.permute.xlu0 %4787
  %4789 = vrot.lane.b32.xlu0 %v4639, 8
  %v4790 = vpop.permute.xlu0 %4789
  %4791 = vrot.lane.b32.xlu0 %v4640, 8
  %v4792 = vpop.permute.xlu0 %4791
  %4793 = vrot.lane.b32.xlu0 %v4641, 8
  %v4794 = vpop.permute.xlu0 %4793
  %4795 = vrot.lane.b32.xlu0 %v4642, 8
  %v4796 = vpop.permute.xlu0 %4795
  %4797 = vrot.lane.b32.xlu0 %v4643, 8
  %v4798 = vpop.permute.xlu0 %4797
  %4799 = vrot.lane.b32.xlu0 %v4644, 8
  %v4800 = vpop.permute.xlu0 %4799
  %4801 = vrot.lane.b32.xlu0 %v4645, 8
  %v4802 = vpop.permute.xlu0 %4801
  %4803 = vrot.lane.b32.xlu0 %v4646, 8
  %v4804 = vpop.permute.xlu0 %4803
  %4805 = vrot.lane.b32.xlu0 %v4647, 8
  %v4806 = vpop.permute.xlu0 %4805
  %4807 = vrot.lane.b32.xlu0 %v4648, 8
  %v4808 = vpop.permute.xlu0 %4807
  %4809 = vrot.lane.b32.xlu0 %v4649, 8
  %v4810 = vpop.permute.xlu0 %4809
  %4811 = vrot.lane.b32.xlu0 %v4650, 8
  %v4812 = vpop.permute.xlu0 %4811
  %4813 = vrot.lane.b32.xlu0 %v4651, 8
  %v4814 = vpop.permute.xlu0 %4813
  %4815 = vrot.lane.b32.xlu0 %v4652, 8
  %v4816 = vpop.permute.xlu0 %4815
  %4817 = vrot.lane.b32.xlu0 %v4653, 8
  %v4818 = vpop.permute.xlu0 %4817
  %4819 = vrot.lane.b32.xlu0 %v4654, 8
  %v4820 = vpop.permute.xlu0 %4819
  %4821 = vrot.lane.b32.xlu0 %v4655, 8
  %v4822 = vpop.permute.xlu0 %4821
  %4823 = vrot.lane.b32.xlu0 %v4656, 8
  %v4824 = vpop.permute.xlu0 %4823
  %4825 = vrot.lane.b32.xlu0 %v4657, 8
  %v4826 = vpop.permute.xlu0 %4825
  %4827 = vrot.lane.b32.xlu0 %v4658, 8
  %v4828 = vpop.permute.xlu0 %4827
  %4829 = vrot.lane.b32.xlu0 %v4659, 8
  %v4830 = vpop.permute.xlu0 %4829
  %4831 = vrot.lane.b32.xlu0 %v4660, 8
  %v4832 = vpop.permute.xlu0 %4831
  %4833 = vrot.lane.b32.xlu0 %v4661, 8
  %v4834 = vpop.permute.xlu0 %4833
  %4835 = vrot.lane.b32.xlu0 %v4662, 8
  %v4836 = vpop.permute.xlu0 %4835
  %4837 = vrot.lane.b32.xlu0 %v4663, 8
  %v4838 = vpop.permute.xlu0 %4837
  %4839 = vrot.lane.b32.xlu0 %v4664, 8
  %v4840 = vpop.permute.xlu0 %4839
  %4841 = vrot.lane.b32.xlu0 %v4665, 8
  %v4842 = vpop.permute.xlu0 %4841
  %4843 = vrot.lane.b32.xlu0 %v4666, 8
  %v4844 = vpop.permute.xlu0 %4843
  %4845 = vrot.lane.b32.xlu0 %v4667, 8
  %v4846 = vpop.permute.xlu0 %4845
  %4847 = vrot.lane.b32.xlu0 %v4668, 8
  %v4848 = vpop.permute.xlu0 %4847
  %vm4909 = vcmask 130112
  %4910 = vst.msk [vmem:[%s4547] sm:$0xff] %vm4909, %v4730
  %4911 = vst.msk [vmem:[%s4547 + $0x8] sm:$0xff] %vm4909, %v4732
  %4912 = vst.msk [vmem:[%s4547 + $0x10] sm:$0xff] %vm4909, %v4734
  %4913 = vst.msk [vmem:[%s4547 + $0x18] sm:$0xff] %vm4909, %v4736
  %4914 = vst.msk [vmem:[%s4547 + $0x20] sm:$0xff] %vm4909, %v4738
  %4915 = vst.msk [vmem:[%s4547 + $0x28] sm:$0xff] %vm4909, %v4740
  %4916 = vst.msk [vmem:[%s4547 + $0x30] sm:$0xff] %vm4909, %v4742
  %4917 = vst.msk [vmem:[%s4547 + $0x38] sm:$0xff] %vm4909, %v4744
  %4918 = vst.msk [vmem:[%s4547 + $0x40] sm:$0xff] %vm4909, %v4746
  %4919 = vst.msk [vmem:[%s4547 + $0x48] sm:$0xff] %vm4909, %v4748
  %4920 = vst.msk [vmem:[%s4547 + $0x50] sm:$0xff] %vm4909, %v4750
  %4921 = vst.msk [vmem:[%s4547 + $0x58] sm:$0xff] %vm4909, %v4752
  %4922 = vst.msk [vmem:[%s4547 + $0x60] sm:$0xff] %vm4909, %v4754
  %4923 = vst.msk [vmem:[%s4547 + $0x68] sm:$0xff] %vm4909, %v4756
  %4924 = vst.msk [vmem:[%s4547 + $0x70] sm:$0xff] %vm4909, %v4758
  %4925 = vst.msk [vmem:[%s4547 + $0x78] sm:$0xff] %vm4909, %v4760
  %4926 = vst.msk [vmem:[%s4547 + $0x80] sm:$0xff] %vm4909, %v4762
  %4927 = vst.msk [vmem:[%s4547 + $0x88] sm:$0xff] %vm4909, %v4764
  %4928 = vst.msk [vmem:[%s4547 + $0x90] sm:$0xff] %vm4909, %v4766
  %4929 = vst.msk [vmem:[%s4547 + $0x98] sm:$0xff] %vm4909, %v4768
  %4930 = vst.msk [vmem:[%s4547 + $0xa0] sm:$0xff] %vm4909, %v4770
  %4931 = vst.msk [vmem:[%s4547 + $0xa8] sm:$0xff] %vm4909, %v4772
  %4932 = vst.msk [vmem:[%s4547 + $0xb0] sm:$0xff] %vm4909, %v4774
  %4933 = vst.msk [vmem:[%s4547 + $0xb8] sm:$0xff] %vm4909, %v4776
  %4934 = vst.msk [vmem:[%s4547 + $0xc0] sm:$0xff] %vm4909, %v4778
  %4935 = vst.msk [vmem:[%s4547 + $0xc8] sm:$0xff] %vm4909, %v4780
  %4936 = vst.msk [vmem:[%s4547 + $0xd0] sm:$0xff] %vm4909, %v4782
  %4937 = vst.msk [vmem:[%s4547 + $0xd8] sm:$0xff] %vm4909, %v4784
  %4938 = vst.msk [vmem:[%s4547 + $0xe0] sm:$0xff] %vm4909, %v4786
  %4939 = vst.msk [vmem:[%s4547 + $0xe8] sm:$0xff] %vm4909, %v4788
  %4940 = vst.msk [vmem:[%s4547 + $0x100] sm:$0xff] %vm4909, %v4790
  %4941 = vst.msk [vmem:[%s4547 + $0x108] sm:$0xff] %vm4909, %v4792
  %4942 = vst.msk [vmem:[%s4547 + $0x110] sm:$0xff] %vm4909, %v4794
  %4943 = vst.msk [vmem:[%s4547 + $0x118] sm:$0xff] %vm4909, %v4796
  %4944 = vst.msk [vmem:[%s4547 + $0x120] sm:$0xff] %vm4909, %v4798
  %4945 = vst.msk [vmem:[%s4547 + $0x128] sm:$0xff] %vm4909, %v4800
  %4946 = vst.msk [vmem:[%s4547 + $0x130] sm:$0xff] %vm4909, %v4802
  %4947 = vst.msk [vmem:[%s4547 + $0x138] sm:$0xff] %vm4909, %v4804
  %4948 = vst.msk [vmem:[%s4547 + $0x140] sm:$0xff] %vm4909, %v4806
  %4949 = vst.msk [vmem:[%s4547 + $0x148] sm:$0xff] %vm4909, %v4808
  %4950 = vst.msk [vmem:[%s4547 + $0x150] sm:$0xff] %vm4909, %v4810
  %4951 = vst.msk [vmem:[%s4547 + $0x158] sm:$0xff] %vm4909, %v4812
  %4952 = vst.msk [vmem:[%s4547 + $0x160] sm:$0xff] %vm4909, %v4814
  %4953 = vst.msk [vmem:[%s4547 + $0x168] sm:$0xff] %vm4909, %v4816
  %4954 = vst.msk [vmem:[%s4547 + $0x170] sm:$0xff] %vm4909, %v4818
  %4955 = vst.msk [vmem:[%s4547 + $0x178] sm:$0xff] %vm4909, %v4820
  %4956 = vst.msk [vmem:[%s4547 + $0x180] sm:$0xff] %vm4909, %v4822
  %4957 = vst.msk [vmem:[%s4547 + $0x188] sm:$0xff] %vm4909, %v4824
  %4958 = vst.msk [vmem:[%s4547 + $0x190] sm:$0xff] %vm4909, %v4826
  %4959 = vst.msk [vmem:[%s4547 + $0x198] sm:$0xff] %vm4909, %v4828
  %4960 = vst.msk [vmem:[%s4547 + $0x1a0] sm:$0xff] %vm4909, %v4830
  %4961 = vst.msk [vmem:[%s4547 + $0x1a8] sm:$0xff] %vm4909, %v4832
  %4962 = vst.msk [vmem:[%s4547 + $0x1b0] sm:$0xff] %vm4909, %v4834
  %4963 = vst.msk [vmem:[%s4547 + $0x1b8] sm:$0xff] %vm4909, %v4836
  %4964 = vst.msk [vmem:[%s4547 + $0x1c0] sm:$0xff] %vm4909, %v4838
  %4965 = vst.msk [vmem:[%s4547 + $0x1c8] sm:$0xff] %vm4909, %v4840
  %4966 = vst.msk [vmem:[%s4547 + $0x1d0] sm:$0xff] %vm4909, %v4842
  %4967 = vst.msk [vmem:[%s4547 + $0x1d8] sm:$0xff] %vm4909, %v4844
  %4968 = vst.msk [vmem:[%s4547 + $0x1e0] sm:$0xff] %vm4909, %v4846
  %4969 = vst.msk [vmem:[%s4547 + $0x1e8] sm:$0xff] %vm4909, %v4848
  %v4970 = vld [vmem:[#allocation3 + $0x1] sm:$0xff]
  %v4971 = vld [vmem:[#allocation3 + $0x9] sm:$0x7f]
  %v4972 = vld [vmem:[#allocation3 + $0x11] sm:$0xff]
  %v4973 = vld [vmem:[#allocation3 + $0x19] sm:$0x7f]
  %v4974 = vld [vmem:[#allocation3 + $0x21] sm:$0xff]
  %v4975 = vld [vmem:[#allocation3 + $0x29] sm:$0x7f]
  %v4976 = vld [vmem:[#allocation3 + $0x31] sm:$0xff]
  %v4977 = vld [vmem:[#allocation3 + $0x39] sm:$0x7f]
  %v4978 = vld [vmem:[#allocation3 + $0x41] sm:$0xff]
  %v4979 = vld [vmem:[#allocation3 + $0x49] sm:$0x7f]
  %v4980 = vld [vmem:[#allocation3 + $0x51] sm:$0xff]
  %v4981 = vld [vmem:[#allocation3 + $0x59] sm:$0x7f]
  %v4982 = vld [vmem:[#allocation3 + $0x61] sm:$0xff]
  %v4983 = vld [vmem:[#allocation3 + $0x69] sm:$0x7f]
  %v4984 = vld [vmem:[#allocation3 + $0x71] sm:$0xff]
  %v4985 = vld [vmem:[#allocation3 + $0x79] sm:$0x7f]
  %v4986 = vld [vmem:[#allocation3 + $0x81] sm:$0xff]
  %v4987 = vld [vmem:[#allocation3 + $0x89] sm:$0x7f]
  %v4988 = vld [vmem:[#allocation3 + $0x91] sm:$0xff]
  %v4989 = vld [vmem:[#allocation3 + $0x99] sm:$0x7f]
  %v4990 = vld [vmem:[#allocation3 + $0xa1] sm:$0xff]
  %v4991 = vld [vmem:[#allocation3 + $0xa9] sm:$0x7f]
  %v4992 = vld [vmem:[#allocation3 + $0xb1] sm:$0xff]
  %v4993 = vld [vmem:[#allocation3 + $0xb9] sm:$0x7f]
  %v4994 = vld [vmem:[#allocation3 + $0xc1] sm:$0xff]
  %v4995 = vld [vmem:[#allocation3 + $0xc9] sm:$0x7f]
  %v4996 = vld [vmem:[#allocation3 + $0xd1] sm:$0xff]
  %v4997 = vld [vmem:[#allocation3 + $0xd9] sm:$0x7f]
  %v4998 = vld [vmem:[#allocation3 + $0xe1] sm:$0xff]
  %v4999 = vld [vmem:[#allocation3 + $0xe9] sm:$0x7f]
  %v5000 = vld [vmem:[#allocation3 + $0x101] sm:$0xff]
  %v5001 = vld [vmem:[#allocation3 + $0x109] sm:$0x7f]
  %v5002 = vld [vmem:[#allocation3 + $0x111] sm:$0xff]
  %v5003 = vld [vmem:[#allocation3 + $0x119] sm:$0x7f]
  %v5004 = vld [vmem:[#allocation3 + $0x121] sm:$0xff]
  %v5005 = vld [vmem:[#allocation3 + $0x129] sm:$0x7f]
  %v5006 = vld [vmem:[#allocation3 + $0x131] sm:$0xff]
  %v5007 = vld [vmem:[#allocation3 + $0x139] sm:$0x7f]
  %v5008 = vld [vmem:[#allocation3 + $0x141] sm:$0xff]
  %v5009 = vld [vmem:[#allocation3 + $0x149] sm:$0x7f]
  %v5010 = vld [vmem:[#allocation3 + $0x151] sm:$0xff]
  %v5011 = vld [vmem:[#allocation3 + $0x159] sm:$0x7f]
  %v5012 = vld [vmem:[#allocation3 + $0x161] sm:$0xff]
  %v5013 = vld [vmem:[#allocation3 + $0x169] sm:$0x7f]
  %v5014 = vld [vmem:[#allocation3 + $0x171] sm:$0xff]
  %v5015 = vld [vmem:[#allocation3 + $0x179] sm:$0x7f]
  %v5016 = vld [vmem:[#allocation3 + $0x181] sm:$0xff]
  %v5017 = vld [vmem:[#allocation3 + $0x189] sm:$0x7f]
  %v5018 = vld [vmem:[#allocation3 + $0x191] sm:$0xff]
  %v5019 = vld [vmem:[#allocation3 + $0x199] sm:$0x7f]
  %v5020 = vld [vmem:[#allocation3 + $0x1a1] sm:$0xff]
  %v5021 = vld [vmem:[#allocation3 + $0x1a9] sm:$0x7f]
  %v5022 = vld [vmem:[#allocation3 + $0x1b1] sm:$0xff]
  %v5023 = vld [vmem:[#allocation3 + $0x1b9] sm:$0x7f]
  %v5024 = vld [vmem:[#allocation3 + $0x1c1] sm:$0xff]
  %v5025 = vld [vmem:[#allocation3 + $0x1c9] sm:$0x7f]
  %v5026 = vld [vmem:[#allocation3 + $0x1d1] sm:$0xff]
  %v5027 = vld [vmem:[#allocation3 + $0x1d9] sm:$0x7f]
  %v5028 = vld [vmem:[#allocation3 + $0x1e1] sm:$0xff]
  %v5029 = vld [vmem:[#allocation3 + $0x1e9] sm:$0x7f]
  %5090 = vrot.lane.b32.xlu0 %v4970, 16
  %v5091 = vpop.permute.xlu0 %5090
  %5092 = vrot.lane.b32.xlu0 %v4971, 16
  %v5093 = vpop.permute.xlu0 %5092
  %5094 = vrot.lane.b32.xlu0 %v4972, 16
  %v5095 = vpop.permute.xlu0 %5094
  %5096 = vrot.lane.b32.xlu0 %v4973, 16
  %v5097 = vpop.permute.xlu0 %5096
  %5098 = vrot.lane.b32.xlu0 %v4974, 16
  %v5099 = vpop.permute.xlu0 %5098
  %5100 = vrot.lane.b32.xlu0 %v4975, 16
  %v5101 = vpop.permute.xlu0 %5100
  %5102 = vrot.lane.b32.xlu0 %v4976, 16
  %v5103 = vpop.permute.xlu0 %5102
  %5104 = vrot.lane.b32.xlu0 %v4977, 16
  %v5105 = vpop.permute.xlu0 %5104
  %5106 = vrot.lane.b32.xlu0 %v4978, 16
  %v5107 = vpop.permute.xlu0 %5106
  %5108 = vrot.lane.b32.xlu0 %v4979, 16
  %v5109 = vpop.permute.xlu0 %5108
  %5110 = vrot.lane.b32.xlu0 %v4980, 16
  %v5111 = vpop.permute.xlu0 %5110
  %5112 = vrot.lane.b32.xlu0 %v4981, 16
  %v5113 = vpop.permute.xlu0 %5112
  %5114 = vrot.lane.b32.xlu0 %v4982, 16
  %v5115 = vpop.permute.xlu0 %5114
  %5116 = vrot.lane.b32.xlu0 %v4983, 16
  %v5117 = vpop.permute.xlu0 %5116
  %5118 = vrot.lane.b32.xlu0 %v4984, 16
  %v5119 = vpop.permute.xlu0 %5118
  %5120 = vrot.lane.b32.xlu0 %v4985, 16
  %v5121 = vpop.permute.xlu0 %5120
  %5122 = vrot.lane.b32.xlu0 %v4986, 16
  %v5123 = vpop.permute.xlu0 %5122
  %5124 = vrot.lane.b32.xlu0 %v4987, 16
  %v5125 = vpop.permute.xlu0 %5124
  %5126 = vrot.lane.b32.xlu0 %v4988, 16
  %v5127 = vpop.permute.xlu0 %5126
  %5128 = vrot.lane.b32.xlu0 %v4989, 16
  %v5129 = vpop.permute.xlu0 %5128
  %5130 = vrot.lane.b32.xlu0 %v4990, 16
  %v5131 = vpop.permute.xlu0 %5130
  %5132 = vrot.lane.b32.xlu0 %v4991, 16
  %v5133 = vpop.permute.xlu0 %5132
  %5134 = vrot.lane.b32.xlu0 %v4992, 16
  %v5135 = vpop.permute.xlu0 %5134
  %5136 = vrot.lane.b32.xlu0 %v4993, 16
  %v5137 = vpop.permute.xlu0 %5136
  %5138 = vrot.lane.b32.xlu0 %v4994, 16
  %v5139 = vpop.permute.xlu0 %5138
  %5140 = vrot.lane.b32.xlu0 %v4995, 16
  %v5141 = vpop.permute.xlu0 %5140
  %5142 = vrot.lane.b32.xlu0 %v4996, 16
  %v5143 = vpop.permute.xlu0 %5142
  %5144 = vrot.lane.b32.xlu0 %v4997, 16
  %v5145 = vpop.permute.xlu0 %5144
  %5146 = vrot.lane.b32.xlu0 %v4998, 16
  %v5147 = vpop.permute.xlu0 %5146
  %5148 = vrot.lane.b32.xlu0 %v4999, 16
  %v5149 = vpop.permute.xlu0 %5148
  %5150 = vrot.lane.b32.xlu0 %v5000, 16
  %v5151 = vpop.permute.xlu0 %5150
  %5152 = vrot.lane.b32.xlu0 %v5001, 16
  %v5153 = vpop.permute.xlu0 %5152
  %5154 = vrot.lane.b32.xlu0 %v5002, 16
  %v5155 = vpop.permute.xlu0 %5154
  %5156 = vrot.lane.b32.xlu0 %v5003, 16
  %v5157 = vpop.permute.xlu0 %5156
  %5158 = vrot.lane.b32.xlu0 %v5004, 16
  %v5159 = vpop.permute.xlu0 %5158
  %5160 = vrot.lane.b32.xlu0 %v5005, 16
  %v5161 = vpop.permute.xlu0 %5160
  %5162 = vrot.lane.b32.xlu0 %v5006, 16
  %v5163 = vpop.permute.xlu0 %5162
  %5164 = vrot.lane.b32.xlu0 %v5007, 16
  %v5165 = vpop.permute.xlu0 %5164
  %5166 = vrot.lane.b32.xlu0 %v5008, 16
  %v5167 = vpop.permute.xlu0 %5166
  %5168 = vrot.lane.b32.xlu0 %v5009, 16
  %v5169 = vpop.permute.xlu0 %5168
  %5170 = vrot.lane.b32.xlu0 %v5010, 16
  %v5171 = vpop.permute.xlu0 %5170
  %5172 = vrot.lane.b32.xlu0 %v5011, 16
  %v5173 = vpop.permute.xlu0 %5172
  %5174 = vrot.lane.b32.xlu0 %v5012, 16
  %v5175 = vpop.permute.xlu0 %5174
  %5176 = vrot.lane.b32.xlu0 %v5013, 16
  %v5177 = vpop.permute.xlu0 %5176
  %5178 = vrot.lane.b32.xlu0 %v5014, 16
  %v5179 = vpop.permute.xlu0 %5178
  %5180 = vrot.lane.b32.xlu0 %v5015, 16
  %v5181 = vpop.permute.xlu0 %5180
  %5182 = vrot.lane.b32.xlu0 %v5016, 16
  %v5183 = vpop.permute.xlu0 %5182
  %5184 = vrot.lane.b32.xlu0 %v5017, 16
  %v5185 = vpop.permute.xlu0 %5184
  %5186 = vrot.lane.b32.xlu0 %v5018, 16
  %v5187 = vpop.permute.xlu0 %5186
  %5188 = vrot.lane.b32.xlu0 %v5019, 16
  %v5189 = vpop.permute.xlu0 %5188
  %5190 = vrot.lane.b32.xlu0 %v5020, 16
  %v5191 = vpop.permute.xlu0 %5190
  %5192 = vrot.lane.b32.xlu0 %v5021, 16
  %v5193 = vpop.permute.xlu0 %5192
  %5194 = vrot.lane.b32.xlu0 %v5022, 16
  %v5195 = vpop.permute.xlu0 %5194
  %5196 = vrot.lane.b32.xlu0 %v5023, 16
  %v5197 = vpop.permute.xlu0 %5196
  %5198 = vrot.lane.b32.xlu0 %v5024, 16
  %v5199 = vpop.permute.xlu0 %5198
  %5200 = vrot.lane.b32.xlu0 %v5025, 16
  %v5201 = vpop.permute.xlu0 %5200
  %5202 = vrot.lane.b32.xlu0 %v5026, 16
  %v5203 = vpop.permute.xlu0 %5202
  %5204 = vrot.lane.b32.xlu0 %v5027, 16
  %v5205 = vpop.permute.xlu0 %5204
  %5206 = vrot.lane.b32.xlu0 %v5028, 16
  %v5207 = vpop.permute.xlu0 %5206
  %5208 = vrot.lane.b32.xlu0 %v5029, 16
  %v5209 = vpop.permute.xlu0 %5208
  %vm5270 = vcmask 195712
  %5271 = vst.msk [vmem:[%s4547] sm:$0xff] %vm5270, %v5091
  %vm5272 = vcmask 194688
  %5273 = vst.msk [vmem:[%s4547 + $0x8] sm:$0x7f] %vm5272, %v5093
  %5274 = vst.msk [vmem:[%s4547 + $0x10] sm:$0xff] %vm5270, %v5095
  %5275 = vst.msk [vmem:[%s4547 + $0x18] sm:$0x7f] %vm5272, %v5097
  %5276 = vst.msk [vmem:[%s4547 + $0x20] sm:$0xff] %vm5270, %v5099
  %5277 = vst.msk [vmem:[%s4547 + $0x28] sm:$0x7f] %vm5272, %v5101
  %5278 = vst.msk [vmem:[%s4547 + $0x30] sm:$0xff] %vm5270, %v5103
  %5279 = vst.msk [vmem:[%s4547 + $0x38] sm:$0x7f] %vm5272, %v5105
  %5280 = vst.msk [vmem:[%s4547 + $0x40] sm:$0xff] %vm5270, %v5107
  %5281 = vst.msk [vmem:[%s4547 + $0x48] sm:$0x7f] %vm5272, %v5109
  %5282 = vst.msk [vmem:[%s4547 + $0x50] sm:$0xff] %vm5270, %v5111
  %5283 = vst.msk [vmem:[%s4547 + $0x58] sm:$0x7f] %vm5272, %v5113
  %5284 = vst.msk [vmem:[%s4547 + $0x60] sm:$0xff] %vm5270, %v5115
  %5285 = vst.msk [vmem:[%s4547 + $0x68] sm:$0x7f] %vm5272, %v5117
  %5286 = vst.msk [vmem:[%s4547 + $0x70] sm:$0xff] %vm5270, %v5119
  %5287 = vst.msk [vmem:[%s4547 + $0x78] sm:$0x7f] %vm5272, %v5121
  %5288 = vst.msk [vmem:[%s4547 + $0x80] sm:$0xff] %vm5270, %v5123
  %5289 = vst.msk [vmem:[%s4547 + $0x88] sm:$0x7f] %vm5272, %v5125
  %5290 = vst.msk [vmem:[%s4547 + $0x90] sm:$0xff] %vm5270, %v5127
  %5291 = vst.msk [vmem:[%s4547 + $0x98] sm:$0x7f] %vm5272, %v5129
  %5292 = vst.msk [vmem:[%s4547 + $0xa0] sm:$0xff] %vm5270, %v5131
  %5293 = vst.msk [vmem:[%s4547 + $0xa8] sm:$0x7f] %vm5272, %v5133
  %5294 = vst.msk [vmem:[%s4547 + $0xb0] sm:$0xff] %vm5270, %v5135
  %5295 = vst.msk [vmem:[%s4547 + $0xb8] sm:$0x7f] %vm5272, %v5137
  %5296 = vst.msk [vmem:[%s4547 + $0xc0] sm:$0xff] %vm5270, %v5139
  %5297 = vst.msk [vmem:[%s4547 + $0xc8] sm:$0x7f] %vm5272, %v5141
  %5298 = vst.msk [vmem:[%s4547 + $0xd0] sm:$0xff] %vm5270, %v5143
  %5299 = vst.msk [vmem:[%s4547 + $0xd8] sm:$0x7f] %vm5272, %v5145
  %5300 = vst.msk [vmem:[%s4547 + $0xe0] sm:$0xff] %vm5270, %v5147
  %5301 = vst.msk [vmem:[%s4547 + $0xe8] sm:$0x7f] %vm5272, %v5149
  %5302 = vst.msk [vmem:[%s4547 + $0x100] sm:$0xff] %vm5270, %v5151
  %5303 = vst.msk [vmem:[%s4547 + $0x108] sm:$0x7f] %vm5272, %v5153
  %5304 = vst.msk [vmem:[%s4547 + $0x110] sm:$0xff] %vm5270, %v5155
  %5305 = vst.msk [vmem:[%s4547 + $0x118] sm:$0x7f] %vm5272, %v5157
  %5306 = vst.msk [vmem:[%s4547 + $0x120] sm:$0xff] %vm5270, %v5159
  %5307 = vst.msk [vmem:[%s4547 + $0x128] sm:$0x7f] %vm5272, %v5161
  %5308 = vst.msk [vmem:[%s4547 + $0x130] sm:$0xff] %vm5270, %v5163
  %5309 = vst.msk [vmem:[%s4547 + $0x138] sm:$0x7f] %vm5272, %v5165
  %5310 = vst.msk [vmem:[%s4547 + $0x140] sm:$0xff] %vm5270, %v5167
  %5311 = vst.msk [vmem:[%s4547 + $0x148] sm:$0x7f] %vm5272, %v5169
  %5312 = vst.msk [vmem:[%s4547 + $0x150] sm:$0xff] %vm5270, %v5171
  %5313 = vst.msk [vmem:[%s4547 + $0x158] sm:$0x7f] %vm5272, %v5173
  %5314 = vst.msk [vmem:[%s4547 + $0x160] sm:$0xff] %vm5270, %v5175
  %5315 = vst.msk [vmem:[%s4547 + $0x168] sm:$0x7f] %vm5272, %v5177
  %5316 = vst.msk [vmem:[%s4547 + $0x170] sm:$0xff] %vm5270, %v5179
  %5317 = vst.msk [vmem:[%s4547 + $0x178] sm:$0x7f] %vm5272, %v5181
  %5318 = vst.msk [vmem:[%s4547 + $0x180] sm:$0xff] %vm5270, %v5183
  %5319 = vst.msk [vmem:[%s4547 + $0x188] sm:$0x7f] %vm5272, %v5185
  %5320 = vst.msk [vmem:[%s4547 + $0x190] sm:$0xff] %vm5270, %v5187
  %5321 = vst.msk [vmem:[%s4547 + $0x198] sm:$0x7f] %vm5272, %v5189
  %5322 = vst.msk [vmem:[%s4547 + $0x1a0] sm:$0xff] %vm5270, %v5191
  %5323 = vst.msk [vmem:[%s4547 + $0x1a8] sm:$0x7f] %vm5272, %v5193
  %5324 = vst.msk [vmem:[%s4547 + $0x1b0] sm:$0xff] %vm5270, %v5195
  %5325 = vst.msk [vmem:[%s4547 + $0x1b8] sm:$0x7f] %vm5272, %v5197
  %5326 = vst.msk [vmem:[%s4547 + $0x1c0] sm:$0xff] %vm5270, %v5199
  %5327 = vst.msk [vmem:[%s4547 + $0x1c8] sm:$0x7f] %vm5272, %v5201
  %5328 = vst.msk [vmem:[%s4547 + $0x1d0] sm:$0xff] %vm5270, %v5203
  %5329 = vst.msk [vmem:[%s4547 + $0x1d8] sm:$0x7f] %vm5272, %v5205
  %5330 = vst.msk [vmem:[%s4547 + $0x1e0] sm:$0xff] %vm5270, %v5207
  %5331 = vst.msk [vmem:[%s4547 + $0x1e8] sm:$0x7f] %vm5272, %v5209
  %v5332 = vld [vmem:[#allocation3] sm:$0xff]
  %v5333 = vld [vmem:[#allocation3 + $0x8] sm:$0x7f]
  %v5334 = vld [vmem:[#allocation3 + $0x10] sm:$0xff]
  %v5335 = vld [vmem:[#allocation3 + $0x18] sm:$0x7f]
  %v5336 = vld [vmem:[#allocation3 + $0x20] sm:$0xff]
  %v5337 = vld [vmem:[#allocation3 + $0x28] sm:$0x7f]
  %v5338 = vld [vmem:[#allocation3 + $0x30] sm:$0xff]
  %v5339 = vld [vmem:[#allocation3 + $0x38] sm:$0x7f]
  %v5340 = vld [vmem:[#allocation3 + $0x40] sm:$0xff]
  %v5341 = vld [vmem:[#allocation3 + $0x48] sm:$0x7f]
  %v5342 = vld [vmem:[#allocation3 + $0x50] sm:$0xff]
  %v5343 = vld [vmem:[#allocation3 + $0x58] sm:$0x7f]
  %v5344 = vld [vmem:[#allocation3 + $0x60] sm:$0xff]
  %v5345 = vld [vmem:[#allocation3 + $0x68] sm:$0x7f]
  %v5346 = vld [vmem:[#allocation3 + $0x70] sm:$0xff]
  %v5347 = vld [vmem:[#allocation3 + $0x78] sm:$0x7f]
  %v5348 = vld [vmem:[#allocation3 + $0x80] sm:$0xff]
  %v5349 = vld [vmem:[#allocation3 + $0x88] sm:$0x7f]
  %v5350 = vld [vmem:[#allocation3 + $0x90] sm:$0xff]
  %v5351 = vld [vmem:[#allocation3 + $0x98] sm:$0x7f]
  %v5352 = vld [vmem:[#allocation3 + $0xa0] sm:$0xff]
  %v5353 = vld [vmem:[#allocation3 + $0xa8] sm:$0x7f]
  %v5354 = vld [vmem:[#allocation3 + $0xb0] sm:$0xff]
  %v5355 = vld [vmem:[#allocation3 + $0xb8] sm:$0x7f]
  %v5356 = vld [vmem:[#allocation3 + $0xc0] sm:$0xff]
  %v5357 = vld [vmem:[#allocation3 + $0xc8] sm:$0x7f]
  %v5358 = vld [vmem:[#allocation3 + $0xd0] sm:$0xff]
  %v5359 = vld [vmem:[#allocation3 + $0xd8] sm:$0x7f]
  %v5360 = vld [vmem:[#allocation3 + $0xe0] sm:$0xff]
  %v5361 = vld [vmem:[#allocation3 + $0xe8] sm:$0x7f]
  %v5362 = vld [vmem:[#allocation3 + $0xf0] sm:$0xff]
  %v5363 = vld [vmem:[#allocation3 + $0xf8] sm:$0x7f]
  %v5364 = vld [vmem:[#allocation3 + $0x100] sm:$0xff]
  %v5365 = vld [vmem:[#allocation3 + $0x108] sm:$0x7f]
  %v5366 = vld [vmem:[#allocation3 + $0x110] sm:$0xff]
  %v5367 = vld [vmem:[#allocation3 + $0x118] sm:$0x7f]
  %v5368 = vld [vmem:[#allocation3 + $0x120] sm:$0xff]
  %v5369 = vld [vmem:[#allocation3 + $0x128] sm:$0x7f]
  %v5370 = vld [vmem:[#allocation3 + $0x130] sm:$0xff]
  %v5371 = vld [vmem:[#allocation3 + $0x138] sm:$0x7f]
  %v5372 = vld [vmem:[#allocation3 + $0x140] sm:$0xff]
  %v5373 = vld [vmem:[#allocation3 + $0x148] sm:$0x7f]
  %v5374 = vld [vmem:[#allocation3 + $0x150] sm:$0xff]
  %v5375 = vld [vmem:[#allocation3 + $0x158] sm:$0x7f]
  %v5376 = vld [vmem:[#allocation3 + $0x160] sm:$0xff]
  %v5377 = vld [vmem:[#allocation3 + $0x168] sm:$0x7f]
  %v5378 = vld [vmem:[#allocation3 + $0x170] sm:$0xff]
  %v5379 = vld [vmem:[#allocation3 + $0x178] sm:$0x7f]
  %v5380 = vld [vmem:[#allocation3 + $0x180] sm:$0xff]
  %v5381 = vld [vmem:[#allocation3 + $0x188] sm:$0x7f]
  %v5382 = vld [vmem:[#allocation3 + $0x190] sm:$0xff]
  %v5383 = vld [vmem:[#allocation3 + $0x198] sm:$0x7f]
  %v5384 = vld [vmem:[#allocation3 + $0x1a0] sm:$0xff]
  %v5385 = vld [vmem:[#allocation3 + $0x1a8] sm:$0x7f]
  %v5386 = vld [vmem:[#allocation3 + $0x1b0] sm:$0xff]
  %v5387 = vld [vmem:[#allocation3 + $0x1b8] sm:$0x7f]
  %v5388 = vld [vmem:[#allocation3 + $0x1c0] sm:$0xff]
  %v5389 = vld [vmem:[#allocation3 + $0x1c8] sm:$0x7f]
  %v5390 = vld [vmem:[#allocation3 + $0x1d0] sm:$0xff]
  %v5391 = vld [vmem:[#allocation3 + $0x1d8] sm:$0x7f]
  %v5392 = vld [vmem:[#allocation3 + $0x1e0] sm:$0xff]
  %v5393 = vld [vmem:[#allocation3 + $0x1e8] sm:$0x7f]
  %v5394 = vld [vmem:[#allocation3 + $0x1f0] sm:$0xff]
  %v5395 = vld [vmem:[#allocation3 + $0x1f8] sm:$0x7f]
  %5460 = vrot.lane.b32.xlu0 %v5332, 24
  %v5461 = vpop.permute.xlu0 %5460
  %5462 = vrot.lane.b32.xlu0 %v5333, 24
  %v5463 = vpop.permute.xlu0 %5462
  %5464 = vrot.lane.b32.xlu0 %v5334, 24
  %v5465 = vpop.permute.xlu0 %5464
  %5466 = vrot.lane.b32.xlu0 %v5335, 24
  %v5467 = vpop.permute.xlu0 %5466
  %5468 = vrot.lane.b32.xlu0 %v5336, 24
  %v5469 = vpop.permute.xlu0 %5468
  %5470 = vrot.lane.b32.xlu0 %v5337, 24
  %v5471 = vpop.permute.xlu0 %5470
  %5472 = vrot.lane.b32.xlu0 %v5338, 24
  %v5473 = vpop.permute.xlu0 %5472
  %5474 = vrot.lane.b32.xlu0 %v5339, 24
  %v5475 = vpop.permute.xlu0 %5474
  %5476 = vrot.lane.b32.xlu0 %v5340, 24
  %v5477 = vpop.permute.xlu0 %5476
  %5478 = vrot.lane.b32.xlu0 %v5341, 24
  %v5479 = vpop.permute.xlu0 %5478
  %5480 = vrot.lane.b32.xlu0 %v5342, 24
  %v5481 = vpop.permute.xlu0 %5480
  %5482 = vrot.lane.b32.xlu0 %v5343, 24
  %v5483 = vpop.permute.xlu0 %5482
  %5484 = vrot.lane.b32.xlu0 %v5344, 24
  %v5485 = vpop.permute.xlu0 %5484
  %5486 = vrot.lane.b32.xlu0 %v5345, 24
  %v5487 = vpop.permute.xlu0 %5486
  %5488 = vrot.lane.b32.xlu0 %v5346, 24
  %v5489 = vpop.permute.xlu0 %5488
  %5490 = vrot.lane.b32.xlu0 %v5347, 24
  %v5491 = vpop.permute.xlu0 %5490
  %5492 = vrot.lane.b32.xlu0 %v5348, 24
  %v5493 = vpop.permute.xlu0 %5492
  %5494 = vrot.lane.b32.xlu0 %v5349, 24
  %v5495 = vpop.permute.xlu0 %5494
  %5496 = vrot.lane.b32.xlu0 %v5350, 24
  %v5497 = vpop.permute.xlu0 %5496
  %5498 = vrot.lane.b32.xlu0 %v5351, 24
  %v5499 = vpop.permute.xlu0 %5498
  %5500 = vrot.lane.b32.xlu0 %v5352, 24
  %v5501 = vpop.permute.xlu0 %5500
  %5502 = vrot.lane.b32.xlu0 %v5353, 24
  %v5503 = vpop.permute.xlu0 %5502
  %5504 = vrot.lane.b32.xlu0 %v5354, 24
  %v5505 = vpop.permute.xlu0 %5504
  %5506 = vrot.lane.b32.xlu0 %v5355, 24
  %v5507 = vpop.permute.xlu0 %5506
  %5508 = vrot.lane.b32.xlu0 %v5356, 24
  %v5509 = vpop.permute.xlu0 %5508
  %5510 = vrot.lane.b32.xlu0 %v5357, 24
  %v5511 = vpop.permute.xlu0 %5510
  %5512 = vrot.lane.b32.xlu0 %v5358, 24
  %v5513 = vpop.permute.xlu0 %5512
  %5514 = vrot.lane.b32.xlu0 %v5359, 24
  %v5515 = vpop.permute.xlu0 %5514
  %5516 = vrot.lane.b32.xlu0 %v5360, 24
  %v5517 = vpop.permute.xlu0 %5516
  %5518 = vrot.lane.b32.xlu0 %v5361, 24
  %v5519 = vpop.permute.xlu0 %5518
  %5520 = vrot.lane.b32.xlu0 %v5362, 24
  %v5521 = vpop.permute.xlu0 %5520
  %5522 = vrot.lane.b32.xlu0 %v5363, 24
  %v5523 = vpop.permute.xlu0 %5522
  %5524 = vrot.lane.b32.xlu0 %v5364, 24
  %v5525 = vpop.permute.xlu0 %5524
  %5526 = vrot.lane.b32.xlu0 %v5365, 24
  %v5527 = vpop.permute.xlu0 %5526
  %5528 = vrot.lane.b32.xlu0 %v5366, 24
  %v5529 = vpop.permute.xlu0 %5528
  %5530 = vrot.lane.b32.xlu0 %v5367, 24
  %v5531 = vpop.permute.xlu0 %5530
  %5532 = vrot.lane.b32.xlu0 %v5368, 24
  %v5533 = vpop.permute.xlu0 %5532
  %5534 = vrot.lane.b32.xlu0 %v5369, 24
  %v5535 = vpop.permute.xlu0 %5534
  %5536 = vrot.lane.b32.xlu0 %v5370, 24
  %v5537 = vpop.permute.xlu0 %5536
  %5538 = vrot.lane.b32.xlu0 %v5371, 24
  %v5539 = vpop.permute.xlu0 %5538
  %5540 = vrot.lane.b32.xlu0 %v5372, 24
  %v5541 = vpop.permute.xlu0 %5540
  %5542 = vrot.lane.b32.xlu0 %v5373, 24
  %v5543 = vpop.permute.xlu0 %5542
  %5544 = vrot.lane.b32.xlu0 %v5374, 24
  %v5545 = vpop.permute.xlu0 %5544
  %5546 = vrot.lane.b32.xlu0 %v5375, 24
  %v5547 = vpop.permute.xlu0 %5546
  %5548 = vrot.lane.b32.xlu0 %v5376, 24
  %v5549 = vpop.permute.xlu0 %5548
  %5550 = vrot.lane.b32.xlu0 %v5377, 24
  %v5551 = vpop.permute.xlu0 %5550
  %5552 = vrot.lane.b32.xlu0 %v5378, 24
  %v5553 = vpop.permute.xlu0 %5552
  %5554 = vrot.lane.b32.xlu0 %v5379, 24
  %v5555 = vpop.permute.xlu0 %5554
  %5556 = vrot.lane.b32.xlu0 %v5380, 24
  %v5557 = vpop.permute.xlu0 %5556
  %5558 = vrot.lane.b32.xlu0 %v5381, 24
  %v5559 = vpop.permute.xlu0 %5558
  %5560 = vrot.lane.b32.xlu0 %v5382, 24
  %v5561 = vpop.permute.xlu0 %5560
  %5562 = vrot.lane.b32.xlu0 %v5383, 24
  %v5563 = vpop.permute.xlu0 %5562
  %5564 = vrot.lane.b32.xlu0 %v5384, 24
  %v5565 = vpop.permute.xlu0 %5564
  %5566 = vrot.lane.b32.xlu0 %v5385, 24
  %v5567 = vpop.permute.xlu0 %5566
  %5568 = vrot.lane.b32.xlu0 %v5386, 24
  %v5569 = vpop.permute.xlu0 %5568
  %5570 = vrot.lane.b32.xlu0 %v5387, 24
  %v5571 = vpop.permute.xlu0 %5570
  %5572 = vrot.lane.b32.xlu0 %v5388, 24
  %v5573 = vpop.permute.xlu0 %5572
  %5574 = vrot.lane.b32.xlu0 %v5389, 24
  %v5575 = vpop.permute.xlu0 %5574
  %5576 = vrot.lane.b32.xlu0 %v5390, 24
  %v5577 = vpop.permute.xlu0 %5576
  %5578 = vrot.lane.b32.xlu0 %v5391, 24
  %v5579 = vpop.permute.xlu0 %5578
  %5580 = vrot.lane.b32.xlu0 %v5392, 24
  %v5581 = vpop.permute.xlu0 %5580
  %5582 = vrot.lane.b32.xlu0 %v5393, 24
  %v5583 = vpop.permute.xlu0 %5582
  %5584 = vrot.lane.b32.xlu0 %v5394, 24
  %v5585 = vpop.permute.xlu0 %5584
  %5586 = vrot.lane.b32.xlu0 %v5395, 24
  %v5587 = vpop.permute.xlu0 %5586
  %vm5652 = vcmask 261312
  %5653 = vst.msk [vmem:[#allocation4 + $0x1] sm:$0xff] %vm5652, %v5461
  %vm5654 = vcmask 260288
  %5655 = vst.msk [vmem:[#allocation4 + $0x9] sm:$0x7f] %vm5654, %v5463
  %5656 = vst.msk [vmem:[#allocation4 + $0x11] sm:$0xff] %vm5652, %v5465
  %5657 = vst.msk [vmem:[#allocation4 + $0x19] sm:$0x7f] %vm5654, %v5467
  %5658 = vst.msk [vmem:[#allocation4 + $0x21] sm:$0xff] %vm5652, %v5469
  %5659 = vst.msk [vmem:[#allocation4 + $0x29] sm:$0x7f] %vm5654, %v5471
  %5660 = vst.msk [vmem:[#allocation4 + $0x31] sm:$0xff] %vm5652, %v5473
  %5661 = vst.msk [vmem:[#allocation4 + $0x39] sm:$0x7f] %vm5654, %v5475
  %5662 = vst.msk [vmem:[#allocation4 + $0x41] sm:$0xff] %vm5652, %v5477
  %5663 = vst.msk [vmem:[#allocation4 + $0x49] sm:$0x7f] %vm5654, %v5479
  %5664 = vst.msk [vmem:[#allocation4 + $0x51] sm:$0xff] %vm5652, %v5481
  %5665 = vst.msk [vmem:[#allocation4 + $0x59] sm:$0x7f] %vm5654, %v5483
  %5666 = vst.msk [vmem:[#allocation4 + $0x61] sm:$0xff] %vm5652, %v5485
  %5667 = vst.msk [vmem:[#allocation4 + $0x69] sm:$0x7f] %vm5654, %v5487
  %5668 = vst.msk [vmem:[#allocation4 + $0x71] sm:$0xff] %vm5652, %v5489
  %5669 = vst.msk [vmem:[#allocation4 + $0x79] sm:$0x7f] %vm5654, %v5491
  %5670 = vst.msk [vmem:[#allocation4 + $0x81] sm:$0xff] %vm5652, %v5493
  %5671 = vst.msk [vmem:[#allocation4 + $0x89] sm:$0x7f] %vm5654, %v5495
  %5672 = vst.msk [vmem:[#allocation4 + $0x91] sm:$0xff] %vm5652, %v5497
  %5673 = vst.msk [vmem:[#allocation4 + $0x99] sm:$0x7f] %vm5654, %v5499
  %5674 = vst.msk [vmem:[#allocation4 + $0xa1] sm:$0xff] %vm5652, %v5501
  %5675 = vst.msk [vmem:[#allocation4 + $0xa9] sm:$0x7f] %vm5654, %v5503
  %5676 = vst.msk [vmem:[#allocation4 + $0xb1] sm:$0xff] %vm5652, %v5505
  %5677 = vst.msk [vmem:[#allocation4 + $0xb9] sm:$0x7f] %vm5654, %v5507
  %5678 = vst.msk [vmem:[#allocation4 + $0xc1] sm:$0xff] %vm5652, %v5509
  %5679 = vst.msk [vmem:[#allocation4 + $0xc9] sm:$0x7f] %vm5654, %v5511
  %5680 = vst.msk [vmem:[#allocation4 + $0xd1] sm:$0xff] %vm5652, %v5513
  %5681 = vst.msk [vmem:[#allocation4 + $0xd9] sm:$0x7f] %vm5654, %v5515
  %5682 = vst.msk [vmem:[#allocation4 + $0xe1] sm:$0xff] %vm5652, %v5517
  %5683 = vst.msk [vmem:[#allocation4 + $0xe9] sm:$0x7f] %vm5654, %v5519
  %5684 = vst.msk [vmem:[#allocation4 + $0xf1] sm:$0xff] %vm5652, %v5521
  %5685 = vst.msk [vmem:[#allocation4 + $0xf9] sm:$0x7f] %vm5654, %v5523
  %5686 = vst.msk [vmem:[#allocation4 + $0x101] sm:$0xff] %vm5652, %v5525
  %5687 = vst.msk [vmem:[#allocation4 + $0x109] sm:$0x7f] %vm5654, %v5527
  %5688 = vst.msk [vmem:[#allocation4 + $0x111] sm:$0xff] %vm5652, %v5529
  %5689 = vst.msk [vmem:[#allocation4 + $0x119] sm:$0x7f] %vm5654, %v5531
  %5690 = vst.msk [vmem:[#allocation4 + $0x121] sm:$0xff] %vm5652, %v5533
  %5691 = vst.msk [vmem:[#allocation4 + $0x129] sm:$0x7f] %vm5654, %v5535
  %5692 = vst.msk [vmem:[#allocation4 + $0x131] sm:$0xff] %vm5652, %v5537
  %5693 = vst.msk [vmem:[#allocation4 + $0x139] sm:$0x7f] %vm5654, %v5539
  %5694 = vst.msk [vmem:[#allocation4 + $0x141] sm:$0xff] %vm5652, %v5541
  %5695 = vst.msk [vmem:[#allocation4 + $0x149] sm:$0x7f] %vm5654, %v5543
  %5696 = vst.msk [vmem:[#allocation4 + $0x151] sm:$0xff] %vm5652, %v5545
  %5697 = vst.msk [vmem:[#allocation4 + $0x159] sm:$0x7f] %vm5654, %v5547
  %5698 = vst.msk [vmem:[#allocation4 + $0x161] sm:$0xff] %vm5652, %v5549
  %5699 = vst.msk [vmem:[#allocation4 + $0x169] sm:$0x7f] %vm5654, %v5551
  %5700 = vst.msk [vmem:[#allocation4 + $0x171] sm:$0xff] %vm5652, %v5553
  %5701 = vst.msk [vmem:[#allocation4 + $0x179] sm:$0x7f] %vm5654, %v5555
  %5702 = vst.msk [vmem:[#allocation4 + $0x181] sm:$0xff] %vm5652, %v5557
  %5703 = vst.msk [vmem:[#allocation4 + $0x189] sm:$0x7f] %vm5654, %v5559
  %5704 = vst.msk [vmem:[#allocation4 + $0x191] sm:$0xff] %vm5652, %v5561
  %5705 = vst.msk [vmem:[#allocation4 + $0x199] sm:$0x7f] %vm5654, %v5563
  %5706 = vst.msk [vmem:[#allocation4 + $0x1a1] sm:$0xff] %vm5652, %v5565
  %5707 = vst.msk [vmem:[#allocation4 + $0x1a9] sm:$0x7f] %vm5654, %v5567
  %5708 = vst.msk [vmem:[#allocation4 + $0x1b1] sm:$0xff] %vm5652, %v5569
  %5709 = vst.msk [vmem:[#allocation4 + $0x1b9] sm:$0x7f] %vm5654, %v5571
  %5710 = vst.msk [vmem:[#allocation4 + $0x1c1] sm:$0xff] %vm5652, %v5573
  %5711 = vst.msk [vmem:[#allocation4 + $0x1c9] sm:$0x7f] %vm5654, %v5575
  %5712 = vst.msk [vmem:[#allocation4 + $0x1d1] sm:$0xff] %vm5652, %v5577
  %5713 = vst.msk [vmem:[#allocation4 + $0x1d9] sm:$0x7f] %vm5654, %v5579
  %5714 = vst.msk [vmem:[#allocation4 + $0x1e1] sm:$0xff] %vm5652, %v5581
  %5715 = vst.msk [vmem:[#allocation4 + $0x1e9] sm:$0x7f] %vm5654, %v5583
  %5716 = vst.msk [vmem:[#allocation4 + $0x1f1] sm:$0xff] %vm5652, %v5585
  %5717 = vst.msk [vmem:[#allocation4 + $0x1f9] sm:$0x7f] %vm5654, %v5587
  %v5718 = vld [vmem:[#allocation3] sm:$0xff]
  %v5719 = vld [vmem:[#allocation3 + $0x8] sm:$0xff]
  %v5720 = vld [vmem:[#allocation3 + $0x10] sm:$0xff]
  %v5721 = vld [vmem:[#allocation3 + $0x18] sm:$0xff]
  %v5722 = vld [vmem:[#allocation3 + $0x20] sm:$0xff]
  %v5723 = vld [vmem:[#allocation3 + $0x28] sm:$0xff]
  %v5724 = vld [vmem:[#allocation3 + $0x30] sm:$0xff]
  %v5725 = vld [vmem:[#allocation3 + $0x38] sm:$0xff]
  %v5726 = vld [vmem:[#allocation3 + $0x40] sm:$0xff]
  %v5727 = vld [vmem:[#allocation3 + $0x48] sm:$0xff]
  %v5728 = vld [vmem:[#allocation3 + $0x50] sm:$0xff]
  %v5729 = vld [vmem:[#allocation3 + $0x58] sm:$0xff]
  %v5730 = vld [vmem:[#allocation3 + $0x60] sm:$0xff]
  %v5731 = vld [vmem:[#allocation3 + $0x68] sm:$0xff]
  %v5732 = vld [vmem:[#allocation3 + $0x70] sm:$0xff]
  %v5733 = vld [vmem:[#allocation3 + $0x78] sm:$0xff]
  %v5734 = vld [vmem:[#allocation3 + $0x80] sm:$0xff]
  %v5735 = vld [vmem:[#allocation3 + $0x88] sm:$0xff]
  %v5736 = vld [vmem:[#allocation3 + $0x90] sm:$0xff]
  %v5737 = vld [vmem:[#allocation3 + $0x98] sm:$0xff]
  %v5738 = vld [vmem:[#allocation3 + $0xa0] sm:$0xff]
  %v5739 = vld [vmem:[#allocation3 + $0xa8] sm:$0xff]
  %v5740 = vld [vmem:[#allocation3 + $0xb0] sm:$0xff]
  %v5741 = vld [vmem:[#allocation3 + $0xb8] sm:$0xff]
  %v5742 = vld [vmem:[#allocation3 + $0xc0] sm:$0xff]
  %v5743 = vld [vmem:[#allocation3 + $0xc8] sm:$0xff]
  %v5744 = vld [vmem:[#allocation3 + $0xd0] sm:$0xff]
  %v5745 = vld [vmem:[#allocation3 + $0xd8] sm:$0xff]
  %v5746 = vld [vmem:[#allocation3 + $0xe0] sm:$0xff]
  %v5747 = vld [vmem:[#allocation3 + $0xe8] sm:$0xff]
  %v5748 = vld [vmem:[#allocation3 + $0xf0] sm:$0xff]
  %v5749 = vld [vmem:[#allocation3 + $0xf8] sm:$0xff]
  %v5750 = vld [vmem:[#allocation3 + $0x100] sm:$0xff]
  %v5751 = vld [vmem:[#allocation3 + $0x108] sm:$0xff]
  %v5752 = vld [vmem:[#allocation3 + $0x110] sm:$0xff]
  %v5753 = vld [vmem:[#allocation3 + $0x118] sm:$0xff]
  %v5754 = vld [vmem:[#allocation3 + $0x120] sm:$0xff]
  %v5755 = vld [vmem:[#allocation3 + $0x128] sm:$0xff]
  %v5756 = vld [vmem:[#allocation3 + $0x130] sm:$0xff]
  %v5757 = vld [vmem:[#allocation3 + $0x138] sm:$0xff]
  %v5758 = vld [vmem:[#allocation3 + $0x140] sm:$0xff]
  %v5759 = vld [vmem:[#allocation3 + $0x148] sm:$0xff]
  %v5760 = vld [vmem:[#allocation3 + $0x150] sm:$0xff]
  %v5761 = vld [vmem:[#allocation3 + $0x158] sm:$0xff]
  %v5762 = vld [vmem:[#allocation3 + $0x160] sm:$0xff]
  %v5763 = vld [vmem:[#allocation3 + $0x168] sm:$0xff]
  %v5764 = vld [vmem:[#allocation3 + $0x170] sm:$0xff]
  %v5765 = vld [vmem:[#allocation3 + $0x178] sm:$0xff]
  %v5766 = vld [vmem:[#allocation3 + $0x180] sm:$0xff]
  %v5767 = vld [vmem:[#allocation3 + $0x188] sm:$0xff]
  %v5768 = vld [vmem:[#allocation3 + $0x190] sm:$0xff]
  %v5769 = vld [vmem:[#allocation3 + $0x198] sm:$0xff]
  %v5770 = vld [vmem:[#allocation3 + $0x1a0] sm:$0xff]
  %v5771 = vld [vmem:[#allocation3 + $0x1a8] sm:$0xff]
  %v5772 = vld [vmem:[#allocation3 + $0x1b0] sm:$0xff]
  %v5773 = vld [vmem:[#allocation3 + $0x1b8] sm:$0xff]
  %v5774 = vld [vmem:[#allocation3 + $0x1c0] sm:$0xff]
  %v5775 = vld [vmem:[#allocation3 + $0x1c8] sm:$0xff]
  %v5776 = vld [vmem:[#allocation3 + $0x1d0] sm:$0xff]
  %v5777 = vld [vmem:[#allocation3 + $0x1d8] sm:$0xff]
  %v5778 = vld [vmem:[#allocation3 + $0x1e0] sm:$0xff]
  %v5779 = vld [vmem:[#allocation3 + $0x1e8] sm:$0xff]
  %v5780 = vld [vmem:[#allocation3 + $0x1f0] sm:$0xff]
  %v5781 = vld [vmem:[#allocation3 + $0x1f8] sm:$0xff]
  %5846 = vrot.lane.b32.xlu0 %v5718, 32
  %v5847 = vpop.permute.xlu0 %5846
  %5848 = vrot.lane.b32.xlu0 %v5719, 32
  %v5849 = vpop.permute.xlu0 %5848
  %5850 = vrot.lane.b32.xlu0 %v5720, 32
  %v5851 = vpop.permute.xlu0 %5850
  %5852 = vrot.lane.b32.xlu0 %v5721, 32
  %v5853 = vpop.permute.xlu0 %5852
  %5854 = vrot.lane.b32.xlu0 %v5722, 32
  %v5855 = vpop.permute.xlu0 %5854
  %5856 = vrot.lane.b32.xlu0 %v5723, 32
  %v5857 = vpop.permute.xlu0 %5856
  %5858 = vrot.lane.b32.xlu0 %v5724, 32
  %v5859 = vpop.permute.xlu0 %5858
  %5860 = vrot.lane.b32.xlu0 %v5725, 32
  %v5861 = vpop.permute.xlu0 %5860
  %5862 = vrot.lane.b32.xlu0 %v5726, 32
  %v5863 = vpop.permute.xlu0 %5862
  %5864 = vrot.lane.b32.xlu0 %v5727, 32
  %v5865 = vpop.permute.xlu0 %5864
  %5866 = vrot.lane.b32.xlu0 %v5728, 32
  %v5867 = vpop.permute.xlu0 %5866
  %5868 = vrot.lane.b32.xlu0 %v5729, 32
  %v5869 = vpop.permute.xlu0 %5868
  %5870 = vrot.lane.b32.xlu0 %v5730, 32
  %v5871 = vpop.permute.xlu0 %5870
  %5872 = vrot.lane.b32.xlu0 %v5731, 32
  %v5873 = vpop.permute.xlu0 %5872
  %5874 = vrot.lane.b32.xlu0 %v5732, 32
  %v5875 = vpop.permute.xlu0 %5874
  %5876 = vrot.lane.b32.xlu0 %v5733, 32
  %v5877 = vpop.permute.xlu0 %5876
  %5878 = vrot.lane.b32.xlu0 %v5734, 32
  %v5879 = vpop.permute.xlu0 %5878
  %5880 = vrot.lane.b32.xlu0 %v5735, 32
  %v5881 = vpop.permute.xlu0 %5880
  %5882 = vrot.lane.b32.xlu0 %v5736, 32
  %v5883 = vpop.permute.xlu0 %5882
  %5884 = vrot.lane.b32.xlu0 %v5737, 32
  %v5885 = vpop.permute.xlu0 %5884
  %5886 = vrot.lane.b32.xlu0 %v5738, 32
  %v5887 = vpop.permute.xlu0 %5886
  %5888 = vrot.lane.b32.xlu0 %v5739, 32
  %v5889 = vpop.permute.xlu0 %5888
  %5890 = vrot.lane.b32.xlu0 %v5740, 32
  %v5891 = vpop.permute.xlu0 %5890
  %5892 = vrot.lane.b32.xlu0 %v5741, 32
  %v5893 = vpop.permute.xlu0 %5892
  %5894 = vrot.lane.b32.xlu0 %v5742, 32
  %v5895 = vpop.permute.xlu0 %5894
  %5896 = vrot.lane.b32.xlu0 %v5743, 32
  %v5897 = vpop.permute.xlu0 %5896
  %5898 = vrot.lane.b32.xlu0 %v5744, 32
  %v5899 = vpop.permute.xlu0 %5898
  %5900 = vrot.lane.b32.xlu0 %v5745, 32
  %v5901 = vpop.permute.xlu0 %5900
  %5902 = vrot.lane.b32.xlu0 %v5746, 32
  %v5903 = vpop.permute.xlu0 %5902
  %5904 = vrot.lane.b32.xlu0 %v5747, 32
  %v5905 = vpop.permute.xlu0 %5904
  %5906 = vrot.lane.b32.xlu0 %v5748, 32
  %v5907 = vpop.permute.xlu0 %5906
  %5908 = vrot.lane.b32.xlu0 %v5749, 32
  %v5909 = vpop.permute.xlu0 %5908
  %5910 = vrot.lane.b32.xlu0 %v5750, 32
  %v5911 = vpop.permute.xlu0 %5910
  %5912 = vrot.lane.b32.xlu0 %v5751, 32
  %v5913 = vpop.permute.xlu0 %5912
  %5914 = vrot.lane.b32.xlu0 %v5752, 32
  %v5915 = vpop.permute.xlu0 %5914
  %5916 = vrot.lane.b32.xlu0 %v5753, 32
  %v5917 = vpop.permute.xlu0 %5916
  %5918 = vrot.lane.b32.xlu0 %v5754, 32
  %v5919 = vpop.permute.xlu0 %5918
  %5920 = vrot.lane.b32.xlu0 %v5755, 32
  %v5921 = vpop.permute.xlu0 %5920
  %5922 = vrot.lane.b32.xlu0 %v5756, 32
  %v5923 = vpop.permute.xlu0 %5922
  %5924 = vrot.lane.b32.xlu0 %v5757, 32
  %v5925 = vpop.permute.xlu0 %5924
  %5926 = vrot.lane.b32.xlu0 %v5758, 32
  %v5927 = vpop.permute.xlu0 %5926
  %5928 = vrot.lane.b32.xlu0 %v5759, 32
  %v5929 = vpop.permute.xlu0 %5928
  %5930 = vrot.lane.b32.xlu0 %v5760, 32
  %v5931 = vpop.permute.xlu0 %5930
  %5932 = vrot.lane.b32.xlu0 %v5761, 32
  %v5933 = vpop.permute.xlu0 %5932
  %5934 = vrot.lane.b32.xlu0 %v5762, 32
  %v5935 = vpop.permute.xlu0 %5934
  %5936 = vrot.lane.b32.xlu0 %v5763, 32
  %v5937 = vpop.permute.xlu0 %5936
  %5938 = vrot.lane.b32.xlu0 %v5764, 32
  %v5939 = vpop.permute.xlu0 %5938
  %5940 = vrot.lane.b32.xlu0 %v5765, 32
  %v5941 = vpop.permute.xlu0 %5940
  %5942 = vrot.lane.b32.xlu0 %v5766, 32
  %v5943 = vpop.permute.xlu0 %5942
  %5944 = vrot.lane.b32.xlu0 %v5767, 32
  %v5945 = vpop.permute.xlu0 %5944
  %5946 = vrot.lane.b32.xlu0 %v5768, 32
  %v5947 = vpop.permute.xlu0 %5946
  %5948 = vrot.lane.b32.xlu0 %v5769, 32
  %v5949 = vpop.permute.xlu0 %5948
  %5950 = vrot.lane.b32.xlu0 %v5770, 32
  %v5951 = vpop.permute.xlu0 %5950
  %5952 = vrot.lane.b32.xlu0 %v5771, 32
  %v5953 = vpop.permute.xlu0 %5952
  %5954 = vrot.lane.b32.xlu0 %v5772, 32
  %v5955 = vpop.permute.xlu0 %5954
  %5956 = vrot.lane.b32.xlu0 %v5773, 32
  %v5957 = vpop.permute.xlu0 %5956
  %5958 = vrot.lane.b32.xlu0 %v5774, 32
  %v5959 = vpop.permute.xlu0 %5958
  %5960 = vrot.lane.b32.xlu0 %v5775, 32
  %v5961 = vpop.permute.xlu0 %5960
  %5962 = vrot.lane.b32.xlu0 %v5776, 32
  %v5963 = vpop.permute.xlu0 %5962
  %5964 = vrot.lane.b32.xlu0 %v5777, 32
  %v5965 = vpop.permute.xlu0 %5964
  %5966 = vrot.lane.b32.xlu0 %v5778, 32
  %v5967 = vpop.permute.xlu0 %5966
  %5968 = vrot.lane.b32.xlu0 %v5779, 32
  %v5969 = vpop.permute.xlu0 %5968
  %5970 = vrot.lane.b32.xlu0 %v5780, 32
  %v5971 = vpop.permute.xlu0 %5970
  %5972 = vrot.lane.b32.xlu0 %v5781, 32
  %v5973 = vpop.permute.xlu0 %5972
  %vm6038 = vcmask 326912
  %6039 = vst.msk [vmem:[#allocation4] sm:$0xff] %vm6038, %v5847
  %6040 = vst.msk [vmem:[#allocation4 + $0x8] sm:$0xff] %vm6038, %v5849
  %6041 = vst.msk [vmem:[#allocation4 + $0x10] sm:$0xff] %vm6038, %v5851
  %6042 = vst.msk [vmem:[#allocation4 + $0x18] sm:$0xff] %vm6038, %v5853
  %6043 = vst.msk [vmem:[#allocation4 + $0x20] sm:$0xff] %vm6038, %v5855
  %6044 = vst.msk [vmem:[#allocation4 + $0x28] sm:$0xff] %vm6038, %v5857
  %6045 = vst.msk [vmem:[#allocation4 + $0x30] sm:$0xff] %vm6038, %v5859
  %6046 = vst.msk [vmem:[#allocation4 + $0x38] sm:$0xff] %vm6038, %v5861
  %6047 = vst.msk [vmem:[#allocation4 + $0x40] sm:$0xff] %vm6038, %v5863
  %6048 = vst.msk [vmem:[#allocation4 + $0x48] sm:$0xff] %vm6038, %v5865
  %6049 = vst.msk [vmem:[#allocation4 + $0x50] sm:$0xff] %vm6038, %v5867
  %6050 = vst.msk [vmem:[#allocation4 + $0x58] sm:$0xff] %vm6038, %v5869
  %6051 = vst.msk [vmem:[#allocation4 + $0x60] sm:$0xff] %vm6038, %v5871
  %6052 = vst.msk [vmem:[#allocation4 + $0x68] sm:$0xff] %vm6038, %v5873
  %6053 = vst.msk [vmem:[#allocation4 + $0x70] sm:$0xff] %vm6038, %v5875
  %6054 = vst.msk [vmem:[#allocation4 + $0x78] sm:$0xff] %vm6038, %v5877
  %6055 = vst.msk [vmem:[#allocation4 + $0x80] sm:$0xff] %vm6038, %v5879
  %6056 = vst.msk [vmem:[#allocation4 + $0x88] sm:$0xff] %vm6038, %v5881
  %6057 = vst.msk [vmem:[#allocation4 + $0x90] sm:$0xff] %vm6038, %v5883
  %6058 = vst.msk [vmem:[#allocation4 + $0x98] sm:$0xff] %vm6038, %v5885
  %6059 = vst.msk [vmem:[#allocation4 + $0xa0] sm:$0xff] %vm6038, %v5887
  %6060 = vst.msk [vmem:[#allocation4 + $0xa8] sm:$0xff] %vm6038, %v5889
  %6061 = vst.msk [vmem:[#allocation4 + $0xb0] sm:$0xff] %vm6038, %v5891
  %6062 = vst.msk [vmem:[#allocation4 + $0xb8] sm:$0xff] %vm6038, %v5893
  %6063 = vst.msk [vmem:[#allocation4 + $0xc0] sm:$0xff] %vm6038, %v5895
  %6064 = vst.msk [vmem:[#allocation4 + $0xc8] sm:$0xff] %vm6038, %v5897
  %6065 = vst.msk [vmem:[#allocation4 + $0xd0] sm:$0xff] %vm6038, %v5899
  %6066 = vst.msk [vmem:[#allocation4 + $0xd8] sm:$0xff] %vm6038, %v5901
  %6067 = vst.msk [vmem:[#allocation4 + $0xe0] sm:$0xff] %vm6038, %v5903
  %6068 = vst.msk [vmem:[#allocation4 + $0xe8] sm:$0xff] %vm6038, %v5905
  %6069 = vst.msk [vmem:[#allocation4 + $0xf0] sm:$0xff] %vm6038, %v5907
  %6070 = vst.msk [vmem:[#allocation4 + $0xf8] sm:$0xff] %vm6038, %v5909
  %6071 = vst.msk [vmem:[#allocation4 + $0x100] sm:$0xff] %vm6038, %v5911
  %6072 = vst.msk [vmem:[#allocation4 + $0x108] sm:$0xff] %vm6038, %v5913
  %6073 = vst.msk [vmem:[#allocation4 + $0x110] sm:$0xff] %vm6038, %v5915
  %6074 = vst.msk [vmem:[#allocation4 + $0x118] sm:$0xff] %vm6038, %v5917
  %6075 = vst.msk [vmem:[#allocation4 + $0x120] sm:$0xff] %vm6038, %v5919
  %6076 = vst.msk [vmem:[#allocation4 + $0x128] sm:$0xff] %vm6038, %v5921
  %6077 = vst.msk [vmem:[#allocation4 + $0x130] sm:$0xff] %vm6038, %v5923
  %6078 = vst.msk [vmem:[#allocation4 + $0x138] sm:$0xff] %vm6038, %v5925
  %6079 = vst.msk [vmem:[#allocation4 + $0x140] sm:$0xff] %vm6038, %v5927
  %6080 = vst.msk [vmem:[#allocation4 + $0x148] sm:$0xff] %vm6038, %v5929
  %6081 = vst.msk [vmem:[#allocation4 + $0x150] sm:$0xff] %vm6038, %v5931
  %6082 = vst.msk [vmem:[#allocation4 + $0x158] sm:$0xff] %vm6038, %v5933
  %6083 = vst.msk [vmem:[#allocation4 + $0x160] sm:$0xff] %vm6038, %v5935
  %6084 = vst.msk [vmem:[#allocation4 + $0x168] sm:$0xff] %vm6038, %v5937
  %6085 = vst.msk [vmem:[#allocation4 + $0x170] sm:$0xff] %vm6038, %v5939
  %6086 = vst.msk [vmem:[#allocation4 + $0x178] sm:$0xff] %vm6038, %v5941
  %6087 = vst.msk [vmem:[#allocation4 + $0x180] sm:$0xff] %vm6038, %v5943
  %6088 = vst.msk [vmem:[#allocation4 + $0x188] sm:$0xff] %vm6038, %v5945
  %6089 = vst.msk [vmem:[#allocation4 + $0x190] sm:$0xff] %vm6038, %v5947
  %6090 = vst.msk [vmem:[#allocation4 + $0x198] sm:$0xff] %vm6038, %v5949
  %6091 = vst.msk [vmem:[#allocation4 + $0x1a0] sm:$0xff] %vm6038, %v5951
  %6092 = vst.msk [vmem:[#allocation4 + $0x1a8] sm:$0xff] %vm6038, %v5953
  %6093 = vst.msk [vmem:[#allocation4 + $0x1b0] sm:$0xff] %vm6038, %v5955
  %6094 = vst.msk [vmem:[#allocation4 + $0x1b8] sm:$0xff] %vm6038, %v5957
  %6095 = vst.msk [vmem:[#allocation4 + $0x1c0] sm:$0xff] %vm6038, %v5959
  %6096 = vst.msk [vmem:[#allocation4 + $0x1c8] sm:$0xff] %vm6038, %v5961
  %6097 = vst.msk [vmem:[#allocation4 + $0x1d0] sm:$0xff] %vm6038, %v5963
  %6098 = vst.msk [vmem:[#allocation4 + $0x1d8] sm:$0xff] %vm6038, %v5965
  %6099 = vst.msk [vmem:[#allocation4 + $0x1e0] sm:$0xff] %vm6038, %v5967
  %6100 = vst.msk [vmem:[#allocation4 + $0x1e8] sm:$0xff] %vm6038, %v5969
  %6101 = vst.msk [vmem:[#allocation4 + $0x1f0] sm:$0xff] %vm6038, %v5971
  %6102 = vst.msk [vmem:[#allocation4 + $0x1f8] sm:$0xff] %vm6038, %v5973
  %v6103 = vld [vmem:[#allocation3 + $0x1] sm:$0xff]
  %v6104 = vld [vmem:[#allocation3 + $0x9] sm:$0x7f]
  %v6105 = vld [vmem:[#allocation3 + $0x11] sm:$0xff]
  %v6106 = vld [vmem:[#allocation3 + $0x19] sm:$0x7f]
  %v6107 = vld [vmem:[#allocation3 + $0x21] sm:$0xff]
  %v6108 = vld [vmem:[#allocation3 + $0x29] sm:$0x7f]
  %v6109 = vld [vmem:[#allocation3 + $0x31] sm:$0xff]
  %v6110 = vld [vmem:[#allocation3 + $0x39] sm:$0x7f]
  %v6111 = vld [vmem:[#allocation3 + $0x41] sm:$0xff]
  %v6112 = vld [vmem:[#allocation3 + $0x49] sm:$0x7f]
  %v6113 = vld [vmem:[#allocation3 + $0x51] sm:$0xff]
  %v6114 = vld [vmem:[#allocation3 + $0x59] sm:$0x7f]
  %v6115 = vld [vmem:[#allocation3 + $0x61] sm:$0xff]
  %v6116 = vld [vmem:[#allocation3 + $0x69] sm:$0x7f]
  %v6117 = vld [vmem:[#allocation3 + $0x71] sm:$0xff]
  %v6118 = vld [vmem:[#allocation3 + $0x79] sm:$0x7f]
  %v6119 = vld [vmem:[#allocation3 + $0x81] sm:$0xff]
  %v6120 = vld [vmem:[#allocation3 + $0x89] sm:$0x7f]
  %v6121 = vld [vmem:[#allocation3 + $0x91] sm:$0xff]
  %v6122 = vld [vmem:[#allocation3 + $0x99] sm:$0x7f]
  %v6123 = vld [vmem:[#allocation3 + $0xa1] sm:$0xff]
  %v6124 = vld [vmem:[#allocation3 + $0xa9] sm:$0x7f]
  %v6125 = vld [vmem:[#allocation3 + $0xb1] sm:$0xff]
  %v6126 = vld [vmem:[#allocation3 + $0xb9] sm:$0x7f]
  %v6127 = vld [vmem:[#allocation3 + $0xc1] sm:$0xff]
  %v6128 = vld [vmem:[#allocation3 + $0xc9] sm:$0x7f]
  %v6129 = vld [vmem:[#allocation3 + $0xd1] sm:$0xff]
  %v6130 = vld [vmem:[#allocation3 + $0xd9] sm:$0x7f]
  %v6131 = vld [vmem:[#allocation3 + $0xe1] sm:$0xff]
  %v6132 = vld [vmem:[#allocation3 + $0xe9] sm:$0x7f]
  %v6133 = vld [vmem:[#allocation3 + $0xf1] sm:$0xff]
  %v6134 = vld [vmem:[#allocation3 + $0xf9] sm:$0x7f]
  %v6135 = vld [vmem:[#allocation3 + $0x101] sm:$0xff]
  %v6136 = vld [vmem:[#allocation3 + $0x109] sm:$0x7f]
  %v6137 = vld [vmem:[#allocation3 + $0x111] sm:$0xff]
  %v6138 = vld [vmem:[#allocation3 + $0x119] sm:$0x7f]
  %v6139 = vld [vmem:[#allocation3 + $0x121] sm:$0xff]
  %v6140 = vld [vmem:[#allocation3 + $0x129] sm:$0x7f]
  %v6141 = vld [vmem:[#allocation3 + $0x131] sm:$0xff]
  %v6142 = vld [vmem:[#allocation3 + $0x139] sm:$0x7f]
  %v6143 = vld [vmem:[#allocation3 + $0x141] sm:$0xff]
  %v6144 = vld [vmem:[#allocation3 + $0x149] sm:$0x7f]
  %v6145 = vld [vmem:[#allocation3 + $0x151] sm:$0xff]
  %v6146 = vld [vmem:[#allocation3 + $0x159] sm:$0x7f]
  %v6147 = vld [vmem:[#allocation3 + $0x161] sm:$0xff]
  %v6148 = vld [vmem:[#allocation3 + $0x169] sm:$0x7f]
  %v6149 = vld [vmem:[#allocation3 + $0x171] sm:$0xff]
  %v6150 = vld [vmem:[#allocation3 + $0x179] sm:$0x7f]
  %v6151 = vld [vmem:[#allocation3 + $0x181] sm:$0xff]
  %v6152 = vld [vmem:[#allocation3 + $0x189] sm:$0x7f]
  %v6153 = vld [vmem:[#allocation3 + $0x191] sm:$0xff]
  %v6154 = vld [vmem:[#allocation3 + $0x199] sm:$0x7f]
  %v6155 = vld [vmem:[#allocation3 + $0x1a1] sm:$0xff]
  %v6156 = vld [vmem:[#allocation3 + $0x1a9] sm:$0x7f]
  %v6157 = vld [vmem:[#allocation3 + $0x1b1] sm:$0xff]
  %v6158 = vld [vmem:[#allocation3 + $0x1b9] sm:$0x7f]
  %v6159 = vld [vmem:[#allocation3 + $0x1c1] sm:$0xff]
  %v6160 = vld [vmem:[#allocation3 + $0x1c9] sm:$0x7f]
  %v6161 = vld [vmem:[#allocation3 + $0x1d1] sm:$0xff]
  %v6162 = vld [vmem:[#allocation3 + $0x1d9] sm:$0x7f]
  %v6163 = vld [vmem:[#allocation3 + $0x1e1] sm:$0xff]
  %v6164 = vld [vmem:[#allocation3 + $0x1e9] sm:$0x7f]
  %v6165 = vld [vmem:[#allocation3 + $0x1f1] sm:$0xff]
  %v6166 = vld [vmem:[#allocation3 + $0x1f9] sm:$0x7f]
  %6231 = vrot.lane.b32.xlu0 %v6103, 40
  %v6232 = vpop.permute.xlu0 %6231
  %6233 = vrot.lane.b32.xlu0 %v6104, 40
  %v6234 = vpop.permute.xlu0 %6233
  %6235 = vrot.lane.b32.xlu0 %v6105, 40
  %v6236 = vpop.permute.xlu0 %6235
  %6237 = vrot.lane.b32.xlu0 %v6106, 40
  %v6238 = vpop.permute.xlu0 %6237
  %6239 = vrot.lane.b32.xlu0 %v6107, 40
  %v6240 = vpop.permute.xlu0 %6239
  %6241 = vrot.lane.b32.xlu0 %v6108, 40
  %v6242 = vpop.permute.xlu0 %6241
  %6243 = vrot.lane.b32.xlu0 %v6109, 40
  %v6244 = vpop.permute.xlu0 %6243
  %6245 = vrot.lane.b32.xlu0 %v6110, 40
  %v6246 = vpop.permute.xlu0 %6245
  %6247 = vrot.lane.b32.xlu0 %v6111, 40
  %v6248 = vpop.permute.xlu0 %6247
  %6249 = vrot.lane.b32.xlu0 %v6112, 40
  %v6250 = vpop.permute.xlu0 %6249
  %6251 = vrot.lane.b32.xlu0 %v6113, 40
  %v6252 = vpop.permute.xlu0 %6251
  %6253 = vrot.lane.b32.xlu0 %v6114, 40
  %v6254 = vpop.permute.xlu0 %6253
  %6255 = vrot.lane.b32.xlu0 %v6115, 40
  %v6256 = vpop.permute.xlu0 %6255
  %6257 = vrot.lane.b32.xlu0 %v6116, 40
  %v6258 = vpop.permute.xlu0 %6257
  %6259 = vrot.lane.b32.xlu0 %v6117, 40
  %v6260 = vpop.permute.xlu0 %6259
  %6261 = vrot.lane.b32.xlu0 %v6118, 40
  %v6262 = vpop.permute.xlu0 %6261
  %6263 = vrot.lane.b32.xlu0 %v6119, 40
  %v6264 = vpop.permute.xlu0 %6263
  %6265 = vrot.lane.b32.xlu0 %v6120, 40
  %v6266 = vpop.permute.xlu0 %6265
  %6267 = vrot.lane.b32.xlu0 %v6121, 40
  %v6268 = vpop.permute.xlu0 %6267
  %6269 = vrot.lane.b32.xlu0 %v6122, 40
  %v6270 = vpop.permute.xlu0 %6269
  %6271 = vrot.lane.b32.xlu0 %v6123, 40
  %v6272 = vpop.permute.xlu0 %6271
  %6273 = vrot.lane.b32.xlu0 %v6124, 40
  %v6274 = vpop.permute.xlu0 %6273
  %6275 = vrot.lane.b32.xlu0 %v6125, 40
  %v6276 = vpop.permute.xlu0 %6275
  %6277 = vrot.lane.b32.xlu0 %v6126, 40
  %v6278 = vpop.permute.xlu0 %6277
  %6279 = vrot.lane.b32.xlu0 %v6127, 40
  %v6280 = vpop.permute.xlu0 %6279
  %6281 = vrot.lane.b32.xlu0 %v6128, 40
  %v6282 = vpop.permute.xlu0 %6281
  %6283 = vrot.lane.b32.xlu0 %v6129, 40
  %v6284 = vpop.permute.xlu0 %6283
  %6285 = vrot.lane.b32.xlu0 %v6130, 40
  %v6286 = vpop.permute.xlu0 %6285
  %6287 = vrot.lane.b32.xlu0 %v6131, 40
  %v6288 = vpop.permute.xlu0 %6287
  %6289 = vrot.lane.b32.xlu0 %v6132, 40
  %v6290 = vpop.permute.xlu0 %6289
  %6291 = vrot.lane.b32.xlu0 %v6133, 40
  %v6292 = vpop.permute.xlu0 %6291
  %6293 = vrot.lane.b32.xlu0 %v6134, 40
  %v6294 = vpop.permute.xlu0 %6293
  %6295 = vrot.lane.b32.xlu0 %v6135, 40
  %v6296 = vpop.permute.xlu0 %6295
  %6297 = vrot.lane.b32.xlu0 %v6136, 40
  %v6298 = vpop.permute.xlu0 %6297
  %6299 = vrot.lane.b32.xlu0 %v6137, 40
  %v6300 = vpop.permute.xlu0 %6299
  %6301 = vrot.lane.b32.xlu0 %v6138, 40
  %v6302 = vpop.permute.xlu0 %6301
  %6303 = vrot.lane.b32.xlu0 %v6139, 40
  %v6304 = vpop.permute.xlu0 %6303
  %6305 = vrot.lane.b32.xlu0 %v6140, 40
  %v6306 = vpop.permute.xlu0 %6305
  %6307 = vrot.lane.b32.xlu0 %v6141, 40
  %v6308 = vpop.permute.xlu0 %6307
  %6309 = vrot.lane.b32.xlu0 %v6142, 40
  %v6310 = vpop.permute.xlu0 %6309
  %6311 = vrot.lane.b32.xlu0 %v6143, 40
  %v6312 = vpop.permute.xlu0 %6311
  %6313 = vrot.lane.b32.xlu0 %v6144, 40
  %v6314 = vpop.permute.xlu0 %6313
  %6315 = vrot.lane.b32.xlu0 %v6145, 40
  %v6316 = vpop.permute.xlu0 %6315
  %6317 = vrot.lane.b32.xlu0 %v6146, 40
  %v6318 = vpop.permute.xlu0 %6317
  %6319 = vrot.lane.b32.xlu0 %v6147, 40
  %v6320 = vpop.permute.xlu0 %6319
  %6321 = vrot.lane.b32.xlu0 %v6148, 40
  %v6322 = vpop.permute.xlu0 %6321
  %6323 = vrot.lane.b32.xlu0 %v6149, 40
  %v6324 = vpop.permute.xlu0 %6323
  %6325 = vrot.lane.b32.xlu0 %v6150, 40
  %v6326 = vpop.permute.xlu0 %6325
  %6327 = vrot.lane.b32.xlu0 %v6151, 40
  %v6328 = vpop.permute.xlu0 %6327
  %6329 = vrot.lane.b32.xlu0 %v6152, 40
  %v6330 = vpop.permute.xlu0 %6329
  %6331 = vrot.lane.b32.xlu0 %v6153, 40
  %v6332 = vpop.permute.xlu0 %6331
  %6333 = vrot.lane.b32.xlu0 %v6154, 40
  %v6334 = vpop.permute.xlu0 %6333
  %6335 = vrot.lane.b32.xlu0 %v6155, 40
  %v6336 = vpop.permute.xlu0 %6335
  %6337 = vrot.lane.b32.xlu0 %v6156, 40
  %v6338 = vpop.permute.xlu0 %6337
  %6339 = vrot.lane.b32.xlu0 %v6157, 40
  %v6340 = vpop.permute.xlu0 %6339
  %6341 = vrot.lane.b32.xlu0 %v6158, 40
  %v6342 = vpop.permute.xlu0 %6341
  %6343 = vrot.lane.b32.xlu0 %v6159, 40
  %v6344 = vpop.permute.xlu0 %6343
  %6345 = vrot.lane.b32.xlu0 %v6160, 40
  %v6346 = vpop.permute.xlu0 %6345
  %6347 = vrot.lane.b32.xlu0 %v6161, 40
  %v6348 = vpop.permute.xlu0 %6347
  %6349 = vrot.lane.b32.xlu0 %v6162, 40
  %v6350 = vpop.permute.xlu0 %6349
  %6351 = vrot.lane.b32.xlu0 %v6163, 40
  %v6352 = vpop.permute.xlu0 %6351
  %6353 = vrot.lane.b32.xlu0 %v6164, 40
  %v6354 = vpop.permute.xlu0 %6353
  %6355 = vrot.lane.b32.xlu0 %v6165, 40
  %v6356 = vpop.permute.xlu0 %6355
  %6357 = vrot.lane.b32.xlu0 %v6166, 40
  %v6358 = vpop.permute.xlu0 %6357
  %vm6423 = vcmask 392512
  %6424 = vst.msk [vmem:[#allocation4] sm:$0xff] %vm6423, %v6232
  %vm6425 = vcmask 391488
  %6426 = vst.msk [vmem:[#allocation4 + $0x8] sm:$0x7f] %vm6425, %v6234
  %6427 = vst.msk [vmem:[#allocation4 + $0x10] sm:$0xff] %vm6423, %v6236
  %6428 = vst.msk [vmem:[#allocation4 + $0x18] sm:$0x7f] %vm6425, %v6238
  %6429 = vst.msk [vmem:[#allocation4 + $0x20] sm:$0xff] %vm6423, %v6240
  %6430 = vst.msk [vmem:[#allocation4 + $0x28] sm:$0x7f] %vm6425, %v6242
  %6431 = vst.msk [vmem:[#allocation4 + $0x30] sm:$0xff] %vm6423, %v6244
  %6432 = vst.msk [vmem:[#allocation4 + $0x38] sm:$0x7f] %vm6425, %v6246
  %6433 = vst.msk [vmem:[#allocation4 + $0x40] sm:$0xff] %vm6423, %v6248
  %6434 = vst.msk [vmem:[#allocation4 + $0x48] sm:$0x7f] %vm6425, %v6250
  %6435 = vst.msk [vmem:[#allocation4 + $0x50] sm:$0xff] %vm6423, %v6252
  %6436 = vst.msk [vmem:[#allocation4 + $0x58] sm:$0x7f] %vm6425, %v6254
  %6437 = vst.msk [vmem:[#allocation4 + $0x60] sm:$0xff] %vm6423, %v6256
  %6438 = vst.msk [vmem:[#allocation4 + $0x68] sm:$0x7f] %vm6425, %v6258
  %6439 = vst.msk [vmem:[#allocation4 + $0x70] sm:$0xff] %vm6423, %v6260
  %6440 = vst.msk [vmem:[#allocation4 + $0x78] sm:$0x7f] %vm6425, %v6262
  %6441 = vst.msk [vmem:[#allocation4 + $0x80] sm:$0xff] %vm6423, %v6264
  %6442 = vst.msk [vmem:[#allocation4 + $0x88] sm:$0x7f] %vm6425, %v6266
  %6443 = vst.msk [vmem:[#allocation4 + $0x90] sm:$0xff] %vm6423, %v6268
  %6444 = vst.msk [vmem:[#allocation4 + $0x98] sm:$0x7f] %vm6425, %v6270
  %6445 = vst.msk [vmem:[#allocation4 + $0xa0] sm:$0xff] %vm6423, %v6272
  %6446 = vst.msk [vmem:[#allocation4 + $0xa8] sm:$0x7f] %vm6425, %v6274
  %6447 = vst.msk [vmem:[#allocation4 + $0xb0] sm:$0xff] %vm6423, %v6276
  %6448 = vst.msk [vmem:[#allocation4 + $0xb8] sm:$0x7f] %vm6425, %v6278
  %6449 = vst.msk [vmem:[#allocation4 + $0xc0] sm:$0xff] %vm6423, %v6280
  %6450 = vst.msk [vmem:[#allocation4 + $0xc8] sm:$0x7f] %vm6425, %v6282
  %6451 = vst.msk [vmem:[#allocation4 + $0xd0] sm:$0xff] %vm6423, %v6284
  %6452 = vst.msk [vmem:[#allocation4 + $0xd8] sm:$0x7f] %vm6425, %v6286
  %6453 = vst.msk [vmem:[#allocation4 + $0xe0] sm:$0xff] %vm6423, %v6288
  %6454 = vst.msk [vmem:[#allocation4 + $0xe8] sm:$0x7f] %vm6425, %v6290
  %6455 = vst.msk [vmem:[#allocation4 + $0xf0] sm:$0xff] %vm6423, %v6292
  %6456 = vst.msk [vmem:[#allocation4 + $0xf8] sm:$0x7f] %vm6425, %v6294
  %6457 = vst.msk [vmem:[#allocation4 + $0x100] sm:$0xff] %vm6423, %v6296
  %6458 = vst.msk [vmem:[#allocation4 + $0x108] sm:$0x7f] %vm6425, %v6298
  %6459 = vst.msk [vmem:[#allocation4 + $0x110] sm:$0xff] %vm6423, %v6300
  %6460 = vst.msk [vmem:[#allocation4 + $0x118] sm:$0x7f] %vm6425, %v6302
  %6461 = vst.msk [vmem:[#allocation4 + $0x120] sm:$0xff] %vm6423, %v6304
  %6462 = vst.msk [vmem:[#allocation4 + $0x128] sm:$0x7f] %vm6425, %v6306
  %6463 = vst.msk [vmem:[#allocation4 + $0x130] sm:$0xff] %vm6423, %v6308
  %6464 = vst.msk [vmem:[#allocation4 + $0x138] sm:$0x7f] %vm6425, %v6310
  %6465 = vst.msk [vmem:[#allocation4 + $0x140] sm:$0xff] %vm6423, %v6312
  %6466 = vst.msk [vmem:[#allocation4 + $0x148] sm:$0x7f] %vm6425, %v6314
  %6467 = vst.msk [vmem:[#allocation4 + $0x150] sm:$0xff] %vm6423, %v6316
  %6468 = vst.msk [vmem:[#allocation4 + $0x158] sm:$0x7f] %vm6425, %v6318
  %6469 = vst.msk [vmem:[#allocation4 + $0x160] sm:$0xff] %vm6423, %v6320
  %6470 = vst.msk [vmem:[#allocation4 + $0x168] sm:$0x7f] %vm6425, %v6322
  %6471 = vst.msk [vmem:[#allocation4 + $0x170] sm:$0xff] %vm6423, %v6324
  %6472 = vst.msk [vmem:[#allocation4 + $0x178] sm:$0x7f] %vm6425, %v6326
  %6473 = vst.msk [vmem:[#allocation4 + $0x180] sm:$0xff] %vm6423, %v6328
  %6474 = vst.msk [vmem:[#allocation4 + $0x188] sm:$0x7f] %vm6425, %v6330
  %6475 = vst.msk [vmem:[#allocation4 + $0x190] sm:$0xff] %vm6423, %v6332
  %6476 = vst.msk [vmem:[#allocation4 + $0x198] sm:$0x7f] %vm6425, %v6334
  %6477 = vst.msk [vmem:[#allocation4 + $0x1a0] sm:$0xff] %vm6423, %v6336
  %6478 = vst.msk [vmem:[#allocation4 + $0x1a8] sm:$0x7f] %vm6425, %v6338
  %6479 = vst.msk [vmem:[#allocation4 + $0x1b0] sm:$0xff] %vm6423, %v6340
  %6480 = vst.msk [vmem:[#allocation4 + $0x1b8] sm:$0x7f] %vm6425, %v6342
  %6481 = vst.msk [vmem:[#allocation4 + $0x1c0] sm:$0xff] %vm6423, %v6344
  %6482 = vst.msk [vmem:[#allocation4 + $0x1c8] sm:$0x7f] %vm6425, %v6346
  %6483 = vst.msk [vmem:[#allocation4 + $0x1d0] sm:$0xff] %vm6423, %v6348
  %6484 = vst.msk [vmem:[#allocation4 + $0x1d8] sm:$0x7f] %vm6425, %v6350
  %6485 = vst.msk [vmem:[#allocation4 + $0x1e0] sm:$0xff] %vm6423, %v6352
  %6486 = vst.msk [vmem:[#allocation4 + $0x1e8] sm:$0x7f] %vm6425, %v6354
  %6487 = vst.msk [vmem:[#allocation4 + $0x1f0] sm:$0xff] %vm6423, %v6356
  %6488 = vst.msk [vmem:[#allocation4 + $0x1f8] sm:$0x7f] %vm6425, %v6358
  %s6489 = scalar_lea.vmem [#allocation3], 16
  %v6490 = vld [vmem:[%s6489] sm:$0xff]
  %v6491 = vld [vmem:[%s6489 + $0x8] sm:$0x7f]
  %v6492 = vld [vmem:[%s6489 + $0x10] sm:$0xff]
  %v6493 = vld [vmem:[%s6489 + $0x18] sm:$0x7f]
  %v6494 = vld [vmem:[%s6489 + $0x20] sm:$0xff]
  %v6495 = vld [vmem:[%s6489 + $0x28] sm:$0x7f]
  %v6496 = vld [vmem:[%s6489 + $0x30] sm:$0xff]
  %v6497 = vld [vmem:[%s6489 + $0x38] sm:$0x7f]
  %v6498 = vld [vmem:[%s6489 + $0x40] sm:$0xff]
  %v6499 = vld [vmem:[%s6489 + $0x48] sm:$0x7f]
  %v6500 = vld [vmem:[%s6489 + $0x50] sm:$0xff]
  %v6501 = vld [vmem:[%s6489 + $0x58] sm:$0x7f]
  %v6502 = vld [vmem:[%s6489 + $0x60] sm:$0xff]
  %v6503 = vld [vmem:[%s6489 + $0x68] sm:$0x7f]
  %v6504 = vld [vmem:[%s6489 + $0x70] sm:$0xff]
  %v6505 = vld [vmem:[%s6489 + $0x78] sm:$0x7f]
  %v6506 = vld [vmem:[%s6489 + $0x80] sm:$0xff]
  %v6507 = vld [vmem:[%s6489 + $0x88] sm:$0x7f]
  %v6508 = vld [vmem:[%s6489 + $0x90] sm:$0xff]
  %v6509 = vld [vmem:[%s6489 + $0x98] sm:$0x7f]
  %v6510 = vld [vmem:[%s6489 + $0xa0] sm:$0xff]
  %v6511 = vld [vmem:[%s6489 + $0xa8] sm:$0x7f]
  %v6512 = vld [vmem:[%s6489 + $0xb0] sm:$0xff]
  %v6513 = vld [vmem:[%s6489 + $0xb8] sm:$0x7f]
  %v6514 = vld [vmem:[%s6489 + $0xc0] sm:$0xff]
  %v6515 = vld [vmem:[%s6489 + $0xc8] sm:$0x7f]
  %v6516 = vld [vmem:[%s6489 + $0xd0] sm:$0xff]
  %v6517 = vld [vmem:[%s6489 + $0xd8] sm:$0x7f]
  %v6518 = vld [vmem:[%s6489 + $0xe0] sm:$0xff]
  %v6519 = vld [vmem:[%s6489 + $0xe8] sm:$0x7f]
  %v6520 = vld [vmem:[%s6489 + $0x100] sm:$0xff]
  %v6521 = vld [vmem:[%s6489 + $0x108] sm:$0x7f]
  %v6522 = vld [vmem:[%s6489 + $0x110] sm:$0xff]
  %v6523 = vld [vmem:[%s6489 + $0x118] sm:$0x7f]
  %v6524 = vld [vmem:[%s6489 + $0x120] sm:$0xff]
  %v6525 = vld [vmem:[%s6489 + $0x128] sm:$0x7f]
  %v6526 = vld [vmem:[%s6489 + $0x130] sm:$0xff]
  %v6527 = vld [vmem:[%s6489 + $0x138] sm:$0x7f]
  %v6528 = vld [vmem:[%s6489 + $0x140] sm:$0xff]
  %v6529 = vld [vmem:[%s6489 + $0x148] sm:$0x7f]
  %v6530 = vld [vmem:[%s6489 + $0x150] sm:$0xff]
  %v6531 = vld [vmem:[%s6489 + $0x158] sm:$0x7f]
  %v6532 = vld [vmem:[%s6489 + $0x160] sm:$0xff]
  %v6533 = vld [vmem:[%s6489 + $0x168] sm:$0x7f]
  %v6534 = vld [vmem:[%s6489 + $0x170] sm:$0xff]
  %v6535 = vld [vmem:[%s6489 + $0x178] sm:$0x7f]
  %v6536 = vld [vmem:[%s6489 + $0x180] sm:$0xff]
  %v6537 = vld [vmem:[%s6489 + $0x188] sm:$0x7f]
  %v6538 = vld [vmem:[%s6489 + $0x190] sm:$0xff]
  %v6539 = vld [vmem:[%s6489 + $0x198] sm:$0x7f]
  %v6540 = vld [vmem:[%s6489 + $0x1a0] sm:$0xff]
  %v6541 = vld [vmem:[%s6489 + $0x1a8] sm:$0x7f]
  %v6542 = vld [vmem:[%s6489 + $0x1b0] sm:$0xff]
  %v6543 = vld [vmem:[%s6489 + $0x1b8] sm:$0x7f]
  %v6544 = vld [vmem:[%s6489 + $0x1c0] sm:$0xff]
  %v6545 = vld [vmem:[%s6489 + $0x1c8] sm:$0x7f]
  %v6546 = vld [vmem:[%s6489 + $0x1d0] sm:$0xff]
  %v6547 = vld [vmem:[%s6489 + $0x1d8] sm:$0x7f]
  %v6548 = vld [vmem:[%s6489 + $0x1e0] sm:$0xff]
  %v6549 = vld [vmem:[%s6489 + $0x1e8] sm:$0x7f]
  %6610 = vrot.lane.b32.xlu0 %v6490, 48
  %v6611 = vpop.permute.xlu0 %6610
  %6612 = vrot.lane.b32.xlu0 %v6491, 48
  %v6613 = vpop.permute.xlu0 %6612
  %6614 = vrot.lane.b32.xlu0 %v6492, 48
  %v6615 = vpop.permute.xlu0 %6614
  %6616 = vrot.lane.b32.xlu0 %v6493, 48
  %v6617 = vpop.permute.xlu0 %6616
  %6618 = vrot.lane.b32.xlu0 %v6494, 48
  %v6619 = vpop.permute.xlu0 %6618
  %6620 = vrot.lane.b32.xlu0 %v6495, 48
  %v6621 = vpop.permute.xlu0 %6620
  %6622 = vrot.lane.b32.xlu0 %v6496, 48
  %v6623 = vpop.permute.xlu0 %6622
  %6624 = vrot.lane.b32.xlu0 %v6497, 48
  %v6625 = vpop.permute.xlu0 %6624
  %6626 = vrot.lane.b32.xlu0 %v6498, 48
  %v6627 = vpop.permute.xlu0 %6626
  %6628 = vrot.lane.b32.xlu0 %v6499, 48
  %v6629 = vpop.permute.xlu0 %6628
  %6630 = vrot.lane.b32.xlu0 %v6500, 48
  %v6631 = vpop.permute.xlu0 %6630
  %6632 = vrot.lane.b32.xlu0 %v6501, 48
  %v6633 = vpop.permute.xlu0 %6632
  %6634 = vrot.lane.b32.xlu0 %v6502, 48
  %v6635 = vpop.permute.xlu0 %6634
  %6636 = vrot.lane.b32.xlu0 %v6503, 48
  %v6637 = vpop.permute.xlu0 %6636
  %6638 = vrot.lane.b32.xlu0 %v6504, 48
  %v6639 = vpop.permute.xlu0 %6638
  %6640 = vrot.lane.b32.xlu0 %v6505, 48
  %v6641 = vpop.permute.xlu0 %6640
  %6642 = vrot.lane.b32.xlu0 %v6506, 48
  %v6643 = vpop.permute.xlu0 %6642
  %6644 = vrot.lane.b32.xlu0 %v6507, 48
  %v6645 = vpop.permute.xlu0 %6644
  %6646 = vrot.lane.b32.xlu0 %v6508, 48
  %v6647 = vpop.permute.xlu0 %6646
  %6648 = vrot.lane.b32.xlu0 %v6509, 48
  %v6649 = vpop.permute.xlu0 %6648
  %6650 = vrot.lane.b32.xlu0 %v6510, 48
  %v6651 = vpop.permute.xlu0 %6650
  %6652 = vrot.lane.b32.xlu0 %v6511, 48
  %v6653 = vpop.permute.xlu0 %6652
  %6654 = vrot.lane.b32.xlu0 %v6512, 48
  %v6655 = vpop.permute.xlu0 %6654
  %6656 = vrot.lane.b32.xlu0 %v6513, 48
  %v6657 = vpop.permute.xlu0 %6656
  %6658 = vrot.lane.b32.xlu0 %v6514, 48
  %v6659 = vpop.permute.xlu0 %6658
  %6660 = vrot.lane.b32.xlu0 %v6515, 48
  %v6661 = vpop.permute.xlu0 %6660
  %6662 = vrot.lane.b32.xlu0 %v6516, 48
  %v6663 = vpop.permute.xlu0 %6662
  %6664 = vrot.lane.b32.xlu0 %v6517, 48
  %v6665 = vpop.permute.xlu0 %6664
  %6666 = vrot.lane.b32.xlu0 %v6518, 48
  %v6667 = vpop.permute.xlu0 %6666
  %6668 = vrot.lane.b32.xlu0 %v6519, 48
  %v6669 = vpop.permute.xlu0 %6668
  %6670 = vrot.lane.b32.xlu0 %v6520, 48
  %v6671 = vpop.permute.xlu0 %6670
  %6672 = vrot.lane.b32.xlu0 %v6521, 48
  %v6673 = vpop.permute.xlu0 %6672
  %6674 = vrot.lane.b32.xlu0 %v6522, 48
  %v6675 = vpop.permute.xlu0 %6674
  %6676 = vrot.lane.b32.xlu0 %v6523, 48
  %v6677 = vpop.permute.xlu0 %6676
  %6678 = vrot.lane.b32.xlu0 %v6524, 48
  %v6679 = vpop.permute.xlu0 %6678
  %6680 = vrot.lane.b32.xlu0 %v6525, 48
  %v6681 = vpop.permute.xlu0 %6680
  %6682 = vrot.lane.b32.xlu0 %v6526, 48
  %v6683 = vpop.permute.xlu0 %6682
  %6684 = vrot.lane.b32.xlu0 %v6527, 48
  %v6685 = vpop.permute.xlu0 %6684
  %6686 = vrot.lane.b32.xlu0 %v6528, 48
  %v6687 = vpop.permute.xlu0 %6686
  %6688 = vrot.lane.b32.xlu0 %v6529, 48
  %v6689 = vpop.permute.xlu0 %6688
  %6690 = vrot.lane.b32.xlu0 %v6530, 48
  %v6691 = vpop.permute.xlu0 %6690
  %6692 = vrot.lane.b32.xlu0 %v6531, 48
  %v6693 = vpop.permute.xlu0 %6692
  %6694 = vrot.lane.b32.xlu0 %v6532, 48
  %v6695 = vpop.permute.xlu0 %6694
  %6696 = vrot.lane.b32.xlu0 %v6533, 48
  %v6697 = vpop.permute.xlu0 %6696
  %6698 = vrot.lane.b32.xlu0 %v6534, 48
  %v6699 = vpop.permute.xlu0 %6698
  %6700 = vrot.lane.b32.xlu0 %v6535, 48
  %v6701 = vpop.permute.xlu0 %6700
  %6702 = vrot.lane.b32.xlu0 %v6536, 48
  %v6703 = vpop.permute.xlu0 %6702
  %6704 = vrot.lane.b32.xlu0 %v6537, 48
  %v6705 = vpop.permute.xlu0 %6704
  %6706 = vrot.lane.b32.xlu0 %v6538, 48
  %v6707 = vpop.permute.xlu0 %6706
  %6708 = vrot.lane.b32.xlu0 %v6539, 48
  %v6709 = vpop.permute.xlu0 %6708
  %6710 = vrot.lane.b32.xlu0 %v6540, 48
  %v6711 = vpop.permute.xlu0 %6710
  %6712 = vrot.lane.b32.xlu0 %v6541, 48
  %v6713 = vpop.permute.xlu0 %6712
  %6714 = vrot.lane.b32.xlu0 %v6542, 48
  %v6715 = vpop.permute.xlu0 %6714
  %6716 = vrot.lane.b32.xlu0 %v6543, 48
  %v6717 = vpop.permute.xlu0 %6716
  %6718 = vrot.lane.b32.xlu0 %v6544, 48
  %v6719 = vpop.permute.xlu0 %6718
  %6720 = vrot.lane.b32.xlu0 %v6545, 48
  %v6721 = vpop.permute.xlu0 %6720
  %6722 = vrot.lane.b32.xlu0 %v6546, 48
  %v6723 = vpop.permute.xlu0 %6722
  %6724 = vrot.lane.b32.xlu0 %v6547, 48
  %v6725 = vpop.permute.xlu0 %6724
  %6726 = vrot.lane.b32.xlu0 %v6548, 48
  %v6727 = vpop.permute.xlu0 %6726
  %6728 = vrot.lane.b32.xlu0 %v6549, 48
  %v6729 = vpop.permute.xlu0 %6728
  %vm6790 = vcmask 458112
  %6791 = vst.msk [vmem:[#allocation4 + $0x1] sm:$0xff] %vm6790, %v6611
  %vm6792 = vcmask 457088
  %6793 = vst.msk [vmem:[#allocation4 + $0x9] sm:$0x7f] %vm6792, %v6613
  %6794 = vst.msk [vmem:[#allocation4 + $0x11] sm:$0xff] %vm6790, %v6615
  %6795 = vst.msk [vmem:[#allocation4 + $0x19] sm:$0x7f] %vm6792, %v6617
  %6796 = vst.msk [vmem:[#allocation4 + $0x21] sm:$0xff] %vm6790, %v6619
  %6797 = vst.msk [vmem:[#allocation4 + $0x29] sm:$0x7f] %vm6792, %v6621
  %6798 = vst.msk [vmem:[#allocation4 + $0x31] sm:$0xff] %vm6790, %v6623
  %6799 = vst.msk [vmem:[#allocation4 + $0x39] sm:$0x7f] %vm6792, %v6625
  %6800 = vst.msk [vmem:[#allocation4 + $0x41] sm:$0xff] %vm6790, %v6627
  %6801 = vst.msk [vmem:[#allocation4 + $0x49] sm:$0x7f] %vm6792, %v6629
  %6802 = vst.msk [vmem:[#allocation4 + $0x51] sm:$0xff] %vm6790, %v6631
  %6803 = vst.msk [vmem:[#allocation4 + $0x59] sm:$0x7f] %vm6792, %v6633
  %6804 = vst.msk [vmem:[#allocation4 + $0x61] sm:$0xff] %vm6790, %v6635
  %6805 = vst.msk [vmem:[#allocation4 + $0x69] sm:$0x7f] %vm6792, %v6637
  %6806 = vst.msk [vmem:[#allocation4 + $0x71] sm:$0xff] %vm6790, %v6639
  %6807 = vst.msk [vmem:[#allocation4 + $0x79] sm:$0x7f] %vm6792, %v6641
  %6808 = vst.msk [vmem:[#allocation4 + $0x81] sm:$0xff] %vm6790, %v6643
  %6809 = vst.msk [vmem:[#allocation4 + $0x89] sm:$0x7f] %vm6792, %v6645
  %6810 = vst.msk [vmem:[#allocation4 + $0x91] sm:$0xff] %vm6790, %v6647
  %6811 = vst.msk [vmem:[#allocation4 + $0x99] sm:$0x7f] %vm6792, %v6649
  %6812 = vst.msk [vmem:[#allocation4 + $0xa1] sm:$0xff] %vm6790, %v6651
  %6813 = vst.msk [vmem:[#allocation4 + $0xa9] sm:$0x7f] %vm6792, %v6653
  %6814 = vst.msk [vmem:[#allocation4 + $0xb1] sm:$0xff] %vm6790, %v6655
  %6815 = vst.msk [vmem:[#allocation4 + $0xb9] sm:$0x7f] %vm6792, %v6657
  %6816 = vst.msk [vmem:[#allocation4 + $0xc1] sm:$0xff] %vm6790, %v6659
  %6817 = vst.msk [vmem:[#allocation4 + $0xc9] sm:$0x7f] %vm6792, %v6661
  %6818 = vst.msk [vmem:[#allocation4 + $0xd1] sm:$0xff] %vm6790, %v6663
  %6819 = vst.msk [vmem:[#allocation4 + $0xd9] sm:$0x7f] %vm6792, %v6665
  %6820 = vst.msk [vmem:[#allocation4 + $0xe1] sm:$0xff] %vm6790, %v6667
  %6821 = vst.msk [vmem:[#allocation4 + $0xe9] sm:$0x7f] %vm6792, %v6669
  %6822 = vst.msk [vmem:[#allocation4 + $0x101] sm:$0xff] %vm6790, %v6671
  %6823 = vst.msk [vmem:[#allocation4 + $0x109] sm:$0x7f] %vm6792, %v6673
  %6824 = vst.msk [vmem:[#allocation4 + $0x111] sm:$0xff] %vm6790, %v6675
  %6825 = vst.msk [vmem:[#allocation4 + $0x119] sm:$0x7f] %vm6792, %v6677
  %6826 = vst.msk [vmem:[#allocation4 + $0x121] sm:$0xff] %vm6790, %v6679
  %6827 = vst.msk [vmem:[#allocation4 + $0x129] sm:$0x7f] %vm6792, %v6681
  %6828 = vst.msk [vmem:[#allocation4 + $0x131] sm:$0xff] %vm6790, %v6683
  %6829 = vst.msk [vmem:[#allocation4 + $0x139] sm:$0x7f] %vm6792, %v6685
  %6830 = vst.msk [vmem:[#allocation4 + $0x141] sm:$0xff] %vm6790, %v6687
  %6831 = vst.msk [vmem:[#allocation4 + $0x149] sm:$0x7f] %vm6792, %v6689
  %6832 = vst.msk [vmem:[#allocation4 + $0x151] sm:$0xff] %vm6790, %v6691
  %6833 = vst.msk [vmem:[#allocation4 + $0x159] sm:$0x7f] %vm6792, %v6693
  %6834 = vst.msk [vmem:[#allocation4 + $0x161] sm:$0xff] %vm6790, %v6695
  %6835 = vst.msk [vmem:[#allocation4 + $0x169] sm:$0x7f] %vm6792, %v6697
  %6836 = vst.msk [vmem:[#allocation4 + $0x171] sm:$0xff] %vm6790, %v6699
  %6837 = vst.msk [vmem:[#allocation4 + $0x179] sm:$0x7f] %vm6792, %v6701
  %6838 = vst.msk [vmem:[#allocation4 + $0x181] sm:$0xff] %vm6790, %v6703
  %6839 = vst.msk [vmem:[#allocation4 + $0x189] sm:$0x7f] %vm6792, %v6705
  %6840 = vst.msk [vmem:[#allocation4 + $0x191] sm:$0xff] %vm6790, %v6707
  %6841 = vst.msk [vmem:[#allocation4 + $0x199] sm:$0x7f] %vm6792, %v6709
  %6842 = vst.msk [vmem:[#allocation4 + $0x1a1] sm:$0xff] %vm6790, %v6711
  %6843 = vst.msk [vmem:[#allocation4 + $0x1a9] sm:$0x7f] %vm6792, %v6713
  %6844 = vst.msk [vmem:[#allocation4 + $0x1b1] sm:$0xff] %vm6790, %v6715
  %6845 = vst.msk [vmem:[#allocation4 + $0x1b9] sm:$0x7f] %vm6792, %v6717
  %6846 = vst.msk [vmem:[#allocation4 + $0x1c1] sm:$0xff] %vm6790, %v6719
  %6847 = vst.msk [vmem:[#allocation4 + $0x1c9] sm:$0x7f] %vm6792, %v6721
  %6848 = vst.msk [vmem:[#allocation4 + $0x1d1] sm:$0xff] %vm6790, %v6723
  %6849 = vst.msk [vmem:[#allocation4 + $0x1d9] sm:$0x7f] %vm6792, %v6725
  %6850 = vst.msk [vmem:[#allocation4 + $0x1e1] sm:$0xff] %vm6790, %v6727
  %6851 = vst.msk [vmem:[#allocation4 + $0x1e9] sm:$0x7f] %vm6792, %v6729
  %v6852 = vld [vmem:[%s6489] sm:$0xff]
  %v6853 = vld [vmem:[%s6489 + $0x8] sm:$0xff]
  %v6854 = vld [vmem:[%s6489 + $0x10] sm:$0xff]
  %v6855 = vld [vmem:[%s6489 + $0x18] sm:$0xff]
  %v6856 = vld [vmem:[%s6489 + $0x20] sm:$0xff]
  %v6857 = vld [vmem:[%s6489 + $0x28] sm:$0xff]
  %v6858 = vld [vmem:[%s6489 + $0x30] sm:$0xff]
  %v6859 = vld [vmem:[%s6489 + $0x38] sm:$0xff]
  %v6860 = vld [vmem:[%s6489 + $0x40] sm:$0xff]
  %v6861 = vld [vmem:[%s6489 + $0x48] sm:$0xff]
  %v6862 = vld [vmem:[%s6489 + $0x50] sm:$0xff]
  %v6863 = vld [vmem:[%s6489 + $0x58] sm:$0xff]
  %v6864 = vld [vmem:[%s6489 + $0x60] sm:$0xff]
  %v6865 = vld [vmem:[%s6489 + $0x68] sm:$0xff]
  %v6866 = vld [vmem:[%s6489 + $0x70] sm:$0xff]
  %v6867 = vld [vmem:[%s6489 + $0x78] sm:$0xff]
  %v6868 = vld [vmem:[%s6489 + $0x80] sm:$0xff]
  %v6869 = vld [vmem:[%s6489 + $0x88] sm:$0xff]
  %v6870 = vld [vmem:[%s6489 + $0x90] sm:$0xff]
  %v6871 = vld [vmem:[%s6489 + $0x98] sm:$0xff]
  %v6872 = vld [vmem:[%s6489 + $0xa0] sm:$0xff]
  %v6873 = vld [vmem:[%s6489 + $0xa8] sm:$0xff]
  %v6874 = vld [vmem:[%s6489 + $0xb0] sm:$0xff]
  %v6875 = vld [vmem:[%s6489 + $0xb8] sm:$0xff]
  %v6876 = vld [vmem:[%s6489 + $0xc0] sm:$0xff]
  %v6877 = vld [vmem:[%s6489 + $0xc8] sm:$0xff]
  %v6878 = vld [vmem:[%s6489 + $0xd0] sm:$0xff]
  %v6879 = vld [vmem:[%s6489 + $0xd8] sm:$0xff]
  %v6880 = vld [vmem:[%s6489 + $0xe0] sm:$0xff]
  %v6881 = vld [vmem:[%s6489 + $0xe8] sm:$0xff]
  %v6882 = vld [vmem:[%s6489 + $0x100] sm:$0xff]
  %v6883 = vld [vmem:[%s6489 + $0x108] sm:$0xff]
  %v6884 = vld [vmem:[%s6489 + $0x110] sm:$0xff]
  %v6885 = vld [vmem:[%s6489 + $0x118] sm:$0xff]
  %v6886 = vld [vmem:[%s6489 + $0x120] sm:$0xff]
  %v6887 = vld [vmem:[%s6489 + $0x128] sm:$0xff]
  %v6888 = vld [vmem:[%s6489 + $0x130] sm:$0xff]
  %v6889 = vld [vmem:[%s6489 + $0x138] sm:$0xff]
  %v6890 = vld [vmem:[%s6489 + $0x140] sm:$0xff]
  %v6891 = vld [vmem:[%s6489 + $0x148] sm:$0xff]
  %v6892 = vld [vmem:[%s6489 + $0x150] sm:$0xff]
  %v6893 = vld [vmem:[%s6489 + $0x158] sm:$0xff]
  %v6894 = vld [vmem:[%s6489 + $0x160] sm:$0xff]
  %v6895 = vld [vmem:[%s6489 + $0x168] sm:$0xff]
  %v6896 = vld [vmem:[%s6489 + $0x170] sm:$0xff]
  %v6897 = vld [vmem:[%s6489 + $0x178] sm:$0xff]
  %v6898 = vld [vmem:[%s6489 + $0x180] sm:$0xff]
  %v6899 = vld [vmem:[%s6489 + $0x188] sm:$0xff]
  %v6900 = vld [vmem:[%s6489 + $0x190] sm:$0xff]
  %v6901 = vld [vmem:[%s6489 + $0x198] sm:$0xff]
  %v6902 = vld [vmem:[%s6489 + $0x1a0] sm:$0xff]
  %v6903 = vld [vmem:[%s6489 + $0x1a8] sm:$0xff]
  %v6904 = vld [vmem:[%s6489 + $0x1b0] sm:$0xff]
  %v6905 = vld [vmem:[%s6489 + $0x1b8] sm:$0xff]
  %v6906 = vld [vmem:[%s6489 + $0x1c0] sm:$0xff]
  %v6907 = vld [vmem:[%s6489 + $0x1c8] sm:$0xff]
  %v6908 = vld [vmem:[%s6489 + $0x1d0] sm:$0xff]
  %v6909 = vld [vmem:[%s6489 + $0x1d8] sm:$0xff]
  %v6910 = vld [vmem:[%s6489 + $0x1e0] sm:$0xff]
  %v6911 = vld [vmem:[%s6489 + $0x1e8] sm:$0xff]
  %6972 = vrot.lane.b32.xlu0 %v6852, 56
  %v6973 = vpop.permute.xlu0 %6972
  %6974 = vrot.lane.b32.xlu0 %v6853, 56
  %v6975 = vpop.permute.xlu0 %6974
  %6976 = vrot.lane.b32.xlu0 %v6854, 56
  %v6977 = vpop.permute.xlu0 %6976
  %6978 = vrot.lane.b32.xlu0 %v6855, 56
  %v6979 = vpop.permute.xlu0 %6978
  %6980 = vrot.lane.b32.xlu0 %v6856, 56
  %v6981 = vpop.permute.xlu0 %6980
  %6982 = vrot.lane.b32.xlu0 %v6857, 56
  %v6983 = vpop.permute.xlu0 %6982
  %6984 = vrot.lane.b32.xlu0 %v6858, 56
  %v6985 = vpop.permute.xlu0 %6984
  %6986 = vrot.lane.b32.xlu0 %v6859, 56
  %v6987 = vpop.permute.xlu0 %6986
  %6988 = vrot.lane.b32.xlu0 %v6860, 56
  %v6989 = vpop.permute.xlu0 %6988
  %6990 = vrot.lane.b32.xlu0 %v6861, 56
  %v6991 = vpop.permute.xlu0 %6990
  %6992 = vrot.lane.b32.xlu0 %v6862, 56
  %v6993 = vpop.permute.xlu0 %6992
  %6994 = vrot.lane.b32.xlu0 %v6863, 56
  %v6995 = vpop.permute.xlu0 %6994
  %6996 = vrot.lane.b32.xlu0 %v6864, 56
  %v6997 = vpop.permute.xlu0 %6996
  %6998 = vrot.lane.b32.xlu0 %v6865, 56
  %v6999 = vpop.permute.xlu0 %6998
  %7000 = vrot.lane.b32.xlu0 %v6866, 56
  %v7001 = vpop.permute.xlu0 %7000
  %7002 = vrot.lane.b32.xlu0 %v6867, 56
  %v7003 = vpop.permute.xlu0 %7002
  %7004 = vrot.lane.b32.xlu0 %v6868, 56
  %v7005 = vpop.permute.xlu0 %7004
  %7006 = vrot.lane.b32.xlu0 %v6869, 56
  %v7007 = vpop.permute.xlu0 %7006
  %7008 = vrot.lane.b32.xlu0 %v6870, 56
  %v7009 = vpop.permute.xlu0 %7008
  %7010 = vrot.lane.b32.xlu0 %v6871, 56
  %v7011 = vpop.permute.xlu0 %7010
  %7012 = vrot.lane.b32.xlu0 %v6872, 56
  %v7013 = vpop.permute.xlu0 %7012
  %7014 = vrot.lane.b32.xlu0 %v6873, 56
  %v7015 = vpop.permute.xlu0 %7014
  %7016 = vrot.lane.b32.xlu0 %v6874, 56
  %v7017 = vpop.permute.xlu0 %7016
  %7018 = vrot.lane.b32.xlu0 %v6875, 56
  %v7019 = vpop.permute.xlu0 %7018
  %7020 = vrot.lane.b32.xlu0 %v6876, 56
  %v7021 = vpop.permute.xlu0 %7020
  %7022 = vrot.lane.b32.xlu0 %v6877, 56
  %v7023 = vpop.permute.xlu0 %7022
  %7024 = vrot.lane.b32.xlu0 %v6878, 56
  %v7025 = vpop.permute.xlu0 %7024
  %7026 = vrot.lane.b32.xlu0 %v6879, 56
  %v7027 = vpop.permute.xlu0 %7026
  %7028 = vrot.lane.b32.xlu0 %v6880, 56
  %v7029 = vpop.permute.xlu0 %7028
  %7030 = vrot.lane.b32.xlu0 %v6881, 56
  %v7031 = vpop.permute.xlu0 %7030
  %7032 = vrot.lane.b32.xlu0 %v6882, 56
  %v7033 = vpop.permute.xlu0 %7032
  %7034 = vrot.lane.b32.xlu0 %v6883, 56
  %v7035 = vpop.permute.xlu0 %7034
  %7036 = vrot.lane.b32.xlu0 %v6884, 56
  %v7037 = vpop.permute.xlu0 %7036
  %7038 = vrot.lane.b32.xlu0 %v6885, 56
  %v7039 = vpop.permute.xlu0 %7038
  %7040 = vrot.lane.b32.xlu0 %v6886, 56
  %v7041 = vpop.permute.xlu0 %7040
  %7042 = vrot.lane.b32.xlu0 %v6887, 56
  %v7043 = vpop.permute.xlu0 %7042
  %7044 = vrot.lane.b32.xlu0 %v6888, 56
  %v7045 = vpop.permute.xlu0 %7044
  %7046 = vrot.lane.b32.xlu0 %v6889, 56
  %v7047 = vpop.permute.xlu0 %7046
  %7048 = vrot.lane.b32.xlu0 %v6890, 56
  %v7049 = vpop.permute.xlu0 %7048
  %7050 = vrot.lane.b32.xlu0 %v6891, 56
  %v7051 = vpop.permute.xlu0 %7050
  %7052 = vrot.lane.b32.xlu0 %v6892, 56
  %v7053 = vpop.permute.xlu0 %7052
  %7054 = vrot.lane.b32.xlu0 %v6893, 56
  %v7055 = vpop.permute.xlu0 %7054
  %7056 = vrot.lane.b32.xlu0 %v6894, 56
  %v7057 = vpop.permute.xlu0 %7056
  %7058 = vrot.lane.b32.xlu0 %v6895, 56
  %v7059 = vpop.permute.xlu0 %7058
  %7060 = vrot.lane.b32.xlu0 %v6896, 56
  %v7061 = vpop.permute.xlu0 %7060
  %7062 = vrot.lane.b32.xlu0 %v6897, 56
  %v7063 = vpop.permute.xlu0 %7062
  %7064 = vrot.lane.b32.xlu0 %v6898, 56
  %v7065 = vpop.permute.xlu0 %7064
  %7066 = vrot.lane.b32.xlu0 %v6899, 56
  %v7067 = vpop.permute.xlu0 %7066
  %7068 = vrot.lane.b32.xlu0 %v6900, 56
  %v7069 = vpop.permute.xlu0 %7068
  %7070 = vrot.lane.b32.xlu0 %v6901, 56
  %v7071 = vpop.permute.xlu0 %7070
  %7072 = vrot.lane.b32.xlu0 %v6902, 56
  %v7073 = vpop.permute.xlu0 %7072
  %7074 = vrot.lane.b32.xlu0 %v6903, 56
  %v7075 = vpop.permute.xlu0 %7074
  %7076 = vrot.lane.b32.xlu0 %v6904, 56
  %v7077 = vpop.permute.xlu0 %7076
  %7078 = vrot.lane.b32.xlu0 %v6905, 56
  %v7079 = vpop.permute.xlu0 %7078
  %7080 = vrot.lane.b32.xlu0 %v6906, 56
  %v7081 = vpop.permute.xlu0 %7080
  %7082 = vrot.lane.b32.xlu0 %v6907, 56
  %v7083 = vpop.permute.xlu0 %7082
  %7084 = vrot.lane.b32.xlu0 %v6908, 56
  %v7085 = vpop.permute.xlu0 %7084
  %7086 = vrot.lane.b32.xlu0 %v6909, 56
  %v7087 = vpop.permute.xlu0 %7086
  %7088 = vrot.lane.b32.xlu0 %v6910, 56
  %v7089 = vpop.permute.xlu0 %7088
  %7090 = vrot.lane.b32.xlu0 %v6911, 56
  %v7091 = vpop.permute.xlu0 %7090
  %vm7152 = vcmask 523712
  %7153 = vst.msk [vmem:[#allocation4] sm:$0xff] %vm7152, %v6973
  %7154 = vst.msk [vmem:[#allocation4 + $0x8] sm:$0xff] %vm7152, %v6975
  %7155 = vst.msk [vmem:[#allocation4 + $0x10] sm:$0xff] %vm7152, %v6977
  %7156 = vst.msk [vmem:[#allocation4 + $0x18] sm:$0xff] %vm7152, %v6979
  %7157 = vst.msk [vmem:[#allocation4 + $0x20] sm:$0xff] %vm7152, %v6981
  %7158 = vst.msk [vmem:[#allocation4 + $0x28] sm:$0xff] %vm7152, %v6983
  %7159 = vst.msk [vmem:[#allocation4 + $0x30] sm:$0xff] %vm7152, %v6985
  %7160 = vst.msk [vmem:[#allocation4 + $0x38] sm:$0xff] %vm7152, %v6987
  %7161 = vst.msk [vmem:[#allocation4 + $0x40] sm:$0xff] %vm7152, %v6989
  %7162 = vst.msk [vmem:[#allocation4 + $0x48] sm:$0xff] %vm7152, %v6991
  %7163 = vst.msk [vmem:[#allocation4 + $0x50] sm:$0xff] %vm7152, %v6993
  %7164 = vst.msk [vmem:[#allocation4 + $0x58] sm:$0xff] %vm7152, %v6995
  %7165 = vst.msk [vmem:[#allocation4 + $0x60] sm:$0xff] %vm7152, %v6997
  %7166 = vst.msk [vmem:[#allocation4 + $0x68] sm:$0xff] %vm7152, %v6999
  %7167 = vst.msk [vmem:[#allocation4 + $0x70] sm:$0xff] %vm7152, %v7001
  %7168 = vst.msk [vmem:[#allocation4 + $0x78] sm:$0xff] %vm7152, %v7003
  %7169 = vst.msk [vmem:[#allocation4 + $0x80] sm:$0xff] %vm7152, %v7005
  %7170 = vst.msk [vmem:[#allocation4 + $0x88] sm:$0xff] %vm7152, %v7007
  %7171 = vst.msk [vmem:[#allocation4 + $0x90] sm:$0xff] %vm7152, %v7009
  %7172 = vst.msk [vmem:[#allocation4 + $0x98] sm:$0xff] %vm7152, %v7011
  %7173 = vst.msk [vmem:[#allocation4 + $0xa0] sm:$0xff] %vm7152, %v7013
  %7174 = vst.msk [vmem:[#allocation4 + $0xa8] sm:$0xff] %vm7152, %v7015
  %7175 = vst.msk [vmem:[#allocation4 + $0xb0] sm:$0xff] %vm7152, %v7017
  %7176 = vst.msk [vmem:[#allocation4 + $0xb8] sm:$0xff] %vm7152, %v7019
  %7177 = vst.msk [vmem:[#allocation4 + $0xc0] sm:$0xff] %vm7152, %v7021
  %7178 = vst.msk [vmem:[#allocation4 + $0xc8] sm:$0xff] %vm7152, %v7023
  %7179 = vst.msk [vmem:[#allocation4 + $0xd0] sm:$0xff] %vm7152, %v7025
  %7180 = vst.msk [vmem:[#allocation4 + $0xd8] sm:$0xff] %vm7152, %v7027
  %7181 = vst.msk [vmem:[#allocation4 + $0xe0] sm:$0xff] %vm7152, %v7029
  %7182 = vst.msk [vmem:[#allocation4 + $0xe8] sm:$0xff] %vm7152, %v7031
  %7183 = vst.msk [vmem:[#allocation4 + $0x100] sm:$0xff] %vm7152, %v7033
  %7184 = vst.msk [vmem:[#allocation4 + $0x108] sm:$0xff] %vm7152, %v7035
  %7185 = vst.msk [vmem:[#allocation4 + $0x110] sm:$0xff] %vm7152, %v7037
  %7186 = vst.msk [vmem:[#allocation4 + $0x118] sm:$0xff] %vm7152, %v7039
  %7187 = vst.msk [vmem:[#allocation4 + $0x120] sm:$0xff] %vm7152, %v7041
  %7188 = vst.msk [vmem:[#allocation4 + $0x128] sm:$0xff] %vm7152, %v7043
  %7189 = vst.msk [vmem:[#allocation4 + $0x130] sm:$0xff] %vm7152, %v7045
  %7190 = vst.msk [vmem:[#allocation4 + $0x138] sm:$0xff] %vm7152, %v7047
  %7191 = vst.msk [vmem:[#allocation4 + $0x140] sm:$0xff] %vm7152, %v7049
  %7192 = vst.msk [vmem:[#allocation4 + $0x148] sm:$0xff] %vm7152, %v7051
  %7193 = vst.msk [vmem:[#allocation4 + $0x150] sm:$0xff] %vm7152, %v7053
  %7194 = vst.msk [vmem:[#allocation4 + $0x158] sm:$0xff] %vm7152, %v7055
  %7195 = vst.msk [vmem:[#allocation4 + $0x160] sm:$0xff] %vm7152, %v7057
  %7196 = vst.msk [vmem:[#allocation4 + $0x168] sm:$0xff] %vm7152, %v7059
  %7197 = vst.msk [vmem:[#allocation4 + $0x170] sm:$0xff] %vm7152, %v7061
  %7198 = vst.msk [vmem:[#allocation4 + $0x178] sm:$0xff] %vm7152, %v7063
  %7199 = vst.msk [vmem:[#allocation4 + $0x180] sm:$0xff] %vm7152, %v7065
  %7200 = vst.msk [vmem:[#allocation4 + $0x188] sm:$0xff] %vm7152, %v7067
  %7201 = vst.msk [vmem:[#allocation4 + $0x190] sm:$0xff] %vm7152, %v7069
  %7202 = vst.msk [vmem:[#allocation4 + $0x198] sm:$0xff] %vm7152, %v7071
  %7203 = vst.msk [vmem:[#allocation4 + $0x1a0] sm:$0xff] %vm7152, %v7073
  %7204 = vst.msk [vmem:[#allocation4 + $0x1a8] sm:$0xff] %vm7152, %v7075
  %7205 = vst.msk [vmem:[#allocation4 + $0x1b0] sm:$0xff] %vm7152, %v7077
  %7206 = vst.msk [vmem:[#allocation4 + $0x1b8] sm:$0xff] %vm7152, %v7079
  %7207 = vst.msk [vmem:[#allocation4 + $0x1c0] sm:$0xff] %vm7152, %v7081
  %7208 = vst.msk [vmem:[#allocation4 + $0x1c8] sm:$0xff] %vm7152, %v7083
  %7209 = vst.msk [vmem:[#allocation4 + $0x1d0] sm:$0xff] %vm7152, %v7085
  %7210 = vst.msk [vmem:[#allocation4 + $0x1d8] sm:$0xff] %vm7152, %v7087
  %7211 = vst.msk [vmem:[#allocation4 + $0x1e0] sm:$0xff] %vm7152, %v7089
  %7212 = vst.msk [vmem:[#allocation4 + $0x1e8] sm:$0xff] %vm7152, %v7091
  %v7213 = vld [vmem:[%s6489 + $0x1] sm:$0xff]
  %v7214 = vld [vmem:[%s6489 + $0x9] sm:$0x7f]
  %v7215 = vld [vmem:[%s6489 + $0x11] sm:$0xff]
  %v7216 = vld [vmem:[%s6489 + $0x19] sm:$0x7f]
  %v7217 = vld [vmem:[%s6489 + $0x21] sm:$0xff]
  %v7218 = vld [vmem:[%s6489 + $0x29] sm:$0x7f]
  %v7219 = vld [vmem:[%s6489 + $0x31] sm:$0xff]
  %v7220 = vld [vmem:[%s6489 + $0x39] sm:$0x7f]
  %v7221 = vld [vmem:[%s6489 + $0x41] sm:$0xff]
  %v7222 = vld [vmem:[%s6489 + $0x49] sm:$0x7f]
  %v7223 = vld [vmem:[%s6489 + $0x51] sm:$0xff]
  %v7224 = vld [vmem:[%s6489 + $0x59] sm:$0x7f]
  %v7225 = vld [vmem:[%s6489 + $0x61] sm:$0xff]
  %v7226 = vld [vmem:[%s6489 + $0x69] sm:$0x7f]
  %v7227 = vld [vmem:[%s6489 + $0x71] sm:$0xff]
  %v7228 = vld [vmem:[%s6489 + $0x79] sm:$0x7f]
  %v7229 = vld [vmem:[%s6489 + $0x81] sm:$0xff]
  %v7230 = vld [vmem:[%s6489 + $0x89] sm:$0x7f]
  %v7231 = vld [vmem:[%s6489 + $0x91] sm:$0xff]
  %v7232 = vld [vmem:[%s6489 + $0x99] sm:$0x7f]
  %v7233 = vld [vmem:[%s6489 + $0xa1] sm:$0xff]
  %v7234 = vld [vmem:[%s6489 + $0xa9] sm:$0x7f]
  %v7235 = vld [vmem:[%s6489 + $0xb1] sm:$0xff]
  %v7236 = vld [vmem:[%s6489 + $0xb9] sm:$0x7f]
  %v7237 = vld [vmem:[%s6489 + $0xc1] sm:$0xff]
  %v7238 = vld [vmem:[%s6489 + $0xc9] sm:$0x7f]
  %v7239 = vld [vmem:[%s6489 + $0xd1] sm:$0xff]
  %v7240 = vld [vmem:[%s6489 + $0xd9] sm:$0x7f]
  %v7241 = vld [vmem:[%s6489 + $0xe1] sm:$0xff]
  %v7242 = vld [vmem:[%s6489 + $0xe9] sm:$0x7f]
  %v7243 = vld [vmem:[%s6489 + $0x101] sm:$0xff]
  %v7244 = vld [vmem:[%s6489 + $0x109] sm:$0x7f]
  %v7245 = vld [vmem:[%s6489 + $0x111] sm:$0xff]
  %v7246 = vld [vmem:[%s6489 + $0x119] sm:$0x7f]
  %v7247 = vld [vmem:[%s6489 + $0x121] sm:$0xff]
  %v7248 = vld [vmem:[%s6489 + $0x129] sm:$0x7f]
  %v7249 = vld [vmem:[%s6489 + $0x131] sm:$0xff]
  %v7250 = vld [vmem:[%s6489 + $0x139] sm:$0x7f]
  %v7251 = vld [vmem:[%s6489 + $0x141] sm:$0xff]
  %v7252 = vld [vmem:[%s6489 + $0x149] sm:$0x7f]
  %v7253 = vld [vmem:[%s6489 + $0x151] sm:$0xff]
  %v7254 = vld [vmem:[%s6489 + $0x159] sm:$0x7f]
  %v7255 = vld [vmem:[%s6489 + $0x161] sm:$0xff]
  %v7256 = vld [vmem:[%s6489 + $0x169] sm:$0x7f]
  %v7257 = vld [vmem:[%s6489 + $0x171] sm:$0xff]
  %v7258 = vld [vmem:[%s6489 + $0x179] sm:$0x7f]
  %v7259 = vld [vmem:[%s6489 + $0x181] sm:$0xff]
  %v7260 = vld [vmem:[%s6489 + $0x189] sm:$0x7f]
  %v7261 = vld [vmem:[%s6489 + $0x191] sm:$0xff]
  %v7262 = vld [vmem:[%s6489 + $0x199] sm:$0x7f]
  %v7263 = vld [vmem:[%s6489 + $0x1a1] sm:$0xff]
  %v7264 = vld [vmem:[%s6489 + $0x1a9] sm:$0x7f]
  %v7265 = vld [vmem:[%s6489 + $0x1b1] sm:$0xff]
  %v7266 = vld [vmem:[%s6489 + $0x1b9] sm:$0x7f]
  %v7267 = vld [vmem:[%s6489 + $0x1c1] sm:$0xff]
  %v7268 = vld [vmem:[%s6489 + $0x1c9] sm:$0x7f]
  %v7269 = vld [vmem:[%s6489 + $0x1d1] sm:$0xff]
  %v7270 = vld [vmem:[%s6489 + $0x1d9] sm:$0x7f]
  %v7271 = vld [vmem:[%s6489 + $0x1e1] sm:$0xff]
  %v7272 = vld [vmem:[%s6489 + $0x1e9] sm:$0x7f]
  %7333 = vrot.lane.b32.xlu0 %v7213, 64
  %v7334 = vpop.permute.xlu0 %7333
  %7335 = vrot.lane.b32.xlu0 %v7214, 64
  %v7336 = vpop.permute.xlu0 %7335
  %7337 = vrot.lane.b32.xlu0 %v7215, 64
  %v7338 = vpop.permute.xlu0 %7337
  %7339 = vrot.lane.b32.xlu0 %v7216, 64
  %v7340 = vpop.permute.xlu0 %7339
  %7341 = vrot.lane.b32.xlu0 %v7217, 64
  %v7342 = vpop.permute.xlu0 %7341
  %7343 = vrot.lane.b32.xlu0 %v7218, 64
  %v7344 = vpop.permute.xlu0 %7343
  %7345 = vrot.lane.b32.xlu0 %v7219, 64
  %v7346 = vpop.permute.xlu0 %7345
  %7347 = vrot.lane.b32.xlu0 %v7220, 64
  %v7348 = vpop.permute.xlu0 %7347
  %7349 = vrot.lane.b32.xlu0 %v7221, 64
  %v7350 = vpop.permute.xlu0 %7349
  %7351 = vrot.lane.b32.xlu0 %v7222, 64
  %v7352 = vpop.permute.xlu0 %7351
  %7353 = vrot.lane.b32.xlu0 %v7223, 64
  %v7354 = vpop.permute.xlu0 %7353
  %7355 = vrot.lane.b32.xlu0 %v7224, 64
  %v7356 = vpop.permute.xlu0 %7355
  %7357 = vrot.lane.b32.xlu0 %v7225, 64
  %v7358 = vpop.permute.xlu0 %7357
  %7359 = vrot.lane.b32.xlu0 %v7226, 64
  %v7360 = vpop.permute.xlu0 %7359
  %7361 = vrot.lane.b32.xlu0 %v7227, 64
  %v7362 = vpop.permute.xlu0 %7361
  %7363 = vrot.lane.b32.xlu0 %v7228, 64
  %v7364 = vpop.permute.xlu0 %7363
  %7365 = vrot.lane.b32.xlu0 %v7229, 64
  %v7366 = vpop.permute.xlu0 %7365
  %7367 = vrot.lane.b32.xlu0 %v7230, 64
  %v7368 = vpop.permute.xlu0 %7367
  %7369 = vrot.lane.b32.xlu0 %v7231, 64
  %v7370 = vpop.permute.xlu0 %7369
  %7371 = vrot.lane.b32.xlu0 %v7232, 64
  %v7372 = vpop.permute.xlu0 %7371
  %7373 = vrot.lane.b32.xlu0 %v7233, 64
  %v7374 = vpop.permute.xlu0 %7373
  %7375 = vrot.lane.b32.xlu0 %v7234, 64
  %v7376 = vpop.permute.xlu0 %7375
  %7377 = vrot.lane.b32.xlu0 %v7235, 64
  %v7378 = vpop.permute.xlu0 %7377
  %7379 = vrot.lane.b32.xlu0 %v7236, 64
  %v7380 = vpop.permute.xlu0 %7379
  %7381 = vrot.lane.b32.xlu0 %v7237, 64
  %v7382 = vpop.permute.xlu0 %7381
  %7383 = vrot.lane.b32.xlu0 %v7238, 64
  %v7384 = vpop.permute.xlu0 %7383
  %7385 = vrot.lane.b32.xlu0 %v7239, 64
  %v7386 = vpop.permute.xlu0 %7385
  %7387 = vrot.lane.b32.xlu0 %v7240, 64
  %v7388 = vpop.permute.xlu0 %7387
  %7389 = vrot.lane.b32.xlu0 %v7241, 64
  %v7390 = vpop.permute.xlu0 %7389
  %7391 = vrot.lane.b32.xlu0 %v7242, 64
  %v7392 = vpop.permute.xlu0 %7391
  %7393 = vrot.lane.b32.xlu0 %v7243, 64
  %v7394 = vpop.permute.xlu0 %7393
  %7395 = vrot.lane.b32.xlu0 %v7244, 64
  %v7396 = vpop.permute.xlu0 %7395
  %7397 = vrot.lane.b32.xlu0 %v7245, 64
  %v7398 = vpop.permute.xlu0 %7397
  %7399 = vrot.lane.b32.xlu0 %v7246, 64
  %v7400 = vpop.permute.xlu0 %7399
  %7401 = vrot.lane.b32.xlu0 %v7247, 64
  %v7402 = vpop.permute.xlu0 %7401
  %7403 = vrot.lane.b32.xlu0 %v7248, 64
  %v7404 = vpop.permute.xlu0 %7403
  %7405 = vrot.lane.b32.xlu0 %v7249, 64
  %v7406 = vpop.permute.xlu0 %7405
  %7407 = vrot.lane.b32.xlu0 %v7250, 64
  %v7408 = vpop.permute.xlu0 %7407
  %7409 = vrot.lane.b32.xlu0 %v7251, 64
  %v7410 = vpop.permute.xlu0 %7409
  %7411 = vrot.lane.b32.xlu0 %v7252, 64
  %v7412 = vpop.permute.xlu0 %7411
  %7413 = vrot.lane.b32.xlu0 %v7253, 64
  %v7414 = vpop.permute.xlu0 %7413
  %7415 = vrot.lane.b32.xlu0 %v7254, 64
  %v7416 = vpop.permute.xlu0 %7415
  %7417 = vrot.lane.b32.xlu0 %v7255, 64
  %v7418 = vpop.permute.xlu0 %7417
  %7419 = vrot.lane.b32.xlu0 %v7256, 64
  %v7420 = vpop.permute.xlu0 %7419
  %7421 = vrot.lane.b32.xlu0 %v7257, 64
  %v7422 = vpop.permute.xlu0 %7421
  %7423 = vrot.lane.b32.xlu0 %v7258, 64
  %v7424 = vpop.permute.xlu0 %7423
  %7425 = vrot.lane.b32.xlu0 %v7259, 64
  %v7426 = vpop.permute.xlu0 %7425
  %7427 = vrot.lane.b32.xlu0 %v7260, 64
  %v7428 = vpop.permute.xlu0 %7427
  %7429 = vrot.lane.b32.xlu0 %v7261, 64
  %v7430 = vpop.permute.xlu0 %7429
  %7431 = vrot.lane.b32.xlu0 %v7262, 64
  %v7432 = vpop.permute.xlu0 %7431
  %7433 = vrot.lane.b32.xlu0 %v7263, 64
  %v7434 = vpop.permute.xlu0 %7433
  %7435 = vrot.lane.b32.xlu0 %v7264, 64
  %v7436 = vpop.permute.xlu0 %7435
  %7437 = vrot.lane.b32.xlu0 %v7265, 64
  %v7438 = vpop.permute.xlu0 %7437
  %7439 = vrot.lane.b32.xlu0 %v7266, 64
  %v7440 = vpop.permute.xlu0 %7439
  %7441 = vrot.lane.b32.xlu0 %v7267, 64
  %v7442 = vpop.permute.xlu0 %7441
  %7443 = vrot.lane.b32.xlu0 %v7268, 64
  %v7444 = vpop.permute.xlu0 %7443
  %7445 = vrot.lane.b32.xlu0 %v7269, 64
  %v7446 = vpop.permute.xlu0 %7445
  %7447 = vrot.lane.b32.xlu0 %v7270, 64
  %v7448 = vpop.permute.xlu0 %7447
  %7449 = vrot.lane.b32.xlu0 %v7271, 64
  %v7450 = vpop.permute.xlu0 %7449
  %7451 = vrot.lane.b32.xlu0 %v7272, 64
  %v7452 = vpop.permute.xlu0 %7451
  %vm7513 = vcmask 589312
  %7514 = vst.msk [vmem:[#allocation4] sm:$0xff] %vm7513, %v7334
  %vm7515 = vcmask 588288
  %7516 = vst.msk [vmem:[#allocation4 + $0x8] sm:$0x7f] %vm7515, %v7336
  %7517 = vst.msk [vmem:[#allocation4 + $0x10] sm:$0xff] %vm7513, %v7338
  %7518 = vst.msk [vmem:[#allocation4 + $0x18] sm:$0x7f] %vm7515, %v7340
  %7519 = vst.msk [vmem:[#allocation4 + $0x20] sm:$0xff] %vm7513, %v7342
  %7520 = vst.msk [vmem:[#allocation4 + $0x28] sm:$0x7f] %vm7515, %v7344
  %7521 = vst.msk [vmem:[#allocation4 + $0x30] sm:$0xff] %vm7513, %v7346
  %7522 = vst.msk [vmem:[#allocation4 + $0x38] sm:$0x7f] %vm7515, %v7348
  %7523 = vst.msk [vmem:[#allocation4 + $0x40] sm:$0xff] %vm7513, %v7350
  %7524 = vst.msk [vmem:[#allocation4 + $0x48] sm:$0x7f] %vm7515, %v7352
  %7525 = vst.msk [vmem:[#allocation4 + $0x50] sm:$0xff] %vm7513, %v7354
  %7526 = vst.msk [vmem:[#allocation4 + $0x58] sm:$0x7f] %vm7515, %v7356
  %7527 = vst.msk [vmem:[#allocation4 + $0x60] sm:$0xff] %vm7513, %v7358
  %7528 = vst.msk [vmem:[#allocation4 + $0x68] sm:$0x7f] %vm7515, %v7360
  %7529 = vst.msk [vmem:[#allocation4 + $0x70] sm:$0xff] %vm7513, %v7362
  %7530 = vst.msk [vmem:[#allocation4 + $0x78] sm:$0x7f] %vm7515, %v7364
  %7531 = vst.msk [vmem:[#allocation4 + $0x80] sm:$0xff] %vm7513, %v7366
  %7532 = vst.msk [vmem:[#allocation4 + $0x88] sm:$0x7f] %vm7515, %v7368
  %7533 = vst.msk [vmem:[#allocation4 + $0x90] sm:$0xff] %vm7513, %v7370
  %7534 = vst.msk [vmem:[#allocation4 + $0x98] sm:$0x7f] %vm7515, %v7372
  %7535 = vst.msk [vmem:[#allocation4 + $0xa0] sm:$0xff] %vm7513, %v7374
  %7536 = vst.msk [vmem:[#allocation4 + $0xa8] sm:$0x7f] %vm7515, %v7376
  %7537 = vst.msk [vmem:[#allocation4 + $0xb0] sm:$0xff] %vm7513, %v7378
  %7538 = vst.msk [vmem:[#allocation4 + $0xb8] sm:$0x7f] %vm7515, %v7380
  %7539 = vst.msk [vmem:[#allocation4 + $0xc0] sm:$0xff] %vm7513, %v7382
  %7540 = vst.msk [vmem:[#allocation4 + $0xc8] sm:$0x7f] %vm7515, %v7384
  %7541 = vst.msk [vmem:[#allocation4 + $0xd0] sm:$0xff] %vm7513, %v7386
  %7542 = vst.msk [vmem:[#allocation4 + $0xd8] sm:$0x7f] %vm7515, %v7388
  %7543 = vst.msk [vmem:[#allocation4 + $0xe0] sm:$0xff] %vm7513, %v7390
  %7544 = vst.msk [vmem:[#allocation4 + $0xe8] sm:$0x7f] %vm7515, %v7392
  %7545 = vst.msk [vmem:[#allocation4 + $0x100] sm:$0xff] %vm7513, %v7394
  %7546 = vst.msk [vmem:[#allocation4 + $0x108] sm:$0x7f] %vm7515, %v7396
  %7547 = vst.msk [vmem:[#allocation4 + $0x110] sm:$0xff] %vm7513, %v7398
  %7548 = vst.msk [vmem:[#allocation4 + $0x118] sm:$0x7f] %vm7515, %v7400
  %7549 = vst.msk [vmem:[#allocation4 + $0x120] sm:$0xff] %vm7513, %v7402
  %7550 = vst.msk [vmem:[#allocation4 + $0x128] sm:$0x7f] %vm7515, %v7404
  %7551 = vst.msk [vmem:[#allocation4 + $0x130] sm:$0xff] %vm7513, %v7406
  %7552 = vst.msk [vmem:[#allocation4 + $0x138] sm:$0x7f] %vm7515, %v7408
  %7553 = vst.msk [vmem:[#allocation4 + $0x140] sm:$0xff] %vm7513, %v7410
  %7554 = vst.msk [vmem:[#allocation4 + $0x148] sm:$0x7f] %vm7515, %v7412
  %7555 = vst.msk [vmem:[#allocation4 + $0x150] sm:$0xff] %vm7513, %v7414
  %7556 = vst.msk [vmem:[#allocation4 + $0x158] sm:$0x7f] %vm7515, %v7416
  %7557 = vst.msk [vmem:[#allocation4 + $0x160] sm:$0xff] %vm7513, %v7418
  %7558 = vst.msk [vmem:[#allocation4 + $0x168] sm:$0x7f] %vm7515, %v7420
  %7559 = vst.msk [vmem:[#allocation4 + $0x170] sm:$0xff] %vm7513, %v7422
  %7560 = vst.msk [vmem:[#allocation4 + $0x178] sm:$0x7f] %vm7515, %v7424
  %7561 = vst.msk [vmem:[#allocation4 + $0x180] sm:$0xff] %vm7513, %v7426
  %7562 = vst.msk [vmem:[#allocation4 + $0x188] sm:$0x7f] %vm7515, %v7428
  %7563 = vst.msk [vmem:[#allocation4 + $0x190] sm:$0xff] %vm7513, %v7430
  %7564 = vst.msk [vmem:[#allocation4 + $0x198] sm:$0x7f] %vm7515, %v7432
  %7565 = vst.msk [vmem:[#allocation4 + $0x1a0] sm:$0xff] %vm7513, %v7434
  %7566 = vst.msk [vmem:[#allocation4 + $0x1a8] sm:$0x7f] %vm7515, %v7436
  %7567 = vst.msk [vmem:[#allocation4 + $0x1b0] sm:$0xff] %vm7513, %v7438
  %7568 = vst.msk [vmem:[#allocation4 + $0x1b8] sm:$0x7f] %vm7515, %v7440
  %7569 = vst.msk [vmem:[#allocation4 + $0x1c0] sm:$0xff] %vm7513, %v7442
  %7570 = vst.msk [vmem:[#allocation4 + $0x1c8] sm:$0x7f] %vm7515, %v7444
  %7571 = vst.msk [vmem:[#allocation4 + $0x1d0] sm:$0xff] %vm7513, %v7446
  %7572 = vst.msk [vmem:[#allocation4 + $0x1d8] sm:$0x7f] %vm7515, %v7448
  %7573 = vst.msk [vmem:[#allocation4 + $0x1e0] sm:$0xff] %vm7513, %v7450
  %7574 = vst.msk [vmem:[#allocation4 + $0x1e8] sm:$0x7f] %vm7515, %v7452
  %v7575 = vld [vmem:[#allocation4] sm:$0xff]
  %v7576 = vld [vmem:[#allocation4 + $0x8] sm:$0xff]
  %v7577 = vld [vmem:[#allocation4 + $0x10] sm:$0xff]
  %v7578 = vld [vmem:[#allocation4 + $0x18] sm:$0xff]
  %v7579 = vld [vmem:[#allocation4 + $0x20] sm:$0xff]
  %v7580 = vld [vmem:[#allocation4 + $0x28] sm:$0xff]
  %v7581 = vld [vmem:[#allocation4 + $0x30] sm:$0xff]
  %v7582 = vld [vmem:[#allocation4 + $0x38] sm:$0xff]
  %v7583 = vld [vmem:[#allocation4 + $0x40] sm:$0xff]
  %v7584 = vld [vmem:[#allocation4 + $0x48] sm:$0xff]
  %v7585 = vld [vmem:[#allocation4 + $0x50] sm:$0xff]
  %v7586 = vld [vmem:[#allocation4 + $0x58] sm:$0xff]
  %v7587 = vld [vmem:[#allocation4 + $0x60] sm:$0xff]
  %v7588 = vld [vmem:[#allocation4 + $0x68] sm:$0xff]
  %v7589 = vld [vmem:[#allocation4 + $0x70] sm:$0xff]
  %v7590 = vld [vmem:[#allocation4 + $0x78] sm:$0xff]
  %v7591 = vld [vmem:[#allocation4 + $0x80] sm:$0xff]
  %v7592 = vld [vmem:[#allocation4 + $0x88] sm:$0xff]
  %v7593 = vld [vmem:[#allocation4 + $0x90] sm:$0xff]
  %v7594 = vld [vmem:[#allocation4 + $0x98] sm:$0xff]
  %v7595 = vld [vmem:[#allocation4 + $0xa0] sm:$0xff]
  %v7596 = vld [vmem:[#allocation4 + $0xa8] sm:$0xff]
  %v7597 = vld [vmem:[#allocation4 + $0xb0] sm:$0xff]
  %v7598 = vld [vmem:[#allocation4 + $0xb8] sm:$0xff]
  %v7599 = vld [vmem:[#allocation4 + $0xc0] sm:$0xff]
  %v7600 = vld [vmem:[#allocation4 + $0xc8] sm:$0xff]
  %v7601 = vld [vmem:[#allocation4 + $0xd0] sm:$0xff]
  %v7602 = vld [vmem:[#allocation4 + $0xd8] sm:$0xff]
  %v7603 = vld [vmem:[#allocation4 + $0xe0] sm:$0xff]
  %v7604 = vld [vmem:[#allocation4 + $0xe8] sm:$0xff]
  %v7605 = vld [vmem:[#allocation4 + $0xf0] sm:$0xff]
  %v7606 = vld [vmem:[#allocation4 + $0xf8] sm:$0xff]
  %v7607 = vld [vmem:[#allocation4 + $0x100] sm:$0xff]
  %v7608 = vld [vmem:[#allocation4 + $0x108] sm:$0xff]
  %v7609 = vld [vmem:[#allocation4 + $0x110] sm:$0xff]
  %v7610 = vld [vmem:[#allocation4 + $0x118] sm:$0xff]
  %v7611 = vld [vmem:[#allocation4 + $0x120] sm:$0xff]
  %v7612 = vld [vmem:[#allocation4 + $0x128] sm:$0xff]
  %v7613 = vld [vmem:[#allocation4 + $0x130] sm:$0xff]
  %v7614 = vld [vmem:[#allocation4 + $0x138] sm:$0xff]
  %v7615 = vld [vmem:[#allocation4 + $0x140] sm:$0xff]
  %v7616 = vld [vmem:[#allocation4 + $0x148] sm:$0xff]
  %v7617 = vld [vmem:[#allocation4 + $0x150] sm:$0xff]
  %v7618 = vld [vmem:[#allocation4 + $0x158] sm:$0xff]
  %v7619 = vld [vmem:[#allocation4 + $0x160] sm:$0xff]
  %v7620 = vld [vmem:[#allocation4 + $0x168] sm:$0xff]
  %v7621 = vld [vmem:[#allocation4 + $0x170] sm:$0xff]
  %v7622 = vld [vmem:[#allocation4 + $0x178] sm:$0xff]
  %v7623 = vld [vmem:[#allocation4 + $0x180] sm:$0xff]
  %v7624 = vld [vmem:[#allocation4 + $0x188] sm:$0xff]
  %v7625 = vld [vmem:[#allocation4 + $0x190] sm:$0xff]
  %v7626 = vld [vmem:[#allocation4 + $0x198] sm:$0xff]
  %v7627 = vld [vmem:[#allocation4 + $0x1a0] sm:$0xff]
  %v7628 = vld [vmem:[#allocation4 + $0x1a8] sm:$0xff]
  %v7629 = vld [vmem:[#allocation4 + $0x1b0] sm:$0xff]
  %v7630 = vld [vmem:[#allocation4 + $0x1b8] sm:$0xff]
  %v7631 = vld [vmem:[#allocation4 + $0x1c0] sm:$0xff]
  %v7632 = vld [vmem:[#allocation4 + $0x1c8] sm:$0xff]
  %v7633 = vld [vmem:[#allocation4 + $0x1d0] sm:$0xff]
  %v7634 = vld [vmem:[#allocation4 + $0x1d8] sm:$0xff]
  %v7635 = vld [vmem:[#allocation4 + $0x1e0] sm:$0xff]
  %v7636 = vld [vmem:[#allocation4 + $0x1e8] sm:$0xff]
  %v7637 = vld [vmem:[#allocation4 + $0x1f0] sm:$0xff]
  %v7638 = vld [vmem:[#allocation4 + $0x1f8] sm:$0xff]
  %v7639 = vpack.c.bf16 %v7576, %v7575
  %v7640 = vpack.c.bf16 %v7578, %v7577
  %v7641 = vpack.c.bf16 %v7580, %v7579
  %v7642 = vpack.c.bf16 %v7582, %v7581
  %v7643 = vpack.c.bf16 %v7584, %v7583
  %v7644 = vpack.c.bf16 %v7586, %v7585
  %v7645 = vpack.c.bf16 %v7588, %v7587
  %v7646 = vpack.c.bf16 %v7590, %v7589
  %v7647 = vpack.c.bf16 %v7592, %v7591
  %v7648 = vpack.c.bf16 %v7594, %v7593
  %v7649 = vpack.c.bf16 %v7596, %v7595
  %v7650 = vpack.c.bf16 %v7598, %v7597
  %v7651 = vpack.c.bf16 %v7600, %v7599
  %v7652 = vpack.c.bf16 %v7602, %v7601
  %v7653 = vpack.c.bf16 %v7604, %v7603
  %v7654 = vpack.c.bf16 %v7606, %v7605
  %v7655 = vpack.c.bf16 %v7608, %v7607
  %v7656 = vpack.c.bf16 %v7610, %v7609
  %v7657 = vpack.c.bf16 %v7612, %v7611
  %v7658 = vpack.c.bf16 %v7614, %v7613
  %v7659 = vpack.c.bf16 %v7616, %v7615
  %v7660 = vpack.c.bf16 %v7618, %v7617
  %v7661 = vpack.c.bf16 %v7620, %v7619
  %v7662 = vpack.c.bf16 %v7622, %v7621
  %v7663 = vpack.c.bf16 %v7624, %v7623
  %v7664 = vpack.c.bf16 %v7626, %v7625
  %v7665 = vpack.c.bf16 %v7628, %v7627
  %v7666 = vpack.c.bf16 %v7630, %v7629
  %v7667 = vpack.c.bf16 %v7632, %v7631
  %v7668 = vpack.c.bf16 %v7634, %v7633
  %v7669 = vpack.c.bf16 %v7636, %v7635
  %v7670 = vpack.c.bf16 %v7638, %v7637
  %v7671 = vld [vmem:[%s2] sm:$0xf]
  %v7672 = vld [vmem:[%s2 + $0x4] sm:$0xf]
  %v7673 = vld [vmem:[%s2 + $0x8] sm:$0xf]
  %v7674 = vld [vmem:[%s2 + $0xc] sm:$0xf]
  %v7675 = vld [vmem:[%s2 + $0x10] sm:$0xf]
  %v7676 = vld [vmem:[%s2 + $0x14] sm:$0xf]
  %v7677 = vld [vmem:[%s2 + $0x18] sm:$0xf]
  %v7678 = vld [vmem:[%s2 + $0x1c] sm:$0xf]
  %v7679 = vld [vmem:[%s2 + $0x20] sm:$0xf]
  %v7680 = vld [vmem:[%s3] sm:$0x1]
  %v7682 = vlaneseq
  %v7683 = vshrl.u32 %v7682, 7
  %v7684 = vsub.s32 0, %v7683
  %v7685 = vrot.slane %v7680, %v7684
  %v7696 = vunpack.c.l.b16 %v7671
  %v7697 = vunpack.c.l.b16 %v7672
  %v7698 = vunpack.c.l.b16 %v7673
  %v7699 = vunpack.c.l.b16 %v7674
  %v7700 = vunpack.c.l.b16 %v7675
  %v7701 = vunpack.c.l.b16 %v7676
  %v7702 = vunpack.c.l.b16 %v7677
  %v7703 = vunpack.c.l.b16 %v7678
  %v7704 = vunpack.c.l.b16 %v7679
  %v7705 = vpack.c.b16 %v7697, %v7696
  %v7706 = vpack.c.b16 %v7699, %v7698
  %v7707 = vpack.c.b16 %v7701, %v7700
  %v7708 = vpack.c.b16 %v7703, %v7702
  %v7709 = vpack.c.b16 %v7704, %v7704
  %v7715 = vsel %vm4422, %v7639, 0
  %v7718 = vsel %vm4422, %v7640, 0
  %v7721 = vsel %vm4422, %v7641, 0
  %v7724 = vsel %vm4422, %v7642, 0
  %v7727 = vsel %vm4422, %v7643, 0
  %v7730 = vsel %vm4422, %v7644, 0
  %v7733 = vsel %vm4422, %v7645, 0
  %v7736 = vsel %vm4422, %v7646, 0
  %v7739 = vsel %vm4422, %v7647, 0
  %v7742 = vsel %vm4422, %v7648, 0
  %v7745 = vsel %vm4422, %v7649, 0
  %v7748 = vsel %vm4422, %v7650, 0
  %v7751 = vsel %vm4422, %v7651, 0
  %v7754 = vsel %vm4422, %v7652, 0
  %v7757 = vsel %vm4422, %v7653, 0
  %v7760 = vsel %vm4422, %v7654, 0
  %v7763 = vsel %vm4422, %v7655, 0
  %v7766 = vsel %vm4422, %v7656, 0
  %v7769 = vsel %vm4422, %v7657, 0
  %v7772 = vsel %vm4422, %v7658, 0
  %v7775 = vsel %vm4422, %v7659, 0
  %v7778 = vsel %vm4422, %v7660, 0
  %v7781 = vsel %vm4422, %v7661, 0
  %v7784 = vsel %vm4422, %v7662, 0
  %v7787 = vsel %vm4422, %v7663, 0
  %v7790 = vsel %vm4422, %v7664, 0
  %v7793 = vsel %vm4422, %v7665, 0
  %v7796 = vsel %vm4422, %v7666, 0
  %v7799 = vsel %vm4422, %v7667, 0
  %v7802 = vsel %vm4422, %v7668, 0
  %v7805 = vsel %vm4422, %v7669, 0
  %v7808 = vsel %vm4422, %v7670, 0
  %vm7810 = vcmask 1043456
  %v7812 = vsel %vm7810, %v7709, 0
  %7814 = vmatprep.subr.bf16.mxu0 0
  %7815 = vmatpush1.bf16.msra.mxu0 0
  %7816 = vmatprep.subr.bf16.mxu0 0
  %7817 = vmatpush1.bf16.msra.mxu0 0
  %7818 = vmatprep.subr.bf16.mxu0 0
  %7819 = vmatpush1.bf16.msra.mxu0 0
  %7820 = vmatprep.subr.bf16.mxu0 0
  %7821 = vmatpush1.bf16.msra.mxu0 %v7812
  %7822 = vmatprep.subr.bf16.mxu0 0
  %7823 = vmatpush1.bf16.msra.mxu0 %v7708
  %7824 = vmatprep.subr.bf16.mxu0 0
  %7825 = vmatpush1.bf16.msra.mxu0 %v7707
  %7826 = vmatprep.subr.bf16.mxu0 0
  %7827 = vmatpush1.bf16.msra.mxu0 %v7706
  %7828 = vmatprep.subr.bf16.mxu0 0
  %7829 = vmatpush1.bf16.msra.mxu0 %v7705
  %7830 = vmatprep.subr.bf16.mxu0 0
  %7831 = vmatpush2.bf16.msra.mxu0 0
  %7832 = vmatprep.subr.bf16.mxu0 0
  %7833 = vmatpush2.bf16.msra.mxu0 0
  %7834 = vmatprep.subr.bf16.mxu0 0
  %7835 = vmatpush2.bf16.msra.mxu0 0
  %7836 = vmatprep.subr.bf16.mxu0 0
  %7837 = vmatpush2.bf16.msra.mxu0 0
  %7838 = vmatprep.subr.bf16.mxu0 0
  %7839 = vmatpush2.bf16.msra.mxu0 0
  %7840 = vmatprep.subr.bf16.mxu0 0
  %7841 = vmatpush2.bf16.msra.mxu0 0
  %7842 = vmatprep.subr.bf16.mxu0 0
  %7843 = vmatpush2.bf16.msra.mxu0 0
  %7844 = vmatprep.subr.bf16.mxu0 0
  %7845 = vmatpush2.bf16.msra.mxu0 0
  %7846 = vmatprep.mubr.bf16.mxu0 0
  %7847 = vmatmul.mubr.bf16.gmra.mxu0 %v7715
  %v7848 = vpop.f32.mrf.mxu0
  %v7849 = vpop.f32.mrf.mxu0
  %v7850 = vpop.f32.mrf.mxu0
  %v7851 = vpop.f32.mrf.mxu0
  %7852 = vmatprep.mubr.bf16.mxu0 0
  %7853 = vmatmul.mubr.bf16.gmra.mxu0 %v7718
  %v7854 = vpop.f32.mrf.mxu0
  %v7855 = vadd.f32 %v7685, %v7854
  %v7856 = vpop.f32.mrf.mxu0
  %v7857 = vpop.f32.mrf.mxu0
  %v7858 = vadd.f32 %v7685, %v7857
  %v7859 = vpop.f32.mrf.mxu0
  %7860 = vmatprep.mubr.bf16.mxu0 0
  %7861 = vmatmul.mubr.bf16.gmra.mxu0 %v7721
  %v7862 = vpop.f32.mrf.mxu0
  %v7863 = vadd.f32 %v7685, %v7862
  %v7864 = vpop.f32.mrf.mxu0
  %v7865 = vpop.f32.mrf.mxu0
  %v7866 = vadd.f32 %v7685, %v7865
  %v7867 = vpop.f32.mrf.mxu0
  %7868 = vmatprep.mubr.bf16.mxu0 0
  %7869 = vmatmul.mubr.bf16.gmra.mxu0 %v7724
  %v7870 = vpop.f32.mrf.mxu0
  %v7871 = vadd.f32 %v7685, %v7870
  %v7872 = vpop.f32.mrf.mxu0
  %v7873 = vpop.f32.mrf.mxu0
  %v7874 = vadd.f32 %v7685, %v7873
  %v7875 = vpop.f32.mrf.mxu0
  %7876 = vmatprep.mubr.bf16.mxu0 0
  %7877 = vmatmul.mubr.bf16.gmra.mxu0 %v7727
  %v7878 = vpop.f32.mrf.mxu0
  %v7879 = vadd.f32 %v7685, %v7878
  %v7880 = vpop.f32.mrf.mxu0
  %v7881 = vpop.f32.mrf.mxu0
  %v7882 = vadd.f32 %v7685, %v7881
  %v7883 = vpop.f32.mrf.mxu0
  %7884 = vmatprep.mubr.bf16.mxu0 0
  %7885 = vmatmul.mubr.bf16.gmra.mxu0 %v7730
  %v7886 = vpop.f32.mrf.mxu0
  %v7887 = vadd.f32 %v7685, %v7886
  %v7888 = vpop.f32.mrf.mxu0
  %v7889 = vpop.f32.mrf.mxu0
  %v7890 = vadd.f32 %v7685, %v7889
  %v7891 = vpop.f32.mrf.mxu0
  %7892 = vmatprep.mubr.bf16.mxu0 0
  %7893 = vmatmul.mubr.bf16.gmra.mxu0 %v7733
  %v7894 = vpop.f32.mrf.mxu0
  %v7895 = vadd.f32 %v7685, %v7894
  %v7896 = vpop.f32.mrf.mxu0
  %v7897 = vpop.f32.mrf.mxu0
  %v7898 = vadd.f32 %v7685, %v7897
  %v7899 = vpop.f32.mrf.mxu0
  %7900 = vmatprep.mubr.bf16.mxu0 0
  %7901 = vmatmul.mubr.bf16.gmra.mxu0 %v7736
  %v7902 = vpop.f32.mrf.mxu0
  %v7903 = vadd.f32 %v7685, %v7902
  %v7904 = vpop.f32.mrf.mxu0
  %v7905 = vpop.f32.mrf.mxu0
  %v7906 = vadd.f32 %v7685, %v7905
  %v7907 = vpop.f32.mrf.mxu0
  %7908 = vmatprep.mubr.bf16.mxu0 0
  %7909 = vmatmul.mubr.bf16.gmra.mxu0 %v7739
  %v7910 = vpop.f32.mrf.mxu0
  %v7911 = vadd.f32 %v7685, %v7910
  %v7912 = vpop.f32.mrf.mxu0
  %v7913 = vpop.f32.mrf.mxu0
  %v7914 = vadd.f32 %v7685, %v7913
  %v7915 = vpop.f32.mrf.mxu0
  %7916 = vmatprep.mubr.bf16.mxu0 0
  %7917 = vmatmul.mubr.bf16.gmra.mxu0 %v7742
  %v7918 = vpop.f32.mrf.mxu0
  %v7919 = vadd.f32 %v7685, %v7918
  %v7920 = vpop.f32.mrf.mxu0
  %v7921 = vpop.f32.mrf.mxu0
  %v7922 = vadd.f32 %v7685, %v7921
  %v7923 = vpop.f32.mrf.mxu0
  %7924 = vmatprep.mubr.bf16.mxu0 0
  %7925 = vmatmul.mubr.bf16.gmra.mxu0 %v7745
  %v7926 = vpop.f32.mrf.mxu0
  %v7927 = vadd.f32 %v7685, %v7926
  %v7928 = vpop.f32.mrf.mxu0
  %v7929 = vpop.f32.mrf.mxu0
  %v7930 = vadd.f32 %v7685, %v7929
  %v7931 = vpop.f32.mrf.mxu0
  %7932 = vmatprep.mubr.bf16.mxu0 0
  %7933 = vmatmul.mubr.bf16.gmra.mxu0 %v7748
  %v7934 = vpop.f32.mrf.mxu0
  %v7935 = vadd.f32 %v7685, %v7934
  %v7936 = vpop.f32.mrf.mxu0
  %v7937 = vpop.f32.mrf.mxu0
  %v7938 = vadd.f32 %v7685, %v7937
  %v7939 = vpop.f32.mrf.mxu0
  %7940 = vmatprep.mubr.bf16.mxu0 0
  %7941 = vmatmul.mubr.bf16.gmra.mxu0 %v7751
  %v7942 = vpop.f32.mrf.mxu0
  %v7943 = vadd.f32 %v7685, %v7942
  %v7944 = vpop.f32.mrf.mxu0
  %v7945 = vpop.f32.mrf.mxu0
  %v7946 = vadd.f32 %v7685, %v7945
  %v7947 = vpop.f32.mrf.mxu0
  %7948 = vmatprep.mubr.bf16.mxu0 0
  %7949 = vmatmul.mubr.bf16.gmra.mxu0 %v7754
  %v7950 = vpop.f32.mrf.mxu0
  %v7951 = vadd.f32 %v7685, %v7950
  %v7952 = vpop.f32.mrf.mxu0
  %v7953 = vpop.f32.mrf.mxu0
  %v7954 = vadd.f32 %v7685, %v7953
  %v7955 = vpop.f32.mrf.mxu0
  %7956 = vmatprep.mubr.bf16.mxu0 0
  %7957 = vmatmul.mubr.bf16.gmra.mxu0 %v7757
  %v7958 = vpop.f32.mrf.mxu0
  %v7959 = vadd.f32 %v7685, %v7958
  %v7960 = vpop.f32.mrf.mxu0
  %v7961 = vpop.f32.mrf.mxu0
  %v7962 = vadd.f32 %v7685, %v7961
  %v7963 = vpop.f32.mrf.mxu0
  %7964 = vmatprep.mubr.bf16.mxu0 0
  %7965 = vmatmul.mubr.bf16.gmra.mxu0 %v7760
  %v7966 = vpop.f32.mrf.mxu0
  %v7967 = vpop.f32.mrf.mxu0
  %v7968 = vpop.f32.mrf.mxu0
  %v7969 = vpop.f32.mrf.mxu0
  %7970 = vmatprep.mubr.bf16.mxu0 0
  %7971 = vmatmul.mubr.bf16.gmra.mxu0 %v7763
  %v7972 = vpop.f32.mrf.mxu0
  %v7973 = vpop.f32.mrf.mxu0
  %v7974 = vpop.f32.mrf.mxu0
  %v7975 = vpop.f32.mrf.mxu0
  %7976 = vmatprep.mubr.bf16.mxu0 0
  %7977 = vmatmul.mubr.bf16.gmra.mxu0 %v7766
  %v7978 = vpop.f32.mrf.mxu0
  %v7979 = vadd.f32 %v7685, %v7978
  %v7980 = vpop.f32.mrf.mxu0
  %v7981 = vpop.f32.mrf.mxu0
  %v7982 = vadd.f32 %v7685, %v7981
  %v7983 = vpop.f32.mrf.mxu0
  %7984 = vmatprep.mubr.bf16.mxu0 0
  %7985 = vmatmul.mubr.bf16.gmra.mxu0 %v7769
  %v7986 = vpop.f32.mrf.mxu0
  %v7987 = vadd.f32 %v7685, %v7986
  %v7988 = vpop.f32.mrf.mxu0
  %v7989 = vpop.f32.mrf.mxu0
  %v7990 = vadd.f32 %v7685, %v7989
  %v7991 = vpop.f32.mrf.mxu0
  %7992 = vmatprep.mubr.bf16.mxu0 0
  %7993 = vmatmul.mubr.bf16.gmra.mxu0 %v7772
  %v7994 = vpop.f32.mrf.mxu0
  %v7995 = vadd.f32 %v7685, %v7994
  %v7996 = vpop.f32.mrf.mxu0
  %v7997 = vpop.f32.mrf.mxu0
  %v7998 = vadd.f32 %v7685, %v7997
  %v7999 = vpop.f32.mrf.mxu0
  %8000 = vmatprep.mubr.bf16.mxu0 0
  %8001 = vmatmul.mubr.bf16.gmra.mxu0 %v7775
  %v8002 = vpop.f32.mrf.mxu0
  %v8003 = vadd.f32 %v7685, %v8002
  %v8004 = vpop.f32.mrf.mxu0
  %v8005 = vpop.f32.mrf.mxu0
  %v8006 = vadd.f32 %v7685, %v8005
  %v8007 = vpop.f32.mrf.mxu0
  %8008 = vmatprep.mubr.bf16.mxu0 0
  %8009 = vmatmul.mubr.bf16.gmra.mxu0 %v7778
  %v8010 = vpop.f32.mrf.mxu0
  %v8011 = vadd.f32 %v7685, %v8010
  %v8012 = vpop.f32.mrf.mxu0
  %v8013 = vpop.f32.mrf.mxu0
  %v8014 = vadd.f32 %v7685, %v8013
  %v8015 = vpop.f32.mrf.mxu0
  %8016 = vmatprep.mubr.bf16.mxu0 0
  %8017 = vmatmul.mubr.bf16.gmra.mxu0 %v7781
  %v8018 = vpop.f32.mrf.mxu0
  %v8019 = vadd.f32 %v7685, %v8018
  %v8020 = vpop.f32.mrf.mxu0
  %v8021 = vpop.f32.mrf.mxu0
  %v8022 = vadd.f32 %v7685, %v8021
  %v8023 = vpop.f32.mrf.mxu0
  %8024 = vmatprep.mubr.bf16.mxu0 0
  %8025 = vmatmul.mubr.bf16.gmra.mxu0 %v7784
  %v8026 = vpop.f32.mrf.mxu0
  %v8027 = vadd.f32 %v7685, %v8026
  %v8028 = vpop.f32.mrf.mxu0
  %v8029 = vpop.f32.mrf.mxu0
  %v8030 = vadd.f32 %v7685, %v8029
  %v8031 = vpop.f32.mrf.mxu0
  %8032 = vmatprep.mubr.bf16.mxu0 0
  %8033 = vmatmul.mubr.bf16.gmra.mxu0 %v7787
  %v8034 = vpop.f32.mrf.mxu0
  %v8035 = vadd.f32 %v7685, %v8034
  %v8036 = vpop.f32.mrf.mxu0
  %v8037 = vpop.f32.mrf.mxu0
  %v8038 = vadd.f32 %v7685, %v8037
  %v8039 = vpop.f32.mrf.mxu0
  %8040 = vmatprep.mubr.bf16.mxu0 0
  %8041 = vmatmul.mubr.bf16.gmra.mxu0 %v7790
  %v8042 = vpop.f32.mrf.mxu0
  %v8043 = vadd.f32 %v7685, %v8042
  %v8044 = vpop.f32.mrf.mxu0
  %v8045 = vpop.f32.mrf.mxu0
  %v8046 = vadd.f32 %v7685, %v8045
  %v8047 = vpop.f32.mrf.mxu0
  %8048 = vmatprep.mubr.bf16.mxu0 0
  %8049 = vmatmul.mubr.bf16.gmra.mxu0 %v7793
  %v8050 = vpop.f32.mrf.mxu0
  %v8051 = vadd.f32 %v7685, %v8050
  %v8052 = vpop.f32.mrf.mxu0
  %v8053 = vpop.f32.mrf.mxu0
  %v8054 = vadd.f32 %v7685, %v8053
  %v8055 = vpop.f32.mrf.mxu0
  %8056 = vmatprep.mubr.bf16.mxu0 0
  %8057 = vmatmul.mubr.bf16.gmra.mxu0 %v7796
  %v8058 = vpop.f32.mrf.mxu0
  %v8059 = vadd.f32 %v7685, %v8058
  %v8060 = vpop.f32.mrf.mxu0
  %v8061 = vpop.f32.mrf.mxu0
  %v8062 = vadd.f32 %v7685, %v8061
  %v8063 = vpop.f32.mrf.mxu0
  %8064 = vmatprep.mubr.bf16.mxu0 0
  %8065 = vmatmul.mubr.bf16.gmra.mxu0 %v7799
  %v8066 = vpop.f32.mrf.mxu0
  %v8067 = vadd.f32 %v7685, %v8066
  %v8068 = vpop.f32.mrf.mxu0
  %v8069 = vpop.f32.mrf.mxu0
  %v8070 = vadd.f32 %v7685, %v8069
  %v8071 = vpop.f32.mrf.mxu0
  %8072 = vmatprep.mubr.bf16.mxu0 0
  %8073 = vmatmul.mubr.bf16.gmra.mxu0 %v7802
  %v8074 = vpop.f32.mrf.mxu0
  %v8075 = vadd.f32 %v7685, %v8074
  %v8076 = vpop.f32.mrf.mxu0
  %v8077 = vpop.f32.mrf.mxu0
  %v8078 = vadd.f32 %v7685, %v8077
  %v8079 = vpop.f32.mrf.mxu0
  %8080 = vmatprep.mubr.bf16.mxu0 0
  %8081 = vmatmul.mubr.bf16.gmra.mxu0 %v7805
  %v8082 = vpop.f32.mrf.mxu0
  %v8083 = vadd.f32 %v7685, %v8082
  %v8084 = vpop.f32.mrf.mxu0
  %v8085 = vpop.f32.mrf.mxu0
  %v8086 = vadd.f32 %v7685, %v8085
  %v8087 = vpop.f32.mrf.mxu0
  %8088 = vmatprep.mubr.bf16.mxu0 0
  %8089 = vmatmul.mubr.bf16.gmra.mxu0 %v7808
  %v8090 = vpop.f32.mrf.mxu0
  %v8091 = vpop.f32.mrf.mxu0
  %v8092 = vpop.f32.mrf.mxu0
  %v8093 = vpop.f32.mrf.mxu0
  %8094 = vdwg.mxu0
  %vm8095 = vcmp.gt.f32.partialorder %v7855, 0.0
  %vm8096 = vcmp.gt.f32.partialorder %v7858, 0.0
  %vm8097 = vcmp.gt.f32.partialorder %v7863, 0.0
  %vm8098 = vcmp.gt.f32.partialorder %v7866, 0.0
  %vm8099 = vcmp.gt.f32.partialorder %v7871, 0.0
  %vm8100 = vcmp.gt.f32.partialorder %v7874, 0.0
  %vm8101 = vcmp.gt.f32.partialorder %v7879, 0.0
  %vm8102 = vcmp.gt.f32.partialorder %v7882, 0.0
  %vm8103 = vcmp.gt.f32.partialorder %v7887, 0.0
  %vm8104 = vcmp.gt.f32.partialorder %v7890, 0.0
  %vm8105 = vcmp.gt.f32.partialorder %v7895, 0.0
  %vm8106 = vcmp.gt.f32.partialorder %v7898, 0.0
  %vm8107 = vcmp.gt.f32.partialorder %v7903, 0.0
  %vm8108 = vcmp.gt.f32.partialorder %v7906, 0.0
  %vm8109 = vcmp.gt.f32.partialorder %v7911, 0.0
  %vm8110 = vcmp.gt.f32.partialorder %v7914, 0.0
  %vm8111 = vcmp.gt.f32.partialorder %v7919, 0.0
  %vm8112 = vcmp.gt.f32.partialorder %v7922, 0.0
  %vm8113 = vcmp.gt.f32.partialorder %v7927, 0.0
  %vm8114 = vcmp.gt.f32.partialorder %v7930, 0.0
  %vm8115 = vcmp.gt.f32.partialorder %v7935, 0.0
  %vm8116 = vcmp.gt.f32.partialorder %v7938, 0.0
  %vm8117 = vcmp.gt.f32.partialorder %v7943, 0.0
  %vm8118 = vcmp.gt.f32.partialorder %v7946, 0.0
  %vm8119 = vcmp.gt.f32.partialorder %v7951, 0.0
  %vm8120 = vcmp.gt.f32.partialorder %v7954, 0.0
  %vm8121 = vcmp.gt.f32.partialorder %v7959, 0.0
  %vm8122 = vcmp.gt.f32.partialorder %v7962, 0.0
  %vm8123 = vcmp.gt.f32.partialorder %v7979, 0.0
  %vm8124 = vcmp.gt.f32.partialorder %v7982, 0.0
  %vm8125 = vcmp.gt.f32.partialorder %v7987, 0.0
  %vm8126 = vcmp.gt.f32.partialorder %v7990, 0.0
  %vm8127 = vcmp.gt.f32.partialorder %v7995, 0.0
  %vm8128 = vcmp.gt.f32.partialorder %v7998, 0.0
  %vm8129 = vcmp.gt.f32.partialorder %v8003, 0.0
  %vm8130 = vcmp.gt.f32.partialorder %v8006, 0.0
  %vm8131 = vcmp.gt.f32.partialorder %v8011, 0.0
  %vm8132 = vcmp.gt.f32.partialorder %v8014, 0.0
  %vm8133 = vcmp.gt.f32.partialorder %v8019, 0.0
  %vm8134 = vcmp.gt.f32.partialorder %v8022, 0.0
  %vm8135 = vcmp.gt.f32.partialorder %v8027, 0.0
  %vm8136 = vcmp.gt.f32.partialorder %v8030, 0.0
  %vm8137 = vcmp.gt.f32.partialorder %v8035, 0.0
  %vm8138 = vcmp.gt.f32.partialorder %v8038, 0.0
  %vm8139 = vcmp.gt.f32.partialorder %v8043, 0.0
  %vm8140 = vcmp.gt.f32.partialorder %v8046, 0.0
  %vm8141 = vcmp.gt.f32.partialorder %v8051, 0.0
  %vm8142 = vcmp.gt.f32.partialorder %v8054, 0.0
  %vm8143 = vcmp.gt.f32.partialorder %v8059, 0.0
  %vm8144 = vcmp.gt.f32.partialorder %v8062, 0.0
  %vm8145 = vcmp.gt.f32.partialorder %v8067, 0.0
  %vm8146 = vcmp.gt.f32.partialorder %v8070, 0.0
  %vm8147 = vcmp.gt.f32.partialorder %v8075, 0.0
  %vm8148 = vcmp.gt.f32.partialorder %v8078, 0.0
  %vm8149 = vcmp.gt.f32.partialorder %v8083, 0.0
  %vm8150 = vcmp.gt.f32.partialorder %v8086, 0.0
  %v8151 = vmul.f32 %v7855, 0.2
  %v8152 = vmul.f32 %v7858, 0.2
  %v8153 = vmul.f32 %v7863, 0.2
  %v8154 = vmul.f32 %v7866, 0.2
  %v8155 = vmul.f32 %v7871, 0.2
  %v8156 = vmul.f32 %v7874, 0.2
  %v8157 = vmul.f32 %v7879, 0.2
  %v8158 = vmul.f32 %v7882, 0.2
  %v8159 = vmul.f32 %v7887, 0.2
  %v8160 = vmul.f32 %v7890, 0.2
  %v8161 = vmul.f32 %v7895, 0.2
  %v8162 = vmul.f32 %v7898, 0.2
  %v8163 = vmul.f32 %v7903, 0.2
  %v8164 = vmul.f32 %v7906, 0.2
  %v8165 = vmul.f32 %v7911, 0.2
  %v8166 = vmul.f32 %v7914, 0.2
  %v8167 = vmul.f32 %v7919, 0.2
  %v8168 = vmul.f32 %v7922, 0.2
  %v8169 = vmul.f32 %v7927, 0.2
  %v8170 = vmul.f32 %v7930, 0.2
  %v8171 = vmul.f32 %v7935, 0.2
  %v8172 = vmul.f32 %v7938, 0.2
  %v8173 = vmul.f32 %v7943, 0.2
  %v8174 = vmul.f32 %v7946, 0.2
  %v8175 = vmul.f32 %v7951, 0.2
  %v8176 = vmul.f32 %v7954, 0.2
  %v8177 = vmul.f32 %v7959, 0.2
  %v8178 = vmul.f32 %v7962, 0.2
  %v8179 = vmul.f32 %v7979, 0.2
  %v8180 = vmul.f32 %v7982, 0.2
  %v8181 = vmul.f32 %v7987, 0.2
  %v8182 = vmul.f32 %v7990, 0.2
  %v8183 = vmul.f32 %v7995, 0.2
  %v8184 = vmul.f32 %v7998, 0.2
  %v8185 = vmul.f32 %v8003, 0.2
  %v8186 = vmul.f32 %v8006, 0.2
  %v8187 = vmul.f32 %v8011, 0.2
  %v8188 = vmul.f32 %v8014, 0.2
  %v8189 = vmul.f32 %v8019, 0.2
  %v8190 = vmul.f32 %v8022, 0.2
  %v8191 = vmul.f32 %v8027, 0.2
  %v8192 = vmul.f32 %v8030, 0.2
  %v8193 = vmul.f32 %v8035, 0.2
  %v8194 = vmul.f32 %v8038, 0.2
  %v8195 = vmul.f32 %v8043, 0.2
  %v8196 = vmul.f32 %v8046, 0.2
  %v8197 = vmul.f32 %v8051, 0.2
  %v8198 = vmul.f32 %v8054, 0.2
  %v8199 = vmul.f32 %v8059, 0.2
  %v8200 = vmul.f32 %v8062, 0.2
  %v8201 = vmul.f32 %v8067, 0.2
  %v8202 = vmul.f32 %v8070, 0.2
  %v8203 = vmul.f32 %v8075, 0.2
  %v8204 = vmul.f32 %v8078, 0.2
  %v8205 = vmul.f32 %v8083, 0.2
  %v8206 = vmul.f32 %v8086, 0.2
  %v8207 = vsel %vm8095, %v7855, %v8151
  %v8208 = vsel %vm8096, %v7858, %v8152
  %v8209 = vsel %vm8097, %v7863, %v8153
  %v8210 = vsel %vm8098, %v7866, %v8154
  %v8211 = vsel %vm8099, %v7871, %v8155
  %v8212 = vsel %vm8100, %v7874, %v8156
  %v8213 = vsel %vm8101, %v7879, %v8157
  %v8214 = vsel %vm8102, %v7882, %v8158
  %v8215 = vsel %vm8103, %v7887, %v8159
  %v8216 = vsel %vm8104, %v7890, %v8160
  %v8217 = vsel %vm8105, %v7895, %v8161
  %v8218 = vsel %vm8106, %v7898, %v8162
  %v8219 = vsel %vm8107, %v7903, %v8163
  %v8220 = vsel %vm8108, %v7906, %v8164
  %v8221 = vsel %vm8109, %v7911, %v8165
  %v8222 = vsel %vm8110, %v7914, %v8166
  %v8223 = vsel %vm8111, %v7919, %v8167
  %v8224 = vsel %vm8112, %v7922, %v8168
  %v8225 = vsel %vm8113, %v7927, %v8169
  %v8226 = vsel %vm8114, %v7930, %v8170
  %v8227 = vsel %vm8115, %v7935, %v8171
  %v8228 = vsel %vm8116, %v7938, %v8172
  %v8229 = vsel %vm8117, %v7943, %v8173
  %v8230 = vsel %vm8118, %v7946, %v8174
  %v8231 = vsel %vm8119, %v7951, %v8175
  %v8232 = vsel %vm8120, %v7954, %v8176
  %v8233 = vsel %vm8121, %v7959, %v8177
  %v8234 = vsel %vm8122, %v7962, %v8178
  %v8235 = vsel %vm8123, %v7979, %v8179
  %v8236 = vsel %vm8124, %v7982, %v8180
  %v8237 = vsel %vm8125, %v7987, %v8181
  %v8238 = vsel %vm8126, %v7990, %v8182
  %v8239 = vsel %vm8127, %v7995, %v8183
  %v8240 = vsel %vm8128, %v7998, %v8184
  %v8241 = vsel %vm8129, %v8003, %v8185
  %v8242 = vsel %vm8130, %v8006, %v8186
  %v8243 = vsel %vm8131, %v8011, %v8187
  %v8244 = vsel %vm8132, %v8014, %v8188
  %v8245 = vsel %vm8133, %v8019, %v8189
  %v8246 = vsel %vm8134, %v8022, %v8190
  %v8247 = vsel %vm8135, %v8027, %v8191
  %v8248 = vsel %vm8136, %v8030, %v8192
  %v8249 = vsel %vm8137, %v8035, %v8193
  %v8250 = vsel %vm8138, %v8038, %v8194
  %v8251 = vsel %vm8139, %v8043, %v8195
  %v8252 = vsel %vm8140, %v8046, %v8196
  %v8253 = vsel %vm8141, %v8051, %v8197
  %v8254 = vsel %vm8142, %v8054, %v8198
  %v8255 = vsel %vm8143, %v8059, %v8199
  %v8256 = vsel %vm8144, %v8062, %v8200
  %v8257 = vsel %vm8145, %v8067, %v8201
  %v8258 = vsel %vm8146, %v8070, %v8202
  %v8259 = vsel %vm8147, %v8075, %v8203
  %v8260 = vsel %vm8148, %v8078, %v8204
  %v8261 = vsel %vm8149, %v8083, %v8205
  %v8262 = vsel %vm8150, %v8086, %v8206
  %8263 = vst [vmem:[%s6 - $0x1] sm:$0xfe] %v8207
  %8264 = vst [vmem:[%s6 + $0x7] sm:$0x7f] %v8208
  %8265 = vst [vmem:[%s6 + $0xf] sm:$0xfe] %v8209
  %8266 = vst [vmem:[%s6 + $0x17] sm:$0x7f] %v8210
  %8267 = vst [vmem:[%s6 + $0x1f] sm:$0xfe] %v8211
  %8268 = vst [vmem:[%s6 + $0x27] sm:$0x7f] %v8212
  %8269 = vst [vmem:[%s6 + $0x2f] sm:$0xfe] %v8213
  %8270 = vst [vmem:[%s6 + $0x37] sm:$0x7f] %v8214
  %8271 = vst [vmem:[%s6 + $0x3f] sm:$0xfe] %v8215
  %8272 = vst [vmem:[%s6 + $0x47] sm:$0x7f] %v8216
  %8273 = vst [vmem:[%s6 + $0x4f] sm:$0xfe] %v8217
  %8274 = vst [vmem:[%s6 + $0x57] sm:$0x7f] %v8218
  %8275 = vst [vmem:[%s6 + $0x5f] sm:$0xfe] %v8219
  %8276 = vst [vmem:[%s6 + $0x67] sm:$0x7f] %v8220
  %8277 = vst [vmem:[%s6 + $0x6f] sm:$0xfe] %v8221
  %8278 = vst [vmem:[%s6 + $0x77] sm:$0x7f] %v8222
  %8279 = vst [vmem:[%s6 + $0x7f] sm:$0xfe] %v8223
  %8280 = vst [vmem:[%s6 + $0x87] sm:$0x7f] %v8224
  %8281 = vst [vmem:[%s6 + $0x8f] sm:$0xfe] %v8225
  %8282 = vst [vmem:[%s6 + $0x97] sm:$0x7f] %v8226
  %8283 = vst [vmem:[%s6 + $0x9f] sm:$0xfe] %v8227
  %8284 = vst [vmem:[%s6 + $0xa7] sm:$0x7f] %v8228
  %8285 = vst [vmem:[%s6 + $0xaf] sm:$0xfe] %v8229
  %8286 = vst [vmem:[%s6 + $0xb7] sm:$0x7f] %v8230
  %8287 = vst [vmem:[%s6 + $0xbf] sm:$0xfe] %v8231
  %8288 = vst [vmem:[%s6 + $0xc7] sm:$0x7f] %v8232
  %8289 = vst [vmem:[%s6 + $0xcf] sm:$0xfe] %v8233
  %8290 = vst [vmem:[%s6 + $0xd7] sm:$0x7f] %v8234
  %8291 = vst [vmem:[%s6 + $0xdf] sm:$0xfe] %v8235
  %8292 = vst [vmem:[%s6 + $0xe7] sm:$0x7f] %v8236
  %8293 = vst [vmem:[%s6 + $0xef] sm:$0xfe] %v8237
  %8294 = vst [vmem:[%s6 + $0xf7] sm:$0x7f] %v8238
  %8295 = vst [vmem:[%s6 + $0xff] sm:$0xfe] %v8239
  %8296 = vst [vmem:[%s6 + $0x107] sm:$0x7f] %v8240
  %8297 = vst [vmem:[%s6 + $0x10f] sm:$0xfe] %v8241
  %8298 = vst [vmem:[%s6 + $0x117] sm:$0x7f] %v8242
  %8299 = vst [vmem:[%s6 + $0x11f] sm:$0xfe] %v8243
  %8300 = vst [vmem:[%s6 + $0x127] sm:$0x7f] %v8244
  %8301 = vst [vmem:[%s6 + $0x12f] sm:$0xfe] %v8245
  %8302 = vst [vmem:[%s6 + $0x137] sm:$0x7f] %v8246
  %8303 = vst [vmem:[%s6 + $0x13f] sm:$0xfe] %v8247
  %8304 = vst [vmem:[%s6 + $0x147] sm:$0x7f] %v8248
  %8305 = vst [vmem:[%s6 + $0x14f] sm:$0xfe] %v8249
  %8306 = vst [vmem:[%s6 + $0x157] sm:$0x7f] %v8250
  %8307 = vst [vmem:[%s6 + $0x15f] sm:$0xfe] %v8251
  %8308 = vst [vmem:[%s6 + $0x167] sm:$0x7f] %v8252
  %8309 = vst [vmem:[%s6 + $0x16f] sm:$0xfe] %v8253
  %8310 = vst [vmem:[%s6 + $0x177] sm:$0x7f] %v8254
  %8311 = vst [vmem:[%s6 + $0x17f] sm:$0xfe] %v8255
  %8312 = vst [vmem:[%s6 + $0x187] sm:$0x7f] %v8256
  %8313 = vst [vmem:[%s6 + $0x18f] sm:$0xfe] %v8257
  %8314 = vst [vmem:[%s6 + $0x197] sm:$0x7f] %v8258
  %8315 = vst [vmem:[%s6 + $0x19f] sm:$0xfe] %v8259
  %8316 = vst [vmem:[%s6 + $0x1a7] sm:$0x7f] %v8260
  %8317 = vst [vmem:[%s6 + $0x1af] sm:$0xfe] %v8261
  %8318 = vst [vmem:[%s6 + $0x1b7] sm:$0x7f] %v8262
  // Predicated region
  $region26: #{double_conv2d_block.1} parent=0 // pred_check
    _
  $region27: #{double_conv2d_block.1} parent=0 // pred_check_branch
    %8320 = sbr.rel (0) target = $region29
  $region28: #{double_conv2d_block.1} parent=0 // pred_region
    _
  $region29: #{double_conv2d_block.1} parent=0 // pred_fallthru
    _
  // Predicated region
  $region30: #{double_conv2d_block.1} parent=0 // pred_check
    _
  $region31: #{double_conv2d_block.1} parent=0 // pred_check_branch
    %8322 = sbr.rel (0) target = $region33
  $region32: #{double_conv2d_block.1} parent=0 // pred_region
    _
  $region33: #{double_conv2d_block.1} parent=0 // pred_fallthru
    _

</llo_original>
